<compile_context>
chip_gen: v5e
topology: v5e:2x2
jax: 0.10.0
libtpu: 0.0.40
codegen_flags: <defaults>
</compile_context>

<pallas_src>
import jax
import jax.numpy as jnp
from jax.experimental import pallas as pl
from jax.experimental.pallas import tpu as pltpu

INPUT_SIZE = 28 * 28   # 784
HIDDEN = 200
OUTPUT = 10
NUM_HIDDEN = 4
LN_EPS = 1e-5


def ff_kernel(x_ref,
              w1_ref, b1_ref, w2_ref, b2_ref, w3_ref, b3_ref, w4_ref, b4_ref,
              ws2_ref, ws3_ref, ws4_ref, bs_ref,
              out_ref):
    # MXU operand dtype (bf16 by default, chosen in the wrapper); all
    # accumulation / LN / softmax math stays in f32.
    cdt = w1_ref.dtype

    def linear_relu_norm(h, w_ref, b_ref):
        z = jnp.dot(h.astype(cdt), w_ref[...],
                    preferred_element_type=jnp.float32) + b_ref[...]
        a = jnp.maximum(z, 0.0)
        # One-pass LayerNorm statistics: var = E[a^2] - mean^2 (biased, like torch).
        mean = jnp.mean(a, axis=-1, keepdims=True)
        var = jnp.mean(a * a, axis=-1, keepdims=True) - mean * mean
        var = jnp.maximum(var, 0.0)
        return (a - mean) * jax.lax.rsqrt(var + LN_EPS)

    # Hidden stack (4 x Linear+ReLU+LayerNorm). Layer 0 output is NOT collected.
    h1 = linear_relu_norm(x_ref[...], w1_ref, b1_ref)
    h2 = linear_relu_norm(h1, w2_ref, b2_ref)
    h3 = linear_relu_norm(h2, w3_ref, b3_ref)
    h4 = linear_relu_norm(h3, w4_ref, b4_ref)

    # torch.cat([h2,h3,h4], dim=1) @ Ws  ==  h2@Ws[:200] + h3@Ws[200:400] + h4@Ws[400:]
    logits = (jnp.dot(h2.astype(cdt), ws2_ref[...], preferred_element_type=jnp.float32)
              + jnp.dot(h3.astype(cdt), ws3_ref[...], preferred_element_type=jnp.float32)
              + jnp.dot(h4.astype(cdt), ws4_ref[...], preferred_element_type=jnp.float32)
              + bs_ref[...])

    # Softmax(dim=1), numerically stabilized.
    m = jnp.max(logits, axis=-1, keepdims=True)
    e = jnp.exp(logits - m)
    out_ref[...] = e / jnp.sum(e, axis=-1, keepdims=True)


def init_params(key):
    """Deterministic synthetic parameters with the same shapes as the torch module."""
    ks = jax.random.split(key, 2 * NUM_HIDDEN + 2)
    params = {}
    in_dim = INPUT_SIZE
    for i in range(NUM_HIDDEN):
        bound = 1.0 / jnp.sqrt(in_dim)
        params[f"w{i+1}"] = jax.random.uniform(
            ks[2 * i], (in_dim, HIDDEN), jnp.float32, -bound, bound)
        params[f"b{i+1}"] = jax.random.uniform(
            ks[2 * i + 1], (1, HIDDEN), jnp.float32, -bound, bound)
        in_dim = HIDDEN
    bound = 1.0 / jnp.sqrt(3 * HIDDEN)
    params["ws"] = jax.random.uniform(
        ks[-2], (3 * HIDDEN, OUTPUT), jnp.float32, -bound, bound)
    params["bs"] = jax.random.uniform(
        ks[-1], (1, OUTPUT), jnp.float32, -bound, bound)
    return params


def ff_forward(x_img, params, *, tb=256, dot_dtype=jnp.bfloat16):
    """Pallas forward pass. x_img: (B, 1, 28, 28) float32 -> probs (B, 10) float32.

    tb: batch tile (sweep 256-512 on v6e/v7x, 128-256 on v5e).
    dot_dtype: dtype of the MXU operands (bf16 default; use jnp.float32 for exact-f32).
    """
    B = x_img.shape[0]
    x = x_img.reshape(B, INPUT_SIZE).astype(dot_dtype)   # nn.Flatten on NCHW + MXU dtype

    # Pad batch up to a multiple of the tile so big tiles work for any B.
    tb = int(tb)
    if B < tb:
        tb = max(8, -(-B // 8) * 8)
    Bp = -(-B // tb) * tb
    if Bp != B:
        x = jnp.pad(x, ((0, Bp - B), (0, 0)))

    # Split the softmax weight so concat never materializes; store matmul operands bf16.
    ws2 = params["ws"][0 * HIDDEN:1 * HIDDEN, :].astype(dot_dtype)
    ws3 = params["ws"][1 * HIDDEN:2 * HIDDEN, :].astype(dot_dtype)
    ws4 = params["ws"][2 * HIDDEN:3 * HIDDEN, :].astype(dot_dtype)

    weights = (params["w1"].astype(dot_dtype), params["b1"],
               params["w2"].astype(dot_dtype), params["b2"],
               params["w3"].astype(dot_dtype), params["b3"],
               params["w4"].astype(dot_dtype), params["b4"],
               ws2, ws3, ws4, params["bs"])

    def full_spec(arr):
        # Whole-array block with a constant block index: Pallas fetches it once and
        # keeps it resident in VMEM across all batch-grid steps (no re-DMA).
        return pl.BlockSpec(arr.shape, lambda i: (0, 0))

    grid = (Bp // tb,)
    in_specs = [pl.BlockSpec((tb, INPUT_SIZE), lambda i: (i, 0))]
    in_specs += [full_spec(w) for w in weights]
    out_specs = pl.BlockSpec((tb, OUTPUT), lambda i: (i, 0))

    out = pl.pallas_call(
        ff_kernel,
        out_shape=jax.ShapeDtypeStruct((Bp, OUTPUT), jnp.float32),
        grid=grid,
        in_specs=in_specs,
        out_specs=out_specs,
        compiler_params=pltpu.CompilerParams(
            dimension_semantics=("parallel",)),   # shards batch tiles across v7x's 2 TCs
    )(x, *weights)

    return out[:B] if Bp != B else out


def ff_forward_ref(x_img, params, *, dot_dtype=jnp.float32):
    """Pure-JAX reference (mirrors the torch forward). dot_dtype lets us emulate the
    kernel's bf16 matmul operands for a matched-precision comparison."""
    B = x_img.shape[0]
    h = x_img.reshape(B, INPUT_SIZE)
    collected = []
    for i in range(NUM_HIDDEN):
        w = params[f"w{i+1}"].astype(dot_dtype)
        z = jnp.dot(h.astype(dot_dtype), w,
                    preferred_element_type=jnp.float32) + params[f"b{i+1}"]
        a = jnp.maximum(z, 0.0)
        mean = jnp.mean(a, axis=-1, keepdims=True)
        var = jnp.mean((a - mean) ** 2, axis=-1, keepdims=True)
        h = (a - mean) * jax.lax.rsqrt(var + LN_EPS)
        if i != 0:
            collected.append(h)
    cat = jnp.concatenate(collected, axis=1)
    logits = jnp.dot(cat.astype(dot_dtype), params["ws"].astype(dot_dtype),
                     preferred_element_type=jnp.float32) + params["bs"]
    return jax.nn.softmax(logits, axis=1)


if __name__ == "__main__":
    key = jax.random.PRNGKey(0)
    kx, kp = jax.random.split(key)

    # Batch 512 with tb=256 -> 2 grid steps (feeds both v7x TensorCores) while
    # still being a tiny problem (~1.6 MB of input).
    B = 512
    x_img = jax.random.normal(kx, (B, 1, 28, 28), jnp.float32)  # NCHW, like MNIST
    params = init_params(kp)

    probs = ff_forward(x_img, params, tb=256)
    probs = jax.block_until_ready(probs)

    # Matched-precision reference (same bf16 operand casts, f32 accumulation).
    ref_matched = ff_forward_ref(x_img, params, dot_dtype=jnp.bfloat16)
    # Full-f32 reference (sanity check; bf16 MXU operands introduce ~1e-3 level drift).
    ref_f32 = ff_forward_ref(x_img, params, dot_dtype=jnp.float32)

    assert probs.shape == (B, OUTPUT)
    assert jnp.allclose(jnp.sum(probs, axis=1), 1.0, atol=1e-5)
    assert jnp.allclose(probs, ref_matched, atol=2e-3, rtol=2e-3)
    assert jnp.allclose(probs, ref_f32, atol=5e-2)

    print("KERNEL_OK")
</pallas_src>

<mosaic_0001>
module attributes {stable_mosaic.version = 11 : i64} {
  func.func @ff_kernel(%arg0: i32, %arg1: memref<256x784xbf16, #tpu.memory_space<vmem>>, %arg2: memref<784x200xbf16, #tpu.memory_space<vmem>>, %arg3: memref<1x200xf32, #tpu.memory_space<vmem>>, %arg4: memref<200x200xbf16, #tpu.memory_space<vmem>>, %arg5: memref<1x200xf32, #tpu.memory_space<vmem>>, %arg6: memref<200x200xbf16, #tpu.memory_space<vmem>>, %arg7: memref<1x200xf32, #tpu.memory_space<vmem>>, %arg8: memref<200x200xbf16, #tpu.memory_space<vmem>>, %arg9: memref<1x200xf32, #tpu.memory_space<vmem>>, %arg10: memref<200x10xbf16, #tpu.memory_space<vmem>>, %arg11: memref<200x10xbf16, #tpu.memory_space<vmem>>, %arg12: memref<200x10xbf16, #tpu.memory_space<vmem>>, %arg13: memref<1x10xf32, #tpu.memory_space<vmem>>, %arg14: memref<256x10xf32, #tpu.memory_space<vmem>>) attributes {dimension_semantics = [#tpu.dimension_semantics<parallel>], iteration_bounds = array<i64: 2>, scalar_prefetch = 0 : i64, scratch_operands = 0 : i64, tpu.core_type = #tpu.core_type<tc>, window_params = [{transform_indices = @transform_0, window_bounds = array<i64: 256, 784>}, {pipeline_mode = #tpu.pipeline_mode<synchronous>, transform_indices = @transform_1, window_bounds = array<i64: 784, 200>}, {pipeline_mode = #tpu.pipeline_mode<synchronous>, transform_indices = @transform_2, window_bounds = array<i64: 1, 200>}, {pipeline_mode = #tpu.pipeline_mode<synchronous>, transform_indices = @transform_3, window_bounds = array<i64: 200, 200>}, {pipeline_mode = #tpu.pipeline_mode<synchronous>, transform_indices = @transform_4, window_bounds = array<i64: 1, 200>}, {pipeline_mode = #tpu.pipeline_mode<synchronous>, transform_indices = @transform_5, window_bounds = array<i64: 200, 200>}, {pipeline_mode = #tpu.pipeline_mode<synchronous>, transform_indices = @transform_6, window_bounds = array<i64: 1, 200>}, {pipeline_mode = #tpu.pipeline_mode<synchronous>, transform_indices = @transform_7, window_bounds = array<i64: 200, 200>}, {pipeline_mode = #tpu.pipeline_mode<synchronous>, transform_indices = @transform_8, window_bounds = array<i64: 1, 200>}, {pipeline_mode = #tpu.pipeline_mode<synchronous>, transform_indices = @transform_9, window_bounds = array<i64: 200, 10>}, {pipeline_mode = #tpu.pipeline_mode<synchronous>, transform_indices = @transform_10, window_bounds = array<i64: 200, 10>}, {pipeline_mode = #tpu.pipeline_mode<synchronous>, transform_indices = @transform_11, window_bounds = array<i64: 200, 10>}, {pipeline_mode = #tpu.pipeline_mode<synchronous>, transform_indices = @transform_12, window_bounds = array<i64: 1, 10>}, {transform_indices = @transform_13, window_bounds = array<i64: 256, 10>}]} {
    %c0 = arith.constant 0 : index
    %c0_0 = arith.constant 0 : index
    %0 = vector.load %arg1[%c0, %c0_0] : memref<256x784xbf16, #tpu.memory_space<vmem>>, vector<256x784xbf16>
    %c0_1 = arith.constant 0 : index
    %c0_2 = arith.constant 0 : index
    %1 = vector.load %arg2[%c0_1, %c0_2] : memref<784x200xbf16, #tpu.memory_space<vmem>>, vector<784x200xbf16>
    %cst = arith.constant dense<0.000000e+00> : vector<256x200xf32>
    %2 = tpu.matmul %0, %1, %cst {dimension_numbers = #tpu.dot_dimension_numbers<[1], [0], [0], [1], [0, 0, 1, 1], [], []>} : vector<256x784xbf16>, vector<784x200xbf16>, vector<256x200xf32> -> vector<256x200xf32>
    %c0_3 = arith.constant 0 : index
    %c0_4 = arith.constant 0 : index
    %3 = vector.load %arg3[%c0_3, %c0_4] : memref<1x200xf32, #tpu.memory_space<vmem>>, vector<1x200xf32>
    %4 = vector.broadcast %3 : vector<1x200xf32> to vector<256x200xf32>
    %5 = arith.addf %2, %4 : vector<256x200xf32>
    %cst_5 = arith.constant 0.000000e+00 : f32
    %6 = vector.broadcast %cst_5 : f32 to vector<256x200xf32>
    %7 = arith.maximumf %5, %6 : vector<256x200xf32>
    %cst_6 = arith.constant dense<0.000000e+00> : vector<256xf32>
    %8 = vector.multi_reduction <add>, %7, %cst_6 [1] : vector<256x200xf32> to vector<256xf32>
    %9 = vector.shape_cast %8 : vector<256xf32> to vector<256x1xf32>
    %cst_7 = arith.constant 2.000000e+02 : f32
    %10 = vector.broadcast %cst_7 : f32 to vector<256x1xf32>
    %11 = arith.divf %9, %10 : vector<256x1xf32>
    %12 = arith.mulf %7, %7 : vector<256x200xf32>
    %cst_8 = arith.constant dense<0.000000e+00> : vector<256xf32>
    %13 = vector.multi_reduction <add>, %12, %cst_8 [1] : vector<256x200xf32> to vector<256xf32>
    %14 = vector.shape_cast %13 : vector<256xf32> to vector<256x1xf32>
    %cst_9 = arith.constant 2.000000e+02 : f32
    %15 = vector.broadcast %cst_9 : f32 to vector<256x1xf32>
    %16 = arith.divf %14, %15 : vector<256x1xf32>
    %17 = arith.mulf %11, %11 : vector<256x1xf32>
    %18 = arith.subf %16, %17 : vector<256x1xf32>
    %cst_10 = arith.constant 0.000000e+00 : f32
    %19 = vector.broadcast %cst_10 : f32 to vector<256x1xf32>
    %20 = arith.maximumf %18, %19 : vector<256x1xf32>
    %21 = vector.broadcast %11 : vector<256x1xf32> to vector<256x200xf32>
    %22 = arith.subf %7, %21 : vector<256x200xf32>
    %cst_11 = arith.constant 9.99999974E-6 : f32
    %23 = vector.broadcast %cst_11 : f32 to vector<256x1xf32>
    %24 = arith.addf %20, %23 : vector<256x1xf32>
    %25 = math.rsqrt %24 : vector<256x1xf32>
    %26 = vector.broadcast %25 : vector<256x1xf32> to vector<256x200xf32>
    %27 = arith.mulf %22, %26 : vector<256x200xf32>
    %28 = arith.truncf %27 : vector<256x200xf32> to vector<256x200xbf16>
    %c0_12 = arith.constant 0 : index
    %c0_13 = arith.constant 0 : index
    %29 = vector.load %arg4[%c0_12, %c0_13] : memref<200x200xbf16, #tpu.memory_space<vmem>>, vector<200x200xbf16>
    %cst_14 = arith.constant dense<0.000000e+00> : vector<256x200xf32>
    %30 = tpu.matmul %28, %29, %cst_14 {dimension_numbers = #tpu.dot_dimension_numbers<[1], [0], [0], [1], [0, 0, 1, 1], [], []>} : vector<256x200xbf16>, vector<200x200xbf16>, vector<256x200xf32> -> vector<256x200xf32>
    %c0_15 = arith.constant 0 : index
    %c0_16 = arith.constant 0 : index
    %31 = vector.load %arg5[%c0_15, %c0_16] : memref<1x200xf32, #tpu.memory_space<vmem>>, vector<1x200xf32>
    %32 = vector.broadcast %31 : vector<1x200xf32> to vector<256x200xf32>
    %33 = arith.addf %30, %32 : vector<256x200xf32>
    %cst_17 = arith.constant 0.000000e+00 : f32
    %34 = vector.broadcast %cst_17 : f32 to vector<256x200xf32>
    %35 = arith.maximumf %33, %34 : vector<256x200xf32>
    %cst_18 = arith.constant dense<0.000000e+00> : vector<256xf32>
    %36 = vector.multi_reduction <add>, %35, %cst_18 [1] : vector<256x200xf32> to vector<256xf32>
    %37 = vector.shape_cast %36 : vector<256xf32> to vector<256x1xf32>
    %cst_19 = arith.constant 2.000000e+02 : f32
    %38 = vector.broadcast %cst_19 : f32 to vector<256x1xf32>
    %39 = arith.divf %37, %38 : vector<256x1xf32>
    %40 = arith.mulf %35, %35 : vector<256x200xf32>
    %cst_20 = arith.constant dense<0.000000e+00> : vector<256xf32>
    %41 = vector.multi_reduction <add>, %40, %cst_20 [1] : vector<256x200xf32> to vector<256xf32>
    %42 = vector.shape_cast %41 : vector<256xf32> to vector<256x1xf32>
    %cst_21 = arith.constant 2.000000e+02 : f32
    %43 = vector.broadcast %cst_21 : f32 to vector<256x1xf32>
    %44 = arith.divf %42, %43 : vector<256x1xf32>
    %45 = arith.mulf %39, %39 : vector<256x1xf32>
    %46 = arith.subf %44, %45 : vector<256x1xf32>
    %cst_22 = arith.constant 0.000000e+00 : f32
    %47 = vector.broadcast %cst_22 : f32 to vector<256x1xf32>
    %48 = arith.maximumf %46, %47 : vector<256x1xf32>
    %49 = vector.broadcast %39 : vector<256x1xf32> to vector<256x200xf32>
    %50 = arith.subf %35, %49 : vector<256x200xf32>
    %cst_23 = arith.constant 9.99999974E-6 : f32
    %51 = vector.broadcast %cst_23 : f32 to vector<256x1xf32>
    %52 = arith.addf %48, %51 : vector<256x1xf32>
    %53 = math.rsqrt %52 : vector<256x1xf32>
    %54 = vector.broadcast %53 : vector<256x1xf32> to vector<256x200xf32>
    %55 = arith.mulf %50, %54 : vector<256x200xf32>
    %56 = arith.truncf %55 : vector<256x200xf32> to vector<256x200xbf16>
    %c0_24 = arith.constant 0 : index
    %c0_25 = arith.constant 0 : index
    %57 = vector.load %arg6[%c0_24, %c0_25] : memref<200x200xbf16, #tpu.memory_space<vmem>>, vector<200x200xbf16>
    %cst_26 = arith.constant dense<0.000000e+00> : vector<256x200xf32>
    %58 = tpu.matmul %56, %57, %cst_26 {dimension_numbers = #tpu.dot_dimension_numbers<[1], [0], [0], [1], [0, 0, 1, 1], [], []>} : vector<256x200xbf16>, vector<200x200xbf16>, vector<256x200xf32> -> vector<256x200xf32>
    %c0_27 = arith.constant 0 : index
    %c0_28 = arith.constant 0 : index
    %59 = vector.load %arg7[%c0_27, %c0_28] : memref<1x200xf32, #tpu.memory_space<vmem>>, vector<1x200xf32>
    %60 = vector.broadcast %59 : vector<1x200xf32> to vector<256x200xf32>
    %61 = arith.addf %58, %60 : vector<256x200xf32>
    %cst_29 = arith.constant 0.000000e+00 : f32
    %62 = vector.broadcast %cst_29 : f32 to vector<256x200xf32>
    %63 = arith.maximumf %61, %62 : vector<256x200xf32>
    %cst_30 = arith.constant dense<0.000000e+00> : vector<256xf32>
    %64 = vector.multi_reduction <add>, %63, %cst_30 [1] : vector<256x200xf32> to vector<256xf32>
    %65 = vector.shape_cast %64 : vector<256xf32> to vector<256x1xf32>
    %cst_31 = arith.constant 2.000000e+02 : f32
    %66 = vector.broadcast %cst_31 : f32 to vector<256x1xf32>
    %67 = arith.divf %65, %66 : vector<256x1xf32>
    %68 = arith.mulf %63, %63 : vector<256x200xf32>
    %cst_32 = arith.constant dense<0.000000e+00> : vector<256xf32>
    %69 = vector.multi_reduction <add>, %68, %cst_32 [1] : vector<256x200xf32> to vector<256xf32>
    %70 = vector.shape_cast %69 : vector<256xf32> to vector<256x1xf32>
    %cst_33 = arith.constant 2.000000e+02 : f32
    %71 = vector.broadcast %cst_33 : f32 to vector<256x1xf32>
    %72 = arith.divf %70, %71 : vector<256x1xf32>
    %73 = arith.mulf %67, %67 : vector<256x1xf32>
    %74 = arith.subf %72, %73 : vector<256x1xf32>
    %cst_34 = arith.constant 0.000000e+00 : f32
    %75 = vector.broadcast %cst_34 : f32 to vector<256x1xf32>
    %76 = arith.maximumf %74, %75 : vector<256x1xf32>
    %77 = vector.broadcast %67 : vector<256x1xf32> to vector<256x200xf32>
    %78 = arith.subf %63, %77 : vector<256x200xf32>
    %cst_35 = arith.constant 9.99999974E-6 : f32
    %79 = vector.broadcast %cst_35 : f32 to vector<256x1xf32>
    %80 = arith.addf %76, %79 : vector<256x1xf32>
    %81 = math.rsqrt %80 : vector<256x1xf32>
    %82 = vector.broadcast %81 : vector<256x1xf32> to vector<256x200xf32>
    %83 = arith.mulf %78, %82 : vector<256x200xf32>
    %84 = arith.truncf %83 : vector<256x200xf32> to vector<256x200xbf16>
    %c0_36 = arith.constant 0 : index
    %c0_37 = arith.constant 0 : index
    %85 = vector.load %arg8[%c0_36, %c0_37] : memref<200x200xbf16, #tpu.memory_space<vmem>>, vector<200x200xbf16>
    %cst_38 = arith.constant dense<0.000000e+00> : vector<256x200xf32>
    %86 = tpu.matmul %84, %85, %cst_38 {dimension_numbers = #tpu.dot_dimension_numbers<[1], [0], [0], [1], [0, 0, 1, 1], [], []>} : vector<256x200xbf16>, vector<200x200xbf16>, vector<256x200xf32> -> vector<256x200xf32>
    %c0_39 = arith.constant 0 : index
    %c0_40 = arith.constant 0 : index
    %87 = vector.load %arg9[%c0_39, %c0_40] : memref<1x200xf32, #tpu.memory_space<vmem>>, vector<1x200xf32>
    %88 = vector.broadcast %87 : vector<1x200xf32> to vector<256x200xf32>
    %89 = arith.addf %86, %88 : vector<256x200xf32>
    %cst_41 = arith.constant 0.000000e+00 : f32
    %90 = vector.broadcast %cst_41 : f32 to vector<256x200xf32>
    %91 = arith.maximumf %89, %90 : vector<256x200xf32>
    %cst_42 = arith.constant dense<0.000000e+00> : vector<256xf32>
    %92 = vector.multi_reduction <add>, %91, %cst_42 [1] : vector<256x200xf32> to vector<256xf32>
    %93 = vector.shape_cast %92 : vector<256xf32> to vector<256x1xf32>
    %cst_43 = arith.constant 2.000000e+02 : f32
    %94 = vector.broadcast %cst_43 : f32 to vector<256x1xf32>
    %95 = arith.divf %93, %94 : vector<256x1xf32>
    %96 = arith.mulf %91, %91 : vector<256x200xf32>
    %cst_44 = arith.constant dense<0.000000e+00> : vector<256xf32>
    %97 = vector.multi_reduction <add>, %96, %cst_44 [1] : vector<256x200xf32> to vector<256xf32>
    %98 = vector.shape_cast %97 : vector<256xf32> to vector<256x1xf32>
    %cst_45 = arith.constant 2.000000e+02 : f32
    %99 = vector.broadcast %cst_45 : f32 to vector<256x1xf32>
    %100 = arith.divf %98, %99 : vector<256x1xf32>
    %101 = arith.mulf %95, %95 : vector<256x1xf32>
    %102 = arith.subf %100, %101 : vector<256x1xf32>
    %cst_46 = arith.constant 0.000000e+00 : f32
    %103 = vector.broadcast %cst_46 : f32 to vector<256x1xf32>
    %104 = arith.maximumf %102, %103 : vector<256x1xf32>
    %105 = vector.broadcast %95 : vector<256x1xf32> to vector<256x200xf32>
    %106 = arith.subf %91, %105 : vector<256x200xf32>
    %cst_47 = arith.constant 9.99999974E-6 : f32
    %107 = vector.broadcast %cst_47 : f32 to vector<256x1xf32>
    %108 = arith.addf %104, %107 : vector<256x1xf32>
    %109 = math.rsqrt %108 : vector<256x1xf32>
    %110 = vector.broadcast %109 : vector<256x1xf32> to vector<256x200xf32>
    %111 = arith.mulf %106, %110 : vector<256x200xf32>
    %112 = arith.truncf %55 : vector<256x200xf32> to vector<256x200xbf16>
    %c0_48 = arith.constant 0 : index
    %c0_49 = arith.constant 0 : index
    %113 = vector.load %arg10[%c0_48, %c0_49] : memref<200x10xbf16, #tpu.memory_space<vmem>>, vector<200x10xbf16>
    %cst_50 = arith.constant dense<0.000000e+00> : vector<256x10xf32>
    %114 = tpu.matmul %112, %113, %cst_50 {dimension_numbers = #tpu.dot_dimension_numbers<[1], [0], [0], [1], [0, 0, 1, 1], [], []>} : vector<256x200xbf16>, vector<200x10xbf16>, vector<256x10xf32> -> vector<256x10xf32>
    %115 = arith.truncf %83 : vector<256x200xf32> to vector<256x200xbf16>
    %c0_51 = arith.constant 0 : index
    %c0_52 = arith.constant 0 : index
    %116 = vector.load %arg11[%c0_51, %c0_52] : memref<200x10xbf16, #tpu.memory_space<vmem>>, vector<200x10xbf16>
    %cst_53 = arith.constant dense<0.000000e+00> : vector<256x10xf32>
    %117 = tpu.matmul %115, %116, %cst_53 {dimension_numbers = #tpu.dot_dimension_numbers<[1], [0], [0], [1], [0, 0, 1, 1], [], []>} : vector<256x200xbf16>, vector<200x10xbf16>, vector<256x10xf32> -> vector<256x10xf32>
    %118 = arith.addf %114, %117 : vector<256x10xf32>
    %119 = arith.truncf %111 : vector<256x200xf32> to vector<256x200xbf16>
    %c0_54 = arith.constant 0 : index
    %c0_55 = arith.constant 0 : index
    %120 = vector.load %arg12[%c0_54, %c0_55] : memref<200x10xbf16, #tpu.memory_space<vmem>>, vector<200x10xbf16>
    %cst_56 = arith.constant dense<0.000000e+00> : vector<256x10xf32>
    %121 = tpu.matmul %119, %120, %cst_56 {dimension_numbers = #tpu.dot_dimension_numbers<[1], [0], [0], [1], [0, 0, 1, 1], [], []>} : vector<256x200xbf16>, vector<200x10xbf16>, vector<256x10xf32> -> vector<256x10xf32>
    %122 = arith.addf %118, %121 : vector<256x10xf32>
    %c0_57 = arith.constant 0 : index
    %c0_58 = arith.constant 0 : index
    %123 = vector.load %arg13[%c0_57, %c0_58] : memref<1x10xf32, #tpu.memory_space<vmem>>, vector<1x10xf32>
    %124 = vector.broadcast %123 : vector<1x10xf32> to vector<256x10xf32>
    %125 = arith.addf %122, %124 : vector<256x10xf32>
    %cst_59 = arith.constant dense<0xFF800000> : vector<256xf32>
    %126 = vector.multi_reduction <maximumf>, %125, %cst_59 [1] : vector<256x10xf32> to vector<256xf32>
    %127 = vector.shape_cast %126 : vector<256xf32> to vector<256x1xf32>
    %128 = vector.broadcast %127 : vector<256x1xf32> to vector<256x10xf32>
    %129 = arith.subf %125, %128 : vector<256x10xf32>
    %130 = math.exp %129 : vector<256x10xf32>
    %cst_60 = arith.constant dense<0.000000e+00> : vector<256xf32>
    %131 = vector.multi_reduction <add>, %130, %cst_60 [1] : vector<256x10xf32> to vector<256xf32>
    %132 = vector.shape_cast %131 : vector<256xf32> to vector<256x1xf32>
    %133 = vector.broadcast %132 : vector<256x1xf32> to vector<256x10xf32>
    %134 = arith.divf %130, %133 : vector<256x10xf32>
    %c0_61 = arith.constant 0 : index
    %c0_62 = arith.constant 0 : index
    %135 = vector.load %arg14[%c0_61, %c0_62] : memref<256x10xf32, #tpu.memory_space<vmem>>, vector<256x10xf32>
    tpu.vector_store %arg14[%c0_61, %c0_62], %134 {strides = array<i32>} : memref<256x10xf32, #tpu.memory_space<vmem>>, vector<256x10xf32>,
    return
  }
  func.func @transform_0(%arg0: i32) -> (i32, i32) {
    %c0_i32 = arith.constant 0 : i32
    %c0_i32_0 = arith.constant 0 : i32
    return %arg0, %c0_i32 : i32, i32
  }
  func.func @transform_1(%arg0: i32) -> (i32, i32) {
    %c0_i32 = arith.constant 0 : i32
    %c0_i32_0 = arith.constant 0 : i32
    %c0_i32_1 = arith.constant 0 : i32
    return %c0_i32, %c0_i32_0 : i32, i32
  }
  func.func @transform_2(%arg0: i32) -> (i32, i32) {
    %c0_i32 = arith.constant 0 : i32
    %c0_i32_0 = arith.constant 0 : i32
    %c0_i32_1 = arith.constant 0 : i32
    return %c0_i32, %c0_i32_0 : i32, i32
  }
  func.func @transform_3(%arg0: i32) -> (i32, i32) {
    %c0_i32 = arith.constant 0 : i32
    %c0_i32_0 = arith.constant 0 : i32
    %c0_i32_1 = arith.constant 0 : i32
    return %c0_i32, %c0_i32_0 : i32, i32
  }
  func.func @transform_4(%arg0: i32) -> (i32, i32) {
    %c0_i32 = arith.constant 0 : i32
    %c0_i32_0 = arith.constant 0 : i32
    %c0_i32_1 = arith.constant 0 : i32
    return %c0_i32, %c0_i32_0 : i32, i32
  }
  func.func @transform_5(%arg0: i32) -> (i32, i32) {
    %c0_i32 = arith.constant 0 : i32
    %c0_i32_0 = arith.constant 0 : i32
    %c0_i32_1 = arith.constant 0 : i32
    return %c0_i32, %c0_i32_0 : i32, i32
  }
  func.func @transform_6(%arg0: i32) -> (i32, i32) {
    %c0_i32 = arith.constant 0 : i32
    %c0_i32_0 = arith.constant 0 : i32
    %c0_i32_1 = arith.constant 0 : i32
    return %c0_i32, %c0_i32_0 : i32, i32
  }
  func.func @transform_7(%arg0: i32) -> (i32, i32) {
    %c0_i32 = arith.constant 0 : i32
    %c0_i32_0 = arith.constant 0 : i32
    %c0_i32_1 = arith.constant 0 : i32
    return %c0_i32, %c0_i32_0 : i32, i32
  }
  func.func @transform_8(%arg0: i32) -> (i32, i32) {
    %c0_i32 = arith.constant 0 : i32
    %c0_i32_0 = arith.constant 0 : i32
    %c0_i32_1 = arith.constant 0 : i32
    return %c0_i32, %c0_i32_0 : i32, i32
  }
  func.func @transform_9(%arg0: i32) -> (i32, i32) {
    %c0_i32 = arith.constant 0 : i32
    %c0_i32_0 = arith.constant 0 : i32
    %c0_i32_1 = arith.constant 0 : i32
    return %c0_i32, %c0_i32_0 : i32, i32
  }
  func.func @transform_10(%arg0: i32) -> (i32, i32) {
    %c0_i32 = arith.constant 0 : i32
    %c0_i32_0 = arith.constant 0 : i32
    %c0_i32_1 = arith.constant 0 : i32
    return %c0_i32, %c0_i32_0 : i32, i32
  }
  func.func @transform_11(%arg0: i32) -> (i32, i32) {
    %c0_i32 = arith.constant 0 : i32
    %c0_i32_0 = arith.constant 0 : i32
    %c0_i32_1 = arith.constant 0 : i32
    return %c0_i32, %c0_i32_0 : i32, i32
  }
  func.func @transform_12(%arg0: i32) -> (i32, i32) {
    %c0_i32 = arith.constant 0 : i32
    %c0_i32_0 = arith.constant 0 : i32
    %c0_i32_1 = arith.constant 0 : i32
    return %c0_i32, %c0_i32_0 : i32, i32
  }
  func.func @transform_13(%arg0: i32) -> (i32, i32) {
    %c0_i32 = arith.constant 0 : i32
    %c0_i32_0 = arith.constant 0 : i32
    return %arg0, %c0_i32 : i32, i32
  }
}

</mosaic_0001>

<llo_original>
// kernel: tpu_custom_call.1
$region0: #{tpu_custom_call.1}
  #allocation0 [shape = 'u32[]', space=smem, size = 0x4, offset = 0x4, fixed_abs, tag = 'smem constant byte address 0x4 - core index']
  #allocation1 [shape = 'u32[72,128]{1,0:T(1,128)}', space=vmem, size = 0x9000, scoped, tag = 'internal scratch']
  %s0 = inlined_call_operand.vmem [shape: bf16[512,784], index: 0, kind: input, shape index: {}]
  %s1 = inlined_call_operand.vmem [shape: bf16[784,200], index: 1, kind: input, shape index: {}]
  %s2 = inlined_call_operand.vmem [shape: f32[1,200], index: 2, kind: input, shape index: {}]
  %s3 = inlined_call_operand.vmem [shape: bf16[200,200], index: 3, kind: input, shape index: {}]
  %s4 = inlined_call_operand.vmem [shape: f32[1,200], index: 4, kind: input, shape index: {}]
  %s5 = inlined_call_operand.vmem [shape: bf16[200,200], index: 5, kind: input, shape index: {}]
  %s6 = inlined_call_operand.vmem [shape: f32[1,200], index: 6, kind: input, shape index: {}]
  %s7 = inlined_call_operand.vmem [shape: bf16[200,200], index: 7, kind: input, shape index: {}]
  %s8 = inlined_call_operand.vmem [shape: f32[1,200], index: 8, kind: input, shape index: {}]
  %s9 = inlined_call_operand.vmem [shape: bf16[200,10], index: 9, kind: input, shape index: {}]
  %s10 = inlined_call_operand.vmem [shape: bf16[200,10], index: 10, kind: input, shape index: {}]
  %s11 = inlined_call_operand.vmem [shape: bf16[200,10], index: 11, kind: input, shape index: {}]
  %s12 = inlined_call_operand.vmem [shape: f32[1,10], index: 12, kind: input, shape index: {}]
  %s13 = inlined_call_operand.vmem [shape: f32[512,10], index: 13, kind: output, shape index: {}]
  %s14 = sld [smem:[#allocation0]]
  $region85: #{tpu_custom_call.1} parent=0
    _
  %s16 = ssub.s32 1, %s14
  %s17 = scalar_select 0, %s16, %s14
  loop: start=0, step=1, limit=4
  $region2: #{tpu_custom_call.1} parent=0 // loop_pre_header
    _
  $region3: #{tpu_custom_call.1} parent=0 // loop_header
    %s19 = sphi 0, %s23
    %p20 = scmp.ge.s32.totalorder %s19, 4
    %s29 = sphi 0, %s31
    %s32 = sphi 0, %s29
    %s33 = sphi 0, %s32
    %s49 = sphi 0, %s33
    %s53 = sphi 0, %s53
    %s55 = sphi 0, %s53
    %s56 = sphi 0, %s55
    %s70 = sphi 0, %s56
    %s74 = sphi 0, %s74
    %s76 = sphi 0, %s74
    %s77 = sphi 0, %s76
    %s91 = sphi 0, %s77
    %s95 = sphi 0, %s95
    %s97 = sphi 0, %s95
    %s98 = sphi 0, %s97
    %s112 = sphi 0, %s98
    %s116 = sphi 0, %s116
    %s118 = sphi 0, %s116
    %s119 = sphi 0, %s118
    %s133 = sphi 0, %s119
    %s137 = sphi 0, %s137
    %s139 = sphi 0, %s137
    %s140 = sphi 0, %s139
    %s154 = sphi 0, %s140
    %s158 = sphi 0, %s158
    %s160 = sphi 0, %s158
    %s161 = sphi 0, %s160
    %s175 = sphi 0, %s161
    %s179 = sphi 0, %s179
    %s181 = sphi 0, %s179
    %s182 = sphi 0, %s181
    %s196 = sphi 0, %s182
    %s200 = sphi 0, %s200
    %s202 = sphi 0, %s200
    %s203 = sphi 0, %s202
    %s217 = sphi 0, %s203
    %s221 = sphi 0, %s221
    %s223 = sphi 0, %s221
    %s224 = sphi 0, %s223
    %s238 = sphi 0, %s224
    %s242 = sphi 0, %s242
    %s244 = sphi 0, %s242
    %s245 = sphi 0, %s244
    %s259 = sphi 0, %s245
    %s263 = sphi 0, %s263
    %s265 = sphi 0, %s263
    %s266 = sphi 0, %s265
    %s280 = sphi 0, %s266
    %s284 = sphi 0, %s284
    %s286 = sphi 0, %s284
    %s287 = sphi 0, %s286
    %s301 = sphi 0, %s287
    %s307 = sphi 0, %s309
    %s310 = sphi 0, %s307
    %s311 = sphi 0, %s310
    %s327 = sphi 0, %s311
  $region4: #{tpu_custom_call.1} parent=0 // loop_header_branch
    %22 = sbr.rel (%p20) target = $region8
  $region5: #{tpu_custom_call.1} parent=0 // loop_body
    %s24 = ssub.s32 %s19, 1
    %s25 = ssub.s32 %s19, 2
    %s26 = sadd.s32 %s19, 1
    %s27 = ssub.s32 %s19, %s26
    %p28 = scmp.eq.s32.totalorder %s27, 0
    %s30 = sadd.s32 %s29, 1
    %s31 = scalar_select %p28, %s29, %s30
    %p34 = pneg %p28
    %p35 = scmp.eq.s32.totalorder %s19, 1
    %p36 = por %p34, %p35
    %p37 = scmp.ne.s32.totalorder %s29, %s32
    %p38 = scmp.eq.s32.totalorder %s19, 0
    %p39 = por %p37, %p38
    %p40 = scmp.ne.s32.totalorder %s29, %s32
    %p41 = scmp.eq.s32.totalorder %s24, 1
    %p42 = por %p40, %p41
    %p43 = scmp.ne.s32.totalorder %s32, %s33
    %p44 = scmp.eq.s32.totalorder %s24, 0
    %p45 = por %p43, %p44
    %p46 = scmp.ne.s32.totalorder %s32, %s33
    %p47 = scmp.eq.s32.totalorder %s25, 1
    %p48 = por %p46, %p47
    %p50 = scmp.ne.s32.totalorder %s33, %s49
    %p51 = scmp.eq.s32.totalorder %s25, 0
    %p52 = por %p50, %p51
    %s54 = sadd.s32 %s53, 1
    %p57 = scmp.eq.s32.totalorder %s19, 1
    %p58 = scmp.ne.s32.totalorder %s53, %s55
    %p59 = scmp.eq.s32.totalorder %s19, 0
    %p60 = por %p58, %p59
    %p61 = scmp.ne.s32.totalorder %s53, %s55
    %p62 = scmp.eq.s32.totalorder %s24, 1
    %p63 = por %p61, %p62
    %p64 = scmp.ne.s32.totalorder %s55, %s56
    %p65 = scmp.eq.s32.totalorder %s24, 0
    %p66 = por %p64, %p65
    %p67 = scmp.ne.s32.totalorder %s55, %s56
    %p68 = scmp.eq.s32.totalorder %s25, 1
    %p69 = por %p67, %p68
    %p71 = scmp.ne.s32.totalorder %s56, %s70
    %p72 = scmp.eq.s32.totalorder %s25, 0
    %p73 = por %p71, %p72
    %s75 = sadd.s32 %s74, 1
    %p78 = scmp.eq.s32.totalorder %s19, 1
    %p79 = scmp.ne.s32.totalorder %s74, %s76
    %p80 = scmp.eq.s32.totalorder %s19, 0
    %p81 = por %p79, %p80
    %p82 = scmp.ne.s32.totalorder %s74, %s76
    %p83 = scmp.eq.s32.totalorder %s24, 1
    %p84 = por %p82, %p83
    %p85 = scmp.ne.s32.totalorder %s76, %s77
    %p86 = scmp.eq.s32.totalorder %s24, 0
    %p87 = por %p85, %p86
    %p88 = scmp.ne.s32.totalorder %s76, %s77
    %p89 = scmp.eq.s32.totalorder %s25, 1
    %p90 = por %p88, %p89
    %p92 = scmp.ne.s32.totalorder %s77, %s91
    %p93 = scmp.eq.s32.totalorder %s25, 0
    %p94 = por %p92, %p93
    %s96 = sadd.s32 %s95, 1
    %p99 = scmp.eq.s32.totalorder %s19, 1
    %p100 = scmp.ne.s32.totalorder %s95, %s97
    %p101 = scmp.eq.s32.totalorder %s19, 0
    %p102 = por %p100, %p101
    %p103 = scmp.ne.s32.totalorder %s95, %s97
    %p104 = scmp.eq.s32.totalorder %s24, 1
    %p105 = por %p103, %p104
    %p106 = scmp.ne.s32.totalorder %s97, %s98
    %p107 = scmp.eq.s32.totalorder %s24, 0
    %p108 = por %p106, %p107
    %p109 = scmp.ne.s32.totalorder %s97, %s98
    %p110 = scmp.eq.s32.totalorder %s25, 1
    %p111 = por %p109, %p110
    %p113 = scmp.ne.s32.totalorder %s98, %s112
    %p114 = scmp.eq.s32.totalorder %s25, 0
    %p115 = por %p113, %p114
    %s117 = sadd.s32 %s116, 1
    %p120 = scmp.eq.s32.totalorder %s19, 1
    %p121 = scmp.ne.s32.totalorder %s116, %s118
    %p122 = scmp.eq.s32.totalorder %s19, 0
    %p123 = por %p121, %p122
    %p124 = scmp.ne.s32.totalorder %s116, %s118
    %p125 = scmp.eq.s32.totalorder %s24, 1
    %p126 = por %p124, %p125
    %p127 = scmp.ne.s32.totalorder %s118, %s119
    %p128 = scmp.eq.s32.totalorder %s24, 0
    %p129 = por %p127, %p128
    %p130 = scmp.ne.s32.totalorder %s118, %s119
    %p131 = scmp.eq.s32.totalorder %s25, 1
    %p132 = por %p130, %p131
    %p134 = scmp.ne.s32.totalorder %s119, %s133
    %p135 = scmp.eq.s32.totalorder %s25, 0
    %p136 = por %p134, %p135
    %s138 = sadd.s32 %s137, 1
    %p141 = scmp.eq.s32.totalorder %s19, 1
    %p142 = scmp.ne.s32.totalorder %s137, %s139
    %p143 = scmp.eq.s32.totalorder %s19, 0
    %p144 = por %p142, %p143
    %p145 = scmp.ne.s32.totalorder %s137, %s139
    %p146 = scmp.eq.s32.totalorder %s24, 1
    %p147 = por %p145, %p146
    %p148 = scmp.ne.s32.totalorder %s139, %s140
    %p149 = scmp.eq.s32.totalorder %s24, 0
    %p150 = por %p148, %p149
    %p151 = scmp.ne.s32.totalorder %s139, %s140
    %p152 = scmp.eq.s32.totalorder %s25, 1
    %p153 = por %p151, %p152
    %p155 = scmp.ne.s32.totalorder %s140, %s154
    %p156 = scmp.eq.s32.totalorder %s25, 0
    %p157 = por %p155, %p156
    %s159 = sadd.s32 %s158, 1
    %p162 = scmp.eq.s32.totalorder %s19, 1
    %p163 = scmp.ne.s32.totalorder %s158, %s160
    %p164 = scmp.eq.s32.totalorder %s19, 0
    %p165 = por %p163, %p164
    %p166 = scmp.ne.s32.totalorder %s158, %s160
    %p167 = scmp.eq.s32.totalorder %s24, 1
    %p168 = por %p166, %p167
    %p169 = scmp.ne.s32.totalorder %s160, %s161
    %p170 = scmp.eq.s32.totalorder %s24, 0
    %p171 = por %p169, %p170
    %p172 = scmp.ne.s32.totalorder %s160, %s161
    %p173 = scmp.eq.s32.totalorder %s25, 1
    %p174 = por %p172, %p173
    %p176 = scmp.ne.s32.totalorder %s161, %s175
    %p177 = scmp.eq.s32.totalorder %s25, 0
    %p178 = por %p176, %p177
    %s180 = sadd.s32 %s179, 1
    %p183 = scmp.eq.s32.totalorder %s19, 1
    %p184 = scmp.ne.s32.totalorder %s179, %s181
    %p185 = scmp.eq.s32.totalorder %s19, 0
    %p186 = por %p184, %p185
    %p187 = scmp.ne.s32.totalorder %s179, %s181
    %p188 = scmp.eq.s32.totalorder %s24, 1
    %p189 = por %p187, %p188
    %p190 = scmp.ne.s32.totalorder %s181, %s182
    %p191 = scmp.eq.s32.totalorder %s24, 0
    %p192 = por %p190, %p191
    %p193 = scmp.ne.s32.totalorder %s181, %s182
    %p194 = scmp.eq.s32.totalorder %s25, 1
    %p195 = por %p193, %p194
    %p197 = scmp.ne.s32.totalorder %s182, %s196
    %p198 = scmp.eq.s32.totalorder %s25, 0
    %p199 = por %p197, %p198
    %s201 = sadd.s32 %s200, 1
    %p204 = scmp.eq.s32.totalorder %s19, 1
    %p205 = scmp.ne.s32.totalorder %s200, %s202
    %p206 = scmp.eq.s32.totalorder %s19, 0
    %p207 = por %p205, %p206
    %p208 = scmp.ne.s32.totalorder %s200, %s202
    %p209 = scmp.eq.s32.totalorder %s24, 1
    %p210 = por %p208, %p209
    %p211 = scmp.ne.s32.totalorder %s202, %s203
    %p212 = scmp.eq.s32.totalorder %s24, 0
    %p213 = por %p211, %p212
    %p214 = scmp.ne.s32.totalorder %s202, %s203
    %p215 = scmp.eq.s32.totalorder %s25, 1
    %p216 = por %p214, %p215
    %p218 = scmp.ne.s32.totalorder %s203, %s217
    %p219 = scmp.eq.s32.totalorder %s25, 0
    %p220 = por %p218, %p219
    %s222 = sadd.s32 %s221, 1
    %p225 = scmp.eq.s32.totalorder %s19, 1
    %p226 = scmp.ne.s32.totalorder %s221, %s223
    %p227 = scmp.eq.s32.totalorder %s19, 0
    %p228 = por %p226, %p227
    %p229 = scmp.ne.s32.totalorder %s221, %s223
    %p230 = scmp.eq.s32.totalorder %s24, 1
    %p231 = por %p229, %p230
    %p232 = scmp.ne.s32.totalorder %s223, %s224
    %p233 = scmp.eq.s32.totalorder %s24, 0
    %p234 = por %p232, %p233
    %p235 = scmp.ne.s32.totalorder %s223, %s224
    %p236 = scmp.eq.s32.totalorder %s25, 1
    %p237 = por %p235, %p236
    %p239 = scmp.ne.s32.totalorder %s224, %s238
    %p240 = scmp.eq.s32.totalorder %s25, 0
    %p241 = por %p239, %p240
    %s243 = sadd.s32 %s242, 1
    %p246 = scmp.eq.s32.totalorder %s19, 1
    %p247 = scmp.ne.s32.totalorder %s242, %s244
    %p248 = scmp.eq.s32.totalorder %s19, 0
    %p249 = por %p247, %p248
    %p250 = scmp.ne.s32.totalorder %s242, %s244
    %p251 = scmp.eq.s32.totalorder %s24, 1
    %p252 = por %p250, %p251
    %p253 = scmp.ne.s32.totalorder %s244, %s245
    %p254 = scmp.eq.s32.totalorder %s24, 0
    %p255 = por %p253, %p254
    %p256 = scmp.ne.s32.totalorder %s244, %s245
    %p257 = scmp.eq.s32.totalorder %s25, 1
    %p258 = por %p256, %p257
    %p260 = scmp.ne.s32.totalorder %s245, %s259
    %p261 = scmp.eq.s32.totalorder %s25, 0
    %p262 = por %p260, %p261
    %s264 = sadd.s32 %s263, 1
    %p267 = scmp.eq.s32.totalorder %s19, 1
    %p268 = scmp.ne.s32.totalorder %s263, %s265
    %p269 = scmp.eq.s32.totalorder %s19, 0
    %p270 = por %p268, %p269
    %p271 = scmp.ne.s32.totalorder %s263, %s265
    %p272 = scmp.eq.s32.totalorder %s24, 1
    %p273 = por %p271, %p272
    %p274 = scmp.ne.s32.totalorder %s265, %s266
    %p275 = scmp.eq.s32.totalorder %s24, 0
    %p276 = por %p274, %p275
    %p277 = scmp.ne.s32.totalorder %s265, %s266
    %p278 = scmp.eq.s32.totalorder %s25, 1
    %p279 = por %p277, %p278
    %p281 = scmp.ne.s32.totalorder %s266, %s280
    %p282 = scmp.eq.s32.totalorder %s25, 0
    %p283 = por %p281, %p282
    %s285 = sadd.s32 %s284, 1
    %p288 = scmp.eq.s32.totalorder %s19, 1
    %p289 = scmp.ne.s32.totalorder %s284, %s286
    %p290 = scmp.eq.s32.totalorder %s19, 0
    %p291 = por %p289, %p290
    %p292 = scmp.ne.s32.totalorder %s284, %s286
    %p293 = scmp.eq.s32.totalorder %s24, 1
    %p294 = por %p292, %p293
    %p295 = scmp.ne.s32.totalorder %s286, %s287
    %p296 = scmp.eq.s32.totalorder %s24, 0
    %p297 = por %p295, %p296
    %p298 = scmp.ne.s32.totalorder %s286, %s287
    %p299 = scmp.eq.s32.totalorder %s25, 1
    %p300 = por %p298, %p299
    %p302 = scmp.ne.s32.totalorder %s287, %s301
    %p303 = scmp.eq.s32.totalorder %s25, 0
    %p304 = por %p302, %p303
    %s305 = ssub.s32 %s19, %s26
    %p306 = scmp.eq.s32.totalorder %s305, 0
    %s308 = sadd.s32 %s307, 1
    %s309 = scalar_select %p306, %s307, %s308
    %p312 = pneg %p306
    %p313 = scmp.eq.s32.totalorder %s19, 1
    %p314 = por %p312, %p313
    %p315 = scmp.ne.s32.totalorder %s307, %s310
    %p316 = scmp.eq.s32.totalorder %s19, 0
    %p317 = por %p315, %p316
    %p318 = scmp.ne.s32.totalorder %s307, %s310
    %p319 = scmp.eq.s32.totalorder %s24, 1
    %p320 = por %p318, %p319
    %p321 = scmp.ne.s32.totalorder %s310, %s311
    %p322 = scmp.eq.s32.totalorder %s24, 0
    %p323 = por %p321, %p322
    %p324 = scmp.ne.s32.totalorder %s310, %s311
    %p325 = scmp.eq.s32.totalorder %s25, 1
    %p326 = por %p324, %p325
    %p328 = scmp.ne.s32.totalorder %s311, %s327
    %p329 = scmp.eq.s32.totalorder %s25, 0
    %p330 = por %p328, %p329
    %p331 = scmp.le.s32.totalorder 1, %s19
    %p332 = scmp.lt.s32.totalorder %s19, 3
    %p333 = pnand %p331, %p332
    %p334 = pneg %p333
    // Predicated region
    $region9: #{tpu_custom_call.1} parent=5 // pred_check
      _
    $region10: #{tpu_custom_call.1} parent=5 // pred_check_branch
      %336 = sbr.rel (%p333) target = $region12
    $region11: #{tpu_custom_call.1} parent=5 // pred_region
      %s337 = ssub.s32 %s19, 1
      // Predicated region
      $region13: #{tpu_custom_call.1} parent=11 // pred_check
        %p338 = pneg %p66
      $region14: #{tpu_custom_call.1} parent=11 // pred_check_branch
        %340 = sbr.rel (%p338) target = $region16
      $region15: #{tpu_custom_call.1} parent=11 // pred_region
        _
      $region16: #{tpu_custom_call.1} parent=11 // pred_fallthru
        _
      // Predicated region
      $region17: #{tpu_custom_call.1} parent=11 // pred_check
        %p341 = pneg %p87
      $region18: #{tpu_custom_call.1} parent=11 // pred_check_branch
        %343 = sbr.rel (%p341) target = $region20
      $region19: #{tpu_custom_call.1} parent=11 // pred_region
        _
      $region20: #{tpu_custom_call.1} parent=11 // pred_fallthru
        _
      // Predicated region
      $region21: #{tpu_custom_call.1} parent=11 // pred_check
        %p344 = pneg %p108
      $region22: #{tpu_custom_call.1} parent=11 // pred_check_branch
        %346 = sbr.rel (%p344) target = $region24
      $region23: #{tpu_custom_call.1} parent=11 // pred_region
        _
      $region24: #{tpu_custom_call.1} parent=11 // pred_fallthru
        _
      // Predicated region
      $region25: #{tpu_custom_call.1} parent=11 // pred_check
        %p347 = pneg %p129
      $region26: #{tpu_custom_call.1} parent=11 // pred_check_branch
        %349 = sbr.rel (%p347) target = $region28
      $region27: #{tpu_custom_call.1} parent=11 // pred_region
        _
      $region28: #{tpu_custom_call.1} parent=11 // pred_fallthru
        _
      // Predicated region
      $region29: #{tpu_custom_call.1} parent=11 // pred_check
        %p350 = pneg %p150
      $region30: #{tpu_custom_call.1} parent=11 // pred_check_branch
        %352 = sbr.rel (%p350) target = $region32
      $region31: #{tpu_custom_call.1} parent=11 // pred_region
        _
      $region32: #{tpu_custom_call.1} parent=11 // pred_fallthru
        _
      // Predicated region
      $region33: #{tpu_custom_call.1} parent=11 // pred_check
        %p353 = pneg %p171
      $region34: #{tpu_custom_call.1} parent=11 // pred_check_branch
        %355 = sbr.rel (%p353) target = $region36
      $region35: #{tpu_custom_call.1} parent=11 // pred_region
        _
      $region36: #{tpu_custom_call.1} parent=11 // pred_fallthru
        _
      // Predicated region
      $region37: #{tpu_custom_call.1} parent=11 // pred_check
        %p356 = pneg %p192
      $region38: #{tpu_custom_call.1} parent=11 // pred_check_branch
        %358 = sbr.rel (%p356) target = $region40
      $region39: #{tpu_custom_call.1} parent=11 // pred_region
        _
      $region40: #{tpu_custom_call.1} parent=11 // pred_fallthru
        _
      // Predicated region
      $region41: #{tpu_custom_call.1} parent=11 // pred_check
        %p359 = pneg %p213
      $region42: #{tpu_custom_call.1} parent=11 // pred_check_branch
        %361 = sbr.rel (%p359) target = $region44
      $region43: #{tpu_custom_call.1} parent=11 // pred_region
        _
      $region44: #{tpu_custom_call.1} parent=11 // pred_fallthru
        _
      // Predicated region
      $region45: #{tpu_custom_call.1} parent=11 // pred_check
        %p362 = pneg %p234
      $region46: #{tpu_custom_call.1} parent=11 // pred_check_branch
        %364 = sbr.rel (%p362) target = $region48
      $region47: #{tpu_custom_call.1} parent=11 // pred_region
        _
      $region48: #{tpu_custom_call.1} parent=11 // pred_fallthru
        _
      // Predicated region
      $region49: #{tpu_custom_call.1} parent=11 // pred_check
        %p365 = pneg %p255
      $region50: #{tpu_custom_call.1} parent=11 // pred_check_branch
        %367 = sbr.rel (%p365) target = $region52
      $region51: #{tpu_custom_call.1} parent=11 // pred_region
        _
      $region52: #{tpu_custom_call.1} parent=11 // pred_fallthru
        _
      // Predicated region
      $region53: #{tpu_custom_call.1} parent=11 // pred_check
        %p368 = pneg %p276
      $region54: #{tpu_custom_call.1} parent=11 // pred_check_branch
        %370 = sbr.rel (%p368) target = $region56
      $region55: #{tpu_custom_call.1} parent=11 // pred_region
        _
      $region56: #{tpu_custom_call.1} parent=11 // pred_fallthru
        _
      // Predicated region
      $region57: #{tpu_custom_call.1} parent=11 // pred_check
        %p371 = pneg %p297
      $region58: #{tpu_custom_call.1} parent=11 // pred_check_branch
        %373 = sbr.rel (%p371) target = $region60
      $region59: #{tpu_custom_call.1} parent=11 // pred_region
        _
      $region60: #{tpu_custom_call.1} parent=11 // pred_fallthru
        _
    $region12: #{tpu_custom_call.1} parent=5 // pred_fallthru
      _
    %p374 = scmp.lt.s32.totalorder %s19, 2
    // Predicated region
    $region61: #{tpu_custom_call.1} parent=5 // pred_check
      %p375 = pneg %p374
    $region62: #{tpu_custom_call.1} parent=5 // pred_check_branch
      %377 = sbr.rel (%p375) target = $region64
    $region63: #{tpu_custom_call.1} parent=5 // pred_region
      // Predicated region
      $region65: #{tpu_custom_call.1} parent=63 // pred_check
        %p378 = pneg %p39
      $region66: #{tpu_custom_call.1} parent=63 // pred_check_branch
        %380 = sbr.rel (%p378) target = $region68
      $region67: #{tpu_custom_call.1} parent=63 // pred_region
        %s381 = smul.u32 32, %s19
        %p382 = scmp.lt.s32.totalorder %s381, 63
        %s383 = scalar_select %p382, %s381, 63
        %s384 = smul.addr %s383, 7
        %s385 = smul.addr %s384, 4
        %s386 = scalar_lea.vmem %s0, %s385
        %s387 = smul.u32 32, %s19
      $region68: #{tpu_custom_call.1} parent=63 // pred_fallthru
        _
    $region64: #{tpu_custom_call.1} parent=5 // pred_fallthru
      _
    %p388 = scmp.le.s32.totalorder 1, %s19
    %p389 = scmp.lt.s32.totalorder %s19, 3
    %p390 = pnand %p388, %p389
    %p391 = pneg %p390
    // Predicated region
    $region69: #{tpu_custom_call.1} parent=5 // pred_check
      _
    $region70: #{tpu_custom_call.1} parent=5 // pred_check_branch
      %393 = sbr.rel (%p390) target = $region72
    $region71: #{tpu_custom_call.1} parent=5 // pred_region
      %s394 = ssub.s32 %s19, 1
      %s395 = smul.u32 32, %s24
      %p396 = scmp.lt.s32.totalorder %s395, 63
      %s397 = scalar_select %p396, %s395, 63
      %s398 = smul.addr %s397, 7
      %s399 = smul.addr %s398, 4
      %s400 = scalar_lea.vmem %s0, %s399
      %p401 = pneg %p45
      %p402 = pneg %p42
      %p403 = pneg %p66
      %p404 = pneg %p63
      %p405 = pneg %p87
      %p406 = pneg %p84
      %p407 = pneg %p108
      %p408 = pneg %p105
      %p409 = pneg %p129
      %p410 = pneg %p126
      %p411 = pneg %p150
      %p412 = pneg %p147
      %p413 = pneg %p171
      %p414 = pneg %p168
      %p415 = pneg %p192
      %p416 = pneg %p189
      %p417 = pneg %p213
      %p418 = pneg %p210
      %p419 = pneg %p234
      %p420 = pneg %p231
      %p421 = pneg %p255
      %p422 = pneg %p252
      %p423 = pneg %p276
      %p424 = pneg %p273
      %p425 = pneg %p297
      %p426 = pneg %p294
      %p427 = pneg %p323
      %p428 = pneg %p320
      %s429 = smul.u32 32, %s24
      %p430 = scmp.lt.s32.totalorder %s429, 63
      %s431 = scalar_select %p430, %s429, 63
      %s432 = smul.addr %s431, 8
      %s433 = scalar_lea.vmem %s13, %s432
      %s434 = smul.u32 32, %s24
      %p435 = scmp.lt.s32.totalorder %s434, 63
      %s436 = scalar_select %p435, %s434, 63
      %s437 = smul.addr %s436, 7
      %s438 = smul.addr %s437, 4
      %s439 = scalar_lea.vmem %s0, %s438
      %s440 = smul.u32 32, %s24
      %s441 = smul.u32 32, %s24
      %p442 = scmp.lt.s32.totalorder %s441, 63
      %s443 = scalar_select %p442, %s441, 63
      %s444 = smul.addr %s443, 8
      %s445 = scalar_lea.vmem %s13, %s444
      %s446 = smul.u32 32, %s24
      %v448 = vld [vmem:[%s439] sm:$0xff]
      %v449 = vld [vmem:[%s439 + $0x8] sm:$0xff]
      %v450 = vld [vmem:[%s439 + $0x10] sm:$0xff]
      %v451 = vld [vmem:[%s439 + $0x18] sm:$0xf]
      %v452 = vld [vmem:[%s439 + $0x1c] sm:$0xff]
      %v453 = vld [vmem:[%s439 + $0x24] sm:$0xff]
      %v454 = vld [vmem:[%s439 + $0x2c] sm:$0xff]
      %v455 = vld [vmem:[%s439 + $0x34] sm:$0xf]
      %v456 = vld [vmem:[%s439 + $0x38] sm:$0xff]
      %v457 = vld [vmem:[%s439 + $0x40] sm:$0xff]
      %v458 = vld [vmem:[%s439 + $0x48] sm:$0xff]
      %v459 = vld [vmem:[%s439 + $0x50] sm:$0xf]
      %v460 = vld [vmem:[%s439 + $0x54] sm:$0xff]
      %v461 = vld [vmem:[%s439 + $0x5c] sm:$0xff]
      %v462 = vld [vmem:[%s439 + $0x64] sm:$0xff]
      %v463 = vld [vmem:[%s439 + $0x6c] sm:$0xf]
      %v464 = vld [vmem:[%s439 + $0x70] sm:$0xff]
      %v465 = vld [vmem:[%s439 + $0x78] sm:$0xff]
      %v466 = vld [vmem:[%s439 + $0x80] sm:$0xff]
      %v467 = vld [vmem:[%s439 + $0x88] sm:$0xf]
      %v468 = vld [vmem:[%s439 + $0x8c] sm:$0xff]
      %v469 = vld [vmem:[%s439 + $0x94] sm:$0xff]
      %v470 = vld [vmem:[%s439 + $0x9c] sm:$0xff]
      %v471 = vld [vmem:[%s439 + $0xa4] sm:$0xf]
      %v472 = vld [vmem:[%s439 + $0xa8] sm:$0xff]
      %v473 = vld [vmem:[%s439 + $0xb0] sm:$0xff]
      %v474 = vld [vmem:[%s439 + $0xb8] sm:$0xff]
      %v475 = vld [vmem:[%s439 + $0xc0] sm:$0xf]
      %v476 = vld [vmem:[%s439 + $0xc4] sm:$0xff]
      %v477 = vld [vmem:[%s439 + $0xcc] sm:$0xff]
      %v478 = vld [vmem:[%s439 + $0xd4] sm:$0xff]
      %v479 = vld [vmem:[%s439 + $0xdc] sm:$0xf]
      %v480 = vld [vmem:[%s439 + $0xe0] sm:$0xff]
      %v481 = vld [vmem:[%s439 + $0xe8] sm:$0xff]
      %v482 = vld [vmem:[%s439 + $0xf0] sm:$0xff]
      %v483 = vld [vmem:[%s439 + $0xf8] sm:$0xf]
      %v484 = vld [vmem:[%s439 + $0xfc] sm:$0xff]
      %v485 = vld [vmem:[%s439 + $0x104] sm:$0xff]
      %v486 = vld [vmem:[%s439 + $0x10c] sm:$0xff]
      %v487 = vld [vmem:[%s439 + $0x114] sm:$0xf]
      %v488 = vld [vmem:[%s439 + $0x118] sm:$0xff]
      %v489 = vld [vmem:[%s439 + $0x120] sm:$0xff]
      %v490 = vld [vmem:[%s439 + $0x128] sm:$0xff]
      %v491 = vld [vmem:[%s439 + $0x130] sm:$0xf]
      %v492 = vld [vmem:[%s439 + $0x134] sm:$0xff]
      %v493 = vld [vmem:[%s439 + $0x13c] sm:$0xff]
      %v494 = vld [vmem:[%s439 + $0x144] sm:$0xff]
      %v495 = vld [vmem:[%s439 + $0x14c] sm:$0xf]
      %v496 = vld [vmem:[%s439 + $0x150] sm:$0xff]
      %v497 = vld [vmem:[%s439 + $0x158] sm:$0xff]
      %v498 = vld [vmem:[%s439 + $0x160] sm:$0xff]
      %v499 = vld [vmem:[%s439 + $0x168] sm:$0xf]
      %v500 = vld [vmem:[%s439 + $0x16c] sm:$0xff]
      %v501 = vld [vmem:[%s439 + $0x174] sm:$0xff]
      %v502 = vld [vmem:[%s439 + $0x17c] sm:$0xff]
      %v503 = vld [vmem:[%s439 + $0x184] sm:$0xf]
      %v504 = vld [vmem:[%s439 + $0x188] sm:$0xff]
      %v505 = vld [vmem:[%s439 + $0x190] sm:$0xff]
      %v506 = vld [vmem:[%s439 + $0x198] sm:$0xff]
      %v507 = vld [vmem:[%s439 + $0x1a0] sm:$0xf]
      %v508 = vld [vmem:[%s439 + $0x1a4] sm:$0xff]
      %v509 = vld [vmem:[%s439 + $0x1ac] sm:$0xff]
      %v510 = vld [vmem:[%s439 + $0x1b4] sm:$0xff]
      %v511 = vld [vmem:[%s439 + $0x1bc] sm:$0xf]
      %v512 = vld [vmem:[%s439 + $0x1c0] sm:$0xff]
      %v513 = vld [vmem:[%s439 + $0x1c8] sm:$0xff]
      %v514 = vld [vmem:[%s439 + $0x1d0] sm:$0xff]
      %v515 = vld [vmem:[%s439 + $0x1d8] sm:$0xf]
      %v516 = vld [vmem:[%s439 + $0x1dc] sm:$0xff]
      %v517 = vld [vmem:[%s439 + $0x1e4] sm:$0xff]
      %v518 = vld [vmem:[%s439 + $0x1ec] sm:$0xff]
      %v519 = vld [vmem:[%s439 + $0x1f4] sm:$0xf]
      %v520 = vld [vmem:[%s439 + $0x1f8] sm:$0xff]
      %v521 = vld [vmem:[%s439 + $0x200] sm:$0xff]
      %v522 = vld [vmem:[%s439 + $0x208] sm:$0xff]
      %v523 = vld [vmem:[%s439 + $0x210] sm:$0xf]
      %v524 = vld [vmem:[%s439 + $0x214] sm:$0xff]
      %v525 = vld [vmem:[%s439 + $0x21c] sm:$0xff]
      %v526 = vld [vmem:[%s439 + $0x224] sm:$0xff]
      %v527 = vld [vmem:[%s439 + $0x22c] sm:$0xf]
      %v528 = vld [vmem:[%s439 + $0x230] sm:$0xff]
      %v529 = vld [vmem:[%s439 + $0x238] sm:$0xff]
      %v530 = vld [vmem:[%s439 + $0x240] sm:$0xff]
      %v531 = vld [vmem:[%s439 + $0x248] sm:$0xf]
      %v532 = vld [vmem:[%s439 + $0x24c] sm:$0xff]
      %v533 = vld [vmem:[%s439 + $0x254] sm:$0xff]
      %v534 = vld [vmem:[%s439 + $0x25c] sm:$0xff]
      %v535 = vld [vmem:[%s439 + $0x264] sm:$0xf]
      %v536 = vld [vmem:[%s439 + $0x268] sm:$0xff]
      %v537 = vld [vmem:[%s439 + $0x270] sm:$0xff]
      %v538 = vld [vmem:[%s439 + $0x278] sm:$0xff]
      %v539 = vld [vmem:[%s439 + $0x280] sm:$0xf]
      %v540 = vld [vmem:[%s439 + $0x284] sm:$0xff]
      %v541 = vld [vmem:[%s439 + $0x28c] sm:$0xff]
      %v542 = vld [vmem:[%s439 + $0x294] sm:$0xff]
      %v543 = vld [vmem:[%s439 + $0x29c] sm:$0xf]
      %v544 = vld [vmem:[%s439 + $0x2a0] sm:$0xff]
      %v545 = vld [vmem:[%s439 + $0x2a8] sm:$0xff]
      %v546 = vld [vmem:[%s439 + $0x2b0] sm:$0xff]
      %v547 = vld [vmem:[%s439 + $0x2b8] sm:$0xf]
      %v548 = vld [vmem:[%s439 + $0x2bc] sm:$0xff]
      %v549 = vld [vmem:[%s439 + $0x2c4] sm:$0xff]
      %v550 = vld [vmem:[%s439 + $0x2cc] sm:$0xff]
      %v551 = vld [vmem:[%s439 + $0x2d4] sm:$0xf]
      %v552 = vld [vmem:[%s439 + $0x2d8] sm:$0xff]
      %v553 = vld [vmem:[%s439 + $0x2e0] sm:$0xff]
      %v554 = vld [vmem:[%s439 + $0x2e8] sm:$0xff]
      %v555 = vld [vmem:[%s439 + $0x2f0] sm:$0xf]
      %v556 = vld [vmem:[%s439 + $0x2f4] sm:$0xff]
      %v557 = vld [vmem:[%s439 + $0x2fc] sm:$0xff]
      %v558 = vld [vmem:[%s439 + $0x304] sm:$0xff]
      %v559 = vld [vmem:[%s439 + $0x30c] sm:$0xf]
      %v560 = vld [vmem:[%s439 + $0x310] sm:$0xff]
      %v561 = vld [vmem:[%s439 + $0x318] sm:$0xff]
      %v562 = vld [vmem:[%s439 + $0x320] sm:$0xff]
      %v563 = vld [vmem:[%s439 + $0x328] sm:$0xf]
      %v564 = vld [vmem:[%s439 + $0x32c] sm:$0xff]
      %v565 = vld [vmem:[%s439 + $0x334] sm:$0xff]
      %v566 = vld [vmem:[%s439 + $0x33c] sm:$0xff]
      %v567 = vld [vmem:[%s439 + $0x344] sm:$0xf]
      %v568 = vld [vmem:[%s439 + $0x348] sm:$0xff]
      %v569 = vld [vmem:[%s439 + $0x350] sm:$0xff]
      %v570 = vld [vmem:[%s439 + $0x358] sm:$0xff]
      %v571 = vld [vmem:[%s439 + $0x360] sm:$0xf]
      %v572 = vld [vmem:[%s439 + $0x364] sm:$0xff]
      %v573 = vld [vmem:[%s439 + $0x36c] sm:$0xff]
      %v574 = vld [vmem:[%s439 + $0x374] sm:$0xff]
      %v575 = vld [vmem:[%s439 + $0x37c] sm:$0xf]
      %v576 = vld [vmem:[%s1] sm:$0xff]
      %v577 = vld [vmem:[%s1 + $0x8] sm:$0xff]
      %v578 = vld [vmem:[%s1 + $0x10] sm:$0xff]
      %v579 = vld [vmem:[%s1 + $0x18] sm:$0xff]
      %v580 = vld [vmem:[%s1 + $0x20] sm:$0xff]
      %v581 = vld [vmem:[%s1 + $0x28] sm:$0xff]
      %v582 = vld [vmem:[%s1 + $0x30] sm:$0xff]
      %v583 = vld [vmem:[%s1 + $0x38] sm:$0xff]
      %v584 = vld [vmem:[%s1 + $0x40] sm:$0xff]
      %v585 = vld [vmem:[%s1 + $0x48] sm:$0xff]
      %v586 = vld [vmem:[%s1 + $0x50] sm:$0xff]
      %v587 = vld [vmem:[%s1 + $0x58] sm:$0xff]
      %v588 = vld [vmem:[%s1 + $0x60] sm:$0xff]
      %v589 = vld [vmem:[%s1 + $0x68] sm:$0xff]
      %v590 = vld [vmem:[%s1 + $0x70] sm:$0xff]
      %v591 = vld [vmem:[%s1 + $0x78] sm:$0xff]
      %v592 = vld [vmem:[%s1 + $0x80] sm:$0xff]
      %v593 = vld [vmem:[%s1 + $0x88] sm:$0xff]
      %v594 = vld [vmem:[%s1 + $0x90] sm:$0xff]
      %v595 = vld [vmem:[%s1 + $0x98] sm:$0xff]
      %v596 = vld [vmem:[%s1 + $0xa0] sm:$0xff]
      %v597 = vld [vmem:[%s1 + $0xa8] sm:$0xff]
      %v598 = vld [vmem:[%s1 + $0xb0] sm:$0xff]
      %v599 = vld [vmem:[%s1 + $0xb8] sm:$0xff]
      %v600 = vld [vmem:[%s1 + $0xc0] sm:$0xff]
      %v601 = vld [vmem:[%s1 + $0xc8] sm:$0xff]
      %v602 = vld [vmem:[%s1 + $0xd0] sm:$0xff]
      %v603 = vld [vmem:[%s1 + $0xd8] sm:$0xff]
      %v604 = vld [vmem:[%s1 + $0xe0] sm:$0xff]
      %v605 = vld [vmem:[%s1 + $0xe8] sm:$0xff]
      %v606 = vld [vmem:[%s1 + $0xf0] sm:$0xff]
      %v607 = vld [vmem:[%s1 + $0xf8] sm:$0xff]
      %v608 = vld [vmem:[%s1 + $0x100] sm:$0xff]
      %v609 = vld [vmem:[%s1 + $0x108] sm:$0xff]
      %v610 = vld [vmem:[%s1 + $0x110] sm:$0xff]
      %v611 = vld [vmem:[%s1 + $0x118] sm:$0xff]
      %v612 = vld [vmem:[%s1 + $0x120] sm:$0xff]
      %v613 = vld [vmem:[%s1 + $0x128] sm:$0xff]
      %v614 = vld [vmem:[%s1 + $0x130] sm:$0xff]
      %v615 = vld [vmem:[%s1 + $0x138] sm:$0xff]
      %v616 = vld [vmem:[%s1 + $0x140] sm:$0xff]
      %v617 = vld [vmem:[%s1 + $0x148] sm:$0xff]
      %v618 = vld [vmem:[%s1 + $0x150] sm:$0xff]
      %v619 = vld [vmem:[%s1 + $0x158] sm:$0xff]
      %v620 = vld [vmem:[%s1 + $0x160] sm:$0xff]
      %v621 = vld [vmem:[%s1 + $0x168] sm:$0xff]
      %v622 = vld [vmem:[%s1 + $0x170] sm:$0xff]
      %v623 = vld [vmem:[%s1 + $0x178] sm:$0xff]
      %v624 = vld [vmem:[%s1 + $0x180] sm:$0xff]
      %v625 = vld [vmem:[%s1 + $0x188] sm:$0xff]
      %v626 = vld [vmem:[%s1 + $0x190] sm:$0xff]
      %v627 = vld [vmem:[%s1 + $0x198] sm:$0xff]
      %v628 = vld [vmem:[%s1 + $0x1a0] sm:$0xff]
      %v629 = vld [vmem:[%s1 + $0x1a8] sm:$0xff]
      %v630 = vld [vmem:[%s1 + $0x1b0] sm:$0xff]
      %v631 = vld [vmem:[%s1 + $0x1b8] sm:$0xff]
      %v632 = vld [vmem:[%s1 + $0x1c0] sm:$0xff]
      %v633 = vld [vmem:[%s1 + $0x1c8] sm:$0xff]
      %v634 = vld [vmem:[%s1 + $0x1d0] sm:$0xff]
      %v635 = vld [vmem:[%s1 + $0x1d8] sm:$0xff]
      %v636 = vld [vmem:[%s1 + $0x1e0] sm:$0xff]
      %v637 = vld [vmem:[%s1 + $0x1e8] sm:$0xff]
      %v638 = vld [vmem:[%s1 + $0x1f0] sm:$0xff]
      %v639 = vld [vmem:[%s1 + $0x1f8] sm:$0xff]
      %v640 = vld [vmem:[%s1 + $0x200] sm:$0xff]
      %v641 = vld [vmem:[%s1 + $0x208] sm:$0xff]
      %v642 = vld [vmem:[%s1 + $0x210] sm:$0xff]
      %v643 = vld [vmem:[%s1 + $0x218] sm:$0xff]
      %v644 = vld [vmem:[%s1 + $0x220] sm:$0xff]
      %v645 = vld [vmem:[%s1 + $0x228] sm:$0xff]
      %v646 = vld [vmem:[%s1 + $0x230] sm:$0xff]
      %v647 = vld [vmem:[%s1 + $0x238] sm:$0xff]
      %v648 = vld [vmem:[%s1 + $0x240] sm:$0xff]
      %v649 = vld [vmem:[%s1 + $0x248] sm:$0xff]
      %v650 = vld [vmem:[%s1 + $0x250] sm:$0xff]
      %v651 = vld [vmem:[%s1 + $0x258] sm:$0xff]
      %v652 = vld [vmem:[%s1 + $0x260] sm:$0xff]
      %v653 = vld [vmem:[%s1 + $0x268] sm:$0xff]
      %v654 = vld [vmem:[%s1 + $0x270] sm:$0xff]
      %v655 = vld [vmem:[%s1 + $0x278] sm:$0xff]
      %v656 = vld [vmem:[%s1 + $0x280] sm:$0xff]
      %v657 = vld [vmem:[%s1 + $0x288] sm:$0xff]
      %v658 = vld [vmem:[%s1 + $0x290] sm:$0xff]
      %v659 = vld [vmem:[%s1 + $0x298] sm:$0xff]
      %v660 = vld [vmem:[%s1 + $0x2a0] sm:$0xff]
      %v661 = vld [vmem:[%s1 + $0x2a8] sm:$0xff]
      %v662 = vld [vmem:[%s1 + $0x2b0] sm:$0xff]
      %v663 = vld [vmem:[%s1 + $0x2b8] sm:$0xff]
      %v664 = vld [vmem:[%s1 + $0x2c0] sm:$0xff]
      %v665 = vld [vmem:[%s1 + $0x2c8] sm:$0xff]
      %v666 = vld [vmem:[%s1 + $0x2d0] sm:$0xff]
      %v667 = vld [vmem:[%s1 + $0x2d8] sm:$0xff]
      %v668 = vld [vmem:[%s1 + $0x2e0] sm:$0xff]
      %v669 = vld [vmem:[%s1 + $0x2e8] sm:$0xff]
      %v670 = vld [vmem:[%s1 + $0x2f0] sm:$0xff]
      %v671 = vld [vmem:[%s1 + $0x2f8] sm:$0xff]
      %v672 = vld [vmem:[%s1 + $0x300] sm:$0xff]
      %v673 = vld [vmem:[%s1 + $0x308] sm:$0xff]
      %v674 = vld [vmem:[%s2] sm:$0x3]
      %v676 = vperm.slane %v674, 0
      %v677 = vperm.slane %v674, 1
      %v808 = vunpack.c.l.b16 %v448
      %v809 = vunpack.c.h.b16 %v448
      %v810 = vunpack.c.l.b16 %v449
      %v811 = vunpack.c.h.b16 %v449
      %v812 = vunpack.c.l.b16 %v450
      %v813 = vunpack.c.h.b16 %v450
      %v814 = vunpack.c.l.b16 %v451
      %v815 = vunpack.c.l.b16 %v452
      %v816 = vunpack.c.h.b16 %v452
      %v817 = vunpack.c.l.b16 %v453
      %v818 = vunpack.c.h.b16 %v453
      %v819 = vunpack.c.l.b16 %v454
      %v820 = vunpack.c.h.b16 %v454
      %v821 = vunpack.c.l.b16 %v455
      %v822 = vunpack.c.l.b16 %v456
      %v823 = vunpack.c.h.b16 %v456
      %v824 = vunpack.c.l.b16 %v457
      %v825 = vunpack.c.h.b16 %v457
      %v826 = vunpack.c.l.b16 %v458
      %v827 = vunpack.c.h.b16 %v458
      %v828 = vunpack.c.l.b16 %v459
      %v829 = vunpack.c.l.b16 %v460
      %v830 = vunpack.c.h.b16 %v460
      %v831 = vunpack.c.l.b16 %v461
      %v832 = vunpack.c.h.b16 %v461
      %v833 = vunpack.c.l.b16 %v462
      %v834 = vunpack.c.h.b16 %v462
      %v835 = vunpack.c.l.b16 %v463
      %v836 = vunpack.c.l.b16 %v464
      %v837 = vunpack.c.h.b16 %v464
      %v838 = vunpack.c.l.b16 %v465
      %v839 = vunpack.c.h.b16 %v465
      %v840 = vunpack.c.l.b16 %v466
      %v841 = vunpack.c.h.b16 %v466
      %v842 = vunpack.c.l.b16 %v467
      %v843 = vunpack.c.l.b16 %v468
      %v844 = vunpack.c.h.b16 %v468
      %v845 = vunpack.c.l.b16 %v469
      %v846 = vunpack.c.h.b16 %v469
      %v847 = vunpack.c.l.b16 %v470
      %v848 = vunpack.c.h.b16 %v470
      %v849 = vunpack.c.l.b16 %v471
      %v850 = vunpack.c.l.b16 %v472
      %v851 = vunpack.c.h.b16 %v472
      %v852 = vunpack.c.l.b16 %v473
      %v853 = vunpack.c.h.b16 %v473
      %v854 = vunpack.c.l.b16 %v474
      %v855 = vunpack.c.h.b16 %v474
      %v856 = vunpack.c.l.b16 %v475
      %v857 = vunpack.c.l.b16 %v476
      %v858 = vunpack.c.h.b16 %v476
      %v859 = vunpack.c.l.b16 %v477
      %v860 = vunpack.c.h.b16 %v477
      %v861 = vunpack.c.l.b16 %v478
      %v862 = vunpack.c.h.b16 %v478
      %v863 = vunpack.c.l.b16 %v479
      %v864 = vunpack.c.l.b16 %v480
      %v865 = vunpack.c.h.b16 %v480
      %v866 = vunpack.c.l.b16 %v481
      %v867 = vunpack.c.h.b16 %v481
      %v868 = vunpack.c.l.b16 %v482
      %v869 = vunpack.c.h.b16 %v482
      %v870 = vunpack.c.l.b16 %v483
      %v871 = vunpack.c.l.b16 %v484
      %v872 = vunpack.c.h.b16 %v484
      %v873 = vunpack.c.l.b16 %v485
      %v874 = vunpack.c.h.b16 %v485
      %v875 = vunpack.c.l.b16 %v486
      %v876 = vunpack.c.h.b16 %v486
      %v877 = vunpack.c.l.b16 %v487
      %v878 = vunpack.c.l.b16 %v488
      %v879 = vunpack.c.h.b16 %v488
      %v880 = vunpack.c.l.b16 %v489
      %v881 = vunpack.c.h.b16 %v489
      %v882 = vunpack.c.l.b16 %v490
      %v883 = vunpack.c.h.b16 %v490
      %v884 = vunpack.c.l.b16 %v491
      %v885 = vunpack.c.l.b16 %v492
      %v886 = vunpack.c.h.b16 %v492
      %v887 = vunpack.c.l.b16 %v493
      %v888 = vunpack.c.h.b16 %v493
      %v889 = vunpack.c.l.b16 %v494
      %v890 = vunpack.c.h.b16 %v494
      %v891 = vunpack.c.l.b16 %v495
      %v892 = vunpack.c.l.b16 %v496
      %v893 = vunpack.c.h.b16 %v496
      %v894 = vunpack.c.l.b16 %v497
      %v895 = vunpack.c.h.b16 %v497
      %v896 = vunpack.c.l.b16 %v498
      %v897 = vunpack.c.h.b16 %v498
      %v898 = vunpack.c.l.b16 %v499
      %v899 = vunpack.c.l.b16 %v500
      %v900 = vunpack.c.h.b16 %v500
      %v901 = vunpack.c.l.b16 %v501
      %v902 = vunpack.c.h.b16 %v501
      %v903 = vunpack.c.l.b16 %v502
      %v904 = vunpack.c.h.b16 %v502
      %v905 = vunpack.c.l.b16 %v503
      %v906 = vunpack.c.l.b16 %v504
      %v907 = vunpack.c.h.b16 %v504
      %v908 = vunpack.c.l.b16 %v505
      %v909 = vunpack.c.h.b16 %v505
      %v910 = vunpack.c.l.b16 %v506
      %v911 = vunpack.c.h.b16 %v506
      %v912 = vunpack.c.l.b16 %v507
      %v913 = vunpack.c.l.b16 %v508
      %v914 = vunpack.c.h.b16 %v508
      %v915 = vunpack.c.l.b16 %v509
      %v916 = vunpack.c.h.b16 %v509
      %v917 = vunpack.c.l.b16 %v510
      %v918 = vunpack.c.h.b16 %v510
      %v919 = vunpack.c.l.b16 %v511
      %v920 = vunpack.c.l.b16 %v512
      %v921 = vunpack.c.h.b16 %v512
      %v922 = vunpack.c.l.b16 %v513
      %v923 = vunpack.c.h.b16 %v513
      %v924 = vunpack.c.l.b16 %v514
      %v925 = vunpack.c.h.b16 %v514
      %v926 = vunpack.c.l.b16 %v515
      %v927 = vunpack.c.l.b16 %v516
      %v928 = vunpack.c.h.b16 %v516
      %v929 = vunpack.c.l.b16 %v517
      %v930 = vunpack.c.h.b16 %v517
      %v931 = vunpack.c.l.b16 %v518
      %v932 = vunpack.c.h.b16 %v518
      %v933 = vunpack.c.l.b16 %v519
      %v934 = vunpack.c.l.b16 %v520
      %v935 = vunpack.c.h.b16 %v520
      %v936 = vunpack.c.l.b16 %v521
      %v937 = vunpack.c.h.b16 %v521
      %v938 = vunpack.c.l.b16 %v522
      %v939 = vunpack.c.h.b16 %v522
      %v940 = vunpack.c.l.b16 %v523
      %v941 = vunpack.c.l.b16 %v524
      %v942 = vunpack.c.h.b16 %v524
      %v943 = vunpack.c.l.b16 %v525
      %v944 = vunpack.c.h.b16 %v525
      %v945 = vunpack.c.l.b16 %v526
      %v946 = vunpack.c.h.b16 %v526
      %v947 = vunpack.c.l.b16 %v527
      %v948 = vunpack.c.l.b16 %v528
      %v949 = vunpack.c.h.b16 %v528
      %v950 = vunpack.c.l.b16 %v529
      %v951 = vunpack.c.h.b16 %v529
      %v952 = vunpack.c.l.b16 %v530
      %v953 = vunpack.c.h.b16 %v530
      %v954 = vunpack.c.l.b16 %v531
      %v955 = vunpack.c.l.b16 %v532
      %v956 = vunpack.c.h.b16 %v532
      %v957 = vunpack.c.l.b16 %v533
      %v958 = vunpack.c.h.b16 %v533
      %v959 = vunpack.c.l.b16 %v534
      %v960 = vunpack.c.h.b16 %v534
      %v961 = vunpack.c.l.b16 %v535
      %v962 = vunpack.c.l.b16 %v536
      %v963 = vunpack.c.h.b16 %v536
      %v964 = vunpack.c.l.b16 %v537
      %v965 = vunpack.c.h.b16 %v537
      %v966 = vunpack.c.l.b16 %v538
      %v967 = vunpack.c.h.b16 %v538
      %v968 = vunpack.c.l.b16 %v539
      %v969 = vunpack.c.l.b16 %v540
      %v970 = vunpack.c.h.b16 %v540
      %v971 = vunpack.c.l.b16 %v541
      %v972 = vunpack.c.h.b16 %v541
      %v973 = vunpack.c.l.b16 %v542
      %v974 = vunpack.c.h.b16 %v542
      %v975 = vunpack.c.l.b16 %v543
      %v976 = vunpack.c.l.b16 %v544
      %v977 = vunpack.c.h.b16 %v544
      %v978 = vunpack.c.l.b16 %v545
      %v979 = vunpack.c.h.b16 %v545
      %v980 = vunpack.c.l.b16 %v546
      %v981 = vunpack.c.h.b16 %v546
      %v982 = vunpack.c.l.b16 %v547
      %v983 = vunpack.c.l.b16 %v548
      %v984 = vunpack.c.h.b16 %v548
      %v985 = vunpack.c.l.b16 %v549
      %v986 = vunpack.c.h.b16 %v549
      %v987 = vunpack.c.l.b16 %v550
      %v988 = vunpack.c.h.b16 %v550
      %v989 = vunpack.c.l.b16 %v551
      %v990 = vunpack.c.l.b16 %v552
      %v991 = vunpack.c.h.b16 %v552
      %v992 = vunpack.c.l.b16 %v553
      %v993 = vunpack.c.h.b16 %v553
      %v994 = vunpack.c.l.b16 %v554
      %v995 = vunpack.c.h.b16 %v554
      %v996 = vunpack.c.l.b16 %v555
      %v997 = vunpack.c.l.b16 %v556
      %v998 = vunpack.c.h.b16 %v556
      %v999 = vunpack.c.l.b16 %v557
      %v1000 = vunpack.c.h.b16 %v557
      %v1001 = vunpack.c.l.b16 %v558
      %v1002 = vunpack.c.h.b16 %v558
      %v1003 = vunpack.c.l.b16 %v559
      %v1004 = vunpack.c.l.b16 %v560
      %v1005 = vunpack.c.h.b16 %v560
      %v1006 = vunpack.c.l.b16 %v561
      %v1007 = vunpack.c.h.b16 %v561
      %v1008 = vunpack.c.l.b16 %v562
      %v1009 = vunpack.c.h.b16 %v562
      %v1010 = vunpack.c.l.b16 %v563
      %v1011 = vunpack.c.l.b16 %v564
      %v1012 = vunpack.c.h.b16 %v564
      %v1013 = vunpack.c.l.b16 %v565
      %v1014 = vunpack.c.h.b16 %v565
      %v1015 = vunpack.c.l.b16 %v566
      %v1016 = vunpack.c.h.b16 %v566
      %v1017 = vunpack.c.l.b16 %v567
      %v1018 = vunpack.c.l.b16 %v568
      %v1019 = vunpack.c.h.b16 %v568
      %v1020 = vunpack.c.l.b16 %v569
      %v1021 = vunpack.c.h.b16 %v569
      %v1022 = vunpack.c.l.b16 %v570
      %v1023 = vunpack.c.h.b16 %v570
      %v1024 = vunpack.c.l.b16 %v571
      %v1025 = vunpack.c.l.b16 %v572
      %v1026 = vunpack.c.h.b16 %v572
      %v1027 = vunpack.c.l.b16 %v573
      %v1028 = vunpack.c.h.b16 %v573
      %v1029 = vunpack.c.l.b16 %v574
      %v1030 = vunpack.c.h.b16 %v574
      %v1031 = vunpack.c.l.b16 %v575
      %v1032 = vpack.c.b16 %v815, %v808
      %v1033 = vpack.c.b16 %v816, %v809
      %v1034 = vpack.c.b16 %v817, %v810
      %v1035 = vpack.c.b16 %v818, %v811
      %v1036 = vpack.c.b16 %v819, %v812
      %v1037 = vpack.c.b16 %v820, %v813
      %v1038 = vpack.c.b16 %v821, %v814
      %v1039 = vpack.c.b16 %v829, %v822
      %v1040 = vpack.c.b16 %v830, %v823
      %v1041 = vpack.c.b16 %v831, %v824
      %v1042 = vpack.c.b16 %v832, %v825
      %v1043 = vpack.c.b16 %v833, %v826
      %v1044 = vpack.c.b16 %v834, %v827
      %v1045 = vpack.c.b16 %v835, %v828
      %v1046 = vpack.c.b16 %v843, %v836
      %v1047 = vpack.c.b16 %v844, %v837
      %v1048 = vpack.c.b16 %v845, %v838
      %v1049 = vpack.c.b16 %v846, %v839
      %v1050 = vpack.c.b16 %v847, %v840
      %v1051 = vpack.c.b16 %v848, %v841
      %v1052 = vpack.c.b16 %v849, %v842
      %v1053 = vpack.c.b16 %v857, %v850
      %v1054 = vpack.c.b16 %v858, %v851
      %v1055 = vpack.c.b16 %v859, %v852
      %v1056 = vpack.c.b16 %v860, %v853
      %v1057 = vpack.c.b16 %v861, %v854
      %v1058 = vpack.c.b16 %v862, %v855
      %v1059 = vpack.c.b16 %v863, %v856
      %v1060 = vpack.c.b16 %v871, %v864
      %v1061 = vpack.c.b16 %v872, %v865
      %v1062 = vpack.c.b16 %v873, %v866
      %v1063 = vpack.c.b16 %v874, %v867
      %v1064 = vpack.c.b16 %v875, %v868
      %v1065 = vpack.c.b16 %v876, %v869
      %v1066 = vpack.c.b16 %v877, %v870
      %v1067 = vpack.c.b16 %v885, %v878
      %v1068 = vpack.c.b16 %v886, %v879
      %v1069 = vpack.c.b16 %v887, %v880
      %v1070 = vpack.c.b16 %v888, %v881
      %v1071 = vpack.c.b16 %v889, %v882
      %v1072 = vpack.c.b16 %v890, %v883
      %v1073 = vpack.c.b16 %v891, %v884
      %v1074 = vpack.c.b16 %v899, %v892
      %v1075 = vpack.c.b16 %v900, %v893
      %v1076 = vpack.c.b16 %v901, %v894
      %v1077 = vpack.c.b16 %v902, %v895
      %v1078 = vpack.c.b16 %v903, %v896
      %v1079 = vpack.c.b16 %v904, %v897
      %v1080 = vpack.c.b16 %v905, %v898
      %v1081 = vpack.c.b16 %v913, %v906
      %v1082 = vpack.c.b16 %v914, %v907
      %v1083 = vpack.c.b16 %v915, %v908
      %v1084 = vpack.c.b16 %v916, %v909
      %v1085 = vpack.c.b16 %v917, %v910
      %v1086 = vpack.c.b16 %v918, %v911
      %v1087 = vpack.c.b16 %v919, %v912
      %v1088 = vpack.c.b16 %v927, %v920
      %v1089 = vpack.c.b16 %v928, %v921
      %v1090 = vpack.c.b16 %v929, %v922
      %v1091 = vpack.c.b16 %v930, %v923
      %v1092 = vpack.c.b16 %v931, %v924
      %v1093 = vpack.c.b16 %v932, %v925
      %v1094 = vpack.c.b16 %v933, %v926
      %v1095 = vpack.c.b16 %v941, %v934
      %v1096 = vpack.c.b16 %v942, %v935
      %v1097 = vpack.c.b16 %v943, %v936
      %v1098 = vpack.c.b16 %v944, %v937
      %v1099 = vpack.c.b16 %v945, %v938
      %v1100 = vpack.c.b16 %v946, %v939
      %v1101 = vpack.c.b16 %v947, %v940
      %v1102 = vpack.c.b16 %v955, %v948
      %v1103 = vpack.c.b16 %v956, %v949
      %v1104 = vpack.c.b16 %v957, %v950
      %v1105 = vpack.c.b16 %v958, %v951
      %v1106 = vpack.c.b16 %v959, %v952
      %v1107 = vpack.c.b16 %v960, %v953
      %v1108 = vpack.c.b16 %v961, %v954
      %v1109 = vpack.c.b16 %v969, %v962
      %v1110 = vpack.c.b16 %v970, %v963
      %v1111 = vpack.c.b16 %v971, %v964
      %v1112 = vpack.c.b16 %v972, %v965
      %v1113 = vpack.c.b16 %v973, %v966
      %v1114 = vpack.c.b16 %v974, %v967
      %v1115 = vpack.c.b16 %v975, %v968
      %v1116 = vpack.c.b16 %v983, %v976
      %v1117 = vpack.c.b16 %v984, %v977
      %v1118 = vpack.c.b16 %v985, %v978
      %v1119 = vpack.c.b16 %v986, %v979
      %v1120 = vpack.c.b16 %v987, %v980
      %v1121 = vpack.c.b16 %v988, %v981
      %v1122 = vpack.c.b16 %v989, %v982
      %v1123 = vpack.c.b16 %v997, %v990
      %v1124 = vpack.c.b16 %v998, %v991
      %v1125 = vpack.c.b16 %v999, %v992
      %v1126 = vpack.c.b16 %v1000, %v993
      %v1127 = vpack.c.b16 %v1001, %v994
      %v1128 = vpack.c.b16 %v1002, %v995
      %v1129 = vpack.c.b16 %v1003, %v996
      %v1130 = vpack.c.b16 %v1011, %v1004
      %v1131 = vpack.c.b16 %v1012, %v1005
      %v1132 = vpack.c.b16 %v1013, %v1006
      %v1133 = vpack.c.b16 %v1014, %v1007
      %v1134 = vpack.c.b16 %v1015, %v1008
      %v1135 = vpack.c.b16 %v1016, %v1009
      %v1136 = vpack.c.b16 %v1017, %v1010
      %v1137 = vpack.c.b16 %v1025, %v1018
      %v1138 = vpack.c.b16 %v1026, %v1019
      %v1139 = vpack.c.b16 %v1027, %v1020
      %v1140 = vpack.c.b16 %v1028, %v1021
      %v1141 = vpack.c.b16 %v1029, %v1022
      %v1142 = vpack.c.b16 %v1030, %v1023
      %v1143 = vpack.c.b16 %v1031, %v1024
      %v1338 = vunpack.c.l.b16 %v576
      %v1339 = vunpack.c.h.b16 %v576
      %v1340 = vunpack.c.l.b16 %v577
      %v1341 = vunpack.c.h.b16 %v577
      %v1342 = vunpack.c.l.b16 %v578
      %v1343 = vunpack.c.h.b16 %v578
      %v1344 = vunpack.c.l.b16 %v579
      %v1345 = vunpack.c.h.b16 %v579
      %v1346 = vunpack.c.l.b16 %v580
      %v1347 = vunpack.c.h.b16 %v580
      %v1348 = vunpack.c.l.b16 %v581
      %v1349 = vunpack.c.h.b16 %v581
      %v1350 = vunpack.c.l.b16 %v582
      %v1351 = vunpack.c.h.b16 %v582
      %v1352 = vunpack.c.l.b16 %v583
      %v1353 = vunpack.c.h.b16 %v583
      %v1354 = vunpack.c.l.b16 %v584
      %v1355 = vunpack.c.h.b16 %v584
      %v1356 = vunpack.c.l.b16 %v585
      %v1357 = vunpack.c.h.b16 %v585
      %v1358 = vunpack.c.l.b16 %v586
      %v1359 = vunpack.c.h.b16 %v586
      %v1360 = vunpack.c.l.b16 %v587
      %v1361 = vunpack.c.h.b16 %v587
      %v1362 = vunpack.c.l.b16 %v588
      %v1363 = vunpack.c.h.b16 %v588
      %v1364 = vunpack.c.l.b16 %v589
      %v1365 = vunpack.c.h.b16 %v589
      %v1366 = vunpack.c.l.b16 %v590
      %v1367 = vunpack.c.h.b16 %v590
      %v1368 = vunpack.c.l.b16 %v591
      %v1369 = vunpack.c.h.b16 %v591
      %v1370 = vunpack.c.l.b16 %v592
      %v1371 = vunpack.c.h.b16 %v592
      %v1372 = vunpack.c.l.b16 %v593
      %v1373 = vunpack.c.h.b16 %v593
      %v1374 = vunpack.c.l.b16 %v594
      %v1375 = vunpack.c.h.b16 %v594
      %v1376 = vunpack.c.l.b16 %v595
      %v1377 = vunpack.c.h.b16 %v595
      %v1378 = vunpack.c.l.b16 %v596
      %v1379 = vunpack.c.h.b16 %v596
      %v1380 = vunpack.c.l.b16 %v597
      %v1381 = vunpack.c.h.b16 %v597
      %v1382 = vunpack.c.l.b16 %v598
      %v1383 = vunpack.c.h.b16 %v598
      %v1384 = vunpack.c.l.b16 %v599
      %v1385 = vunpack.c.h.b16 %v599
      %v1386 = vunpack.c.l.b16 %v600
      %v1387 = vunpack.c.h.b16 %v600
      %v1388 = vunpack.c.l.b16 %v601
      %v1389 = vunpack.c.h.b16 %v601
      %v1390 = vunpack.c.l.b16 %v602
      %v1391 = vunpack.c.h.b16 %v602
      %v1392 = vunpack.c.l.b16 %v603
      %v1393 = vunpack.c.h.b16 %v603
      %v1394 = vunpack.c.l.b16 %v604
      %v1395 = vunpack.c.h.b16 %v604
      %v1396 = vunpack.c.l.b16 %v605
      %v1397 = vunpack.c.h.b16 %v605
      %v1398 = vunpack.c.l.b16 %v606
      %v1399 = vunpack.c.h.b16 %v606
      %v1400 = vunpack.c.l.b16 %v607
      %v1401 = vunpack.c.h.b16 %v607
      %v1402 = vunpack.c.l.b16 %v608
      %v1403 = vunpack.c.h.b16 %v608
      %v1404 = vunpack.c.l.b16 %v609
      %v1405 = vunpack.c.h.b16 %v609
      %v1406 = vunpack.c.l.b16 %v610
      %v1407 = vunpack.c.h.b16 %v610
      %v1408 = vunpack.c.l.b16 %v611
      %v1409 = vunpack.c.h.b16 %v611
      %v1410 = vunpack.c.l.b16 %v612
      %v1411 = vunpack.c.h.b16 %v612
      %v1412 = vunpack.c.l.b16 %v613
      %v1413 = vunpack.c.h.b16 %v613
      %v1414 = vunpack.c.l.b16 %v614
      %v1415 = vunpack.c.h.b16 %v614
      %v1416 = vunpack.c.l.b16 %v615
      %v1417 = vunpack.c.h.b16 %v615
      %v1418 = vunpack.c.l.b16 %v616
      %v1419 = vunpack.c.h.b16 %v616
      %v1420 = vunpack.c.l.b16 %v617
      %v1421 = vunpack.c.h.b16 %v617
      %v1422 = vunpack.c.l.b16 %v618
      %v1423 = vunpack.c.h.b16 %v618
      %v1424 = vunpack.c.l.b16 %v619
      %v1425 = vunpack.c.h.b16 %v619
      %v1426 = vunpack.c.l.b16 %v620
      %v1427 = vunpack.c.h.b16 %v620
      %v1428 = vunpack.c.l.b16 %v621
      %v1429 = vunpack.c.h.b16 %v621
      %v1430 = vunpack.c.l.b16 %v622
      %v1431 = vunpack.c.h.b16 %v622
      %v1432 = vunpack.c.l.b16 %v623
      %v1433 = vunpack.c.h.b16 %v623
      %v1434 = vunpack.c.l.b16 %v624
      %v1435 = vunpack.c.h.b16 %v624
      %v1436 = vunpack.c.l.b16 %v625
      %v1437 = vunpack.c.h.b16 %v625
      %v1438 = vunpack.c.l.b16 %v626
      %v1439 = vunpack.c.h.b16 %v626
      %v1440 = vunpack.c.l.b16 %v627
      %v1441 = vunpack.c.h.b16 %v627
      %v1442 = vunpack.c.l.b16 %v628
      %v1443 = vunpack.c.h.b16 %v628
      %v1444 = vunpack.c.l.b16 %v629
      %v1445 = vunpack.c.h.b16 %v629
      %v1446 = vunpack.c.l.b16 %v630
      %v1447 = vunpack.c.h.b16 %v630
      %v1448 = vunpack.c.l.b16 %v631
      %v1449 = vunpack.c.h.b16 %v631
      %v1450 = vunpack.c.l.b16 %v632
      %v1451 = vunpack.c.h.b16 %v632
      %v1452 = vunpack.c.l.b16 %v633
      %v1453 = vunpack.c.h.b16 %v633
      %v1454 = vunpack.c.l.b16 %v634
      %v1455 = vunpack.c.h.b16 %v634
      %v1456 = vunpack.c.l.b16 %v635
      %v1457 = vunpack.c.h.b16 %v635
      %v1458 = vunpack.c.l.b16 %v636
      %v1459 = vunpack.c.h.b16 %v636
      %v1460 = vunpack.c.l.b16 %v637
      %v1461 = vunpack.c.h.b16 %v637
      %v1462 = vunpack.c.l.b16 %v638
      %v1463 = vunpack.c.h.b16 %v638
      %v1464 = vunpack.c.l.b16 %v639
      %v1465 = vunpack.c.h.b16 %v639
      %v1466 = vunpack.c.l.b16 %v640
      %v1467 = vunpack.c.h.b16 %v640
      %v1468 = vunpack.c.l.b16 %v641
      %v1469 = vunpack.c.h.b16 %v641
      %v1470 = vunpack.c.l.b16 %v642
      %v1471 = vunpack.c.h.b16 %v642
      %v1472 = vunpack.c.l.b16 %v643
      %v1473 = vunpack.c.h.b16 %v643
      %v1474 = vunpack.c.l.b16 %v644
      %v1475 = vunpack.c.h.b16 %v644
      %v1476 = vunpack.c.l.b16 %v645
      %v1477 = vunpack.c.h.b16 %v645
      %v1478 = vunpack.c.l.b16 %v646
      %v1479 = vunpack.c.h.b16 %v646
      %v1480 = vunpack.c.l.b16 %v647
      %v1481 = vunpack.c.h.b16 %v647
      %v1482 = vunpack.c.l.b16 %v648
      %v1483 = vunpack.c.h.b16 %v648
      %v1484 = vunpack.c.l.b16 %v649
      %v1485 = vunpack.c.h.b16 %v649
      %v1486 = vunpack.c.l.b16 %v650
      %v1487 = vunpack.c.h.b16 %v650
      %v1488 = vunpack.c.l.b16 %v651
      %v1489 = vunpack.c.h.b16 %v651
      %v1490 = vunpack.c.l.b16 %v652
      %v1491 = vunpack.c.h.b16 %v652
      %v1492 = vunpack.c.l.b16 %v653
      %v1493 = vunpack.c.h.b16 %v653
      %v1494 = vunpack.c.l.b16 %v654
      %v1495 = vunpack.c.h.b16 %v654
      %v1496 = vunpack.c.l.b16 %v655
      %v1497 = vunpack.c.h.b16 %v655
      %v1498 = vunpack.c.l.b16 %v656
      %v1499 = vunpack.c.h.b16 %v656
      %v1500 = vunpack.c.l.b16 %v657
      %v1501 = vunpack.c.h.b16 %v657
      %v1502 = vunpack.c.l.b16 %v658
      %v1503 = vunpack.c.h.b16 %v658
      %v1504 = vunpack.c.l.b16 %v659
      %v1505 = vunpack.c.h.b16 %v659
      %v1506 = vunpack.c.l.b16 %v660
      %v1507 = vunpack.c.h.b16 %v660
      %v1508 = vunpack.c.l.b16 %v661
      %v1509 = vunpack.c.h.b16 %v661
      %v1510 = vunpack.c.l.b16 %v662
      %v1511 = vunpack.c.h.b16 %v662
      %v1512 = vunpack.c.l.b16 %v663
      %v1513 = vunpack.c.h.b16 %v663
      %v1514 = vunpack.c.l.b16 %v664
      %v1515 = vunpack.c.h.b16 %v664
      %v1516 = vunpack.c.l.b16 %v665
      %v1517 = vunpack.c.h.b16 %v665
      %v1518 = vunpack.c.l.b16 %v666
      %v1519 = vunpack.c.h.b16 %v666
      %v1520 = vunpack.c.l.b16 %v667
      %v1521 = vunpack.c.h.b16 %v667
      %v1522 = vunpack.c.l.b16 %v668
      %v1523 = vunpack.c.h.b16 %v668
      %v1524 = vunpack.c.l.b16 %v669
      %v1525 = vunpack.c.h.b16 %v669
      %v1526 = vunpack.c.l.b16 %v670
      %v1527 = vunpack.c.h.b16 %v670
      %v1528 = vunpack.c.l.b16 %v671
      %v1529 = vunpack.c.h.b16 %v671
      %v1530 = vunpack.c.l.b16 %v672
      %v1531 = vunpack.c.h.b16 %v672
      %v1532 = vunpack.c.l.b16 %v673
      %v1533 = vunpack.c.h.b16 %v673
      %v1534 = vpack.c.b16 %v1340, %v1338
      %v1535 = vpack.c.b16 %v1341, %v1339
      %v1536 = vpack.c.b16 %v1344, %v1342
      %v1537 = vpack.c.b16 %v1345, %v1343
      %v1538 = vpack.c.b16 %v1348, %v1346
      %v1539 = vpack.c.b16 %v1349, %v1347
      %v1540 = vpack.c.b16 %v1352, %v1350
      %v1541 = vpack.c.b16 %v1353, %v1351
      %v1542 = vpack.c.b16 %v1356, %v1354
      %v1543 = vpack.c.b16 %v1357, %v1355
      %v1544 = vpack.c.b16 %v1360, %v1358
      %v1545 = vpack.c.b16 %v1361, %v1359
      %v1546 = vpack.c.b16 %v1364, %v1362
      %v1547 = vpack.c.b16 %v1365, %v1363
      %v1548 = vpack.c.b16 %v1368, %v1366
      %v1549 = vpack.c.b16 %v1369, %v1367
      %v1550 = vpack.c.b16 %v1372, %v1370
      %v1551 = vpack.c.b16 %v1373, %v1371
      %v1552 = vpack.c.b16 %v1376, %v1374
      %v1553 = vpack.c.b16 %v1377, %v1375
      %v1554 = vpack.c.b16 %v1380, %v1378
      %v1555 = vpack.c.b16 %v1381, %v1379
      %v1556 = vpack.c.b16 %v1384, %v1382
      %v1557 = vpack.c.b16 %v1385, %v1383
      %v1558 = vpack.c.b16 %v1388, %v1386
      %v1559 = vpack.c.b16 %v1389, %v1387
      %v1560 = vpack.c.b16 %v1392, %v1390
      %v1561 = vpack.c.b16 %v1393, %v1391
      %v1562 = vpack.c.b16 %v1396, %v1394
      %v1563 = vpack.c.b16 %v1397, %v1395
      %v1564 = vpack.c.b16 %v1400, %v1398
      %v1565 = vpack.c.b16 %v1401, %v1399
      %v1566 = vpack.c.b16 %v1404, %v1402
      %v1567 = vpack.c.b16 %v1405, %v1403
      %v1568 = vpack.c.b16 %v1408, %v1406
      %v1569 = vpack.c.b16 %v1409, %v1407
      %v1570 = vpack.c.b16 %v1412, %v1410
      %v1571 = vpack.c.b16 %v1413, %v1411
      %v1572 = vpack.c.b16 %v1416, %v1414
      %v1573 = vpack.c.b16 %v1417, %v1415
      %v1574 = vpack.c.b16 %v1420, %v1418
      %v1575 = vpack.c.b16 %v1421, %v1419
      %v1576 = vpack.c.b16 %v1424, %v1422
      %v1577 = vpack.c.b16 %v1425, %v1423
      %v1578 = vpack.c.b16 %v1428, %v1426
      %v1579 = vpack.c.b16 %v1429, %v1427
      %v1580 = vpack.c.b16 %v1432, %v1430
      %v1581 = vpack.c.b16 %v1433, %v1431
      %v1582 = vpack.c.b16 %v1436, %v1434
      %v1583 = vpack.c.b16 %v1437, %v1435
      %v1584 = vpack.c.b16 %v1440, %v1438
      %v1585 = vpack.c.b16 %v1441, %v1439
      %v1586 = vpack.c.b16 %v1444, %v1442
      %v1587 = vpack.c.b16 %v1445, %v1443
      %v1588 = vpack.c.b16 %v1448, %v1446
      %v1589 = vpack.c.b16 %v1449, %v1447
      %v1590 = vpack.c.b16 %v1452, %v1450
      %v1591 = vpack.c.b16 %v1453, %v1451
      %v1592 = vpack.c.b16 %v1456, %v1454
      %v1593 = vpack.c.b16 %v1457, %v1455
      %v1594 = vpack.c.b16 %v1460, %v1458
      %v1595 = vpack.c.b16 %v1461, %v1459
      %v1596 = vpack.c.b16 %v1464, %v1462
      %v1597 = vpack.c.b16 %v1465, %v1463
      %v1598 = vpack.c.b16 %v1468, %v1466
      %v1599 = vpack.c.b16 %v1469, %v1467
      %v1600 = vpack.c.b16 %v1472, %v1470
      %v1601 = vpack.c.b16 %v1473, %v1471
      %v1602 = vpack.c.b16 %v1476, %v1474
      %v1603 = vpack.c.b16 %v1477, %v1475
      %v1604 = vpack.c.b16 %v1480, %v1478
      %v1605 = vpack.c.b16 %v1481, %v1479
      %v1606 = vpack.c.b16 %v1484, %v1482
      %v1607 = vpack.c.b16 %v1485, %v1483
      %v1608 = vpack.c.b16 %v1488, %v1486
      %v1609 = vpack.c.b16 %v1489, %v1487
      %v1610 = vpack.c.b16 %v1492, %v1490
      %v1611 = vpack.c.b16 %v1493, %v1491
      %v1612 = vpack.c.b16 %v1496, %v1494
      %v1613 = vpack.c.b16 %v1497, %v1495
      %v1614 = vpack.c.b16 %v1500, %v1498
      %v1615 = vpack.c.b16 %v1501, %v1499
      %v1616 = vpack.c.b16 %v1504, %v1502
      %v1617 = vpack.c.b16 %v1505, %v1503
      %v1618 = vpack.c.b16 %v1508, %v1506
      %v1619 = vpack.c.b16 %v1509, %v1507
      %v1620 = vpack.c.b16 %v1512, %v1510
      %v1621 = vpack.c.b16 %v1513, %v1511
      %v1622 = vpack.c.b16 %v1516, %v1514
      %v1623 = vpack.c.b16 %v1517, %v1515
      %v1624 = vpack.c.b16 %v1520, %v1518
      %v1625 = vpack.c.b16 %v1521, %v1519
      %v1626 = vpack.c.b16 %v1524, %v1522
      %v1627 = vpack.c.b16 %v1525, %v1523
      %v1628 = vpack.c.b16 %v1528, %v1526
      %v1629 = vpack.c.b16 %v1529, %v1527
      %v1630 = vpack.c.b16 %v1532, %v1530
      %v1631 = vpack.c.b16 %v1533, %v1531
      %vm1730 = vcmask 130048
      %v1732 = vsel %vm1730, %v1038, 0
      %v1735 = vsel %vm1730, %v1045, 0
      %v1738 = vsel %vm1730, %v1052, 0
      %v1741 = vsel %vm1730, %v1059, 0
      %v1744 = vsel %vm1730, %v1066, 0
      %v1747 = vsel %vm1730, %v1073, 0
      %v1750 = vsel %vm1730, %v1080, 0
      %v1753 = vsel %vm1730, %v1087, 0
      %v1756 = vsel %vm1730, %v1094, 0
      %v1759 = vsel %vm1730, %v1101, 0
      %v1762 = vsel %vm1730, %v1108, 0
      %v1765 = vsel %vm1730, %v1115, 0
      %v1768 = vsel %vm1730, %v1122, 0
      %v1771 = vsel %vm1730, %v1129, 0
      %v1774 = vsel %vm1730, %v1136, 0
      %v1777 = vsel %vm1730, %v1143, 0
      %1779 = vmatpush.bf16.msra.mxu0 %v1548
      %1780 = vmatpush.bf16.msra.mxu0 %v1546
      %1781 = vmatpush.bf16.msra.mxu0 %v1544
      %1782 = vmatpush.bf16.msra.mxu0 %v1542
      %1783 = vmatpush.bf16.msra.mxu0 %v1540
      %1784 = vmatpush.bf16.msra.mxu0 %v1538
      %1785 = vmatpush.bf16.msra.mxu0 %v1536
      %1786 = vmatpush.bf16.msra.mxu0 %v1534
      %1787 = vmatmul.bf16.gmra.mxu0 %v1032
      %v1788 = vpop.f32.mrf.mxu0
      %v1789 = vadd.f32 %v676, %v1788
      %v1790 = vpop.f32.mrf.mxu0
      %v1791 = vadd.f32 %v676, %v1790
      %1792 = vmatmul.bf16.gmra.mxu0 %v1039
      %v1793 = vpop.f32.mrf.mxu0
      %v1794 = vadd.f32 %v676, %v1793
      %v1795 = vpop.f32.mrf.mxu0
      %v1796 = vadd.f32 %v676, %v1795
      %1797 = vmatmul.bf16.gmra.mxu0 %v1046
      %v1798 = vpop.f32.mrf.mxu0
      %v1799 = vadd.f32 %v676, %v1798
      %v1800 = vpop.f32.mrf.mxu0
      %v1801 = vadd.f32 %v676, %v1800
      %1802 = vmatmul.bf16.gmra.mxu0 %v1053
      %v1803 = vpop.f32.mrf.mxu0
      %v1804 = vadd.f32 %v676, %v1803
      %v1805 = vpop.f32.mrf.mxu0
      %v1806 = vadd.f32 %v676, %v1805
      %1807 = vmatmul.bf16.gmra.mxu0 %v1060
      %v1808 = vpop.f32.mrf.mxu0
      %v1809 = vadd.f32 %v676, %v1808
      %v1810 = vpop.f32.mrf.mxu0
      %v1811 = vadd.f32 %v676, %v1810
      %1812 = vmatmul.bf16.gmra.mxu0 %v1067
      %v1813 = vpop.f32.mrf.mxu0
      %v1814 = vadd.f32 %v676, %v1813
      %v1815 = vpop.f32.mrf.mxu0
      %v1816 = vadd.f32 %v676, %v1815
      %1817 = vmatmul.bf16.gmra.mxu0 %v1074
      %v1818 = vpop.f32.mrf.mxu0
      %v1819 = vadd.f32 %v676, %v1818
      %v1820 = vpop.f32.mrf.mxu0
      %v1821 = vadd.f32 %v676, %v1820
      %1822 = vmatmul.bf16.gmra.mxu0 %v1081
      %v1823 = vpop.f32.mrf.mxu0
      %v1824 = vadd.f32 %v676, %v1823
      %v1825 = vpop.f32.mrf.mxu0
      %v1826 = vadd.f32 %v676, %v1825
      %1827 = vmatmul.bf16.gmra.mxu0 %v1088
      %v1828 = vpop.f32.mrf.mxu0
      %v1829 = vadd.f32 %v676, %v1828
      %v1830 = vpop.f32.mrf.mxu0
      %v1831 = vadd.f32 %v676, %v1830
      %1832 = vmatmul.bf16.gmra.mxu0 %v1095
      %v1833 = vpop.f32.mrf.mxu0
      %v1834 = vadd.f32 %v676, %v1833
      %v1835 = vpop.f32.mrf.mxu0
      %v1836 = vadd.f32 %v676, %v1835
      %1837 = vmatmul.bf16.gmra.mxu0 %v1102
      %v1838 = vpop.f32.mrf.mxu0
      %v1839 = vadd.f32 %v676, %v1838
      %v1840 = vpop.f32.mrf.mxu0
      %v1841 = vadd.f32 %v676, %v1840
      %1842 = vmatmul.bf16.gmra.mxu0 %v1109
      %v1843 = vpop.f32.mrf.mxu0
      %v1844 = vadd.f32 %v676, %v1843
      %v1845 = vpop.f32.mrf.mxu0
      %v1846 = vadd.f32 %v676, %v1845
      %1847 = vmatmul.bf16.gmra.mxu0 %v1116
      %v1848 = vpop.f32.mrf.mxu0
      %v1849 = vadd.f32 %v676, %v1848
      %v1850 = vpop.f32.mrf.mxu0
      %v1851 = vadd.f32 %v676, %v1850
      %1852 = vmatmul.bf16.gmra.mxu0 %v1123
      %v1853 = vpop.f32.mrf.mxu0
      %v1854 = vadd.f32 %v676, %v1853
      %v1855 = vpop.f32.mrf.mxu0
      %v1856 = vadd.f32 %v676, %v1855
      %1857 = vmatmul.bf16.gmra.mxu0 %v1130
      %v1858 = vpop.f32.mrf.mxu0
      %v1859 = vadd.f32 %v676, %v1858
      %v1860 = vpop.f32.mrf.mxu0
      %v1861 = vadd.f32 %v676, %v1860
      %1862 = vmatmul.bf16.gmra.mxu0 %v1137
      %v1863 = vpop.f32.mrf.mxu0
      %v1864 = vadd.f32 %v676, %v1863
      %v1865 = vpop.f32.mrf.mxu0
      %v1866 = vadd.f32 %v676, %v1865
      %1867 = vdwg.mxu0
      %1868 = vmatpush.bf16.msra.mxu0 %v1564
      %1869 = vmatpush.bf16.msra.mxu0 %v1562
      %1870 = vmatpush.bf16.msra.mxu0 %v1560
      %1871 = vmatpush.bf16.msra.mxu0 %v1558
      %1872 = vmatpush.bf16.msra.mxu0 %v1556
      %1873 = vmatpush.bf16.msra.mxu0 %v1554
      %1874 = vmatpush.bf16.msra.mxu0 %v1552
      %1875 = vmatpush.bf16.msra.mxu0 %v1550
      %1876 = vmatmul.bf16.gmra.mxu0 %v1033
      %v1877 = vpop.f32.mrf.mxu0
      %v1878 = vadd.f32 %v1789, %v1877
      %v1879 = vpop.f32.mrf.mxu0
      %v1880 = vadd.f32 %v1791, %v1879
      %1881 = vmatmul.bf16.gmra.mxu0 %v1040
      %v1882 = vpop.f32.mrf.mxu0
      %v1883 = vadd.f32 %v1794, %v1882
      %v1884 = vpop.f32.mrf.mxu0
      %v1885 = vadd.f32 %v1796, %v1884
      %1886 = vmatmul.bf16.gmra.mxu0 %v1047
      %v1887 = vpop.f32.mrf.mxu0
      %v1888 = vadd.f32 %v1799, %v1887
      %v1889 = vpop.f32.mrf.mxu0
      %v1890 = vadd.f32 %v1801, %v1889
      %1891 = vmatmul.bf16.gmra.mxu0 %v1054
      %v1892 = vpop.f32.mrf.mxu0
      %v1893 = vadd.f32 %v1804, %v1892
      %v1894 = vpop.f32.mrf.mxu0
      %v1895 = vadd.f32 %v1806, %v1894
      %1896 = vmatmul.bf16.gmra.mxu0 %v1061
      %v1897 = vpop.f32.mrf.mxu0
      %v1898 = vadd.f32 %v1809, %v1897
      %v1899 = vpop.f32.mrf.mxu0
      %v1900 = vadd.f32 %v1811, %v1899
      %1901 = vmatmul.bf16.gmra.mxu0 %v1068
      %v1902 = vpop.f32.mrf.mxu0
      %v1903 = vadd.f32 %v1814, %v1902
      %v1904 = vpop.f32.mrf.mxu0
      %v1905 = vadd.f32 %v1816, %v1904
      %1906 = vmatmul.bf16.gmra.mxu0 %v1075
      %v1907 = vpop.f32.mrf.mxu0
      %v1908 = vadd.f32 %v1819, %v1907
      %v1909 = vpop.f32.mrf.mxu0
      %v1910 = vadd.f32 %v1821, %v1909
      %1911 = vmatmul.bf16.gmra.mxu0 %v1082
      %v1912 = vpop.f32.mrf.mxu0
      %v1913 = vadd.f32 %v1824, %v1912
      %v1914 = vpop.f32.mrf.mxu0
      %v1915 = vadd.f32 %v1826, %v1914
      %1916 = vmatmul.bf16.gmra.mxu0 %v1089
      %v1917 = vpop.f32.mrf.mxu0
      %v1918 = vadd.f32 %v1829, %v1917
      %v1919 = vpop.f32.mrf.mxu0
      %v1920 = vadd.f32 %v1831, %v1919
      %1921 = vmatmul.bf16.gmra.mxu0 %v1096
      %v1922 = vpop.f32.mrf.mxu0
      %v1923 = vadd.f32 %v1834, %v1922
      %v1924 = vpop.f32.mrf.mxu0
      %v1925 = vadd.f32 %v1836, %v1924
      %1926 = vmatmul.bf16.gmra.mxu0 %v1103
      %v1927 = vpop.f32.mrf.mxu0
      %v1928 = vadd.f32 %v1839, %v1927
      %v1929 = vpop.f32.mrf.mxu0
      %v1930 = vadd.f32 %v1841, %v1929
      %1931 = vmatmul.bf16.gmra.mxu0 %v1110
      %v1932 = vpop.f32.mrf.mxu0
      %v1933 = vadd.f32 %v1844, %v1932
      %v1934 = vpop.f32.mrf.mxu0
      %v1935 = vadd.f32 %v1846, %v1934
      %1936 = vmatmul.bf16.gmra.mxu0 %v1117
      %v1937 = vpop.f32.mrf.mxu0
      %v1938 = vadd.f32 %v1849, %v1937
      %v1939 = vpop.f32.mrf.mxu0
      %v1940 = vadd.f32 %v1851, %v1939
      %1941 = vmatmul.bf16.gmra.mxu0 %v1124
      %v1942 = vpop.f32.mrf.mxu0
      %v1943 = vadd.f32 %v1854, %v1942
      %v1944 = vpop.f32.mrf.mxu0
      %v1945 = vadd.f32 %v1856, %v1944
      %1946 = vmatmul.bf16.gmra.mxu0 %v1131
      %v1947 = vpop.f32.mrf.mxu0
      %v1948 = vadd.f32 %v1859, %v1947
      %v1949 = vpop.f32.mrf.mxu0
      %v1950 = vadd.f32 %v1861, %v1949
      %1951 = vmatmul.bf16.gmra.mxu0 %v1138
      %v1952 = vpop.f32.mrf.mxu0
      %v1953 = vadd.f32 %v1864, %v1952
      %v1954 = vpop.f32.mrf.mxu0
      %v1955 = vadd.f32 %v1866, %v1954
      %1956 = vdwg.mxu0
      %1957 = vmatpush.bf16.msra.mxu0 %v1580
      %1958 = vmatpush.bf16.msra.mxu0 %v1578
      %1959 = vmatpush.bf16.msra.mxu0 %v1576
      %1960 = vmatpush.bf16.msra.mxu0 %v1574
      %1961 = vmatpush.bf16.msra.mxu0 %v1572
      %1962 = vmatpush.bf16.msra.mxu0 %v1570
      %1963 = vmatpush.bf16.msra.mxu0 %v1568
      %1964 = vmatpush.bf16.msra.mxu0 %v1566
      %1965 = vmatmul.bf16.gmra.mxu0 %v1034
      %v1966 = vpop.f32.mrf.mxu0
      %v1967 = vadd.f32 %v1878, %v1966
      %v1968 = vpop.f32.mrf.mxu0
      %v1969 = vadd.f32 %v1880, %v1968
      %1970 = vmatmul.bf16.gmra.mxu0 %v1041
      %v1971 = vpop.f32.mrf.mxu0
      %v1972 = vadd.f32 %v1883, %v1971
      %v1973 = vpop.f32.mrf.mxu0
      %v1974 = vadd.f32 %v1885, %v1973
      %1975 = vmatmul.bf16.gmra.mxu0 %v1048
      %v1976 = vpop.f32.mrf.mxu0
      %v1977 = vadd.f32 %v1888, %v1976
      %v1978 = vpop.f32.mrf.mxu0
      %v1979 = vadd.f32 %v1890, %v1978
      %1980 = vmatmul.bf16.gmra.mxu0 %v1055
      %v1981 = vpop.f32.mrf.mxu0
      %v1982 = vadd.f32 %v1893, %v1981
      %v1983 = vpop.f32.mrf.mxu0
      %v1984 = vadd.f32 %v1895, %v1983
      %1985 = vmatmul.bf16.gmra.mxu0 %v1062
      %v1986 = vpop.f32.mrf.mxu0
      %v1987 = vadd.f32 %v1898, %v1986
      %v1988 = vpop.f32.mrf.mxu0
      %v1989 = vadd.f32 %v1900, %v1988
      %1990 = vmatmul.bf16.gmra.mxu0 %v1069
      %v1991 = vpop.f32.mrf.mxu0
      %v1992 = vadd.f32 %v1903, %v1991
      %v1993 = vpop.f32.mrf.mxu0
      %v1994 = vadd.f32 %v1905, %v1993
      %1995 = vmatmul.bf16.gmra.mxu0 %v1076
      %v1996 = vpop.f32.mrf.mxu0
      %v1997 = vadd.f32 %v1908, %v1996
      %v1998 = vpop.f32.mrf.mxu0
      %v1999 = vadd.f32 %v1910, %v1998
      %2000 = vmatmul.bf16.gmra.mxu0 %v1083
      %v2001 = vpop.f32.mrf.mxu0
      %v2002 = vadd.f32 %v1913, %v2001
      %v2003 = vpop.f32.mrf.mxu0
      %v2004 = vadd.f32 %v1915, %v2003
      %2005 = vmatmul.bf16.gmra.mxu0 %v1090
      %v2006 = vpop.f32.mrf.mxu0
      %v2007 = vadd.f32 %v1918, %v2006
      %v2008 = vpop.f32.mrf.mxu0
      %v2009 = vadd.f32 %v1920, %v2008
      %2010 = vmatmul.bf16.gmra.mxu0 %v1097
      %v2011 = vpop.f32.mrf.mxu0
      %v2012 = vadd.f32 %v1923, %v2011
      %v2013 = vpop.f32.mrf.mxu0
      %v2014 = vadd.f32 %v1925, %v2013
      %2015 = vmatmul.bf16.gmra.mxu0 %v1104
      %v2016 = vpop.f32.mrf.mxu0
      %v2017 = vadd.f32 %v1928, %v2016
      %v2018 = vpop.f32.mrf.mxu0
      %v2019 = vadd.f32 %v1930, %v2018
      %2020 = vmatmul.bf16.gmra.mxu0 %v1111
      %v2021 = vpop.f32.mrf.mxu0
      %v2022 = vadd.f32 %v1933, %v2021
      %v2023 = vpop.f32.mrf.mxu0
      %v2024 = vadd.f32 %v1935, %v2023
      %2025 = vmatmul.bf16.gmra.mxu0 %v1118
      %v2026 = vpop.f32.mrf.mxu0
      %v2027 = vadd.f32 %v1938, %v2026
      %v2028 = vpop.f32.mrf.mxu0
      %v2029 = vadd.f32 %v1940, %v2028
      %2030 = vmatmul.bf16.gmra.mxu0 %v1125
      %v2031 = vpop.f32.mrf.mxu0
      %v2032 = vadd.f32 %v1943, %v2031
      %v2033 = vpop.f32.mrf.mxu0
      %v2034 = vadd.f32 %v1945, %v2033
      %2035 = vmatmul.bf16.gmra.mxu0 %v1132
      %v2036 = vpop.f32.mrf.mxu0
      %v2037 = vadd.f32 %v1948, %v2036
      %v2038 = vpop.f32.mrf.mxu0
      %v2039 = vadd.f32 %v1950, %v2038
      %2040 = vmatmul.bf16.gmra.mxu0 %v1139
      %v2041 = vpop.f32.mrf.mxu0
      %v2042 = vadd.f32 %v1953, %v2041
      %v2043 = vpop.f32.mrf.mxu0
      %v2044 = vadd.f32 %v1955, %v2043
      %2045 = vdwg.mxu0
      %2046 = vmatpush.bf16.msra.mxu0 %v1596
      %2047 = vmatpush.bf16.msra.mxu0 %v1594
      %2048 = vmatpush.bf16.msra.mxu0 %v1592
      %2049 = vmatpush.bf16.msra.mxu0 %v1590
      %2050 = vmatpush.bf16.msra.mxu0 %v1588
      %2051 = vmatpush.bf16.msra.mxu0 %v1586
      %2052 = vmatpush.bf16.msra.mxu0 %v1584
      %2053 = vmatpush.bf16.msra.mxu0 %v1582
      %2054 = vmatmul.bf16.gmra.mxu0 %v1035
      %v2055 = vpop.f32.mrf.mxu0
      %v2056 = vadd.f32 %v1967, %v2055
      %v2057 = vpop.f32.mrf.mxu0
      %v2058 = vadd.f32 %v1969, %v2057
      %2059 = vmatmul.bf16.gmra.mxu0 %v1042
      %v2060 = vpop.f32.mrf.mxu0
      %v2061 = vadd.f32 %v1972, %v2060
      %v2062 = vpop.f32.mrf.mxu0
      %v2063 = vadd.f32 %v1974, %v2062
      %2064 = vmatmul.bf16.gmra.mxu0 %v1049
      %v2065 = vpop.f32.mrf.mxu0
      %v2066 = vadd.f32 %v1977, %v2065
      %v2067 = vpop.f32.mrf.mxu0
      %v2068 = vadd.f32 %v1979, %v2067
      %2069 = vmatmul.bf16.gmra.mxu0 %v1056
      %v2070 = vpop.f32.mrf.mxu0
      %v2071 = vadd.f32 %v1982, %v2070
      %v2072 = vpop.f32.mrf.mxu0
      %v2073 = vadd.f32 %v1984, %v2072
      %2074 = vmatmul.bf16.gmra.mxu0 %v1063
      %v2075 = vpop.f32.mrf.mxu0
      %v2076 = vadd.f32 %v1987, %v2075
      %v2077 = vpop.f32.mrf.mxu0
      %v2078 = vadd.f32 %v1989, %v2077
      %2079 = vmatmul.bf16.gmra.mxu0 %v1070
      %v2080 = vpop.f32.mrf.mxu0
      %v2081 = vadd.f32 %v1992, %v2080
      %v2082 = vpop.f32.mrf.mxu0
      %v2083 = vadd.f32 %v1994, %v2082
      %2084 = vmatmul.bf16.gmra.mxu0 %v1077
      %v2085 = vpop.f32.mrf.mxu0
      %v2086 = vadd.f32 %v1997, %v2085
      %v2087 = vpop.f32.mrf.mxu0
      %v2088 = vadd.f32 %v1999, %v2087
      %2089 = vmatmul.bf16.gmra.mxu0 %v1084
      %v2090 = vpop.f32.mrf.mxu0
      %v2091 = vadd.f32 %v2002, %v2090
      %v2092 = vpop.f32.mrf.mxu0
      %v2093 = vadd.f32 %v2004, %v2092
      %2094 = vmatmul.bf16.gmra.mxu0 %v1091
      %v2095 = vpop.f32.mrf.mxu0
      %v2096 = vadd.f32 %v2007, %v2095
      %v2097 = vpop.f32.mrf.mxu0
      %v2098 = vadd.f32 %v2009, %v2097
      %2099 = vmatmul.bf16.gmra.mxu0 %v1098
      %v2100 = vpop.f32.mrf.mxu0
      %v2101 = vadd.f32 %v2012, %v2100
      %v2102 = vpop.f32.mrf.mxu0
      %v2103 = vadd.f32 %v2014, %v2102
      %2104 = vmatmul.bf16.gmra.mxu0 %v1105
      %v2105 = vpop.f32.mrf.mxu0
      %v2106 = vadd.f32 %v2017, %v2105
      %v2107 = vpop.f32.mrf.mxu0
      %v2108 = vadd.f32 %v2019, %v2107
      %2109 = vmatmul.bf16.gmra.mxu0 %v1112
      %v2110 = vpop.f32.mrf.mxu0
      %v2111 = vadd.f32 %v2022, %v2110
      %v2112 = vpop.f32.mrf.mxu0
      %v2113 = vadd.f32 %v2024, %v2112
      %2114 = vmatmul.bf16.gmra.mxu0 %v1119
      %v2115 = vpop.f32.mrf.mxu0
      %v2116 = vadd.f32 %v2027, %v2115
      %v2117 = vpop.f32.mrf.mxu0
      %v2118 = vadd.f32 %v2029, %v2117
      %2119 = vmatmul.bf16.gmra.mxu0 %v1126
      %v2120 = vpop.f32.mrf.mxu0
      %v2121 = vadd.f32 %v2032, %v2120
      %v2122 = vpop.f32.mrf.mxu0
      %v2123 = vadd.f32 %v2034, %v2122
      %2124 = vmatmul.bf16.gmra.mxu0 %v1133
      %v2125 = vpop.f32.mrf.mxu0
      %v2126 = vadd.f32 %v2037, %v2125
      %v2127 = vpop.f32.mrf.mxu0
      %v2128 = vadd.f32 %v2039, %v2127
      %2129 = vmatmul.bf16.gmra.mxu0 %v1140
      %v2130 = vpop.f32.mrf.mxu0
      %v2131 = vadd.f32 %v2042, %v2130
      %v2132 = vpop.f32.mrf.mxu0
      %v2133 = vadd.f32 %v2044, %v2132
      %2134 = vdwg.mxu0
      %2135 = vmatpush.bf16.msra.mxu0 %v1612
      %2136 = vmatpush.bf16.msra.mxu0 %v1610
      %2137 = vmatpush.bf16.msra.mxu0 %v1608
      %2138 = vmatpush.bf16.msra.mxu0 %v1606
      %2139 = vmatpush.bf16.msra.mxu0 %v1604
      %2140 = vmatpush.bf16.msra.mxu0 %v1602
      %2141 = vmatpush.bf16.msra.mxu0 %v1600
      %2142 = vmatpush.bf16.msra.mxu0 %v1598
      %2143 = vmatmul.bf16.gmra.mxu0 %v1036
      %v2144 = vpop.f32.mrf.mxu0
      %v2145 = vadd.f32 %v2056, %v2144
      %v2146 = vpop.f32.mrf.mxu0
      %v2147 = vadd.f32 %v2058, %v2146
      %2148 = vmatmul.bf16.gmra.mxu0 %v1043
      %v2149 = vpop.f32.mrf.mxu0
      %v2150 = vadd.f32 %v2061, %v2149
      %v2151 = vpop.f32.mrf.mxu0
      %v2152 = vadd.f32 %v2063, %v2151
      %2153 = vmatmul.bf16.gmra.mxu0 %v1050
      %v2154 = vpop.f32.mrf.mxu0
      %v2155 = vadd.f32 %v2066, %v2154
      %v2156 = vpop.f32.mrf.mxu0
      %v2157 = vadd.f32 %v2068, %v2156
      %2158 = vmatmul.bf16.gmra.mxu0 %v1057
      %v2159 = vpop.f32.mrf.mxu0
      %v2160 = vadd.f32 %v2071, %v2159
      %v2161 = vpop.f32.mrf.mxu0
      %v2162 = vadd.f32 %v2073, %v2161
      %2163 = vmatmul.bf16.gmra.mxu0 %v1064
      %v2164 = vpop.f32.mrf.mxu0
      %v2165 = vadd.f32 %v2076, %v2164
      %v2166 = vpop.f32.mrf.mxu0
      %v2167 = vadd.f32 %v2078, %v2166
      %2168 = vmatmul.bf16.gmra.mxu0 %v1071
      %v2169 = vpop.f32.mrf.mxu0
      %v2170 = vadd.f32 %v2081, %v2169
      %v2171 = vpop.f32.mrf.mxu0
      %v2172 = vadd.f32 %v2083, %v2171
      %2173 = vmatmul.bf16.gmra.mxu0 %v1078
      %v2174 = vpop.f32.mrf.mxu0
      %v2175 = vadd.f32 %v2086, %v2174
      %v2176 = vpop.f32.mrf.mxu0
      %v2177 = vadd.f32 %v2088, %v2176
      %2178 = vmatmul.bf16.gmra.mxu0 %v1085
      %v2179 = vpop.f32.mrf.mxu0
      %v2180 = vadd.f32 %v2091, %v2179
      %v2181 = vpop.f32.mrf.mxu0
      %v2182 = vadd.f32 %v2093, %v2181
      %2183 = vmatmul.bf16.gmra.mxu0 %v1092
      %v2184 = vpop.f32.mrf.mxu0
      %v2185 = vadd.f32 %v2096, %v2184
      %v2186 = vpop.f32.mrf.mxu0
      %v2187 = vadd.f32 %v2098, %v2186
      %2188 = vmatmul.bf16.gmra.mxu0 %v1099
      %v2189 = vpop.f32.mrf.mxu0
      %v2190 = vadd.f32 %v2101, %v2189
      %v2191 = vpop.f32.mrf.mxu0
      %v2192 = vadd.f32 %v2103, %v2191
      %2193 = vmatmul.bf16.gmra.mxu0 %v1106
      %v2194 = vpop.f32.mrf.mxu0
      %v2195 = vadd.f32 %v2106, %v2194
      %v2196 = vpop.f32.mrf.mxu0
      %v2197 = vadd.f32 %v2108, %v2196
      %2198 = vmatmul.bf16.gmra.mxu0 %v1113
      %v2199 = vpop.f32.mrf.mxu0
      %v2200 = vadd.f32 %v2111, %v2199
      %v2201 = vpop.f32.mrf.mxu0
      %v2202 = vadd.f32 %v2113, %v2201
      %2203 = vmatmul.bf16.gmra.mxu0 %v1120
      %v2204 = vpop.f32.mrf.mxu0
      %v2205 = vadd.f32 %v2116, %v2204
      %v2206 = vpop.f32.mrf.mxu0
      %v2207 = vadd.f32 %v2118, %v2206
      %2208 = vmatmul.bf16.gmra.mxu0 %v1127
      %v2209 = vpop.f32.mrf.mxu0
      %v2210 = vadd.f32 %v2121, %v2209
      %v2211 = vpop.f32.mrf.mxu0
      %v2212 = vadd.f32 %v2123, %v2211
      %2213 = vmatmul.bf16.gmra.mxu0 %v1134
      %v2214 = vpop.f32.mrf.mxu0
      %v2215 = vadd.f32 %v2126, %v2214
      %v2216 = vpop.f32.mrf.mxu0
      %v2217 = vadd.f32 %v2128, %v2216
      %2218 = vmatmul.bf16.gmra.mxu0 %v1141
      %v2219 = vpop.f32.mrf.mxu0
      %v2220 = vadd.f32 %v2131, %v2219
      %v2221 = vpop.f32.mrf.mxu0
      %v2222 = vadd.f32 %v2133, %v2221
      %2223 = vdwg.mxu0
      %2224 = vmatpush.bf16.msra.mxu0 %v1628
      %2225 = vmatpush.bf16.msra.mxu0 %v1626
      %2226 = vmatpush.bf16.msra.mxu0 %v1624
      %2227 = vmatpush.bf16.msra.mxu0 %v1622
      %2228 = vmatpush.bf16.msra.mxu0 %v1620
      %2229 = vmatpush.bf16.msra.mxu0 %v1618
      %2230 = vmatpush.bf16.msra.mxu0 %v1616
      %2231 = vmatpush.bf16.msra.mxu0 %v1614
      %2232 = vmatmul.bf16.gmra.mxu0 %v1037
      %v2233 = vpop.f32.mrf.mxu0
      %v2234 = vadd.f32 %v2145, %v2233
      %v2235 = vpop.f32.mrf.mxu0
      %v2236 = vadd.f32 %v2147, %v2235
      %2237 = vmatmul.bf16.gmra.mxu0 %v1044
      %v2238 = vpop.f32.mrf.mxu0
      %v2239 = vadd.f32 %v2150, %v2238
      %v2240 = vpop.f32.mrf.mxu0
      %v2241 = vadd.f32 %v2152, %v2240
      %2242 = vmatmul.bf16.gmra.mxu0 %v1051
      %v2243 = vpop.f32.mrf.mxu0
      %v2244 = vadd.f32 %v2155, %v2243
      %v2245 = vpop.f32.mrf.mxu0
      %v2246 = vadd.f32 %v2157, %v2245
      %2247 = vmatmul.bf16.gmra.mxu0 %v1058
      %v2248 = vpop.f32.mrf.mxu0
      %v2249 = vadd.f32 %v2160, %v2248
      %v2250 = vpop.f32.mrf.mxu0
      %v2251 = vadd.f32 %v2162, %v2250
      %2252 = vmatmul.bf16.gmra.mxu0 %v1065
      %v2253 = vpop.f32.mrf.mxu0
      %v2254 = vadd.f32 %v2165, %v2253
      %v2255 = vpop.f32.mrf.mxu0
      %v2256 = vadd.f32 %v2167, %v2255
      %2257 = vmatmul.bf16.gmra.mxu0 %v1072
      %v2258 = vpop.f32.mrf.mxu0
      %v2259 = vadd.f32 %v2170, %v2258
      %v2260 = vpop.f32.mrf.mxu0
      %v2261 = vadd.f32 %v2172, %v2260
      %2262 = vmatmul.bf16.gmra.mxu0 %v1079
      %v2263 = vpop.f32.mrf.mxu0
      %v2264 = vadd.f32 %v2175, %v2263
      %v2265 = vpop.f32.mrf.mxu0
      %v2266 = vadd.f32 %v2177, %v2265
      %2267 = vmatmul.bf16.gmra.mxu0 %v1086
      %v2268 = vpop.f32.mrf.mxu0
      %v2269 = vadd.f32 %v2180, %v2268
      %v2270 = vpop.f32.mrf.mxu0
      %v2271 = vadd.f32 %v2182, %v2270
      %2272 = vmatmul.bf16.gmra.mxu0 %v1093
      %v2273 = vpop.f32.mrf.mxu0
      %v2274 = vadd.f32 %v2185, %v2273
      %v2275 = vpop.f32.mrf.mxu0
      %v2276 = vadd.f32 %v2187, %v2275
      %2277 = vmatmul.bf16.gmra.mxu0 %v1100
      %v2278 = vpop.f32.mrf.mxu0
      %v2279 = vadd.f32 %v2190, %v2278
      %v2280 = vpop.f32.mrf.mxu0
      %v2281 = vadd.f32 %v2192, %v2280
      %2282 = vmatmul.bf16.gmra.mxu0 %v1107
      %v2283 = vpop.f32.mrf.mxu0
      %v2284 = vadd.f32 %v2195, %v2283
      %v2285 = vpop.f32.mrf.mxu0
      %v2286 = vadd.f32 %v2197, %v2285
      %2287 = vmatmul.bf16.gmra.mxu0 %v1114
      %v2288 = vpop.f32.mrf.mxu0
      %v2289 = vadd.f32 %v2200, %v2288
      %v2290 = vpop.f32.mrf.mxu0
      %v2291 = vadd.f32 %v2202, %v2290
      %2292 = vmatmul.bf16.gmra.mxu0 %v1121
      %v2293 = vpop.f32.mrf.mxu0
      %v2294 = vadd.f32 %v2205, %v2293
      %v2295 = vpop.f32.mrf.mxu0
      %v2296 = vadd.f32 %v2207, %v2295
      %2297 = vmatmul.bf16.gmra.mxu0 %v1128
      %v2298 = vpop.f32.mrf.mxu0
      %v2299 = vadd.f32 %v2210, %v2298
      %v2300 = vpop.f32.mrf.mxu0
      %v2301 = vadd.f32 %v2212, %v2300
      %2302 = vmatmul.bf16.gmra.mxu0 %v1135
      %v2303 = vpop.f32.mrf.mxu0
      %v2304 = vadd.f32 %v2215, %v2303
      %v2305 = vpop.f32.mrf.mxu0
      %v2306 = vadd.f32 %v2217, %v2305
      %2307 = vmatmul.bf16.gmra.mxu0 %v1142
      %v2308 = vpop.f32.mrf.mxu0
      %v2309 = vadd.f32 %v2220, %v2308
      %v2310 = vpop.f32.mrf.mxu0
      %v2311 = vadd.f32 %v2222, %v2310
      %2312 = vdwg.mxu0
      %2313 = vmatpush.bf16.msra.mxu0 0
      %2314 = vmatpush.bf16.msra.mxu0 0
      %2315 = vmatpush.bf16.msra.mxu0 0
      %2316 = vmatpush.bf16.msra.mxu0 0
      %2317 = vmatpush.bf16.msra.mxu0 0
      %2318 = vmatpush.bf16.msra.mxu0 0
      %2319 = vmatpush.bf16.msra.mxu0 0
      %2320 = vmatpush.bf16.msra.mxu0 %v1630
      %2321 = vmatmul.bf16.gmra.mxu0 %v1732
      %v2322 = vpop.f32.mrf.mxu0
      %v2323 = vadd.f32 %v2234, %v2322
      %v2324 = vpop.f32.mrf.mxu0
      %v2325 = vadd.f32 %v2236, %v2324
      %2326 = vmatmul.bf16.gmra.mxu0 %v1735
      %v2327 = vpop.f32.mrf.mxu0
      %v2328 = vadd.f32 %v2239, %v2327
      %v2329 = vpop.f32.mrf.mxu0
      %v2330 = vadd.f32 %v2241, %v2329
      %2331 = vmatmul.bf16.gmra.mxu0 %v1738
      %v2332 = vpop.f32.mrf.mxu0
      %v2333 = vadd.f32 %v2244, %v2332
      %v2334 = vpop.f32.mrf.mxu0
      %v2335 = vadd.f32 %v2246, %v2334
      %2336 = vmatmul.bf16.gmra.mxu0 %v1741
      %v2337 = vpop.f32.mrf.mxu0
      %v2338 = vadd.f32 %v2249, %v2337
      %v2339 = vpop.f32.mrf.mxu0
      %v2340 = vadd.f32 %v2251, %v2339
      %2341 = vmatmul.bf16.gmra.mxu0 %v1744
      %v2342 = vpop.f32.mrf.mxu0
      %v2343 = vadd.f32 %v2254, %v2342
      %v2344 = vpop.f32.mrf.mxu0
      %v2345 = vadd.f32 %v2256, %v2344
      %2346 = vmatmul.bf16.gmra.mxu0 %v1747
      %v2347 = vpop.f32.mrf.mxu0
      %v2348 = vadd.f32 %v2259, %v2347
      %v2349 = vpop.f32.mrf.mxu0
      %v2350 = vadd.f32 %v2261, %v2349
      %2351 = vmatmul.bf16.gmra.mxu0 %v1750
      %v2352 = vpop.f32.mrf.mxu0
      %v2353 = vadd.f32 %v2264, %v2352
      %v2354 = vpop.f32.mrf.mxu0
      %v2355 = vadd.f32 %v2266, %v2354
      %2356 = vmatmul.bf16.gmra.mxu0 %v1753
      %v2357 = vpop.f32.mrf.mxu0
      %v2358 = vadd.f32 %v2269, %v2357
      %v2359 = vpop.f32.mrf.mxu0
      %v2360 = vadd.f32 %v2271, %v2359
      %2361 = vmatmul.bf16.gmra.mxu0 %v1756
      %v2362 = vpop.f32.mrf.mxu0
      %v2363 = vadd.f32 %v2274, %v2362
      %v2364 = vpop.f32.mrf.mxu0
      %v2365 = vadd.f32 %v2276, %v2364
      %2366 = vmatmul.bf16.gmra.mxu0 %v1759
      %v2367 = vpop.f32.mrf.mxu0
      %v2368 = vadd.f32 %v2279, %v2367
      %v2369 = vpop.f32.mrf.mxu0
      %v2370 = vadd.f32 %v2281, %v2369
      %2371 = vmatmul.bf16.gmra.mxu0 %v1762
      %v2372 = vpop.f32.mrf.mxu0
      %v2373 = vadd.f32 %v2284, %v2372
      %v2374 = vpop.f32.mrf.mxu0
      %v2375 = vadd.f32 %v2286, %v2374
      %2376 = vmatmul.bf16.gmra.mxu0 %v1765
      %v2377 = vpop.f32.mrf.mxu0
      %v2378 = vadd.f32 %v2289, %v2377
      %v2379 = vpop.f32.mrf.mxu0
      %v2380 = vadd.f32 %v2291, %v2379
      %2381 = vmatmul.bf16.gmra.mxu0 %v1768
      %v2382 = vpop.f32.mrf.mxu0
      %v2383 = vadd.f32 %v2294, %v2382
      %v2384 = vpop.f32.mrf.mxu0
      %v2385 = vadd.f32 %v2296, %v2384
      %2386 = vmatmul.bf16.gmra.mxu0 %v1771
      %v2387 = vpop.f32.mrf.mxu0
      %v2388 = vadd.f32 %v2299, %v2387
      %v2389 = vpop.f32.mrf.mxu0
      %v2390 = vadd.f32 %v2301, %v2389
      %2391 = vmatmul.bf16.gmra.mxu0 %v1774
      %v2392 = vpop.f32.mrf.mxu0
      %v2393 = vadd.f32 %v2304, %v2392
      %v2394 = vpop.f32.mrf.mxu0
      %v2395 = vadd.f32 %v2306, %v2394
      %2396 = vmatmul.bf16.gmra.mxu0 %v1777
      %v2397 = vpop.f32.mrf.mxu0
      %v2398 = vadd.f32 %v2309, %v2397
      %v2399 = vpop.f32.mrf.mxu0
      %v2400 = vadd.f32 %v2311, %v2399
      %2401 = vdwg.mxu0
      %2402 = vmatpush.bf16.msra.mxu0 %v1549
      %2403 = vmatpush.bf16.msra.mxu0 %v1547
      %2404 = vmatpush.bf16.msra.mxu0 %v1545
      %2405 = vmatpush.bf16.msra.mxu0 %v1543
      %2406 = vmatpush.bf16.msra.mxu0 %v1541
      %2407 = vmatpush.bf16.msra.mxu0 %v1539
      %2408 = vmatpush.bf16.msra.mxu0 %v1537
      %2409 = vmatpush.bf16.msra.mxu0 %v1535
      %2410 = vmatmul.bf16.gmra.mxu0 %v1032
      %v2411 = vpop.f32.mrf.mxu0
      %v2412 = vadd.f32 %v677, %v2411
      %v2413 = vpop.f32.mrf.mxu0
      %v2414 = vadd.f32 %v677, %v2413
      %2415 = vmatmul.bf16.gmra.mxu0 %v1039
      %v2416 = vpop.f32.mrf.mxu0
      %v2417 = vadd.f32 %v677, %v2416
      %v2418 = vpop.f32.mrf.mxu0
      %v2419 = vadd.f32 %v677, %v2418
      %2420 = vmatmul.bf16.gmra.mxu0 %v1046
      %v2421 = vpop.f32.mrf.mxu0
      %v2422 = vadd.f32 %v677, %v2421
      %v2423 = vpop.f32.mrf.mxu0
      %v2424 = vadd.f32 %v677, %v2423
      %2425 = vmatmul.bf16.gmra.mxu0 %v1053
      %v2426 = vpop.f32.mrf.mxu0
      %v2427 = vadd.f32 %v677, %v2426
      %v2428 = vpop.f32.mrf.mxu0
      %v2429 = vadd.f32 %v677, %v2428
      %2430 = vmatmul.bf16.gmra.mxu0 %v1060
      %v2431 = vpop.f32.mrf.mxu0
      %v2432 = vadd.f32 %v677, %v2431
      %v2433 = vpop.f32.mrf.mxu0
      %v2434 = vadd.f32 %v677, %v2433
      %2435 = vmatmul.bf16.gmra.mxu0 %v1067
      %v2436 = vpop.f32.mrf.mxu0
      %v2437 = vadd.f32 %v677, %v2436
      %v2438 = vpop.f32.mrf.mxu0
      %v2439 = vadd.f32 %v677, %v2438
      %2440 = vmatmul.bf16.gmra.mxu0 %v1074
      %v2441 = vpop.f32.mrf.mxu0
      %v2442 = vadd.f32 %v677, %v2441
      %v2443 = vpop.f32.mrf.mxu0
      %v2444 = vadd.f32 %v677, %v2443
      %2445 = vmatmul.bf16.gmra.mxu0 %v1081
      %v2446 = vpop.f32.mrf.mxu0
      %v2447 = vadd.f32 %v677, %v2446
      %v2448 = vpop.f32.mrf.mxu0
      %v2449 = vadd.f32 %v677, %v2448
      %2450 = vmatmul.bf16.gmra.mxu0 %v1088
      %v2451 = vpop.f32.mrf.mxu0
      %v2452 = vadd.f32 %v677, %v2451
      %v2453 = vpop.f32.mrf.mxu0
      %v2454 = vadd.f32 %v677, %v2453
      %2455 = vmatmul.bf16.gmra.mxu0 %v1095
      %v2456 = vpop.f32.mrf.mxu0
      %v2457 = vadd.f32 %v677, %v2456
      %v2458 = vpop.f32.mrf.mxu0
      %v2459 = vadd.f32 %v677, %v2458
      %2460 = vmatmul.bf16.gmra.mxu0 %v1102
      %v2461 = vpop.f32.mrf.mxu0
      %v2462 = vadd.f32 %v677, %v2461
      %v2463 = vpop.f32.mrf.mxu0
      %v2464 = vadd.f32 %v677, %v2463
      %2465 = vmatmul.bf16.gmra.mxu0 %v1109
      %v2466 = vpop.f32.mrf.mxu0
      %v2467 = vadd.f32 %v677, %v2466
      %v2468 = vpop.f32.mrf.mxu0
      %v2469 = vadd.f32 %v677, %v2468
      %2470 = vmatmul.bf16.gmra.mxu0 %v1116
      %v2471 = vpop.f32.mrf.mxu0
      %v2472 = vadd.f32 %v677, %v2471
      %v2473 = vpop.f32.mrf.mxu0
      %v2474 = vadd.f32 %v677, %v2473
      %2475 = vmatmul.bf16.gmra.mxu0 %v1123
      %v2476 = vpop.f32.mrf.mxu0
      %v2477 = vadd.f32 %v677, %v2476
      %v2478 = vpop.f32.mrf.mxu0
      %v2479 = vadd.f32 %v677, %v2478
      %2480 = vmatmul.bf16.gmra.mxu0 %v1130
      %v2481 = vpop.f32.mrf.mxu0
      %v2482 = vadd.f32 %v677, %v2481
      %v2483 = vpop.f32.mrf.mxu0
      %v2484 = vadd.f32 %v677, %v2483
      %2485 = vmatmul.bf16.gmra.mxu0 %v1137
      %v2486 = vpop.f32.mrf.mxu0
      %v2487 = vadd.f32 %v677, %v2486
      %v2488 = vpop.f32.mrf.mxu0
      %v2489 = vadd.f32 %v677, %v2488
      %2490 = vdwg.mxu0
      %2491 = vmatpush.bf16.msra.mxu0 %v1565
      %2492 = vmatpush.bf16.msra.mxu0 %v1563
      %2493 = vmatpush.bf16.msra.mxu0 %v1561
      %2494 = vmatpush.bf16.msra.mxu0 %v1559
      %2495 = vmatpush.bf16.msra.mxu0 %v1557
      %2496 = vmatpush.bf16.msra.mxu0 %v1555
      %2497 = vmatpush.bf16.msra.mxu0 %v1553
      %2498 = vmatpush.bf16.msra.mxu0 %v1551
      %2499 = vmatmul.bf16.gmra.mxu0 %v1033
      %v2500 = vpop.f32.mrf.mxu0
      %v2501 = vadd.f32 %v2412, %v2500
      %v2502 = vpop.f32.mrf.mxu0
      %v2503 = vadd.f32 %v2414, %v2502
      %2504 = vmatmul.bf16.gmra.mxu0 %v1040
      %v2505 = vpop.f32.mrf.mxu0
      %v2506 = vadd.f32 %v2417, %v2505
      %v2507 = vpop.f32.mrf.mxu0
      %v2508 = vadd.f32 %v2419, %v2507
      %2509 = vmatmul.bf16.gmra.mxu0 %v1047
      %v2510 = vpop.f32.mrf.mxu0
      %v2511 = vadd.f32 %v2422, %v2510
      %v2512 = vpop.f32.mrf.mxu0
      %v2513 = vadd.f32 %v2424, %v2512
      %2514 = vmatmul.bf16.gmra.mxu0 %v1054
      %v2515 = vpop.f32.mrf.mxu0
      %v2516 = vadd.f32 %v2427, %v2515
      %v2517 = vpop.f32.mrf.mxu0
      %v2518 = vadd.f32 %v2429, %v2517
      %2519 = vmatmul.bf16.gmra.mxu0 %v1061
      %v2520 = vpop.f32.mrf.mxu0
      %v2521 = vadd.f32 %v2432, %v2520
      %v2522 = vpop.f32.mrf.mxu0
      %v2523 = vadd.f32 %v2434, %v2522
      %2524 = vmatmul.bf16.gmra.mxu0 %v1068
      %v2525 = vpop.f32.mrf.mxu0
      %v2526 = vadd.f32 %v2437, %v2525
      %v2527 = vpop.f32.mrf.mxu0
      %v2528 = vadd.f32 %v2439, %v2527
      %2529 = vmatmul.bf16.gmra.mxu0 %v1075
      %v2530 = vpop.f32.mrf.mxu0
      %v2531 = vadd.f32 %v2442, %v2530
      %v2532 = vpop.f32.mrf.mxu0
      %v2533 = vadd.f32 %v2444, %v2532
      %2534 = vmatmul.bf16.gmra.mxu0 %v1082
      %v2535 = vpop.f32.mrf.mxu0
      %v2536 = vadd.f32 %v2447, %v2535
      %v2537 = vpop.f32.mrf.mxu0
      %v2538 = vadd.f32 %v2449, %v2537
      %2539 = vmatmul.bf16.gmra.mxu0 %v1089
      %v2540 = vpop.f32.mrf.mxu0
      %v2541 = vadd.f32 %v2452, %v2540
      %v2542 = vpop.f32.mrf.mxu0
      %v2543 = vadd.f32 %v2454, %v2542
      %2544 = vmatmul.bf16.gmra.mxu0 %v1096
      %v2545 = vpop.f32.mrf.mxu0
      %v2546 = vadd.f32 %v2457, %v2545
      %v2547 = vpop.f32.mrf.mxu0
      %v2548 = vadd.f32 %v2459, %v2547
      %2549 = vmatmul.bf16.gmra.mxu0 %v1103
      %v2550 = vpop.f32.mrf.mxu0
      %v2551 = vadd.f32 %v2462, %v2550
      %v2552 = vpop.f32.mrf.mxu0
      %v2553 = vadd.f32 %v2464, %v2552
      %2554 = vmatmul.bf16.gmra.mxu0 %v1110
      %v2555 = vpop.f32.mrf.mxu0
      %v2556 = vadd.f32 %v2467, %v2555
      %v2557 = vpop.f32.mrf.mxu0
      %v2558 = vadd.f32 %v2469, %v2557
      %2559 = vmatmul.bf16.gmra.mxu0 %v1117
      %v2560 = vpop.f32.mrf.mxu0
      %v2561 = vadd.f32 %v2472, %v2560
      %v2562 = vpop.f32.mrf.mxu0
      %v2563 = vadd.f32 %v2474, %v2562
      %2564 = vmatmul.bf16.gmra.mxu0 %v1124
      %v2565 = vpop.f32.mrf.mxu0
      %v2566 = vadd.f32 %v2477, %v2565
      %v2567 = vpop.f32.mrf.mxu0
      %v2568 = vadd.f32 %v2479, %v2567
      %2569 = vmatmul.bf16.gmra.mxu0 %v1131
      %v2570 = vpop.f32.mrf.mxu0
      %v2571 = vadd.f32 %v2482, %v2570
      %v2572 = vpop.f32.mrf.mxu0
      %v2573 = vadd.f32 %v2484, %v2572
      %2574 = vmatmul.bf16.gmra.mxu0 %v1138
      %v2575 = vpop.f32.mrf.mxu0
      %v2576 = vadd.f32 %v2487, %v2575
      %v2577 = vpop.f32.mrf.mxu0
      %v2578 = vadd.f32 %v2489, %v2577
      %2579 = vdwg.mxu0
      %2580 = vmatpush.bf16.msra.mxu0 %v1581
      %2581 = vmatpush.bf16.msra.mxu0 %v1579
      %2582 = vmatpush.bf16.msra.mxu0 %v1577
      %2583 = vmatpush.bf16.msra.mxu0 %v1575
      %2584 = vmatpush.bf16.msra.mxu0 %v1573
      %2585 = vmatpush.bf16.msra.mxu0 %v1571
      %2586 = vmatpush.bf16.msra.mxu0 %v1569
      %2587 = vmatpush.bf16.msra.mxu0 %v1567
      %2588 = vmatmul.bf16.gmra.mxu0 %v1034
      %v2589 = vpop.f32.mrf.mxu0
      %v2590 = vadd.f32 %v2501, %v2589
      %v2591 = vpop.f32.mrf.mxu0
      %v2592 = vadd.f32 %v2503, %v2591
      %2593 = vmatmul.bf16.gmra.mxu0 %v1041
      %v2594 = vpop.f32.mrf.mxu0
      %v2595 = vadd.f32 %v2506, %v2594
      %v2596 = vpop.f32.mrf.mxu0
      %v2597 = vadd.f32 %v2508, %v2596
      %2598 = vmatmul.bf16.gmra.mxu0 %v1048
      %v2599 = vpop.f32.mrf.mxu0
      %v2600 = vadd.f32 %v2511, %v2599
      %v2601 = vpop.f32.mrf.mxu0
      %v2602 = vadd.f32 %v2513, %v2601
      %2603 = vmatmul.bf16.gmra.mxu0 %v1055
      %v2604 = vpop.f32.mrf.mxu0
      %v2605 = vadd.f32 %v2516, %v2604
      %v2606 = vpop.f32.mrf.mxu0
      %v2607 = vadd.f32 %v2518, %v2606
      %2608 = vmatmul.bf16.gmra.mxu0 %v1062
      %v2609 = vpop.f32.mrf.mxu0
      %v2610 = vadd.f32 %v2521, %v2609
      %v2611 = vpop.f32.mrf.mxu0
      %v2612 = vadd.f32 %v2523, %v2611
      %2613 = vmatmul.bf16.gmra.mxu0 %v1069
      %v2614 = vpop.f32.mrf.mxu0
      %v2615 = vadd.f32 %v2526, %v2614
      %v2616 = vpop.f32.mrf.mxu0
      %v2617 = vadd.f32 %v2528, %v2616
      %2618 = vmatmul.bf16.gmra.mxu0 %v1076
      %v2619 = vpop.f32.mrf.mxu0
      %v2620 = vadd.f32 %v2531, %v2619
      %v2621 = vpop.f32.mrf.mxu0
      %v2622 = vadd.f32 %v2533, %v2621
      %2623 = vmatmul.bf16.gmra.mxu0 %v1083
      %v2624 = vpop.f32.mrf.mxu0
      %v2625 = vadd.f32 %v2536, %v2624
      %v2626 = vpop.f32.mrf.mxu0
      %v2627 = vadd.f32 %v2538, %v2626
      %2628 = vmatmul.bf16.gmra.mxu0 %v1090
      %v2629 = vpop.f32.mrf.mxu0
      %v2630 = vadd.f32 %v2541, %v2629
      %v2631 = vpop.f32.mrf.mxu0
      %v2632 = vadd.f32 %v2543, %v2631
      %2633 = vmatmul.bf16.gmra.mxu0 %v1097
      %v2634 = vpop.f32.mrf.mxu0
      %v2635 = vadd.f32 %v2546, %v2634
      %v2636 = vpop.f32.mrf.mxu0
      %v2637 = vadd.f32 %v2548, %v2636
      %2638 = vmatmul.bf16.gmra.mxu0 %v1104
      %v2639 = vpop.f32.mrf.mxu0
      %v2640 = vadd.f32 %v2551, %v2639
      %v2641 = vpop.f32.mrf.mxu0
      %v2642 = vadd.f32 %v2553, %v2641
      %2643 = vmatmul.bf16.gmra.mxu0 %v1111
      %v2644 = vpop.f32.mrf.mxu0
      %v2645 = vadd.f32 %v2556, %v2644
      %v2646 = vpop.f32.mrf.mxu0
      %v2647 = vadd.f32 %v2558, %v2646
      %2648 = vmatmul.bf16.gmra.mxu0 %v1118
      %v2649 = vpop.f32.mrf.mxu0
      %v2650 = vadd.f32 %v2561, %v2649
      %v2651 = vpop.f32.mrf.mxu0
      %v2652 = vadd.f32 %v2563, %v2651
      %2653 = vmatmul.bf16.gmra.mxu0 %v1125
      %v2654 = vpop.f32.mrf.mxu0
      %v2655 = vadd.f32 %v2566, %v2654
      %v2656 = vpop.f32.mrf.mxu0
      %v2657 = vadd.f32 %v2568, %v2656
      %2658 = vmatmul.bf16.gmra.mxu0 %v1132
      %v2659 = vpop.f32.mrf.mxu0
      %v2660 = vadd.f32 %v2571, %v2659
      %v2661 = vpop.f32.mrf.mxu0
      %v2662 = vadd.f32 %v2573, %v2661
      %2663 = vmatmul.bf16.gmra.mxu0 %v1139
      %v2664 = vpop.f32.mrf.mxu0
      %v2665 = vadd.f32 %v2576, %v2664
      %v2666 = vpop.f32.mrf.mxu0
      %v2667 = vadd.f32 %v2578, %v2666
      %2668 = vdwg.mxu0
      %2669 = vmatpush.bf16.msra.mxu0 %v1597
      %2670 = vmatpush.bf16.msra.mxu0 %v1595
      %2671 = vmatpush.bf16.msra.mxu0 %v1593
      %2672 = vmatpush.bf16.msra.mxu0 %v1591
      %2673 = vmatpush.bf16.msra.mxu0 %v1589
      %2674 = vmatpush.bf16.msra.mxu0 %v1587
      %2675 = vmatpush.bf16.msra.mxu0 %v1585
      %2676 = vmatpush.bf16.msra.mxu0 %v1583
      %2677 = vmatmul.bf16.gmra.mxu0 %v1035
      %v2678 = vpop.f32.mrf.mxu0
      %v2679 = vadd.f32 %v2590, %v2678
      %v2680 = vpop.f32.mrf.mxu0
      %v2681 = vadd.f32 %v2592, %v2680
      %2682 = vmatmul.bf16.gmra.mxu0 %v1042
      %v2683 = vpop.f32.mrf.mxu0
      %v2684 = vadd.f32 %v2595, %v2683
      %v2685 = vpop.f32.mrf.mxu0
      %v2686 = vadd.f32 %v2597, %v2685
      %2687 = vmatmul.bf16.gmra.mxu0 %v1049
      %v2688 = vpop.f32.mrf.mxu0
      %v2689 = vadd.f32 %v2600, %v2688
      %v2690 = vpop.f32.mrf.mxu0
      %v2691 = vadd.f32 %v2602, %v2690
      %2692 = vmatmul.bf16.gmra.mxu0 %v1056
      %v2693 = vpop.f32.mrf.mxu0
      %v2694 = vadd.f32 %v2605, %v2693
      %v2695 = vpop.f32.mrf.mxu0
      %v2696 = vadd.f32 %v2607, %v2695
      %2697 = vmatmul.bf16.gmra.mxu0 %v1063
      %v2698 = vpop.f32.mrf.mxu0
      %v2699 = vadd.f32 %v2610, %v2698
      %v2700 = vpop.f32.mrf.mxu0
      %v2701 = vadd.f32 %v2612, %v2700
      %2702 = vmatmul.bf16.gmra.mxu0 %v1070
      %v2703 = vpop.f32.mrf.mxu0
      %v2704 = vadd.f32 %v2615, %v2703
      %v2705 = vpop.f32.mrf.mxu0
      %v2706 = vadd.f32 %v2617, %v2705
      %2707 = vmatmul.bf16.gmra.mxu0 %v1077
      %v2708 = vpop.f32.mrf.mxu0
      %v2709 = vadd.f32 %v2620, %v2708
      %v2710 = vpop.f32.mrf.mxu0
      %v2711 = vadd.f32 %v2622, %v2710
      %2712 = vmatmul.bf16.gmra.mxu0 %v1084
      %v2713 = vpop.f32.mrf.mxu0
      %v2714 = vadd.f32 %v2625, %v2713
      %v2715 = vpop.f32.mrf.mxu0
      %v2716 = vadd.f32 %v2627, %v2715
      %2717 = vmatmul.bf16.gmra.mxu0 %v1091
      %v2718 = vpop.f32.mrf.mxu0
      %v2719 = vadd.f32 %v2630, %v2718
      %v2720 = vpop.f32.mrf.mxu0
      %v2721 = vadd.f32 %v2632, %v2720
      %2722 = vmatmul.bf16.gmra.mxu0 %v1098
      %v2723 = vpop.f32.mrf.mxu0
      %v2724 = vadd.f32 %v2635, %v2723
      %v2725 = vpop.f32.mrf.mxu0
      %v2726 = vadd.f32 %v2637, %v2725
      %2727 = vmatmul.bf16.gmra.mxu0 %v1105
      %v2728 = vpop.f32.mrf.mxu0
      %v2729 = vadd.f32 %v2640, %v2728
      %v2730 = vpop.f32.mrf.mxu0
      %v2731 = vadd.f32 %v2642, %v2730
      %2732 = vmatmul.bf16.gmra.mxu0 %v1112
      %v2733 = vpop.f32.mrf.mxu0
      %v2734 = vadd.f32 %v2645, %v2733
      %v2735 = vpop.f32.mrf.mxu0
      %v2736 = vadd.f32 %v2647, %v2735
      %2737 = vmatmul.bf16.gmra.mxu0 %v1119
      %v2738 = vpop.f32.mrf.mxu0
      %v2739 = vadd.f32 %v2650, %v2738
      %v2740 = vpop.f32.mrf.mxu0
      %v2741 = vadd.f32 %v2652, %v2740
      %2742 = vmatmul.bf16.gmra.mxu0 %v1126
      %v2743 = vpop.f32.mrf.mxu0
      %v2744 = vadd.f32 %v2655, %v2743
      %v2745 = vpop.f32.mrf.mxu0
      %v2746 = vadd.f32 %v2657, %v2745
      %2747 = vmatmul.bf16.gmra.mxu0 %v1133
      %v2748 = vpop.f32.mrf.mxu0
      %v2749 = vadd.f32 %v2660, %v2748
      %v2750 = vpop.f32.mrf.mxu0
      %v2751 = vadd.f32 %v2662, %v2750
      %2752 = vmatmul.bf16.gmra.mxu0 %v1140
      %v2753 = vpop.f32.mrf.mxu0
      %v2754 = vadd.f32 %v2665, %v2753
      %v2755 = vpop.f32.mrf.mxu0
      %v2756 = vadd.f32 %v2667, %v2755
      %2757 = vdwg.mxu0
      %2758 = vmatpush.bf16.msra.mxu0 %v1613
      %2759 = vmatpush.bf16.msra.mxu0 %v1611
      %2760 = vmatpush.bf16.msra.mxu0 %v1609
      %2761 = vmatpush.bf16.msra.mxu0 %v1607
      %2762 = vmatpush.bf16.msra.mxu0 %v1605
      %2763 = vmatpush.bf16.msra.mxu0 %v1603
      %2764 = vmatpush.bf16.msra.mxu0 %v1601
      %2765 = vmatpush.bf16.msra.mxu0 %v1599
      %2766 = vmatmul.bf16.gmra.mxu0 %v1036
      %v2767 = vpop.f32.mrf.mxu0
      %v2768 = vadd.f32 %v2679, %v2767
      %v2769 = vpop.f32.mrf.mxu0
      %v2770 = vadd.f32 %v2681, %v2769
      %2771 = vmatmul.bf16.gmra.mxu0 %v1043
      %v2772 = vpop.f32.mrf.mxu0
      %v2773 = vadd.f32 %v2684, %v2772
      %v2774 = vpop.f32.mrf.mxu0
      %v2775 = vadd.f32 %v2686, %v2774
      %2776 = vmatmul.bf16.gmra.mxu0 %v1050
      %v2777 = vpop.f32.mrf.mxu0
      %v2778 = vadd.f32 %v2689, %v2777
      %v2779 = vpop.f32.mrf.mxu0
      %v2780 = vadd.f32 %v2691, %v2779
      %2781 = vmatmul.bf16.gmra.mxu0 %v1057
      %v2782 = vpop.f32.mrf.mxu0
      %v2783 = vadd.f32 %v2694, %v2782
      %v2784 = vpop.f32.mrf.mxu0
      %v2785 = vadd.f32 %v2696, %v2784
      %2786 = vmatmul.bf16.gmra.mxu0 %v1064
      %v2787 = vpop.f32.mrf.mxu0
      %v2788 = vadd.f32 %v2699, %v2787
      %v2789 = vpop.f32.mrf.mxu0
      %v2790 = vadd.f32 %v2701, %v2789
      %2791 = vmatmul.bf16.gmra.mxu0 %v1071
      %v2792 = vpop.f32.mrf.mxu0
      %v2793 = vadd.f32 %v2704, %v2792
      %v2794 = vpop.f32.mrf.mxu0
      %v2795 = vadd.f32 %v2706, %v2794
      %2796 = vmatmul.bf16.gmra.mxu0 %v1078
      %v2797 = vpop.f32.mrf.mxu0
      %v2798 = vadd.f32 %v2709, %v2797
      %v2799 = vpop.f32.mrf.mxu0
      %v2800 = vadd.f32 %v2711, %v2799
      %2801 = vmatmul.bf16.gmra.mxu0 %v1085
      %v2802 = vpop.f32.mrf.mxu0
      %v2803 = vadd.f32 %v2714, %v2802
      %v2804 = vpop.f32.mrf.mxu0
      %v2805 = vadd.f32 %v2716, %v2804
      %2806 = vmatmul.bf16.gmra.mxu0 %v1092
      %v2807 = vpop.f32.mrf.mxu0
      %v2808 = vadd.f32 %v2719, %v2807
      %v2809 = vpop.f32.mrf.mxu0
      %v2810 = vadd.f32 %v2721, %v2809
      %2811 = vmatmul.bf16.gmra.mxu0 %v1099
      %v2812 = vpop.f32.mrf.mxu0
      %v2813 = vadd.f32 %v2724, %v2812
      %v2814 = vpop.f32.mrf.mxu0
      %v2815 = vadd.f32 %v2726, %v2814
      %2816 = vmatmul.bf16.gmra.mxu0 %v1106
      %v2817 = vpop.f32.mrf.mxu0
      %v2818 = vadd.f32 %v2729, %v2817
      %v2819 = vpop.f32.mrf.mxu0
      %v2820 = vadd.f32 %v2731, %v2819
      %2821 = vmatmul.bf16.gmra.mxu0 %v1113
      %v2822 = vpop.f32.mrf.mxu0
      %v2823 = vadd.f32 %v2734, %v2822
      %v2824 = vpop.f32.mrf.mxu0
      %v2825 = vadd.f32 %v2736, %v2824
      %2826 = vmatmul.bf16.gmra.mxu0 %v1120
      %v2827 = vpop.f32.mrf.mxu0
      %v2828 = vadd.f32 %v2739, %v2827
      %v2829 = vpop.f32.mrf.mxu0
      %v2830 = vadd.f32 %v2741, %v2829
      %2831 = vmatmul.bf16.gmra.mxu0 %v1127
      %v2832 = vpop.f32.mrf.mxu0
      %v2833 = vadd.f32 %v2744, %v2832
      %v2834 = vpop.f32.mrf.mxu0
      %v2835 = vadd.f32 %v2746, %v2834
      %2836 = vmatmul.bf16.gmra.mxu0 %v1134
      %v2837 = vpop.f32.mrf.mxu0
      %v2838 = vadd.f32 %v2749, %v2837
      %v2839 = vpop.f32.mrf.mxu0
      %v2840 = vadd.f32 %v2751, %v2839
      %2841 = vmatmul.bf16.gmra.mxu0 %v1141
      %v2842 = vpop.f32.mrf.mxu0
      %v2843 = vadd.f32 %v2754, %v2842
      %v2844 = vpop.f32.mrf.mxu0
      %v2845 = vadd.f32 %v2756, %v2844
      %2846 = vdwg.mxu0
      %2847 = vmatpush.bf16.msra.mxu0 %v1629
      %2848 = vmatpush.bf16.msra.mxu0 %v1627
      %2849 = vmatpush.bf16.msra.mxu0 %v1625
      %2850 = vmatpush.bf16.msra.mxu0 %v1623
      %2851 = vmatpush.bf16.msra.mxu0 %v1621
      %2852 = vmatpush.bf16.msra.mxu0 %v1619
      %2853 = vmatpush.bf16.msra.mxu0 %v1617
      %2854 = vmatpush.bf16.msra.mxu0 %v1615
      %2855 = vmatmul.bf16.gmra.mxu0 %v1037
      %v2856 = vpop.f32.mrf.mxu0
      %v2857 = vadd.f32 %v2768, %v2856
      %v2858 = vpop.f32.mrf.mxu0
      %v2859 = vadd.f32 %v2770, %v2858
      %2860 = vmatmul.bf16.gmra.mxu0 %v1044
      %v2861 = vpop.f32.mrf.mxu0
      %v2862 = vadd.f32 %v2773, %v2861
      %v2863 = vpop.f32.mrf.mxu0
      %v2864 = vadd.f32 %v2775, %v2863
      %2865 = vmatmul.bf16.gmra.mxu0 %v1051
      %v2866 = vpop.f32.mrf.mxu0
      %v2867 = vadd.f32 %v2778, %v2866
      %v2868 = vpop.f32.mrf.mxu0
      %v2869 = vadd.f32 %v2780, %v2868
      %2870 = vmatmul.bf16.gmra.mxu0 %v1058
      %v2871 = vpop.f32.mrf.mxu0
      %v2872 = vadd.f32 %v2783, %v2871
      %v2873 = vpop.f32.mrf.mxu0
      %v2874 = vadd.f32 %v2785, %v2873
      %2875 = vmatmul.bf16.gmra.mxu0 %v1065
      %v2876 = vpop.f32.mrf.mxu0
      %v2877 = vadd.f32 %v2788, %v2876
      %v2878 = vpop.f32.mrf.mxu0
      %v2879 = vadd.f32 %v2790, %v2878
      %2880 = vmatmul.bf16.gmra.mxu0 %v1072
      %v2881 = vpop.f32.mrf.mxu0
      %v2882 = vadd.f32 %v2793, %v2881
      %v2883 = vpop.f32.mrf.mxu0
      %v2884 = vadd.f32 %v2795, %v2883
      %2885 = vmatmul.bf16.gmra.mxu0 %v1079
      %v2886 = vpop.f32.mrf.mxu0
      %v2887 = vadd.f32 %v2798, %v2886
      %v2888 = vpop.f32.mrf.mxu0
      %v2889 = vadd.f32 %v2800, %v2888
      %2890 = vmatmul.bf16.gmra.mxu0 %v1086
      %v2891 = vpop.f32.mrf.mxu0
      %v2892 = vadd.f32 %v2803, %v2891
      %v2893 = vpop.f32.mrf.mxu0
      %v2894 = vadd.f32 %v2805, %v2893
      %2895 = vmatmul.bf16.gmra.mxu0 %v1093
      %v2896 = vpop.f32.mrf.mxu0
      %v2897 = vadd.f32 %v2808, %v2896
      %v2898 = vpop.f32.mrf.mxu0
      %v2899 = vadd.f32 %v2810, %v2898
      %2900 = vmatmul.bf16.gmra.mxu0 %v1100
      %v2901 = vpop.f32.mrf.mxu0
      %v2902 = vadd.f32 %v2813, %v2901
      %v2903 = vpop.f32.mrf.mxu0
      %v2904 = vadd.f32 %v2815, %v2903
      %2905 = vmatmul.bf16.gmra.mxu0 %v1107
      %v2906 = vpop.f32.mrf.mxu0
      %v2907 = vadd.f32 %v2818, %v2906
      %v2908 = vpop.f32.mrf.mxu0
      %v2909 = vadd.f32 %v2820, %v2908
      %2910 = vmatmul.bf16.gmra.mxu0 %v1114
      %v2911 = vpop.f32.mrf.mxu0
      %v2912 = vadd.f32 %v2823, %v2911
      %v2913 = vpop.f32.mrf.mxu0
      %v2914 = vadd.f32 %v2825, %v2913
      %2915 = vmatmul.bf16.gmra.mxu0 %v1121
      %v2916 = vpop.f32.mrf.mxu0
      %v2917 = vadd.f32 %v2828, %v2916
      %v2918 = vpop.f32.mrf.mxu0
      %v2919 = vadd.f32 %v2830, %v2918
      %2920 = vmatmul.bf16.gmra.mxu0 %v1128
      %v2921 = vpop.f32.mrf.mxu0
      %v2922 = vadd.f32 %v2833, %v2921
      %v2923 = vpop.f32.mrf.mxu0
      %v2924 = vadd.f32 %v2835, %v2923
      %2925 = vmatmul.bf16.gmra.mxu0 %v1135
      %v2926 = vpop.f32.mrf.mxu0
      %v2927 = vadd.f32 %v2838, %v2926
      %v2928 = vpop.f32.mrf.mxu0
      %v2929 = vadd.f32 %v2840, %v2928
      %2930 = vmatmul.bf16.gmra.mxu0 %v1142
      %v2931 = vpop.f32.mrf.mxu0
      %v2932 = vadd.f32 %v2843, %v2931
      %v2933 = vpop.f32.mrf.mxu0
      %v2934 = vadd.f32 %v2845, %v2933
      %2935 = vdwg.mxu0
      %2936 = vmatpush.bf16.msra.mxu0 0
      %2937 = vmatpush.bf16.msra.mxu0 0
      %2938 = vmatpush.bf16.msra.mxu0 0
      %2939 = vmatpush.bf16.msra.mxu0 0
      %2940 = vmatpush.bf16.msra.mxu0 0
      %2941 = vmatpush.bf16.msra.mxu0 0
      %2942 = vmatpush.bf16.msra.mxu0 0
      %2943 = vmatpush.bf16.msra.mxu0 %v1631
      %2944 = vmatmul.bf16.gmra.mxu0 %v1732
      %v2945 = vpop.f32.mrf.mxu0
      %v2946 = vadd.f32 %v2857, %v2945
      %v2947 = vpop.f32.mrf.mxu0
      %v2948 = vadd.f32 %v2859, %v2947
      %2949 = vmatmul.bf16.gmra.mxu0 %v1735
      %v2950 = vpop.f32.mrf.mxu0
      %v2951 = vadd.f32 %v2862, %v2950
      %v2952 = vpop.f32.mrf.mxu0
      %v2953 = vadd.f32 %v2864, %v2952
      %2954 = vmatmul.bf16.gmra.mxu0 %v1738
      %v2955 = vpop.f32.mrf.mxu0
      %v2956 = vadd.f32 %v2867, %v2955
      %v2957 = vpop.f32.mrf.mxu0
      %v2958 = vadd.f32 %v2869, %v2957
      %2959 = vmatmul.bf16.gmra.mxu0 %v1741
      %v2960 = vpop.f32.mrf.mxu0
      %v2961 = vadd.f32 %v2872, %v2960
      %v2962 = vpop.f32.mrf.mxu0
      %v2963 = vadd.f32 %v2874, %v2962
      %2964 = vmatmul.bf16.gmra.mxu0 %v1744
      %v2965 = vpop.f32.mrf.mxu0
      %v2966 = vadd.f32 %v2877, %v2965
      %v2967 = vpop.f32.mrf.mxu0
      %v2968 = vadd.f32 %v2879, %v2967
      %2969 = vmatmul.bf16.gmra.mxu0 %v1747
      %v2970 = vpop.f32.mrf.mxu0
      %v2971 = vadd.f32 %v2882, %v2970
      %v2972 = vpop.f32.mrf.mxu0
      %v2973 = vadd.f32 %v2884, %v2972
      %2974 = vmatmul.bf16.gmra.mxu0 %v1750
      %v2975 = vpop.f32.mrf.mxu0
      %v2976 = vadd.f32 %v2887, %v2975
      %v2977 = vpop.f32.mrf.mxu0
      %v2978 = vadd.f32 %v2889, %v2977
      %2979 = vmatmul.bf16.gmra.mxu0 %v1753
      %v2980 = vpop.f32.mrf.mxu0
      %v2981 = vadd.f32 %v2892, %v2980
      %v2982 = vpop.f32.mrf.mxu0
      %v2983 = vadd.f32 %v2894, %v2982
      %2984 = vmatmul.bf16.gmra.mxu0 %v1756
      %v2985 = vpop.f32.mrf.mxu0
      %v2986 = vadd.f32 %v2897, %v2985
      %v2987 = vpop.f32.mrf.mxu0
      %v2988 = vadd.f32 %v2899, %v2987
      %2989 = vmatmul.bf16.gmra.mxu0 %v1759
      %v2990 = vpop.f32.mrf.mxu0
      %v2991 = vadd.f32 %v2902, %v2990
      %v2992 = vpop.f32.mrf.mxu0
      %v2993 = vadd.f32 %v2904, %v2992
      %2994 = vmatmul.bf16.gmra.mxu0 %v1762
      %v2995 = vpop.f32.mrf.mxu0
      %v2996 = vadd.f32 %v2907, %v2995
      %v2997 = vpop.f32.mrf.mxu0
      %v2998 = vadd.f32 %v2909, %v2997
      %2999 = vmatmul.bf16.gmra.mxu0 %v1765
      %v3000 = vpop.f32.mrf.mxu0
      %v3001 = vadd.f32 %v2912, %v3000
      %v3002 = vpop.f32.mrf.mxu0
      %v3003 = vadd.f32 %v2914, %v3002
      %3004 = vmatmul.bf16.gmra.mxu0 %v1768
      %v3005 = vpop.f32.mrf.mxu0
      %v3006 = vadd.f32 %v2917, %v3005
      %v3007 = vpop.f32.mrf.mxu0
      %v3008 = vadd.f32 %v2919, %v3007
      %3009 = vmatmul.bf16.gmra.mxu0 %v1771
      %v3010 = vpop.f32.mrf.mxu0
      %v3011 = vadd.f32 %v2922, %v3010
      %v3012 = vpop.f32.mrf.mxu0
      %v3013 = vadd.f32 %v2924, %v3012
      %3014 = vmatmul.bf16.gmra.mxu0 %v1774
      %v3015 = vpop.f32.mrf.mxu0
      %v3016 = vadd.f32 %v2927, %v3015
      %v3017 = vpop.f32.mrf.mxu0
      %v3018 = vadd.f32 %v2929, %v3017
      %3019 = vmatmul.bf16.gmra.mxu0 %v1777
      %v3020 = vpop.f32.mrf.mxu0
      %v3021 = vadd.f32 %v2932, %v3020
      %v3022 = vpop.f32.mrf.mxu0
      %v3023 = vadd.f32 %v2934, %v3022
      %3024 = vdwg.mxu0
      %v3025 = vmax.f32 %v2323, 0.0
      %v3026 = vmax.f32 %v2946, 0.0
      %v3027 = vmax.f32 %v2325, 0.0
      %v3028 = vmax.f32 %v2948, 0.0
      %v3029 = vmax.f32 %v2328, 0.0
      %v3030 = vmax.f32 %v2951, 0.0
      %v3031 = vmax.f32 %v2330, 0.0
      %v3032 = vmax.f32 %v2953, 0.0
      %v3033 = vmax.f32 %v2333, 0.0
      %v3034 = vmax.f32 %v2956, 0.0
      %v3035 = vmax.f32 %v2335, 0.0
      %v3036 = vmax.f32 %v2958, 0.0
      %v3037 = vmax.f32 %v2338, 0.0
      %v3038 = vmax.f32 %v2961, 0.0
      %v3039 = vmax.f32 %v2340, 0.0
      %v3040 = vmax.f32 %v2963, 0.0
      %v3041 = vmax.f32 %v2343, 0.0
      %v3042 = vmax.f32 %v2966, 0.0
      %v3043 = vmax.f32 %v2345, 0.0
      %v3044 = vmax.f32 %v2968, 0.0
      %v3045 = vmax.f32 %v2348, 0.0
      %v3046 = vmax.f32 %v2971, 0.0
      %v3047 = vmax.f32 %v2350, 0.0
      %v3048 = vmax.f32 %v2973, 0.0
      %v3049 = vmax.f32 %v2353, 0.0
      %v3050 = vmax.f32 %v2976, 0.0
      %v3051 = vmax.f32 %v2355, 0.0
      %v3052 = vmax.f32 %v2978, 0.0
      %v3053 = vmax.f32 %v2358, 0.0
      %v3054 = vmax.f32 %v2981, 0.0
      %v3055 = vmax.f32 %v2360, 0.0
      %v3056 = vmax.f32 %v2983, 0.0
      %v3057 = vmax.f32 %v2363, 0.0
      %v3058 = vmax.f32 %v2986, 0.0
      %v3059 = vmax.f32 %v2365, 0.0
      %v3060 = vmax.f32 %v2988, 0.0
      %v3061 = vmax.f32 %v2368, 0.0
      %v3062 = vmax.f32 %v2991, 0.0
      %v3063 = vmax.f32 %v2370, 0.0
      %v3064 = vmax.f32 %v2993, 0.0
      %v3065 = vmax.f32 %v2373, 0.0
      %v3066 = vmax.f32 %v2996, 0.0
      %v3067 = vmax.f32 %v2375, 0.0
      %v3068 = vmax.f32 %v2998, 0.0
      %v3069 = vmax.f32 %v2378, 0.0
      %v3070 = vmax.f32 %v3001, 0.0
      %v3071 = vmax.f32 %v2380, 0.0
      %v3072 = vmax.f32 %v3003, 0.0
      %v3073 = vmax.f32 %v2383, 0.0
      %v3074 = vmax.f32 %v3006, 0.0
      %v3075 = vmax.f32 %v2385, 0.0
      %v3076 = vmax.f32 %v3008, 0.0
      %v3077 = vmax.f32 %v2388, 0.0
      %v3078 = vmax.f32 %v3011, 0.0
      %v3079 = vmax.f32 %v2390, 0.0
      %v3080 = vmax.f32 %v3013, 0.0
      %v3081 = vmax.f32 %v2393, 0.0
      %v3082 = vmax.f32 %v3016, 0.0
      %v3083 = vmax.f32 %v2395, 0.0
      %v3084 = vmax.f32 %v3018, 0.0
      %v3085 = vmax.f32 %v2398, 0.0
      %v3086 = vmax.f32 %v3021, 0.0
      %v3087 = vmax.f32 %v2400, 0.0
      %v3088 = vmax.f32 %v3023, 0.0
      %vm3089 = vcmask 588800
      %v3090 = vsel %vm3089, %v3026, 0.0
      %v3091 = vadd.f32 %v3025, %v3090
      %3092 = vadd.xlane.f32.xlu0 %v3091
      %v3093 = vpop.xlane.xlu0 %3092
      %v3094 = vsel %vm3089, %v3028, 0.0
      %v3095 = vadd.f32 %v3027, %v3094
      %3096 = vadd.xlane.f32.xlu0 %v3095
      %v3097 = vpop.xlane.xlu0 %3096
      %v3098 = vsel %vm3089, %v3030, 0.0
      %v3099 = vadd.f32 %v3029, %v3098
      %3100 = vadd.xlane.f32.xlu0 %v3099
      %v3101 = vpop.xlane.xlu0 %3100
      %v3102 = vsel %vm3089, %v3032, 0.0
      %v3103 = vadd.f32 %v3031, %v3102
      %3104 = vadd.xlane.f32.xlu0 %v3103
      %v3105 = vpop.xlane.xlu0 %3104
      %v3106 = vsel %vm3089, %v3034, 0.0
      %v3107 = vadd.f32 %v3033, %v3106
      %3108 = vadd.xlane.f32.xlu0 %v3107
      %v3109 = vpop.xlane.xlu0 %3108
      %v3110 = vsel %vm3089, %v3036, 0.0
      %v3111 = vadd.f32 %v3035, %v3110
      %3112 = vadd.xlane.f32.xlu0 %v3111
      %v3113 = vpop.xlane.xlu0 %3112
      %v3114 = vsel %vm3089, %v3038, 0.0
      %v3115 = vadd.f32 %v3037, %v3114
      %3116 = vadd.xlane.f32.xlu0 %v3115
      %v3117 = vpop.xlane.xlu0 %3116
      %v3118 = vsel %vm3089, %v3040, 0.0
      %v3119 = vadd.f32 %v3039, %v3118
      %3120 = vadd.xlane.f32.xlu0 %v3119
      %v3121 = vpop.xlane.xlu0 %3120
      %v3122 = vsel %vm3089, %v3042, 0.0
      %v3123 = vadd.f32 %v3041, %v3122
      %3124 = vadd.xlane.f32.xlu0 %v3123
      %v3125 = vpop.xlane.xlu0 %3124
      %v3126 = vsel %vm3089, %v3044, 0.0
      %v3127 = vadd.f32 %v3043, %v3126
      %3128 = vadd.xlane.f32.xlu0 %v3127
      %v3129 = vpop.xlane.xlu0 %3128
      %v3130 = vsel %vm3089, %v3046, 0.0
      %v3131 = vadd.f32 %v3045, %v3130
      %3132 = vadd.xlane.f32.xlu0 %v3131
      %v3133 = vpop.xlane.xlu0 %3132
      %v3134 = vsel %vm3089, %v3048, 0.0
      %v3135 = vadd.f32 %v3047, %v3134
      %3136 = vadd.xlane.f32.xlu0 %v3135
      %v3137 = vpop.xlane.xlu0 %3136
      %v3138 = vsel %vm3089, %v3050, 0.0
      %v3139 = vadd.f32 %v3049, %v3138
      %3140 = vadd.xlane.f32.xlu0 %v3139
      %v3141 = vpop.xlane.xlu0 %3140
      %v3142 = vsel %vm3089, %v3052, 0.0
      %v3143 = vadd.f32 %v3051, %v3142
      %3144 = vadd.xlane.f32.xlu0 %v3143
      %v3145 = vpop.xlane.xlu0 %3144
      %v3146 = vsel %vm3089, %v3054, 0.0
      %v3147 = vadd.f32 %v3053, %v3146
      %3148 = vadd.xlane.f32.xlu0 %v3147
      %v3149 = vpop.xlane.xlu0 %3148
      %v3150 = vsel %vm3089, %v3056, 0.0
      %v3151 = vadd.f32 %v3055, %v3150
      %3152 = vadd.xlane.f32.xlu0 %v3151
      %v3153 = vpop.xlane.xlu0 %3152
      %v3154 = vsel %vm3089, %v3058, 0.0
      %v3155 = vadd.f32 %v3057, %v3154
      %3156 = vadd.xlane.f32.xlu0 %v3155
      %v3157 = vpop.xlane.xlu0 %3156
      %v3158 = vsel %vm3089, %v3060, 0.0
      %v3159 = vadd.f32 %v3059, %v3158
      %3160 = vadd.xlane.f32.xlu0 %v3159
      %v3161 = vpop.xlane.xlu0 %3160
      %v3162 = vsel %vm3089, %v3062, 0.0
      %v3163 = vadd.f32 %v3061, %v3162
      %3164 = vadd.xlane.f32.xlu0 %v3163
      %v3165 = vpop.xlane.xlu0 %3164
      %v3166 = vsel %vm3089, %v3064, 0.0
      %v3167 = vadd.f32 %v3063, %v3166
      %3168 = vadd.xlane.f32.xlu0 %v3167
      %v3169 = vpop.xlane.xlu0 %3168
      %v3170 = vsel %vm3089, %v3066, 0.0
      %v3171 = vadd.f32 %v3065, %v3170
      %3172 = vadd.xlane.f32.xlu0 %v3171
      %v3173 = vpop.xlane.xlu0 %3172
      %v3174 = vsel %vm3089, %v3068, 0.0
      %v3175 = vadd.f32 %v3067, %v3174
      %3176 = vadd.xlane.f32.xlu0 %v3175
      %v3177 = vpop.xlane.xlu0 %3176
      %v3178 = vsel %vm3089, %v3070, 0.0
      %v3179 = vadd.f32 %v3069, %v3178
      %3180 = vadd.xlane.f32.xlu0 %v3179
      %v3181 = vpop.xlane.xlu0 %3180
      %v3182 = vsel %vm3089, %v3072, 0.0
      %v3183 = vadd.f32 %v3071, %v3182
      %3184 = vadd.xlane.f32.xlu0 %v3183
      %v3185 = vpop.xlane.xlu0 %3184
      %v3186 = vsel %vm3089, %v3074, 0.0
      %v3187 = vadd.f32 %v3073, %v3186
      %3188 = vadd.xlane.f32.xlu0 %v3187
      %v3189 = vpop.xlane.xlu0 %3188
      %v3190 = vsel %vm3089, %v3076, 0.0
      %v3191 = vadd.f32 %v3075, %v3190
      %3192 = vadd.xlane.f32.xlu0 %v3191
      %v3193 = vpop.xlane.xlu0 %3192
      %v3194 = vsel %vm3089, %v3078, 0.0
      %v3195 = vadd.f32 %v3077, %v3194
      %3196 = vadd.xlane.f32.xlu0 %v3195
      %v3197 = vpop.xlane.xlu0 %3196
      %v3198 = vsel %vm3089, %v3080, 0.0
      %v3199 = vadd.f32 %v3079, %v3198
      %3200 = vadd.xlane.f32.xlu0 %v3199
      %v3201 = vpop.xlane.xlu0 %3200
      %v3202 = vsel %vm3089, %v3082, 0.0
      %v3203 = vadd.f32 %v3081, %v3202
      %3204 = vadd.xlane.f32.xlu0 %v3203
      %v3205 = vpop.xlane.xlu0 %3204
      %v3206 = vsel %vm3089, %v3084, 0.0
      %v3207 = vadd.f32 %v3083, %v3206
      %3208 = vadd.xlane.f32.xlu0 %v3207
      %v3209 = vpop.xlane.xlu0 %3208
      %v3210 = vsel %vm3089, %v3086, 0.0
      %v3211 = vadd.f32 %v3085, %v3210
      %3212 = vadd.xlane.f32.xlu0 %v3211
      %v3213 = vpop.xlane.xlu0 %3212
      %v3214 = vsel %vm3089, %v3088, 0.0
      %v3215 = vadd.f32 %v3087, %v3214
      %3216 = vadd.xlane.f32.xlu0 %v3215
      %v3217 = vpop.xlane.xlu0 %3216
      %v3218 = vrcp.pop 200.0
      %v3219 = vmul.f32 200.0, %v3218
      %v3220 = vsub.f32 1.0, %v3219
      %v3221 = vmul.f32 %v3218, %v3220
      %v3222 = vadd.f32 %v3218, %v3221
      %vm3223 = vweird.f32 %v3218
      %v3224 = vsel %vm3223, %v3218, %v3222
      %v3225 = vmul.f32 %v3093, %v3224
      %v3226 = vmul.f32 %v3097, %v3224
      %v3227 = vmul.f32 %v3101, %v3224
      %v3228 = vmul.f32 %v3105, %v3224
      %v3229 = vmul.f32 %v3109, %v3224
      %v3230 = vmul.f32 %v3113, %v3224
      %v3231 = vmul.f32 %v3117, %v3224
      %v3232 = vmul.f32 %v3121, %v3224
      %v3233 = vmul.f32 %v3125, %v3224
      %v3234 = vmul.f32 %v3129, %v3224
      %v3235 = vmul.f32 %v3133, %v3224
      %v3236 = vmul.f32 %v3137, %v3224
      %v3237 = vmul.f32 %v3141, %v3224
      %v3238 = vmul.f32 %v3145, %v3224
      %v3239 = vmul.f32 %v3149, %v3224
      %v3240 = vmul.f32 %v3153, %v3224
      %v3241 = vmul.f32 %v3157, %v3224
      %v3242 = vmul.f32 %v3161, %v3224
      %v3243 = vmul.f32 %v3165, %v3224
      %v3244 = vmul.f32 %v3169, %v3224
      %v3245 = vmul.f32 %v3173, %v3224
      %v3246 = vmul.f32 %v3177, %v3224
      %v3247 = vmul.f32 %v3181, %v3224
      %v3248 = vmul.f32 %v3185, %v3224
      %v3249 = vmul.f32 %v3189, %v3224
      %v3250 = vmul.f32 %v3193, %v3224
      %v3251 = vmul.f32 %v3197, %v3224
      %v3252 = vmul.f32 %v3201, %v3224
      %v3253 = vmul.f32 %v3205, %v3224
      %v3254 = vmul.f32 %v3209, %v3224
      %v3255 = vmul.f32 %v3213, %v3224
      %v3256 = vmul.f32 %v3217, %v3224
      %v3257 = vmul.f32 %v3025, %v3025
      %v3258 = vmul.f32 %v3026, %v3026
      %v3259 = vmul.f32 %v3027, %v3027
      %v3260 = vmul.f32 %v3028, %v3028
      %v3261 = vmul.f32 %v3029, %v3029
      %v3262 = vmul.f32 %v3030, %v3030
      %v3263 = vmul.f32 %v3031, %v3031
      %v3264 = vmul.f32 %v3032, %v3032
      %v3265 = vmul.f32 %v3033, %v3033
      %v3266 = vmul.f32 %v3034, %v3034
      %v3267 = vmul.f32 %v3035, %v3035
      %v3268 = vmul.f32 %v3036, %v3036
      %v3269 = vmul.f32 %v3037, %v3037
      %v3270 = vmul.f32 %v3038, %v3038
      %v3271 = vmul.f32 %v3039, %v3039
      %v3272 = vmul.f32 %v3040, %v3040
      %v3273 = vmul.f32 %v3041, %v3041
      %v3274 = vmul.f32 %v3042, %v3042
      %v3275 = vmul.f32 %v3043, %v3043
      %v3276 = vmul.f32 %v3044, %v3044
      %v3277 = vmul.f32 %v3045, %v3045
      %v3278 = vmul.f32 %v3046, %v3046
      %v3279 = vmul.f32 %v3047, %v3047
      %v3280 = vmul.f32 %v3048, %v3048
      %v3281 = vmul.f32 %v3049, %v3049
      %v3282 = vmul.f32 %v3050, %v3050
      %v3283 = vmul.f32 %v3051, %v3051
      %v3284 = vmul.f32 %v3052, %v3052
      %v3285 = vmul.f32 %v3053, %v3053
      %v3286 = vmul.f32 %v3054, %v3054
      %v3287 = vmul.f32 %v3055, %v3055
      %v3288 = vmul.f32 %v3056, %v3056
      %v3289 = vmul.f32 %v3057, %v3057
      %v3290 = vmul.f32 %v3058, %v3058
      %v3291 = vmul.f32 %v3059, %v3059
      %v3292 = vmul.f32 %v3060, %v3060
      %v3293 = vmul.f32 %v3061, %v3061
      %v3294 = vmul.f32 %v3062, %v3062
      %v3295 = vmul.f32 %v3063, %v3063
      %v3296 = vmul.f32 %v3064, %v3064
      %v3297 = vmul.f32 %v3065, %v3065
      %v3298 = vmul.f32 %v3066, %v3066
      %v3299 = vmul.f32 %v3067, %v3067
      %v3300 = vmul.f32 %v3068, %v3068
      %v3301 = vmul.f32 %v3069, %v3069
      %v3302 = vmul.f32 %v3070, %v3070
      %v3303 = vmul.f32 %v3071, %v3071
      %v3304 = vmul.f32 %v3072, %v3072
      %v3305 = vmul.f32 %v3073, %v3073
      %v3306 = vmul.f32 %v3074, %v3074
      %v3307 = vmul.f32 %v3075, %v3075
      %v3308 = vmul.f32 %v3076, %v3076
      %v3309 = vmul.f32 %v3077, %v3077
      %v3310 = vmul.f32 %v3078, %v3078
      %v3311 = vmul.f32 %v3079, %v3079
      %v3312 = vmul.f32 %v3080, %v3080
      %v3313 = vmul.f32 %v3081, %v3081
      %v3314 = vmul.f32 %v3082, %v3082
      %v3315 = vmul.f32 %v3083, %v3083
      %v3316 = vmul.f32 %v3084, %v3084
      %v3317 = vmul.f32 %v3085, %v3085
      %v3318 = vmul.f32 %v3086, %v3086
      %v3319 = vmul.f32 %v3087, %v3087
      %v3320 = vmul.f32 %v3088, %v3088
      %v3321 = vsel %vm3089, %v3258, 0.0
      %v3322 = vadd.f32 %v3257, %v3321
      %3323 = vadd.xlane.f32.xlu0 %v3322
      %v3324 = vpop.xlane.xlu0 %3323
      %v3325 = vsel %vm3089, %v3260, 0.0
      %v3326 = vadd.f32 %v3259, %v3325
      %3327 = vadd.xlane.f32.xlu0 %v3326
      %v3328 = vpop.xlane.xlu0 %3327
      %v3329 = vsel %vm3089, %v3262, 0.0
      %v3330 = vadd.f32 %v3261, %v3329
      %3331 = vadd.xlane.f32.xlu0 %v3330
      %v3332 = vpop.xlane.xlu0 %3331
      %v3333 = vsel %vm3089, %v3264, 0.0
      %v3334 = vadd.f32 %v3263, %v3333
      %3335 = vadd.xlane.f32.xlu0 %v3334
      %v3336 = vpop.xlane.xlu0 %3335
      %v3337 = vsel %vm3089, %v3266, 0.0
      %v3338 = vadd.f32 %v3265, %v3337
      %3339 = vadd.xlane.f32.xlu0 %v3338
      %v3340 = vpop.xlane.xlu0 %3339
      %v3341 = vsel %vm3089, %v3268, 0.0
      %v3342 = vadd.f32 %v3267, %v3341
      %3343 = vadd.xlane.f32.xlu0 %v3342
      %v3344 = vpop.xlane.xlu0 %3343
      %v3345 = vsel %vm3089, %v3270, 0.0
      %v3346 = vadd.f32 %v3269, %v3345
      %3347 = vadd.xlane.f32.xlu0 %v3346
      %v3348 = vpop.xlane.xlu0 %3347
      %v3349 = vsel %vm3089, %v3272, 0.0
      %v3350 = vadd.f32 %v3271, %v3349
      %3351 = vadd.xlane.f32.xlu0 %v3350
      %v3352 = vpop.xlane.xlu0 %3351
      %v3353 = vsel %vm3089, %v3274, 0.0
      %v3354 = vadd.f32 %v3273, %v3353
      %3355 = vadd.xlane.f32.xlu0 %v3354
      %v3356 = vpop.xlane.xlu0 %3355
      %v3357 = vsel %vm3089, %v3276, 0.0
      %v3358 = vadd.f32 %v3275, %v3357
      %3359 = vadd.xlane.f32.xlu0 %v3358
      %v3360 = vpop.xlane.xlu0 %3359
      %v3361 = vsel %vm3089, %v3278, 0.0
      %v3362 = vadd.f32 %v3277, %v3361
      %3363 = vadd.xlane.f32.xlu0 %v3362
      %v3364 = vpop.xlane.xlu0 %3363
      %v3365 = vsel %vm3089, %v3280, 0.0
      %v3366 = vadd.f32 %v3279, %v3365
      %3367 = vadd.xlane.f32.xlu0 %v3366
      %v3368 = vpop.xlane.xlu0 %3367
      %v3369 = vsel %vm3089, %v3282, 0.0
      %v3370 = vadd.f32 %v3281, %v3369
      %3371 = vadd.xlane.f32.xlu0 %v3370
      %v3372 = vpop.xlane.xlu0 %3371
      %v3373 = vsel %vm3089, %v3284, 0.0
      %v3374 = vadd.f32 %v3283, %v3373
      %3375 = vadd.xlane.f32.xlu0 %v3374
      %v3376 = vpop.xlane.xlu0 %3375
      %v3377 = vsel %vm3089, %v3286, 0.0
      %v3378 = vadd.f32 %v3285, %v3377
      %3379 = vadd.xlane.f32.xlu0 %v3378
      %v3380 = vpop.xlane.xlu0 %3379
      %v3381 = vsel %vm3089, %v3288, 0.0
      %v3382 = vadd.f32 %v3287, %v3381
      %3383 = vadd.xlane.f32.xlu0 %v3382
      %v3384 = vpop.xlane.xlu0 %3383
      %v3385 = vsel %vm3089, %v3290, 0.0
      %v3386 = vadd.f32 %v3289, %v3385
      %3387 = vadd.xlane.f32.xlu0 %v3386
      %v3388 = vpop.xlane.xlu0 %3387
      %v3389 = vsel %vm3089, %v3292, 0.0
      %v3390 = vadd.f32 %v3291, %v3389
      %3391 = vadd.xlane.f32.xlu0 %v3390
      %v3392 = vpop.xlane.xlu0 %3391
      %v3393 = vsel %vm3089, %v3294, 0.0
      %v3394 = vadd.f32 %v3293, %v3393
      %3395 = vadd.xlane.f32.xlu0 %v3394
      %v3396 = vpop.xlane.xlu0 %3395
      %v3397 = vsel %vm3089, %v3296, 0.0
      %v3398 = vadd.f32 %v3295, %v3397
      %3399 = vadd.xlane.f32.xlu0 %v3398
      %v3400 = vpop.xlane.xlu0 %3399
      %v3401 = vsel %vm3089, %v3298, 0.0
      %v3402 = vadd.f32 %v3297, %v3401
      %3403 = vadd.xlane.f32.xlu0 %v3402
      %v3404 = vpop.xlane.xlu0 %3403
      %v3405 = vsel %vm3089, %v3300, 0.0
      %v3406 = vadd.f32 %v3299, %v3405
      %3407 = vadd.xlane.f32.xlu0 %v3406
      %v3408 = vpop.xlane.xlu0 %3407
      %v3409 = vsel %vm3089, %v3302, 0.0
      %v3410 = vadd.f32 %v3301, %v3409
      %3411 = vadd.xlane.f32.xlu0 %v3410
      %v3412 = vpop.xlane.xlu0 %3411
      %v3413 = vsel %vm3089, %v3304, 0.0
      %v3414 = vadd.f32 %v3303, %v3413
      %3415 = vadd.xlane.f32.xlu0 %v3414
      %v3416 = vpop.xlane.xlu0 %3415
      %v3417 = vsel %vm3089, %v3306, 0.0
      %v3418 = vadd.f32 %v3305, %v3417
      %3419 = vadd.xlane.f32.xlu0 %v3418
      %v3420 = vpop.xlane.xlu0 %3419
      %v3421 = vsel %vm3089, %v3308, 0.0
      %v3422 = vadd.f32 %v3307, %v3421
      %3423 = vadd.xlane.f32.xlu0 %v3422
      %v3424 = vpop.xlane.xlu0 %3423
      %v3425 = vsel %vm3089, %v3310, 0.0
      %v3426 = vadd.f32 %v3309, %v3425
      %3427 = vadd.xlane.f32.xlu0 %v3426
      %v3428 = vpop.xlane.xlu0 %3427
      %v3429 = vsel %vm3089, %v3312, 0.0
      %v3430 = vadd.f32 %v3311, %v3429
      %3431 = vadd.xlane.f32.xlu0 %v3430
      %v3432 = vpop.xlane.xlu0 %3431
      %v3433 = vsel %vm3089, %v3314, 0.0
      %v3434 = vadd.f32 %v3313, %v3433
      %3435 = vadd.xlane.f32.xlu0 %v3434
      %v3436 = vpop.xlane.xlu0 %3435
      %v3437 = vsel %vm3089, %v3316, 0.0
      %v3438 = vadd.f32 %v3315, %v3437
      %3439 = vadd.xlane.f32.xlu0 %v3438
      %v3440 = vpop.xlane.xlu0 %3439
      %v3441 = vsel %vm3089, %v3318, 0.0
      %v3442 = vadd.f32 %v3317, %v3441
      %3443 = vadd.xlane.f32.xlu0 %v3442
      %v3444 = vpop.xlane.xlu0 %3443
      %v3445 = vsel %vm3089, %v3320, 0.0
      %v3446 = vadd.f32 %v3319, %v3445
      %3447 = vadd.xlane.f32.xlu0 %v3446
      %v3448 = vpop.xlane.xlu0 %3447
      %v3449 = vmul.f32 %v3324, %v3224
      %v3450 = vmul.f32 %v3328, %v3224
      %v3451 = vmul.f32 %v3332, %v3224
      %v3452 = vmul.f32 %v3336, %v3224
      %v3453 = vmul.f32 %v3340, %v3224
      %v3454 = vmul.f32 %v3344, %v3224
      %v3455 = vmul.f32 %v3348, %v3224
      %v3456 = vmul.f32 %v3352, %v3224
      %v3457 = vmul.f32 %v3356, %v3224
      %v3458 = vmul.f32 %v3360, %v3224
      %v3459 = vmul.f32 %v3364, %v3224
      %v3460 = vmul.f32 %v3368, %v3224
      %v3461 = vmul.f32 %v3372, %v3224
      %v3462 = vmul.f32 %v3376, %v3224
      %v3463 = vmul.f32 %v3380, %v3224
      %v3464 = vmul.f32 %v3384, %v3224
      %v3465 = vmul.f32 %v3388, %v3224
      %v3466 = vmul.f32 %v3392, %v3224
      %v3467 = vmul.f32 %v3396, %v3224
      %v3468 = vmul.f32 %v3400, %v3224
      %v3469 = vmul.f32 %v3404, %v3224
      %v3470 = vmul.f32 %v3408, %v3224
      %v3471 = vmul.f32 %v3412, %v3224
      %v3472 = vmul.f32 %v3416, %v3224
      %v3473 = vmul.f32 %v3420, %v3224
      %v3474 = vmul.f32 %v3424, %v3224
      %v3475 = vmul.f32 %v3428, %v3224
      %v3476 = vmul.f32 %v3432, %v3224
      %v3477 = vmul.f32 %v3436, %v3224
      %v3478 = vmul.f32 %v3440, %v3224
      %v3479 = vmul.f32 %v3444, %v3224
      %v3480 = vmul.f32 %v3448, %v3224
      %v3481 = vmul.f32 %v3225, %v3225
      %v3482 = vmul.f32 %v3226, %v3226
      %v3483 = vmul.f32 %v3227, %v3227
      %v3484 = vmul.f32 %v3228, %v3228
      %v3485 = vmul.f32 %v3229, %v3229
      %v3486 = vmul.f32 %v3230, %v3230
      %v3487 = vmul.f32 %v3231, %v3231
      %v3488 = vmul.f32 %v3232, %v3232
      %v3489 = vmul.f32 %v3233, %v3233
      %v3490 = vmul.f32 %v3234, %v3234
      %v3491 = vmul.f32 %v3235, %v3235
      %v3492 = vmul.f32 %v3236, %v3236
      %v3493 = vmul.f32 %v3237, %v3237
      %v3494 = vmul.f32 %v3238, %v3238
      %v3495 = vmul.f32 %v3239, %v3239
      %v3496 = vmul.f32 %v3240, %v3240
      %v3497 = vmul.f32 %v3241, %v3241
      %v3498 = vmul.f32 %v3242, %v3242
      %v3499 = vmul.f32 %v3243, %v3243
      %v3500 = vmul.f32 %v3244, %v3244
      %v3501 = vmul.f32 %v3245, %v3245
      %v3502 = vmul.f32 %v3246, %v3246
      %v3503 = vmul.f32 %v3247, %v3247
      %v3504 = vmul.f32 %v3248, %v3248
      %v3505 = vmul.f32 %v3249, %v3249
      %v3506 = vmul.f32 %v3250, %v3250
      %v3507 = vmul.f32 %v3251, %v3251
      %v3508 = vmul.f32 %v3252, %v3252
      %v3509 = vmul.f32 %v3253, %v3253
      %v3510 = vmul.f32 %v3254, %v3254
      %v3511 = vmul.f32 %v3255, %v3255
      %v3512 = vmul.f32 %v3256, %v3256
      %v3513 = vsub.f32 %v3449, %v3481
      %v3514 = vsub.f32 %v3450, %v3482
      %v3515 = vsub.f32 %v3451, %v3483
      %v3516 = vsub.f32 %v3452, %v3484
      %v3517 = vsub.f32 %v3453, %v3485
      %v3518 = vsub.f32 %v3454, %v3486
      %v3519 = vsub.f32 %v3455, %v3487
      %v3520 = vsub.f32 %v3456, %v3488
      %v3521 = vsub.f32 %v3457, %v3489
      %v3522 = vsub.f32 %v3458, %v3490
      %v3523 = vsub.f32 %v3459, %v3491
      %v3524 = vsub.f32 %v3460, %v3492
      %v3525 = vsub.f32 %v3461, %v3493
      %v3526 = vsub.f32 %v3462, %v3494
      %v3527 = vsub.f32 %v3463, %v3495
      %v3528 = vsub.f32 %v3464, %v3496
      %v3529 = vsub.f32 %v3465, %v3497
      %v3530 = vsub.f32 %v3466, %v3498
      %v3531 = vsub.f32 %v3467, %v3499
      %v3532 = vsub.f32 %v3468, %v3500
      %v3533 = vsub.f32 %v3469, %v3501
      %v3534 = vsub.f32 %v3470, %v3502
      %v3535 = vsub.f32 %v3471, %v3503
      %v3536 = vsub.f32 %v3472, %v3504
      %v3537 = vsub.f32 %v3473, %v3505
      %v3538 = vsub.f32 %v3474, %v3506
      %v3539 = vsub.f32 %v3475, %v3507
      %v3540 = vsub.f32 %v3476, %v3508
      %v3541 = vsub.f32 %v3477, %v3509
      %v3542 = vsub.f32 %v3478, %v3510
      %v3543 = vsub.f32 %v3479, %v3511
      %v3544 = vsub.f32 %v3480, %v3512
      %v3545 = vmax.f32 %v3513, 0.0
      %v3546 = vmax.f32 %v3514, 0.0
      %v3547 = vmax.f32 %v3515, 0.0
      %v3548 = vmax.f32 %v3516, 0.0
      %v3549 = vmax.f32 %v3517, 0.0
      %v3550 = vmax.f32 %v3518, 0.0
      %v3551 = vmax.f32 %v3519, 0.0
      %v3552 = vmax.f32 %v3520, 0.0
      %v3553 = vmax.f32 %v3521, 0.0
      %v3554 = vmax.f32 %v3522, 0.0
      %v3555 = vmax.f32 %v3523, 0.0
      %v3556 = vmax.f32 %v3524, 0.0
      %v3557 = vmax.f32 %v3525, 0.0
      %v3558 = vmax.f32 %v3526, 0.0
      %v3559 = vmax.f32 %v3527, 0.0
      %v3560 = vmax.f32 %v3528, 0.0
      %v3561 = vmax.f32 %v3529, 0.0
      %v3562 = vmax.f32 %v3530, 0.0
      %v3563 = vmax.f32 %v3531, 0.0
      %v3564 = vmax.f32 %v3532, 0.0
      %v3565 = vmax.f32 %v3533, 0.0
      %v3566 = vmax.f32 %v3534, 0.0
      %v3567 = vmax.f32 %v3535, 0.0
      %v3568 = vmax.f32 %v3536, 0.0
      %v3569 = vmax.f32 %v3537, 0.0
      %v3570 = vmax.f32 %v3538, 0.0
      %v3571 = vmax.f32 %v3539, 0.0
      %v3572 = vmax.f32 %v3540, 0.0
      %v3573 = vmax.f32 %v3541, 0.0
      %v3574 = vmax.f32 %v3542, 0.0
      %v3575 = vmax.f32 %v3543, 0.0
      %v3576 = vmax.f32 %v3544, 0.0
      %v3577 = vsub.f32 %v3025, %v3225
      %v3578 = vsub.f32 %v3026, %v3225
      %v3579 = vsub.f32 %v3027, %v3226
      %v3580 = vsub.f32 %v3028, %v3226
      %v3581 = vsub.f32 %v3029, %v3227
      %v3582 = vsub.f32 %v3030, %v3227
      %v3583 = vsub.f32 %v3031, %v3228
      %v3584 = vsub.f32 %v3032, %v3228
      %v3585 = vsub.f32 %v3033, %v3229
      %v3586 = vsub.f32 %v3034, %v3229
      %v3587 = vsub.f32 %v3035, %v3230
      %v3588 = vsub.f32 %v3036, %v3230
      %v3589 = vsub.f32 %v3037, %v3231
      %v3590 = vsub.f32 %v3038, %v3231
      %v3591 = vsub.f32 %v3039, %v3232
      %v3592 = vsub.f32 %v3040, %v3232
      %v3593 = vsub.f32 %v3041, %v3233
      %v3594 = vsub.f32 %v3042, %v3233
      %v3595 = vsub.f32 %v3043, %v3234
      %v3596 = vsub.f32 %v3044, %v3234
      %v3597 = vsub.f32 %v3045, %v3235
      %v3598 = vsub.f32 %v3046, %v3235
      %v3599 = vsub.f32 %v3047, %v3236
      %v3600 = vsub.f32 %v3048, %v3236
      %v3601 = vsub.f32 %v3049, %v3237
      %v3602 = vsub.f32 %v3050, %v3237
      %v3603 = vsub.f32 %v3051, %v3238
      %v3604 = vsub.f32 %v3052, %v3238
      %v3605 = vsub.f32 %v3053, %v3239
      %v3606 = vsub.f32 %v3054, %v3239
      %v3607 = vsub.f32 %v3055, %v3240
      %v3608 = vsub.f32 %v3056, %v3240
      %v3609 = vsub.f32 %v3057, %v3241
      %v3610 = vsub.f32 %v3058, %v3241
      %v3611 = vsub.f32 %v3059, %v3242
      %v3612 = vsub.f32 %v3060, %v3242
      %v3613 = vsub.f32 %v3061, %v3243
      %v3614 = vsub.f32 %v3062, %v3243
      %v3615 = vsub.f32 %v3063, %v3244
      %v3616 = vsub.f32 %v3064, %v3244
      %v3617 = vsub.f32 %v3065, %v3245
      %v3618 = vsub.f32 %v3066, %v3245
      %v3619 = vsub.f32 %v3067, %v3246
      %v3620 = vsub.f32 %v3068, %v3246
      %v3621 = vsub.f32 %v3069, %v3247
      %v3622 = vsub.f32 %v3070, %v3247
      %v3623 = vsub.f32 %v3071, %v3248
      %v3624 = vsub.f32 %v3072, %v3248
      %v3625 = vsub.f32 %v3073, %v3249
      %v3626 = vsub.f32 %v3074, %v3249
      %v3627 = vsub.f32 %v3075, %v3250
      %v3628 = vsub.f32 %v3076, %v3250
      %v3629 = vsub.f32 %v3077, %v3251
      %v3630 = vsub.f32 %v3078, %v3251
      %v3631 = vsub.f32 %v3079, %v3252
      %v3632 = vsub.f32 %v3080, %v3252
      %v3633 = vsub.f32 %v3081, %v3253
      %v3634 = vsub.f32 %v3082, %v3253
      %v3635 = vsub.f32 %v3083, %v3254
      %v3636 = vsub.f32 %v3084, %v3254
      %v3637 = vsub.f32 %v3085, %v3255
      %v3638 = vsub.f32 %v3086, %v3255
      %v3639 = vsub.f32 %v3087, %v3256
      %v3640 = vsub.f32 %v3088, %v3256
      %v3641 = vadd.f32 %v3545, 1e-05
      %v3642 = vadd.f32 %v3546, 1e-05
      %v3643 = vadd.f32 %v3547, 1e-05
      %v3644 = vadd.f32 %v3548, 1e-05
      %v3645 = vadd.f32 %v3549, 1e-05
      %v3646 = vadd.f32 %v3550, 1e-05
      %v3647 = vadd.f32 %v3551, 1e-05
      %v3648 = vadd.f32 %v3552, 1e-05
      %v3649 = vadd.f32 %v3553, 1e-05
      %v3650 = vadd.f32 %v3554, 1e-05
      %v3651 = vadd.f32 %v3555, 1e-05
      %v3652 = vadd.f32 %v3556, 1e-05
      %v3653 = vadd.f32 %v3557, 1e-05
      %v3654 = vadd.f32 %v3558, 1e-05
      %v3655 = vadd.f32 %v3559, 1e-05
      %v3656 = vadd.f32 %v3560, 1e-05
      %v3657 = vadd.f32 %v3561, 1e-05
      %v3658 = vadd.f32 %v3562, 1e-05
      %v3659 = vadd.f32 %v3563, 1e-05
      %v3660 = vadd.f32 %v3564, 1e-05
      %v3661 = vadd.f32 %v3565, 1e-05
      %v3662 = vadd.f32 %v3566, 1e-05
      %v3663 = vadd.f32 %v3567, 1e-05
      %v3664 = vadd.f32 %v3568, 1e-05
      %v3665 = vadd.f32 %v3569, 1e-05
      %v3666 = vadd.f32 %v3570, 1e-05
      %v3667 = vadd.f32 %v3571, 1e-05
      %v3668 = vadd.f32 %v3572, 1e-05
      %v3669 = vadd.f32 %v3573, 1e-05
      %v3670 = vadd.f32 %v3574, 1e-05
      %v3671 = vadd.f32 %v3575, 1e-05
      %v3672 = vadd.f32 %v3576, 1e-05
      %v3673 = vrsqrt.pop %v3641
      %v3674 = vmul.f32 %v3673, %v3641
      %v3675 = vmul.f32 %v3674, %v3673
      %v3676 = vmul.f32 0.5, %v3675
      %v3677 = vsub.f32 1.5, %v3676
      %v3678 = vmul.f32 %v3673, %v3677
      %vm3679 = vweird.f32 %v3641
      %vm3680 = vweird.f32 %v3673
      %vm3681 = vmor %vm3679, %vm3680
      %v3682 = vsel %vm3681, %v3673, %v3678
      %v3683 = vrsqrt.pop %v3642
      %v3684 = vmul.f32 %v3683, %v3642
      %v3685 = vmul.f32 %v3684, %v3683
      %v3686 = vmul.f32 0.5, %v3685
      %v3687 = vsub.f32 1.5, %v3686
      %v3688 = vmul.f32 %v3683, %v3687
      %vm3689 = vweird.f32 %v3642
      %vm3690 = vweird.f32 %v3683
      %vm3691 = vmor %vm3689, %vm3690
      %v3692 = vsel %vm3691, %v3683, %v3688
      %v3693 = vrsqrt.pop %v3643
      %v3694 = vmul.f32 %v3693, %v3643
      %v3695 = vmul.f32 %v3694, %v3693
      %v3696 = vmul.f32 0.5, %v3695
      %v3697 = vsub.f32 1.5, %v3696
      %v3698 = vmul.f32 %v3693, %v3697
      %vm3699 = vweird.f32 %v3643
      %vm3700 = vweird.f32 %v3693
      %vm3701 = vmor %vm3699, %vm3700
      %v3702 = vsel %vm3701, %v3693, %v3698
      %v3703 = vrsqrt.pop %v3644
      %v3704 = vmul.f32 %v3703, %v3644
      %v3705 = vmul.f32 %v3704, %v3703
      %v3706 = vmul.f32 0.5, %v3705
      %v3707 = vsub.f32 1.5, %v3706
      %v3708 = vmul.f32 %v3703, %v3707
      %vm3709 = vweird.f32 %v3644
      %vm3710 = vweird.f32 %v3703
      %vm3711 = vmor %vm3709, %vm3710
      %v3712 = vsel %vm3711, %v3703, %v3708
      %v3713 = vrsqrt.pop %v3645
      %v3714 = vmul.f32 %v3713, %v3645
      %v3715 = vmul.f32 %v3714, %v3713
      %v3716 = vmul.f32 0.5, %v3715
      %v3717 = vsub.f32 1.5, %v3716
      %v3718 = vmul.f32 %v3713, %v3717
      %vm3719 = vweird.f32 %v3645
      %vm3720 = vweird.f32 %v3713
      %vm3721 = vmor %vm3719, %vm3720
      %v3722 = vsel %vm3721, %v3713, %v3718
      %v3723 = vrsqrt.pop %v3646
      %v3724 = vmul.f32 %v3723, %v3646
      %v3725 = vmul.f32 %v3724, %v3723
      %v3726 = vmul.f32 0.5, %v3725
      %v3727 = vsub.f32 1.5, %v3726
      %v3728 = vmul.f32 %v3723, %v3727
      %vm3729 = vweird.f32 %v3646
      %vm3730 = vweird.f32 %v3723
      %vm3731 = vmor %vm3729, %vm3730
      %v3732 = vsel %vm3731, %v3723, %v3728
      %v3733 = vrsqrt.pop %v3647
      %v3734 = vmul.f32 %v3733, %v3647
      %v3735 = vmul.f32 %v3734, %v3733
      %v3736 = vmul.f32 0.5, %v3735
      %v3737 = vsub.f32 1.5, %v3736
      %v3738 = vmul.f32 %v3733, %v3737
      %vm3739 = vweird.f32 %v3647
      %vm3740 = vweird.f32 %v3733
      %vm3741 = vmor %vm3739, %vm3740
      %v3742 = vsel %vm3741, %v3733, %v3738
      %v3743 = vrsqrt.pop %v3648
      %v3744 = vmul.f32 %v3743, %v3648
      %v3745 = vmul.f32 %v3744, %v3743
      %v3746 = vmul.f32 0.5, %v3745
      %v3747 = vsub.f32 1.5, %v3746
      %v3748 = vmul.f32 %v3743, %v3747
      %vm3749 = vweird.f32 %v3648
      %vm3750 = vweird.f32 %v3743
      %vm3751 = vmor %vm3749, %vm3750
      %v3752 = vsel %vm3751, %v3743, %v3748
      %v3753 = vrsqrt.pop %v3649
      %v3754 = vmul.f32 %v3753, %v3649
      %v3755 = vmul.f32 %v3754, %v3753
      %v3756 = vmul.f32 0.5, %v3755
      %v3757 = vsub.f32 1.5, %v3756
      %v3758 = vmul.f32 %v3753, %v3757
      %vm3759 = vweird.f32 %v3649
      %vm3760 = vweird.f32 %v3753
      %vm3761 = vmor %vm3759, %vm3760
      %v3762 = vsel %vm3761, %v3753, %v3758
      %v3763 = vrsqrt.pop %v3650
      %v3764 = vmul.f32 %v3763, %v3650
      %v3765 = vmul.f32 %v3764, %v3763
      %v3766 = vmul.f32 0.5, %v3765
      %v3767 = vsub.f32 1.5, %v3766
      %v3768 = vmul.f32 %v3763, %v3767
      %vm3769 = vweird.f32 %v3650
      %vm3770 = vweird.f32 %v3763
      %vm3771 = vmor %vm3769, %vm3770
      %v3772 = vsel %vm3771, %v3763, %v3768
      %v3773 = vrsqrt.pop %v3651
      %v3774 = vmul.f32 %v3773, %v3651
      %v3775 = vmul.f32 %v3774, %v3773
      %v3776 = vmul.f32 0.5, %v3775
      %v3777 = vsub.f32 1.5, %v3776
      %v3778 = vmul.f32 %v3773, %v3777
      %vm3779 = vweird.f32 %v3651
      %vm3780 = vweird.f32 %v3773
      %vm3781 = vmor %vm3779, %vm3780
      %v3782 = vsel %vm3781, %v3773, %v3778
      %v3783 = vrsqrt.pop %v3652
      %v3784 = vmul.f32 %v3783, %v3652
      %v3785 = vmul.f32 %v3784, %v3783
      %v3786 = vmul.f32 0.5, %v3785
      %v3787 = vsub.f32 1.5, %v3786
      %v3788 = vmul.f32 %v3783, %v3787
      %vm3789 = vweird.f32 %v3652
      %vm3790 = vweird.f32 %v3783
      %vm3791 = vmor %vm3789, %vm3790
      %v3792 = vsel %vm3791, %v3783, %v3788
      %v3793 = vrsqrt.pop %v3653
      %v3794 = vmul.f32 %v3793, %v3653
      %v3795 = vmul.f32 %v3794, %v3793
      %v3796 = vmul.f32 0.5, %v3795
      %v3797 = vsub.f32 1.5, %v3796
      %v3798 = vmul.f32 %v3793, %v3797
      %vm3799 = vweird.f32 %v3653
      %vm3800 = vweird.f32 %v3793
      %vm3801 = vmor %vm3799, %vm3800
      %v3802 = vsel %vm3801, %v3793, %v3798
      %v3803 = vrsqrt.pop %v3654
      %v3804 = vmul.f32 %v3803, %v3654
      %v3805 = vmul.f32 %v3804, %v3803
      %v3806 = vmul.f32 0.5, %v3805
      %v3807 = vsub.f32 1.5, %v3806
      %v3808 = vmul.f32 %v3803, %v3807
      %vm3809 = vweird.f32 %v3654
      %vm3810 = vweird.f32 %v3803
      %vm3811 = vmor %vm3809, %vm3810
      %v3812 = vsel %vm3811, %v3803, %v3808
      %v3813 = vrsqrt.pop %v3655
      %v3814 = vmul.f32 %v3813, %v3655
      %v3815 = vmul.f32 %v3814, %v3813
      %v3816 = vmul.f32 0.5, %v3815
      %v3817 = vsub.f32 1.5, %v3816
      %v3818 = vmul.f32 %v3813, %v3817
      %vm3819 = vweird.f32 %v3655
      %vm3820 = vweird.f32 %v3813
      %vm3821 = vmor %vm3819, %vm3820
      %v3822 = vsel %vm3821, %v3813, %v3818
      %v3823 = vrsqrt.pop %v3656
      %v3824 = vmul.f32 %v3823, %v3656
      %v3825 = vmul.f32 %v3824, %v3823
      %v3826 = vmul.f32 0.5, %v3825
      %v3827 = vsub.f32 1.5, %v3826
      %v3828 = vmul.f32 %v3823, %v3827
      %vm3829 = vweird.f32 %v3656
      %vm3830 = vweird.f32 %v3823
      %vm3831 = vmor %vm3829, %vm3830
      %v3832 = vsel %vm3831, %v3823, %v3828
      %v3833 = vrsqrt.pop %v3657
      %v3834 = vmul.f32 %v3833, %v3657
      %v3835 = vmul.f32 %v3834, %v3833
      %v3836 = vmul.f32 0.5, %v3835
      %v3837 = vsub.f32 1.5, %v3836
      %v3838 = vmul.f32 %v3833, %v3837
      %vm3839 = vweird.f32 %v3657
      %vm3840 = vweird.f32 %v3833
      %vm3841 = vmor %vm3839, %vm3840
      %v3842 = vsel %vm3841, %v3833, %v3838
      %v3843 = vrsqrt.pop %v3658
      %v3844 = vmul.f32 %v3843, %v3658
      %v3845 = vmul.f32 %v3844, %v3843
      %v3846 = vmul.f32 0.5, %v3845
      %v3847 = vsub.f32 1.5, %v3846
      %v3848 = vmul.f32 %v3843, %v3847
      %vm3849 = vweird.f32 %v3658
      %vm3850 = vweird.f32 %v3843
      %vm3851 = vmor %vm3849, %vm3850
      %v3852 = vsel %vm3851, %v3843, %v3848
      %v3853 = vrsqrt.pop %v3659
      %v3854 = vmul.f32 %v3853, %v3659
      %v3855 = vmul.f32 %v3854, %v3853
      %v3856 = vmul.f32 0.5, %v3855
      %v3857 = vsub.f32 1.5, %v3856
      %v3858 = vmul.f32 %v3853, %v3857
      %vm3859 = vweird.f32 %v3659
      %vm3860 = vweird.f32 %v3853
      %vm3861 = vmor %vm3859, %vm3860
      %v3862 = vsel %vm3861, %v3853, %v3858
      %v3863 = vrsqrt.pop %v3660
      %v3864 = vmul.f32 %v3863, %v3660
      %v3865 = vmul.f32 %v3864, %v3863
      %v3866 = vmul.f32 0.5, %v3865
      %v3867 = vsub.f32 1.5, %v3866
      %v3868 = vmul.f32 %v3863, %v3867
      %vm3869 = vweird.f32 %v3660
      %vm3870 = vweird.f32 %v3863
      %vm3871 = vmor %vm3869, %vm3870
      %v3872 = vsel %vm3871, %v3863, %v3868
      %v3873 = vrsqrt.pop %v3661
      %v3874 = vmul.f32 %v3873, %v3661
      %v3875 = vmul.f32 %v3874, %v3873
      %v3876 = vmul.f32 0.5, %v3875
      %v3877 = vsub.f32 1.5, %v3876
      %v3878 = vmul.f32 %v3873, %v3877
      %vm3879 = vweird.f32 %v3661
      %vm3880 = vweird.f32 %v3873
      %vm3881 = vmor %vm3879, %vm3880
      %v3882 = vsel %vm3881, %v3873, %v3878
      %v3883 = vrsqrt.pop %v3662
      %v3884 = vmul.f32 %v3883, %v3662
      %v3885 = vmul.f32 %v3884, %v3883
      %v3886 = vmul.f32 0.5, %v3885
      %v3887 = vsub.f32 1.5, %v3886
      %v3888 = vmul.f32 %v3883, %v3887
      %vm3889 = vweird.f32 %v3662
      %vm3890 = vweird.f32 %v3883
      %vm3891 = vmor %vm3889, %vm3890
      %v3892 = vsel %vm3891, %v3883, %v3888
      %v3893 = vrsqrt.pop %v3663
      %v3894 = vmul.f32 %v3893, %v3663
      %v3895 = vmul.f32 %v3894, %v3893
      %v3896 = vmul.f32 0.5, %v3895
      %v3897 = vsub.f32 1.5, %v3896
      %v3898 = vmul.f32 %v3893, %v3897
      %vm3899 = vweird.f32 %v3663
      %vm3900 = vweird.f32 %v3893
      %vm3901 = vmor %vm3899, %vm3900
      %v3902 = vsel %vm3901, %v3893, %v3898
      %v3903 = vrsqrt.pop %v3664
      %v3904 = vmul.f32 %v3903, %v3664
      %v3905 = vmul.f32 %v3904, %v3903
      %v3906 = vmul.f32 0.5, %v3905
      %v3907 = vsub.f32 1.5, %v3906
      %v3908 = vmul.f32 %v3903, %v3907
      %vm3909 = vweird.f32 %v3664
      %vm3910 = vweird.f32 %v3903
      %vm3911 = vmor %vm3909, %vm3910
      %v3912 = vsel %vm3911, %v3903, %v3908
      %v3913 = vrsqrt.pop %v3665
      %v3914 = vmul.f32 %v3913, %v3665
      %v3915 = vmul.f32 %v3914, %v3913
      %v3916 = vmul.f32 0.5, %v3915
      %v3917 = vsub.f32 1.5, %v3916
      %v3918 = vmul.f32 %v3913, %v3917
      %vm3919 = vweird.f32 %v3665
      %vm3920 = vweird.f32 %v3913
      %vm3921 = vmor %vm3919, %vm3920
      %v3922 = vsel %vm3921, %v3913, %v3918
      %v3923 = vrsqrt.pop %v3666
      %v3924 = vmul.f32 %v3923, %v3666
      %v3925 = vmul.f32 %v3924, %v3923
      %v3926 = vmul.f32 0.5, %v3925
      %v3927 = vsub.f32 1.5, %v3926
      %v3928 = vmul.f32 %v3923, %v3927
      %vm3929 = vweird.f32 %v3666
      %vm3930 = vweird.f32 %v3923
      %vm3931 = vmor %vm3929, %vm3930
      %v3932 = vsel %vm3931, %v3923, %v3928
      %v3933 = vrsqrt.pop %v3667
      %v3934 = vmul.f32 %v3933, %v3667
      %v3935 = vmul.f32 %v3934, %v3933
      %v3936 = vmul.f32 0.5, %v3935
      %v3937 = vsub.f32 1.5, %v3936
      %v3938 = vmul.f32 %v3933, %v3937
      %vm3939 = vweird.f32 %v3667
      %vm3940 = vweird.f32 %v3933
      %vm3941 = vmor %vm3939, %vm3940
      %v3942 = vsel %vm3941, %v3933, %v3938
      %v3943 = vrsqrt.pop %v3668
      %v3944 = vmul.f32 %v3943, %v3668
      %v3945 = vmul.f32 %v3944, %v3943
      %v3946 = vmul.f32 0.5, %v3945
      %v3947 = vsub.f32 1.5, %v3946
      %v3948 = vmul.f32 %v3943, %v3947
      %vm3949 = vweird.f32 %v3668
      %vm3950 = vweird.f32 %v3943
      %vm3951 = vmor %vm3949, %vm3950
      %v3952 = vsel %vm3951, %v3943, %v3948
      %v3953 = vrsqrt.pop %v3669
      %v3954 = vmul.f32 %v3953, %v3669
      %v3955 = vmul.f32 %v3954, %v3953
      %v3956 = vmul.f32 0.5, %v3955
      %v3957 = vsub.f32 1.5, %v3956
      %v3958 = vmul.f32 %v3953, %v3957
      %vm3959 = vweird.f32 %v3669
      %vm3960 = vweird.f32 %v3953
      %vm3961 = vmor %vm3959, %vm3960
      %v3962 = vsel %vm3961, %v3953, %v3958
      %v3963 = vrsqrt.pop %v3670
      %v3964 = vmul.f32 %v3963, %v3670
      %v3965 = vmul.f32 %v3964, %v3963
      %v3966 = vmul.f32 0.5, %v3965
      %v3967 = vsub.f32 1.5, %v3966
      %v3968 = vmul.f32 %v3963, %v3967
      %vm3969 = vweird.f32 %v3670
      %vm3970 = vweird.f32 %v3963
      %vm3971 = vmor %vm3969, %vm3970
      %v3972 = vsel %vm3971, %v3963, %v3968
      %v3973 = vrsqrt.pop %v3671
      %v3974 = vmul.f32 %v3973, %v3671
      %v3975 = vmul.f32 %v3974, %v3973
      %v3976 = vmul.f32 0.5, %v3975
      %v3977 = vsub.f32 1.5, %v3976
      %v3978 = vmul.f32 %v3973, %v3977
      %vm3979 = vweird.f32 %v3671
      %vm3980 = vweird.f32 %v3973
      %vm3981 = vmor %vm3979, %vm3980
      %v3982 = vsel %vm3981, %v3973, %v3978
      %v3983 = vrsqrt.pop %v3672
      %v3984 = vmul.f32 %v3983, %v3672
      %v3985 = vmul.f32 %v3984, %v3983
      %v3986 = vmul.f32 0.5, %v3985
      %v3987 = vsub.f32 1.5, %v3986
      %v3988 = vmul.f32 %v3983, %v3987
      %vm3989 = vweird.f32 %v3672
      %vm3990 = vweird.f32 %v3983
      %vm3991 = vmor %vm3989, %vm3990
      %v3992 = vsel %vm3991, %v3983, %v3988
      %v3993 = vmul.f32 %v3577, %v3682
      %v3994 = vmul.f32 %v3578, %v3682
      %v3995 = vmul.f32 %v3579, %v3692
      %v3996 = vmul.f32 %v3580, %v3692
      %v3997 = vmul.f32 %v3581, %v3702
      %v3998 = vmul.f32 %v3582, %v3702
      %v3999 = vmul.f32 %v3583, %v3712
      %v4000 = vmul.f32 %v3584, %v3712
      %v4001 = vmul.f32 %v3585, %v3722
      %v4002 = vmul.f32 %v3586, %v3722
      %v4003 = vmul.f32 %v3587, %v3732
      %v4004 = vmul.f32 %v3588, %v3732
      %v4005 = vmul.f32 %v3589, %v3742
      %v4006 = vmul.f32 %v3590, %v3742
      %v4007 = vmul.f32 %v3591, %v3752
      %v4008 = vmul.f32 %v3592, %v3752
      %v4009 = vmul.f32 %v3593, %v3762
      %v4010 = vmul.f32 %v3594, %v3762
      %v4011 = vmul.f32 %v3595, %v3772
      %v4012 = vmul.f32 %v3596, %v3772
      %v4013 = vmul.f32 %v3597, %v3782
      %v4014 = vmul.f32 %v3598, %v3782
      %v4015 = vmul.f32 %v3599, %v3792
      %v4016 = vmul.f32 %v3600, %v3792
      %v4017 = vmul.f32 %v3601, %v3802
      %v4018 = vmul.f32 %v3602, %v3802
      %v4019 = vmul.f32 %v3603, %v3812
      %v4020 = vmul.f32 %v3604, %v3812
      %v4021 = vmul.f32 %v3605, %v3822
      %v4022 = vmul.f32 %v3606, %v3822
      %v4023 = vmul.f32 %v3607, %v3832
      %v4024 = vmul.f32 %v3608, %v3832
      %v4025 = vmul.f32 %v3609, %v3842
      %v4026 = vmul.f32 %v3610, %v3842
      %v4027 = vmul.f32 %v3611, %v3852
      %v4028 = vmul.f32 %v3612, %v3852
      %v4029 = vmul.f32 %v3613, %v3862
      %v4030 = vmul.f32 %v3614, %v3862
      %v4031 = vmul.f32 %v3615, %v3872
      %v4032 = vmul.f32 %v3616, %v3872
      %v4033 = vmul.f32 %v3617, %v3882
      %v4034 = vmul.f32 %v3618, %v3882
      %v4035 = vmul.f32 %v3619, %v3892
      %v4036 = vmul.f32 %v3620, %v3892
      %v4037 = vmul.f32 %v3621, %v3902
      %v4038 = vmul.f32 %v3622, %v3902
      %v4039 = vmul.f32 %v3623, %v3912
      %v4040 = vmul.f32 %v3624, %v3912
      %v4041 = vmul.f32 %v3625, %v3922
      %v4042 = vmul.f32 %v3626, %v3922
      %v4043 = vmul.f32 %v3627, %v3932
      %v4044 = vmul.f32 %v3628, %v3932
      %v4045 = vmul.f32 %v3629, %v3942
      %v4046 = vmul.f32 %v3630, %v3942
      %v4047 = vmul.f32 %v3631, %v3952
      %v4048 = vmul.f32 %v3632, %v3952
      %v4049 = vmul.f32 %v3633, %v3962
      %v4050 = vmul.f32 %v3634, %v3962
      %v4051 = vmul.f32 %v3635, %v3972
      %v4052 = vmul.f32 %v3636, %v3972
      %v4053 = vmul.f32 %v3637, %v3982
      %v4054 = vmul.f32 %v3638, %v3982
      %v4055 = vmul.f32 %v3639, %v3992
      %v4056 = vmul.f32 %v3640, %v3992
      %v4057 = vpack.c.bf16 %v3995, %v3993
      %v4058 = vpack.c.bf16 %v3996, %v3994
      %v4059 = vpack.c.bf16 %v3999, %v3997
      %v4060 = vpack.c.bf16 %v4000, %v3998
      %v4061 = vpack.c.bf16 %v4003, %v4001
      %v4062 = vpack.c.bf16 %v4004, %v4002
      %v4063 = vpack.c.bf16 %v4007, %v4005
      %v4064 = vpack.c.bf16 %v4008, %v4006
      %v4065 = vpack.c.bf16 %v4011, %v4009
      %v4066 = vpack.c.bf16 %v4012, %v4010
      %v4067 = vpack.c.bf16 %v4015, %v4013
      %v4068 = vpack.c.bf16 %v4016, %v4014
      %v4069 = vpack.c.bf16 %v4019, %v4017
      %v4070 = vpack.c.bf16 %v4020, %v4018
      %v4071 = vpack.c.bf16 %v4023, %v4021
      %v4072 = vpack.c.bf16 %v4024, %v4022
      %v4073 = vpack.c.bf16 %v4027, %v4025
      %v4074 = vpack.c.bf16 %v4028, %v4026
      %v4075 = vpack.c.bf16 %v4031, %v4029
      %v4076 = vpack.c.bf16 %v4032, %v4030
      %v4077 = vpack.c.bf16 %v4035, %v4033
      %v4078 = vpack.c.bf16 %v4036, %v4034
      %v4079 = vpack.c.bf16 %v4039, %v4037
      %v4080 = vpack.c.bf16 %v4040, %v4038
      %v4081 = vpack.c.bf16 %v4043, %v4041
      %v4082 = vpack.c.bf16 %v4044, %v4042
      %v4083 = vpack.c.bf16 %v4047, %v4045
      %v4084 = vpack.c.bf16 %v4048, %v4046
      %v4085 = vpack.c.bf16 %v4051, %v4049
      %v4086 = vpack.c.bf16 %v4052, %v4050
      %v4087 = vpack.c.bf16 %v4055, %v4053
      %v4088 = vpack.c.bf16 %v4056, %v4054
      %v4089 = vld [vmem:[%s3] sm:$0xff]
      %v4090 = vld [vmem:[%s3 + $0x8] sm:$0xff]
      %v4091 = vld [vmem:[%s3 + $0x10] sm:$0xff]
      %v4092 = vld [vmem:[%s3 + $0x18] sm:$0xff]
      %v4093 = vld [vmem:[%s3 + $0x20] sm:$0xff]
      %v4094 = vld [vmem:[%s3 + $0x28] sm:$0xff]
      %v4095 = vld [vmem:[%s3 + $0x30] sm:$0xff]
      %v4096 = vld [vmem:[%s3 + $0x38] sm:$0xff]
      %v4097 = vld [vmem:[%s3 + $0x40] sm:$0xff]
      %v4098 = vld [vmem:[%s3 + $0x48] sm:$0xff]
      %v4099 = vld [vmem:[%s3 + $0x50] sm:$0xff]
      %v4100 = vld [vmem:[%s3 + $0x58] sm:$0xff]
      %v4101 = vld [vmem:[%s3 + $0x60] sm:$0xff]
      %v4102 = vld [vmem:[%s3 + $0x68] sm:$0xff]
      %v4103 = vld [vmem:[%s3 + $0x70] sm:$0xff]
      %v4104 = vld [vmem:[%s3 + $0x78] sm:$0xff]
      %v4105 = vld [vmem:[%s3 + $0x80] sm:$0xff]
      %v4106 = vld [vmem:[%s3 + $0x88] sm:$0xff]
      %v4107 = vld [vmem:[%s3 + $0x90] sm:$0xff]
      %v4108 = vld [vmem:[%s3 + $0x98] sm:$0xff]
      %v4109 = vld [vmem:[%s3 + $0xa0] sm:$0xff]
      %v4110 = vld [vmem:[%s3 + $0xa8] sm:$0xff]
      %v4111 = vld [vmem:[%s3 + $0xb0] sm:$0xff]
      %v4112 = vld [vmem:[%s3 + $0xb8] sm:$0xff]
      %v4113 = vld [vmem:[%s3 + $0xc0] sm:$0xff]
      %v4114 = vld [vmem:[%s4] sm:$0x3]
      %v4116 = vperm.slane %v4114, 0
      %v4117 = vperm.slane %v4114, 1
      %v4145 = vunpack.c.l.b16 %v4089
      %v4146 = vunpack.c.h.b16 %v4089
      %v4147 = vunpack.c.l.b16 %v4090
      %v4148 = vunpack.c.h.b16 %v4090
      %v4149 = vunpack.c.l.b16 %v4091
      %v4150 = vunpack.c.h.b16 %v4091
      %v4151 = vunpack.c.l.b16 %v4092
      %v4152 = vunpack.c.h.b16 %v4092
      %v4153 = vunpack.c.l.b16 %v4093
      %v4154 = vunpack.c.h.b16 %v4093
      %v4155 = vunpack.c.l.b16 %v4094
      %v4156 = vunpack.c.h.b16 %v4094
      %v4157 = vunpack.c.l.b16 %v4095
      %v4158 = vunpack.c.h.b16 %v4095
      %v4159 = vunpack.c.l.b16 %v4096
      %v4160 = vunpack.c.h.b16 %v4096
      %v4161 = vunpack.c.l.b16 %v4097
      %v4162 = vunpack.c.h.b16 %v4097
      %v4163 = vunpack.c.l.b16 %v4098
      %v4164 = vunpack.c.h.b16 %v4098
      %v4165 = vunpack.c.l.b16 %v4099
      %v4166 = vunpack.c.h.b16 %v4099
      %v4167 = vunpack.c.l.b16 %v4100
      %v4168 = vunpack.c.h.b16 %v4100
      %v4169 = vunpack.c.l.b16 %v4101
      %v4170 = vunpack.c.h.b16 %v4101
      %v4171 = vunpack.c.l.b16 %v4102
      %v4172 = vunpack.c.h.b16 %v4102
      %v4173 = vunpack.c.l.b16 %v4103
      %v4174 = vunpack.c.h.b16 %v4103
      %v4175 = vunpack.c.l.b16 %v4104
      %v4176 = vunpack.c.h.b16 %v4104
      %v4177 = vunpack.c.l.b16 %v4105
      %v4178 = vunpack.c.h.b16 %v4105
      %v4179 = vunpack.c.l.b16 %v4106
      %v4180 = vunpack.c.h.b16 %v4106
      %v4181 = vunpack.c.l.b16 %v4107
      %v4182 = vunpack.c.h.b16 %v4107
      %v4183 = vunpack.c.l.b16 %v4108
      %v4184 = vunpack.c.h.b16 %v4108
      %v4185 = vunpack.c.l.b16 %v4109
      %v4186 = vunpack.c.h.b16 %v4109
      %v4187 = vunpack.c.l.b16 %v4110
      %v4188 = vunpack.c.h.b16 %v4110
      %v4189 = vunpack.c.l.b16 %v4111
      %v4190 = vunpack.c.h.b16 %v4111
      %v4191 = vunpack.c.l.b16 %v4112
      %v4192 = vunpack.c.h.b16 %v4112
      %v4193 = vunpack.c.l.b16 %v4113
      %v4194 = vunpack.c.h.b16 %v4113
      %v4195 = vpack.c.b16 %v4147, %v4145
      %v4196 = vpack.c.b16 %v4148, %v4146
      %v4197 = vpack.c.b16 %v4151, %v4149
      %v4198 = vpack.c.b16 %v4152, %v4150
      %v4199 = vpack.c.b16 %v4155, %v4153
      %v4200 = vpack.c.b16 %v4156, %v4154
      %v4201 = vpack.c.b16 %v4159, %v4157
      %v4202 = vpack.c.b16 %v4160, %v4158
      %v4203 = vpack.c.b16 %v4163, %v4161
      %v4204 = vpack.c.b16 %v4164, %v4162
      %v4205 = vpack.c.b16 %v4167, %v4165
      %v4206 = vpack.c.b16 %v4168, %v4166
      %v4207 = vpack.c.b16 %v4171, %v4169
      %v4208 = vpack.c.b16 %v4172, %v4170
      %v4209 = vpack.c.b16 %v4175, %v4173
      %v4210 = vpack.c.b16 %v4176, %v4174
      %v4211 = vpack.c.b16 %v4179, %v4177
      %v4212 = vpack.c.b16 %v4180, %v4178
      %v4213 = vpack.c.b16 %v4183, %v4181
      %v4214 = vpack.c.b16 %v4184, %v4182
      %v4215 = vpack.c.b16 %v4187, %v4185
      %v4216 = vpack.c.b16 %v4188, %v4186
      %v4217 = vpack.c.b16 %v4191, %v4189
      %v4218 = vpack.c.b16 %v4192, %v4190
      %v4219 = vpack.c.b16 %v4193, %v4193
      %v4220 = vpack.c.b16 %v4194, %v4194
      %v4246 = vsel %vm3089, %v4058, 0
      %v4249 = vsel %vm3089, %v4060, 0
      %v4252 = vsel %vm3089, %v4062, 0
      %v4255 = vsel %vm3089, %v4064, 0
      %v4258 = vsel %vm3089, %v4066, 0
      %v4261 = vsel %vm3089, %v4068, 0
      %v4264 = vsel %vm3089, %v4070, 0
      %v4267 = vsel %vm3089, %v4072, 0
      %v4270 = vsel %vm3089, %v4074, 0
      %v4273 = vsel %vm3089, %v4076, 0
      %v4276 = vsel %vm3089, %v4078, 0
      %v4279 = vsel %vm3089, %v4080, 0
      %v4282 = vsel %vm3089, %v4082, 0
      %v4285 = vsel %vm3089, %v4084, 0
      %v4288 = vsel %vm3089, %v4086, 0
      %v4291 = vsel %vm3089, %v4088, 0
      %vm4293 = vcmask 1043456
      %v4295 = vsel %vm4293, %v4219, 0
      %v4298 = vsel %vm4293, %v4220, 0
      %4300 = vmatpush.bf16.msra.mxu0 %v4209
      %4301 = vmatpush.bf16.msra.mxu0 %v4207
      %4302 = vmatpush.bf16.msra.mxu0 %v4205
      %4303 = vmatpush.bf16.msra.mxu0 %v4203
      %4304 = vmatpush.bf16.msra.mxu0 %v4201
      %4305 = vmatpush.bf16.msra.mxu0 %v4199
      %4306 = vmatpush.bf16.msra.mxu0 %v4197
      %4307 = vmatpush.bf16.msra.mxu0 %v4195
      %4308 = vmatmul.bf16.gmra.mxu0 %v4057
      %v4309 = vpop.f32.mrf.mxu0
      %v4310 = vadd.f32 %v4116, %v4309
      %v4311 = vpop.f32.mrf.mxu0
      %v4312 = vadd.f32 %v4116, %v4311
      %4313 = vmatmul.bf16.gmra.mxu0 %v4059
      %v4314 = vpop.f32.mrf.mxu0
      %v4315 = vadd.f32 %v4116, %v4314
      %v4316 = vpop.f32.mrf.mxu0
      %v4317 = vadd.f32 %v4116, %v4316
      %4318 = vmatmul.bf16.gmra.mxu0 %v4061
      %v4319 = vpop.f32.mrf.mxu0
      %v4320 = vadd.f32 %v4116, %v4319
      %v4321 = vpop.f32.mrf.mxu0
      %v4322 = vadd.f32 %v4116, %v4321
      %4323 = vmatmul.bf16.gmra.mxu0 %v4063
      %v4324 = vpop.f32.mrf.mxu0
      %v4325 = vadd.f32 %v4116, %v4324
      %v4326 = vpop.f32.mrf.mxu0
      %v4327 = vadd.f32 %v4116, %v4326
      %4328 = vmatmul.bf16.gmra.mxu0 %v4065
      %v4329 = vpop.f32.mrf.mxu0
      %v4330 = vadd.f32 %v4116, %v4329
      %v4331 = vpop.f32.mrf.mxu0
      %v4332 = vadd.f32 %v4116, %v4331
      %4333 = vmatmul.bf16.gmra.mxu0 %v4067
      %v4334 = vpop.f32.mrf.mxu0
      %v4335 = vadd.f32 %v4116, %v4334
      %v4336 = vpop.f32.mrf.mxu0
      %v4337 = vadd.f32 %v4116, %v4336
      %4338 = vmatmul.bf16.gmra.mxu0 %v4069
      %v4339 = vpop.f32.mrf.mxu0
      %v4340 = vadd.f32 %v4116, %v4339
      %v4341 = vpop.f32.mrf.mxu0
      %v4342 = vadd.f32 %v4116, %v4341
      %4343 = vmatmul.bf16.gmra.mxu0 %v4071
      %v4344 = vpop.f32.mrf.mxu0
      %v4345 = vadd.f32 %v4116, %v4344
      %v4346 = vpop.f32.mrf.mxu0
      %v4347 = vadd.f32 %v4116, %v4346
      %4348 = vmatmul.bf16.gmra.mxu0 %v4073
      %v4349 = vpop.f32.mrf.mxu0
      %v4350 = vadd.f32 %v4116, %v4349
      %v4351 = vpop.f32.mrf.mxu0
      %v4352 = vadd.f32 %v4116, %v4351
      %4353 = vmatmul.bf16.gmra.mxu0 %v4075
      %v4354 = vpop.f32.mrf.mxu0
      %v4355 = vadd.f32 %v4116, %v4354
      %v4356 = vpop.f32.mrf.mxu0
      %v4357 = vadd.f32 %v4116, %v4356
      %4358 = vmatmul.bf16.gmra.mxu0 %v4077
      %v4359 = vpop.f32.mrf.mxu0
      %v4360 = vadd.f32 %v4116, %v4359
      %v4361 = vpop.f32.mrf.mxu0
      %v4362 = vadd.f32 %v4116, %v4361
      %4363 = vmatmul.bf16.gmra.mxu0 %v4079
      %v4364 = vpop.f32.mrf.mxu0
      %v4365 = vadd.f32 %v4116, %v4364
      %v4366 = vpop.f32.mrf.mxu0
      %v4367 = vadd.f32 %v4116, %v4366
      %4368 = vmatmul.bf16.gmra.mxu0 %v4081
      %v4369 = vpop.f32.mrf.mxu0
      %v4370 = vadd.f32 %v4116, %v4369
      %v4371 = vpop.f32.mrf.mxu0
      %v4372 = vadd.f32 %v4116, %v4371
      %4373 = vmatmul.bf16.gmra.mxu0 %v4083
      %v4374 = vpop.f32.mrf.mxu0
      %v4375 = vadd.f32 %v4116, %v4374
      %v4376 = vpop.f32.mrf.mxu0
      %v4377 = vadd.f32 %v4116, %v4376
      %4378 = vmatmul.bf16.gmra.mxu0 %v4085
      %v4379 = vpop.f32.mrf.mxu0
      %v4380 = vadd.f32 %v4116, %v4379
      %v4381 = vpop.f32.mrf.mxu0
      %v4382 = vadd.f32 %v4116, %v4381
      %4383 = vmatmul.bf16.gmra.mxu0 %v4087
      %v4384 = vpop.f32.mrf.mxu0
      %v4385 = vadd.f32 %v4116, %v4384
      %v4386 = vpop.f32.mrf.mxu0
      %v4387 = vadd.f32 %v4116, %v4386
      %4388 = vdwg.mxu0
      %4389 = vmatpush.bf16.msra.mxu0 0
      %4390 = vmatpush.bf16.msra.mxu0 0
      %4391 = vmatpush.bf16.msra.mxu0 0
      %4392 = vmatpush.bf16.msra.mxu0 %v4295
      %4393 = vmatpush.bf16.msra.mxu0 %v4217
      %4394 = vmatpush.bf16.msra.mxu0 %v4215
      %4395 = vmatpush.bf16.msra.mxu0 %v4213
      %4396 = vmatpush.bf16.msra.mxu0 %v4211
      %4397 = vmatmul.bf16.gmra.mxu0 %v4246
      %v4398 = vpop.f32.mrf.mxu0
      %v4399 = vadd.f32 %v4310, %v4398
      %v4400 = vpop.f32.mrf.mxu0
      %v4401 = vadd.f32 %v4312, %v4400
      %4402 = vmatmul.bf16.gmra.mxu0 %v4249
      %v4403 = vpop.f32.mrf.mxu0
      %v4404 = vadd.f32 %v4315, %v4403
      %v4405 = vpop.f32.mrf.mxu0
      %v4406 = vadd.f32 %v4317, %v4405
      %4407 = vmatmul.bf16.gmra.mxu0 %v4252
      %v4408 = vpop.f32.mrf.mxu0
      %v4409 = vadd.f32 %v4320, %v4408
      %v4410 = vpop.f32.mrf.mxu0
      %v4411 = vadd.f32 %v4322, %v4410
      %4412 = vmatmul.bf16.gmra.mxu0 %v4255
      %v4413 = vpop.f32.mrf.mxu0
      %v4414 = vadd.f32 %v4325, %v4413
      %v4415 = vpop.f32.mrf.mxu0
      %v4416 = vadd.f32 %v4327, %v4415
      %4417 = vmatmul.bf16.gmra.mxu0 %v4258
      %v4418 = vpop.f32.mrf.mxu0
      %v4419 = vadd.f32 %v4330, %v4418
      %v4420 = vpop.f32.mrf.mxu0
      %v4421 = vadd.f32 %v4332, %v4420
      %4422 = vmatmul.bf16.gmra.mxu0 %v4261
      %v4423 = vpop.f32.mrf.mxu0
      %v4424 = vadd.f32 %v4335, %v4423
      %v4425 = vpop.f32.mrf.mxu0
      %v4426 = vadd.f32 %v4337, %v4425
      %4427 = vmatmul.bf16.gmra.mxu0 %v4264
      %v4428 = vpop.f32.mrf.mxu0
      %v4429 = vadd.f32 %v4340, %v4428
      %v4430 = vpop.f32.mrf.mxu0
      %v4431 = vadd.f32 %v4342, %v4430
      %4432 = vmatmul.bf16.gmra.mxu0 %v4267
      %v4433 = vpop.f32.mrf.mxu0
      %v4434 = vadd.f32 %v4345, %v4433
      %v4435 = vpop.f32.mrf.mxu0
      %v4436 = vadd.f32 %v4347, %v4435
      %4437 = vmatmul.bf16.gmra.mxu0 %v4270
      %v4438 = vpop.f32.mrf.mxu0
      %v4439 = vadd.f32 %v4350, %v4438
      %v4440 = vpop.f32.mrf.mxu0
      %v4441 = vadd.f32 %v4352, %v4440
      %4442 = vmatmul.bf16.gmra.mxu0 %v4273
      %v4443 = vpop.f32.mrf.mxu0
      %v4444 = vadd.f32 %v4355, %v4443
      %v4445 = vpop.f32.mrf.mxu0
      %v4446 = vadd.f32 %v4357, %v4445
      %4447 = vmatmul.bf16.gmra.mxu0 %v4276
      %v4448 = vpop.f32.mrf.mxu0
      %v4449 = vadd.f32 %v4360, %v4448
      %v4450 = vpop.f32.mrf.mxu0
      %v4451 = vadd.f32 %v4362, %v4450
      %4452 = vmatmul.bf16.gmra.mxu0 %v4279
      %v4453 = vpop.f32.mrf.mxu0
      %v4454 = vadd.f32 %v4365, %v4453
      %v4455 = vpop.f32.mrf.mxu0
      %v4456 = vadd.f32 %v4367, %v4455
      %4457 = vmatmul.bf16.gmra.mxu0 %v4282
      %v4458 = vpop.f32.mrf.mxu0
      %v4459 = vadd.f32 %v4370, %v4458
      %v4460 = vpop.f32.mrf.mxu0
      %v4461 = vadd.f32 %v4372, %v4460
      %4462 = vmatmul.bf16.gmra.mxu0 %v4285
      %v4463 = vpop.f32.mrf.mxu0
      %v4464 = vadd.f32 %v4375, %v4463
      %v4465 = vpop.f32.mrf.mxu0
      %v4466 = vadd.f32 %v4377, %v4465
      %4467 = vmatmul.bf16.gmra.mxu0 %v4288
      %v4468 = vpop.f32.mrf.mxu0
      %v4469 = vadd.f32 %v4380, %v4468
      %v4470 = vpop.f32.mrf.mxu0
      %v4471 = vadd.f32 %v4382, %v4470
      %4472 = vmatmul.bf16.gmra.mxu0 %v4291
      %v4473 = vpop.f32.mrf.mxu0
      %v4474 = vadd.f32 %v4385, %v4473
      %v4475 = vpop.f32.mrf.mxu0
      %v4476 = vadd.f32 %v4387, %v4475
      %4477 = vdwg.mxu0
      %4478 = vmatpush.bf16.msra.mxu0 %v4210
      %4479 = vmatpush.bf16.msra.mxu0 %v4208
      %4480 = vmatpush.bf16.msra.mxu0 %v4206
      %4481 = vmatpush.bf16.msra.mxu0 %v4204
      %4482 = vmatpush.bf16.msra.mxu0 %v4202
      %4483 = vmatpush.bf16.msra.mxu0 %v4200
      %4484 = vmatpush.bf16.msra.mxu0 %v4198
      %4485 = vmatpush.bf16.msra.mxu0 %v4196
      %4486 = vmatmul.bf16.gmra.mxu0 %v4057
      %v4487 = vpop.f32.mrf.mxu0
      %v4488 = vadd.f32 %v4117, %v4487
      %v4489 = vpop.f32.mrf.mxu0
      %v4490 = vadd.f32 %v4117, %v4489
      %4491 = vmatmul.bf16.gmra.mxu0 %v4059
      %v4492 = vpop.f32.mrf.mxu0
      %v4493 = vadd.f32 %v4117, %v4492
      %v4494 = vpop.f32.mrf.mxu0
      %v4495 = vadd.f32 %v4117, %v4494
      %4496 = vmatmul.bf16.gmra.mxu0 %v4061
      %v4497 = vpop.f32.mrf.mxu0
      %v4498 = vadd.f32 %v4117, %v4497
      %v4499 = vpop.f32.mrf.mxu0
      %v4500 = vadd.f32 %v4117, %v4499
      %4501 = vmatmul.bf16.gmra.mxu0 %v4063
      %v4502 = vpop.f32.mrf.mxu0
      %v4503 = vadd.f32 %v4117, %v4502
      %v4504 = vpop.f32.mrf.mxu0
      %v4505 = vadd.f32 %v4117, %v4504
      %4506 = vmatmul.bf16.gmra.mxu0 %v4065
      %v4507 = vpop.f32.mrf.mxu0
      %v4508 = vadd.f32 %v4117, %v4507
      %v4509 = vpop.f32.mrf.mxu0
      %v4510 = vadd.f32 %v4117, %v4509
      %4511 = vmatmul.bf16.gmra.mxu0 %v4067
      %v4512 = vpop.f32.mrf.mxu0
      %v4513 = vadd.f32 %v4117, %v4512
      %v4514 = vpop.f32.mrf.mxu0
      %v4515 = vadd.f32 %v4117, %v4514
      %4516 = vmatmul.bf16.gmra.mxu0 %v4069
      %v4517 = vpop.f32.mrf.mxu0
      %v4518 = vadd.f32 %v4117, %v4517
      %v4519 = vpop.f32.mrf.mxu0
      %v4520 = vadd.f32 %v4117, %v4519
      %4521 = vmatmul.bf16.gmra.mxu0 %v4071
      %v4522 = vpop.f32.mrf.mxu0
      %v4523 = vadd.f32 %v4117, %v4522
      %v4524 = vpop.f32.mrf.mxu0
      %v4525 = vadd.f32 %v4117, %v4524
      %4526 = vmatmul.bf16.gmra.mxu0 %v4073
      %v4527 = vpop.f32.mrf.mxu0
      %v4528 = vadd.f32 %v4117, %v4527
      %v4529 = vpop.f32.mrf.mxu0
      %v4530 = vadd.f32 %v4117, %v4529
      %4531 = vmatmul.bf16.gmra.mxu0 %v4075
      %v4532 = vpop.f32.mrf.mxu0
      %v4533 = vadd.f32 %v4117, %v4532
      %v4534 = vpop.f32.mrf.mxu0
      %v4535 = vadd.f32 %v4117, %v4534
      %4536 = vmatmul.bf16.gmra.mxu0 %v4077
      %v4537 = vpop.f32.mrf.mxu0
      %v4538 = vadd.f32 %v4117, %v4537
      %v4539 = vpop.f32.mrf.mxu0
      %v4540 = vadd.f32 %v4117, %v4539
      %4541 = vmatmul.bf16.gmra.mxu0 %v4079
      %v4542 = vpop.f32.mrf.mxu0
      %v4543 = vadd.f32 %v4117, %v4542
      %v4544 = vpop.f32.mrf.mxu0
      %v4545 = vadd.f32 %v4117, %v4544
      %4546 = vmatmul.bf16.gmra.mxu0 %v4081
      %v4547 = vpop.f32.mrf.mxu0
      %v4548 = vadd.f32 %v4117, %v4547
      %v4549 = vpop.f32.mrf.mxu0
      %v4550 = vadd.f32 %v4117, %v4549
      %4551 = vmatmul.bf16.gmra.mxu0 %v4083
      %v4552 = vpop.f32.mrf.mxu0
      %v4553 = vadd.f32 %v4117, %v4552
      %v4554 = vpop.f32.mrf.mxu0
      %v4555 = vadd.f32 %v4117, %v4554
      %4556 = vmatmul.bf16.gmra.mxu0 %v4085
      %v4557 = vpop.f32.mrf.mxu0
      %v4558 = vadd.f32 %v4117, %v4557
      %v4559 = vpop.f32.mrf.mxu0
      %v4560 = vadd.f32 %v4117, %v4559
      %4561 = vmatmul.bf16.gmra.mxu0 %v4087
      %v4562 = vpop.f32.mrf.mxu0
      %v4563 = vadd.f32 %v4117, %v4562
      %v4564 = vpop.f32.mrf.mxu0
      %v4565 = vadd.f32 %v4117, %v4564
      %4566 = vdwg.mxu0
      %4567 = vmatpush.bf16.msra.mxu0 0
      %4568 = vmatpush.bf16.msra.mxu0 0
      %4569 = vmatpush.bf16.msra.mxu0 0
      %4570 = vmatpush.bf16.msra.mxu0 %v4298
      %4571 = vmatpush.bf16.msra.mxu0 %v4218
      %4572 = vmatpush.bf16.msra.mxu0 %v4216
      %4573 = vmatpush.bf16.msra.mxu0 %v4214
      %4574 = vmatpush.bf16.msra.mxu0 %v4212
      %4575 = vmatmul.bf16.gmra.mxu0 %v4246
      %v4576 = vpop.f32.mrf.mxu0
      %v4577 = vadd.f32 %v4488, %v4576
      %v4578 = vpop.f32.mrf.mxu0
      %v4579 = vadd.f32 %v4490, %v4578
      %4580 = vmatmul.bf16.gmra.mxu0 %v4249
      %v4581 = vpop.f32.mrf.mxu0
      %v4582 = vadd.f32 %v4493, %v4581
      %v4583 = vpop.f32.mrf.mxu0
      %v4584 = vadd.f32 %v4495, %v4583
      %4585 = vmatmul.bf16.gmra.mxu0 %v4252
      %v4586 = vpop.f32.mrf.mxu0
      %v4587 = vadd.f32 %v4498, %v4586
      %v4588 = vpop.f32.mrf.mxu0
      %v4589 = vadd.f32 %v4500, %v4588
      %4590 = vmatmul.bf16.gmra.mxu0 %v4255
      %v4591 = vpop.f32.mrf.mxu0
      %v4592 = vadd.f32 %v4503, %v4591
      %v4593 = vpop.f32.mrf.mxu0
      %v4594 = vadd.f32 %v4505, %v4593
      %4595 = vmatmul.bf16.gmra.mxu0 %v4258
      %v4596 = vpop.f32.mrf.mxu0
      %v4597 = vadd.f32 %v4508, %v4596
      %v4598 = vpop.f32.mrf.mxu0
      %v4599 = vadd.f32 %v4510, %v4598
      %4600 = vmatmul.bf16.gmra.mxu0 %v4261
      %v4601 = vpop.f32.mrf.mxu0
      %v4602 = vadd.f32 %v4513, %v4601
      %v4603 = vpop.f32.mrf.mxu0
      %v4604 = vadd.f32 %v4515, %v4603
      %4605 = vmatmul.bf16.gmra.mxu0 %v4264
      %v4606 = vpop.f32.mrf.mxu0
      %v4607 = vadd.f32 %v4518, %v4606
      %v4608 = vpop.f32.mrf.mxu0
      %v4609 = vadd.f32 %v4520, %v4608
      %4610 = vmatmul.bf16.gmra.mxu0 %v4267
      %v4611 = vpop.f32.mrf.mxu0
      %v4612 = vadd.f32 %v4523, %v4611
      %v4613 = vpop.f32.mrf.mxu0
      %v4614 = vadd.f32 %v4525, %v4613
      %4615 = vmatmul.bf16.gmra.mxu0 %v4270
      %v4616 = vpop.f32.mrf.mxu0
      %v4617 = vadd.f32 %v4528, %v4616
      %v4618 = vpop.f32.mrf.mxu0
      %v4619 = vadd.f32 %v4530, %v4618
      %4620 = vmatmul.bf16.gmra.mxu0 %v4273
      %v4621 = vpop.f32.mrf.mxu0
      %v4622 = vadd.f32 %v4533, %v4621
      %v4623 = vpop.f32.mrf.mxu0
      %v4624 = vadd.f32 %v4535, %v4623
      %4625 = vmatmul.bf16.gmra.mxu0 %v4276
      %v4626 = vpop.f32.mrf.mxu0
      %v4627 = vadd.f32 %v4538, %v4626
      %v4628 = vpop.f32.mrf.mxu0
      %v4629 = vadd.f32 %v4540, %v4628
      %4630 = vmatmul.bf16.gmra.mxu0 %v4279
      %v4631 = vpop.f32.mrf.mxu0
      %v4632 = vadd.f32 %v4543, %v4631
      %v4633 = vpop.f32.mrf.mxu0
      %v4634 = vadd.f32 %v4545, %v4633
      %4635 = vmatmul.bf16.gmra.mxu0 %v4282
      %v4636 = vpop.f32.mrf.mxu0
      %v4637 = vadd.f32 %v4548, %v4636
      %v4638 = vpop.f32.mrf.mxu0
      %v4639 = vadd.f32 %v4550, %v4638
      %4640 = vmatmul.bf16.gmra.mxu0 %v4285
      %v4641 = vpop.f32.mrf.mxu0
      %v4642 = vadd.f32 %v4553, %v4641
      %v4643 = vpop.f32.mrf.mxu0
      %v4644 = vadd.f32 %v4555, %v4643
      %4645 = vmatmul.bf16.gmra.mxu0 %v4288
      %v4646 = vpop.f32.mrf.mxu0
      %v4647 = vadd.f32 %v4558, %v4646
      %v4648 = vpop.f32.mrf.mxu0
      %v4649 = vadd.f32 %v4560, %v4648
      %4650 = vmatmul.bf16.gmra.mxu0 %v4291
      %v4651 = vpop.f32.mrf.mxu0
      %v4652 = vadd.f32 %v4563, %v4651
      %v4653 = vpop.f32.mrf.mxu0
      %v4654 = vadd.f32 %v4565, %v4653
      %4655 = vdwg.mxu0
      %v4656 = vmax.f32 %v4399, 0.0
      %v4657 = vmax.f32 %v4577, 0.0
      %v4658 = vmax.f32 %v4401, 0.0
      %v4659 = vmax.f32 %v4579, 0.0
      %v4660 = vmax.f32 %v4404, 0.0
      %v4661 = vmax.f32 %v4582, 0.0
      %v4662 = vmax.f32 %v4406, 0.0
      %v4663 = vmax.f32 %v4584, 0.0
      %v4664 = vmax.f32 %v4409, 0.0
      %v4665 = vmax.f32 %v4587, 0.0
      %v4666 = vmax.f32 %v4411, 0.0
      %v4667 = vmax.f32 %v4589, 0.0
      %v4668 = vmax.f32 %v4414, 0.0
      %v4669 = vmax.f32 %v4592, 0.0
      %v4670 = vmax.f32 %v4416, 0.0
      %v4671 = vmax.f32 %v4594, 0.0
      %v4672 = vmax.f32 %v4419, 0.0
      %v4673 = vmax.f32 %v4597, 0.0
      %v4674 = vmax.f32 %v4421, 0.0
      %v4675 = vmax.f32 %v4599, 0.0
      %v4676 = vmax.f32 %v4424, 0.0
      %v4677 = vmax.f32 %v4602, 0.0
      %v4678 = vmax.f32 %v4426, 0.0
      %v4679 = vmax.f32 %v4604, 0.0
      %v4680 = vmax.f32 %v4429, 0.0
      %v4681 = vmax.f32 %v4607, 0.0
      %v4682 = vmax.f32 %v4431, 0.0
      %v4683 = vmax.f32 %v4609, 0.0
      %v4684 = vmax.f32 %v4434, 0.0
      %v4685 = vmax.f32 %v4612, 0.0
      %v4686 = vmax.f32 %v4436, 0.0
      %v4687 = vmax.f32 %v4614, 0.0
      %v4688 = vmax.f32 %v4439, 0.0
      %v4689 = vmax.f32 %v4617, 0.0
      %v4690 = vmax.f32 %v4441, 0.0
      %v4691 = vmax.f32 %v4619, 0.0
      %v4692 = vmax.f32 %v4444, 0.0
      %v4693 = vmax.f32 %v4622, 0.0
      %v4694 = vmax.f32 %v4446, 0.0
      %v4695 = vmax.f32 %v4624, 0.0
      %v4696 = vmax.f32 %v4449, 0.0
      %v4697 = vmax.f32 %v4627, 0.0
      %v4698 = vmax.f32 %v4451, 0.0
      %v4699 = vmax.f32 %v4629, 0.0
      %v4700 = vmax.f32 %v4454, 0.0
      %v4701 = vmax.f32 %v4632, 0.0
      %v4702 = vmax.f32 %v4456, 0.0
      %v4703 = vmax.f32 %v4634, 0.0
      %v4704 = vmax.f32 %v4459, 0.0
      %v4705 = vmax.f32 %v4637, 0.0
      %v4706 = vmax.f32 %v4461, 0.0
      %v4707 = vmax.f32 %v4639, 0.0
      %v4708 = vmax.f32 %v4464, 0.0
      %v4709 = vmax.f32 %v4642, 0.0
      %v4710 = vmax.f32 %v4466, 0.0
      %v4711 = vmax.f32 %v4644, 0.0
      %v4712 = vmax.f32 %v4469, 0.0
      %v4713 = vmax.f32 %v4647, 0.0
      %v4714 = vmax.f32 %v4471, 0.0
      %v4715 = vmax.f32 %v4649, 0.0
      %v4716 = vmax.f32 %v4474, 0.0
      %v4717 = vmax.f32 %v4652, 0.0
      %v4718 = vmax.f32 %v4476, 0.0
      %v4719 = vmax.f32 %v4654, 0.0
      %v4720 = vsel %vm3089, %v4657, 0.0
      %v4721 = vadd.f32 %v4656, %v4720
      %4722 = vadd.xlane.f32.xlu0 %v4721
      %v4723 = vpop.xlane.xlu0 %4722
      %v4724 = vsel %vm3089, %v4659, 0.0
      %v4725 = vadd.f32 %v4658, %v4724
      %4726 = vadd.xlane.f32.xlu0 %v4725
      %v4727 = vpop.xlane.xlu0 %4726
      %v4728 = vsel %vm3089, %v4661, 0.0
      %v4729 = vadd.f32 %v4660, %v4728
      %4730 = vadd.xlane.f32.xlu0 %v4729
      %v4731 = vpop.xlane.xlu0 %4730
      %v4732 = vsel %vm3089, %v4663, 0.0
      %v4733 = vadd.f32 %v4662, %v4732
      %4734 = vadd.xlane.f32.xlu0 %v4733
      %v4735 = vpop.xlane.xlu0 %4734
      %v4736 = vsel %vm3089, %v4665, 0.0
      %v4737 = vadd.f32 %v4664, %v4736
      %4738 = vadd.xlane.f32.xlu0 %v4737
      %v4739 = vpop.xlane.xlu0 %4738
      %v4740 = vsel %vm3089, %v4667, 0.0
      %v4741 = vadd.f32 %v4666, %v4740
      %4742 = vadd.xlane.f32.xlu0 %v4741
      %v4743 = vpop.xlane.xlu0 %4742
      %v4744 = vsel %vm3089, %v4669, 0.0
      %v4745 = vadd.f32 %v4668, %v4744
      %4746 = vadd.xlane.f32.xlu0 %v4745
      %v4747 = vpop.xlane.xlu0 %4746
      %v4748 = vsel %vm3089, %v4671, 0.0
      %v4749 = vadd.f32 %v4670, %v4748
      %4750 = vadd.xlane.f32.xlu0 %v4749
      %v4751 = vpop.xlane.xlu0 %4750
      %v4752 = vsel %vm3089, %v4673, 0.0
      %v4753 = vadd.f32 %v4672, %v4752
      %4754 = vadd.xlane.f32.xlu0 %v4753
      %v4755 = vpop.xlane.xlu0 %4754
      %v4756 = vsel %vm3089, %v4675, 0.0
      %v4757 = vadd.f32 %v4674, %v4756
      %4758 = vadd.xlane.f32.xlu0 %v4757
      %v4759 = vpop.xlane.xlu0 %4758
      %v4760 = vsel %vm3089, %v4677, 0.0
      %v4761 = vadd.f32 %v4676, %v4760
      %4762 = vadd.xlane.f32.xlu0 %v4761
      %v4763 = vpop.xlane.xlu0 %4762
      %v4764 = vsel %vm3089, %v4679, 0.0
      %v4765 = vadd.f32 %v4678, %v4764
      %4766 = vadd.xlane.f32.xlu0 %v4765
      %v4767 = vpop.xlane.xlu0 %4766
      %v4768 = vsel %vm3089, %v4681, 0.0
      %v4769 = vadd.f32 %v4680, %v4768
      %4770 = vadd.xlane.f32.xlu0 %v4769
      %v4771 = vpop.xlane.xlu0 %4770
      %v4772 = vsel %vm3089, %v4683, 0.0
      %v4773 = vadd.f32 %v4682, %v4772
      %4774 = vadd.xlane.f32.xlu0 %v4773
      %v4775 = vpop.xlane.xlu0 %4774
      %v4776 = vsel %vm3089, %v4685, 0.0
      %v4777 = vadd.f32 %v4684, %v4776
      %4778 = vadd.xlane.f32.xlu0 %v4777
      %v4779 = vpop.xlane.xlu0 %4778
      %v4780 = vsel %vm3089, %v4687, 0.0
      %v4781 = vadd.f32 %v4686, %v4780
      %4782 = vadd.xlane.f32.xlu0 %v4781
      %v4783 = vpop.xlane.xlu0 %4782
      %v4784 = vsel %vm3089, %v4689, 0.0
      %v4785 = vadd.f32 %v4688, %v4784
      %4786 = vadd.xlane.f32.xlu0 %v4785
      %v4787 = vpop.xlane.xlu0 %4786
      %v4788 = vsel %vm3089, %v4691, 0.0
      %v4789 = vadd.f32 %v4690, %v4788
      %4790 = vadd.xlane.f32.xlu0 %v4789
      %v4791 = vpop.xlane.xlu0 %4790
      %v4792 = vsel %vm3089, %v4693, 0.0
      %v4793 = vadd.f32 %v4692, %v4792
      %4794 = vadd.xlane.f32.xlu0 %v4793
      %v4795 = vpop.xlane.xlu0 %4794
      %v4796 = vsel %vm3089, %v4695, 0.0
      %v4797 = vadd.f32 %v4694, %v4796
      %4798 = vadd.xlane.f32.xlu0 %v4797
      %v4799 = vpop.xlane.xlu0 %4798
      %v4800 = vsel %vm3089, %v4697, 0.0
      %v4801 = vadd.f32 %v4696, %v4800
      %4802 = vadd.xlane.f32.xlu0 %v4801
      %v4803 = vpop.xlane.xlu0 %4802
      %v4804 = vsel %vm3089, %v4699, 0.0
      %v4805 = vadd.f32 %v4698, %v4804
      %4806 = vadd.xlane.f32.xlu0 %v4805
      %v4807 = vpop.xlane.xlu0 %4806
      %v4808 = vsel %vm3089, %v4701, 0.0
      %v4809 = vadd.f32 %v4700, %v4808
      %4810 = vadd.xlane.f32.xlu0 %v4809
      %v4811 = vpop.xlane.xlu0 %4810
      %v4812 = vsel %vm3089, %v4703, 0.0
      %v4813 = vadd.f32 %v4702, %v4812
      %4814 = vadd.xlane.f32.xlu0 %v4813
      %v4815 = vpop.xlane.xlu0 %4814
      %v4816 = vsel %vm3089, %v4705, 0.0
      %v4817 = vadd.f32 %v4704, %v4816
      %4818 = vadd.xlane.f32.xlu0 %v4817
      %v4819 = vpop.xlane.xlu0 %4818
      %v4820 = vsel %vm3089, %v4707, 0.0
      %v4821 = vadd.f32 %v4706, %v4820
      %4822 = vadd.xlane.f32.xlu0 %v4821
      %v4823 = vpop.xlane.xlu0 %4822
      %v4824 = vsel %vm3089, %v4709, 0.0
      %v4825 = vadd.f32 %v4708, %v4824
      %4826 = vadd.xlane.f32.xlu0 %v4825
      %v4827 = vpop.xlane.xlu0 %4826
      %v4828 = vsel %vm3089, %v4711, 0.0
      %v4829 = vadd.f32 %v4710, %v4828
      %4830 = vadd.xlane.f32.xlu0 %v4829
      %v4831 = vpop.xlane.xlu0 %4830
      %v4832 = vsel %vm3089, %v4713, 0.0
      %v4833 = vadd.f32 %v4712, %v4832
      %4834 = vadd.xlane.f32.xlu0 %v4833
      %v4835 = vpop.xlane.xlu0 %4834
      %v4836 = vsel %vm3089, %v4715, 0.0
      %v4837 = vadd.f32 %v4714, %v4836
      %4838 = vadd.xlane.f32.xlu0 %v4837
      %v4839 = vpop.xlane.xlu0 %4838
      %v4840 = vsel %vm3089, %v4717, 0.0
      %v4841 = vadd.f32 %v4716, %v4840
      %4842 = vadd.xlane.f32.xlu0 %v4841
      %v4843 = vpop.xlane.xlu0 %4842
      %v4844 = vsel %vm3089, %v4719, 0.0
      %v4845 = vadd.f32 %v4718, %v4844
      %4846 = vadd.xlane.f32.xlu0 %v4845
      %v4847 = vpop.xlane.xlu0 %4846
      %v4848 = vmul.f32 %v4723, %v3224
      %v4849 = vmul.f32 %v4727, %v3224
      %v4850 = vmul.f32 %v4731, %v3224
      %v4851 = vmul.f32 %v4735, %v3224
      %v4852 = vmul.f32 %v4739, %v3224
      %v4853 = vmul.f32 %v4743, %v3224
      %v4854 = vmul.f32 %v4747, %v3224
      %v4855 = vmul.f32 %v4751, %v3224
      %v4856 = vmul.f32 %v4755, %v3224
      %v4857 = vmul.f32 %v4759, %v3224
      %v4858 = vmul.f32 %v4763, %v3224
      %v4859 = vmul.f32 %v4767, %v3224
      %v4860 = vmul.f32 %v4771, %v3224
      %v4861 = vmul.f32 %v4775, %v3224
      %v4862 = vmul.f32 %v4779, %v3224
      %v4863 = vmul.f32 %v4783, %v3224
      %v4864 = vmul.f32 %v4787, %v3224
      %v4865 = vmul.f32 %v4791, %v3224
      %v4866 = vmul.f32 %v4795, %v3224
      %v4867 = vmul.f32 %v4799, %v3224
      %v4868 = vmul.f32 %v4803, %v3224
      %v4869 = vmul.f32 %v4807, %v3224
      %v4870 = vmul.f32 %v4811, %v3224
      %v4871 = vmul.f32 %v4815, %v3224
      %v4872 = vmul.f32 %v4819, %v3224
      %v4873 = vmul.f32 %v4823, %v3224
      %v4874 = vmul.f32 %v4827, %v3224
      %v4875 = vmul.f32 %v4831, %v3224
      %v4876 = vmul.f32 %v4835, %v3224
      %v4877 = vmul.f32 %v4839, %v3224
      %v4878 = vmul.f32 %v4843, %v3224
      %v4879 = vmul.f32 %v4847, %v3224
      %v4880 = vmul.f32 %v4656, %v4656
      %v4881 = vmul.f32 %v4657, %v4657
      %v4882 = vmul.f32 %v4658, %v4658
      %v4883 = vmul.f32 %v4659, %v4659
      %v4884 = vmul.f32 %v4660, %v4660
      %v4885 = vmul.f32 %v4661, %v4661
      %v4886 = vmul.f32 %v4662, %v4662
      %v4887 = vmul.f32 %v4663, %v4663
      %v4888 = vmul.f32 %v4664, %v4664
      %v4889 = vmul.f32 %v4665, %v4665
      %v4890 = vmul.f32 %v4666, %v4666
      %v4891 = vmul.f32 %v4667, %v4667
      %v4892 = vmul.f32 %v4668, %v4668
      %v4893 = vmul.f32 %v4669, %v4669
      %v4894 = vmul.f32 %v4670, %v4670
      %v4895 = vmul.f32 %v4671, %v4671
      %v4896 = vmul.f32 %v4672, %v4672
      %v4897 = vmul.f32 %v4673, %v4673
      %v4898 = vmul.f32 %v4674, %v4674
      %v4899 = vmul.f32 %v4675, %v4675
      %v4900 = vmul.f32 %v4676, %v4676
      %v4901 = vmul.f32 %v4677, %v4677
      %v4902 = vmul.f32 %v4678, %v4678
      %v4903 = vmul.f32 %v4679, %v4679
      %v4904 = vmul.f32 %v4680, %v4680
      %v4905 = vmul.f32 %v4681, %v4681
      %v4906 = vmul.f32 %v4682, %v4682
      %v4907 = vmul.f32 %v4683, %v4683
      %v4908 = vmul.f32 %v4684, %v4684
      %v4909 = vmul.f32 %v4685, %v4685
      %v4910 = vmul.f32 %v4686, %v4686
      %v4911 = vmul.f32 %v4687, %v4687
      %v4912 = vmul.f32 %v4688, %v4688
      %v4913 = vmul.f32 %v4689, %v4689
      %v4914 = vmul.f32 %v4690, %v4690
      %v4915 = vmul.f32 %v4691, %v4691
      %v4916 = vmul.f32 %v4692, %v4692
      %v4917 = vmul.f32 %v4693, %v4693
      %v4918 = vmul.f32 %v4694, %v4694
      %v4919 = vmul.f32 %v4695, %v4695
      %v4920 = vmul.f32 %v4696, %v4696
      %v4921 = vmul.f32 %v4697, %v4697
      %v4922 = vmul.f32 %v4698, %v4698
      %v4923 = vmul.f32 %v4699, %v4699
      %v4924 = vmul.f32 %v4700, %v4700
      %v4925 = vmul.f32 %v4701, %v4701
      %v4926 = vmul.f32 %v4702, %v4702
      %v4927 = vmul.f32 %v4703, %v4703
      %v4928 = vmul.f32 %v4704, %v4704
      %v4929 = vmul.f32 %v4705, %v4705
      %v4930 = vmul.f32 %v4706, %v4706
      %v4931 = vmul.f32 %v4707, %v4707
      %v4932 = vmul.f32 %v4708, %v4708
      %v4933 = vmul.f32 %v4709, %v4709
      %v4934 = vmul.f32 %v4710, %v4710
      %v4935 = vmul.f32 %v4711, %v4711
      %v4936 = vmul.f32 %v4712, %v4712
      %v4937 = vmul.f32 %v4713, %v4713
      %v4938 = vmul.f32 %v4714, %v4714
      %v4939 = vmul.f32 %v4715, %v4715
      %v4940 = vmul.f32 %v4716, %v4716
      %v4941 = vmul.f32 %v4717, %v4717
      %v4942 = vmul.f32 %v4718, %v4718
      %v4943 = vmul.f32 %v4719, %v4719
      %v4944 = vsel %vm3089, %v4881, 0.0
      %v4945 = vadd.f32 %v4880, %v4944
      %4946 = vadd.xlane.f32.xlu0 %v4945
      %v4947 = vpop.xlane.xlu0 %4946
      %v4948 = vsel %vm3089, %v4883, 0.0
      %v4949 = vadd.f32 %v4882, %v4948
      %4950 = vadd.xlane.f32.xlu0 %v4949
      %v4951 = vpop.xlane.xlu0 %4950
      %v4952 = vsel %vm3089, %v4885, 0.0
      %v4953 = vadd.f32 %v4884, %v4952
      %4954 = vadd.xlane.f32.xlu0 %v4953
      %v4955 = vpop.xlane.xlu0 %4954
      %v4956 = vsel %vm3089, %v4887, 0.0
      %v4957 = vadd.f32 %v4886, %v4956
      %4958 = vadd.xlane.f32.xlu0 %v4957
      %v4959 = vpop.xlane.xlu0 %4958
      %v4960 = vsel %vm3089, %v4889, 0.0
      %v4961 = vadd.f32 %v4888, %v4960
      %4962 = vadd.xlane.f32.xlu0 %v4961
      %v4963 = vpop.xlane.xlu0 %4962
      %v4964 = vsel %vm3089, %v4891, 0.0
      %v4965 = vadd.f32 %v4890, %v4964
      %4966 = vadd.xlane.f32.xlu0 %v4965
      %v4967 = vpop.xlane.xlu0 %4966
      %v4968 = vsel %vm3089, %v4893, 0.0
      %v4969 = vadd.f32 %v4892, %v4968
      %4970 = vadd.xlane.f32.xlu0 %v4969
      %v4971 = vpop.xlane.xlu0 %4970
      %v4972 = vsel %vm3089, %v4895, 0.0
      %v4973 = vadd.f32 %v4894, %v4972
      %4974 = vadd.xlane.f32.xlu0 %v4973
      %v4975 = vpop.xlane.xlu0 %4974
      %v4976 = vsel %vm3089, %v4897, 0.0
      %v4977 = vadd.f32 %v4896, %v4976
      %4978 = vadd.xlane.f32.xlu0 %v4977
      %v4979 = vpop.xlane.xlu0 %4978
      %v4980 = vsel %vm3089, %v4899, 0.0
      %v4981 = vadd.f32 %v4898, %v4980
      %4982 = vadd.xlane.f32.xlu0 %v4981
      %v4983 = vpop.xlane.xlu0 %4982
      %v4984 = vsel %vm3089, %v4901, 0.0
      %v4985 = vadd.f32 %v4900, %v4984
      %4986 = vadd.xlane.f32.xlu0 %v4985
      %v4987 = vpop.xlane.xlu0 %4986
      %v4988 = vsel %vm3089, %v4903, 0.0
      %v4989 = vadd.f32 %v4902, %v4988
      %4990 = vadd.xlane.f32.xlu0 %v4989
      %v4991 = vpop.xlane.xlu0 %4990
      %v4992 = vsel %vm3089, %v4905, 0.0
      %v4993 = vadd.f32 %v4904, %v4992
      %4994 = vadd.xlane.f32.xlu0 %v4993
      %v4995 = vpop.xlane.xlu0 %4994
      %v4996 = vsel %vm3089, %v4907, 0.0
      %v4997 = vadd.f32 %v4906, %v4996
      %4998 = vadd.xlane.f32.xlu0 %v4997
      %v4999 = vpop.xlane.xlu0 %4998
      %v5000 = vsel %vm3089, %v4909, 0.0
      %v5001 = vadd.f32 %v4908, %v5000
      %5002 = vadd.xlane.f32.xlu0 %v5001
      %v5003 = vpop.xlane.xlu0 %5002
      %v5004 = vsel %vm3089, %v4911, 0.0
      %v5005 = vadd.f32 %v4910, %v5004
      %5006 = vadd.xlane.f32.xlu0 %v5005
      %v5007 = vpop.xlane.xlu0 %5006
      %v5008 = vsel %vm3089, %v4913, 0.0
      %v5009 = vadd.f32 %v4912, %v5008
      %5010 = vadd.xlane.f32.xlu0 %v5009
      %v5011 = vpop.xlane.xlu0 %5010
      %v5012 = vsel %vm3089, %v4915, 0.0
      %v5013 = vadd.f32 %v4914, %v5012
      %5014 = vadd.xlane.f32.xlu0 %v5013
      %v5015 = vpop.xlane.xlu0 %5014
      %v5016 = vsel %vm3089, %v4917, 0.0
      %v5017 = vadd.f32 %v4916, %v5016
      %5018 = vadd.xlane.f32.xlu0 %v5017
      %v5019 = vpop.xlane.xlu0 %5018
      %v5020 = vsel %vm3089, %v4919, 0.0
      %v5021 = vadd.f32 %v4918, %v5020
      %5022 = vadd.xlane.f32.xlu0 %v5021
      %v5023 = vpop.xlane.xlu0 %5022
      %v5024 = vsel %vm3089, %v4921, 0.0
      %v5025 = vadd.f32 %v4920, %v5024
      %5026 = vadd.xlane.f32.xlu0 %v5025
      %v5027 = vpop.xlane.xlu0 %5026
      %v5028 = vsel %vm3089, %v4923, 0.0
      %v5029 = vadd.f32 %v4922, %v5028
      %5030 = vadd.xlane.f32.xlu0 %v5029
      %v5031 = vpop.xlane.xlu0 %5030
      %v5032 = vsel %vm3089, %v4925, 0.0
      %v5033 = vadd.f32 %v4924, %v5032
      %5034 = vadd.xlane.f32.xlu0 %v5033
      %v5035 = vpop.xlane.xlu0 %5034
      %v5036 = vsel %vm3089, %v4927, 0.0
      %v5037 = vadd.f32 %v4926, %v5036
      %5038 = vadd.xlane.f32.xlu0 %v5037
      %v5039 = vpop.xlane.xlu0 %5038
      %v5040 = vsel %vm3089, %v4929, 0.0
      %v5041 = vadd.f32 %v4928, %v5040
      %5042 = vadd.xlane.f32.xlu0 %v5041
      %v5043 = vpop.xlane.xlu0 %5042
      %v5044 = vsel %vm3089, %v4931, 0.0
      %v5045 = vadd.f32 %v4930, %v5044
      %5046 = vadd.xlane.f32.xlu0 %v5045
      %v5047 = vpop.xlane.xlu0 %5046
      %v5048 = vsel %vm3089, %v4933, 0.0
      %v5049 = vadd.f32 %v4932, %v5048
      %5050 = vadd.xlane.f32.xlu0 %v5049
      %v5051 = vpop.xlane.xlu0 %5050
      %v5052 = vsel %vm3089, %v4935, 0.0
      %v5053 = vadd.f32 %v4934, %v5052
      %5054 = vadd.xlane.f32.xlu0 %v5053
      %v5055 = vpop.xlane.xlu0 %5054
      %v5056 = vsel %vm3089, %v4937, 0.0
      %v5057 = vadd.f32 %v4936, %v5056
      %5058 = vadd.xlane.f32.xlu0 %v5057
      %v5059 = vpop.xlane.xlu0 %5058
      %v5060 = vsel %vm3089, %v4939, 0.0
      %v5061 = vadd.f32 %v4938, %v5060
      %5062 = vadd.xlane.f32.xlu0 %v5061
      %v5063 = vpop.xlane.xlu0 %5062
      %v5064 = vsel %vm3089, %v4941, 0.0
      %v5065 = vadd.f32 %v4940, %v5064
      %5066 = vadd.xlane.f32.xlu0 %v5065
      %v5067 = vpop.xlane.xlu0 %5066
      %v5068 = vsel %vm3089, %v4943, 0.0
      %v5069 = vadd.f32 %v4942, %v5068
      %5070 = vadd.xlane.f32.xlu0 %v5069
      %v5071 = vpop.xlane.xlu0 %5070
      %v5072 = vmul.f32 %v4947, %v3224
      %v5073 = vmul.f32 %v4951, %v3224
      %v5074 = vmul.f32 %v4955, %v3224
      %v5075 = vmul.f32 %v4959, %v3224
      %v5076 = vmul.f32 %v4963, %v3224
      %v5077 = vmul.f32 %v4967, %v3224
      %v5078 = vmul.f32 %v4971, %v3224
      %v5079 = vmul.f32 %v4975, %v3224
      %v5080 = vmul.f32 %v4979, %v3224
      %v5081 = vmul.f32 %v4983, %v3224
      %v5082 = vmul.f32 %v4987, %v3224
      %v5083 = vmul.f32 %v4991, %v3224
      %v5084 = vmul.f32 %v4995, %v3224
      %v5085 = vmul.f32 %v4999, %v3224
      %v5086 = vmul.f32 %v5003, %v3224
      %v5087 = vmul.f32 %v5007, %v3224
      %v5088 = vmul.f32 %v5011, %v3224
      %v5089 = vmul.f32 %v5015, %v3224
      %v5090 = vmul.f32 %v5019, %v3224
      %v5091 = vmul.f32 %v5023, %v3224
      %v5092 = vmul.f32 %v5027, %v3224
      %v5093 = vmul.f32 %v5031, %v3224
      %v5094 = vmul.f32 %v5035, %v3224
      %v5095 = vmul.f32 %v5039, %v3224
      %v5096 = vmul.f32 %v5043, %v3224
      %v5097 = vmul.f32 %v5047, %v3224
      %v5098 = vmul.f32 %v5051, %v3224
      %v5099 = vmul.f32 %v5055, %v3224
      %v5100 = vmul.f32 %v5059, %v3224
      %v5101 = vmul.f32 %v5063, %v3224
      %v5102 = vmul.f32 %v5067, %v3224
      %v5103 = vmul.f32 %v5071, %v3224
      %v5104 = vmul.f32 %v4848, %v4848
      %v5105 = vmul.f32 %v4849, %v4849
      %v5106 = vmul.f32 %v4850, %v4850
      %v5107 = vmul.f32 %v4851, %v4851
      %v5108 = vmul.f32 %v4852, %v4852
      %v5109 = vmul.f32 %v4853, %v4853
      %v5110 = vmul.f32 %v4854, %v4854
      %v5111 = vmul.f32 %v4855, %v4855
      %v5112 = vmul.f32 %v4856, %v4856
      %v5113 = vmul.f32 %v4857, %v4857
      %v5114 = vmul.f32 %v4858, %v4858
      %v5115 = vmul.f32 %v4859, %v4859
      %v5116 = vmul.f32 %v4860, %v4860
      %v5117 = vmul.f32 %v4861, %v4861
      %v5118 = vmul.f32 %v4862, %v4862
      %v5119 = vmul.f32 %v4863, %v4863
      %v5120 = vmul.f32 %v4864, %v4864
      %v5121 = vmul.f32 %v4865, %v4865
      %v5122 = vmul.f32 %v4866, %v4866
      %v5123 = vmul.f32 %v4867, %v4867
      %v5124 = vmul.f32 %v4868, %v4868
      %v5125 = vmul.f32 %v4869, %v4869
      %v5126 = vmul.f32 %v4870, %v4870
      %v5127 = vmul.f32 %v4871, %v4871
      %v5128 = vmul.f32 %v4872, %v4872
      %v5129 = vmul.f32 %v4873, %v4873
      %v5130 = vmul.f32 %v4874, %v4874
      %v5131 = vmul.f32 %v4875, %v4875
      %v5132 = vmul.f32 %v4876, %v4876
      %v5133 = vmul.f32 %v4877, %v4877
      %v5134 = vmul.f32 %v4878, %v4878
      %v5135 = vmul.f32 %v4879, %v4879
      %v5136 = vsub.f32 %v5072, %v5104
      %v5137 = vsub.f32 %v5073, %v5105
      %v5138 = vsub.f32 %v5074, %v5106
      %v5139 = vsub.f32 %v5075, %v5107
      %v5140 = vsub.f32 %v5076, %v5108
      %v5141 = vsub.f32 %v5077, %v5109
      %v5142 = vsub.f32 %v5078, %v5110
      %v5143 = vsub.f32 %v5079, %v5111
      %v5144 = vsub.f32 %v5080, %v5112
      %v5145 = vsub.f32 %v5081, %v5113
      %v5146 = vsub.f32 %v5082, %v5114
      %v5147 = vsub.f32 %v5083, %v5115
      %v5148 = vsub.f32 %v5084, %v5116
      %v5149 = vsub.f32 %v5085, %v5117
      %v5150 = vsub.f32 %v5086, %v5118
      %v5151 = vsub.f32 %v5087, %v5119
      %v5152 = vsub.f32 %v5088, %v5120
      %v5153 = vsub.f32 %v5089, %v5121
      %v5154 = vsub.f32 %v5090, %v5122
      %v5155 = vsub.f32 %v5091, %v5123
      %v5156 = vsub.f32 %v5092, %v5124
      %v5157 = vsub.f32 %v5093, %v5125
      %v5158 = vsub.f32 %v5094, %v5126
      %v5159 = vsub.f32 %v5095, %v5127
      %v5160 = vsub.f32 %v5096, %v5128
      %v5161 = vsub.f32 %v5097, %v5129
      %v5162 = vsub.f32 %v5098, %v5130
      %v5163 = vsub.f32 %v5099, %v5131
      %v5164 = vsub.f32 %v5100, %v5132
      %v5165 = vsub.f32 %v5101, %v5133
      %v5166 = vsub.f32 %v5102, %v5134
      %v5167 = vsub.f32 %v5103, %v5135
      %v5168 = vmax.f32 %v5136, 0.0
      %v5169 = vmax.f32 %v5137, 0.0
      %v5170 = vmax.f32 %v5138, 0.0
      %v5171 = vmax.f32 %v5139, 0.0
      %v5172 = vmax.f32 %v5140, 0.0
      %v5173 = vmax.f32 %v5141, 0.0
      %v5174 = vmax.f32 %v5142, 0.0
      %v5175 = vmax.f32 %v5143, 0.0
      %v5176 = vmax.f32 %v5144, 0.0
      %v5177 = vmax.f32 %v5145, 0.0
      %v5178 = vmax.f32 %v5146, 0.0
      %v5179 = vmax.f32 %v5147, 0.0
      %v5180 = vmax.f32 %v5148, 0.0
      %v5181 = vmax.f32 %v5149, 0.0
      %v5182 = vmax.f32 %v5150, 0.0
      %v5183 = vmax.f32 %v5151, 0.0
      %v5184 = vmax.f32 %v5152, 0.0
      %v5185 = vmax.f32 %v5153, 0.0
      %v5186 = vmax.f32 %v5154, 0.0
      %v5187 = vmax.f32 %v5155, 0.0
      %v5188 = vmax.f32 %v5156, 0.0
      %v5189 = vmax.f32 %v5157, 0.0
      %v5190 = vmax.f32 %v5158, 0.0
      %v5191 = vmax.f32 %v5159, 0.0
      %v5192 = vmax.f32 %v5160, 0.0
      %v5193 = vmax.f32 %v5161, 0.0
      %v5194 = vmax.f32 %v5162, 0.0
      %v5195 = vmax.f32 %v5163, 0.0
      %v5196 = vmax.f32 %v5164, 0.0
      %v5197 = vmax.f32 %v5165, 0.0
      %v5198 = vmax.f32 %v5166, 0.0
      %v5199 = vmax.f32 %v5167, 0.0
      %v5200 = vsub.f32 %v4656, %v4848
      %v5201 = vsub.f32 %v4657, %v4848
      %v5202 = vsub.f32 %v4658, %v4849
      %v5203 = vsub.f32 %v4659, %v4849
      %v5204 = vsub.f32 %v4660, %v4850
      %v5205 = vsub.f32 %v4661, %v4850
      %v5206 = vsub.f32 %v4662, %v4851
      %v5207 = vsub.f32 %v4663, %v4851
      %v5208 = vsub.f32 %v4664, %v4852
      %v5209 = vsub.f32 %v4665, %v4852
      %v5210 = vsub.f32 %v4666, %v4853
      %v5211 = vsub.f32 %v4667, %v4853
      %v5212 = vsub.f32 %v4668, %v4854
      %v5213 = vsub.f32 %v4669, %v4854
      %v5214 = vsub.f32 %v4670, %v4855
      %v5215 = vsub.f32 %v4671, %v4855
      %v5216 = vsub.f32 %v4672, %v4856
      %v5217 = vsub.f32 %v4673, %v4856
      %v5218 = vsub.f32 %v4674, %v4857
      %v5219 = vsub.f32 %v4675, %v4857
      %v5220 = vsub.f32 %v4676, %v4858
      %v5221 = vsub.f32 %v4677, %v4858
      %v5222 = vsub.f32 %v4678, %v4859
      %v5223 = vsub.f32 %v4679, %v4859
      %v5224 = vsub.f32 %v4680, %v4860
      %v5225 = vsub.f32 %v4681, %v4860
      %v5226 = vsub.f32 %v4682, %v4861
      %v5227 = vsub.f32 %v4683, %v4861
      %v5228 = vsub.f32 %v4684, %v4862
      %v5229 = vsub.f32 %v4685, %v4862
      %v5230 = vsub.f32 %v4686, %v4863
      %v5231 = vsub.f32 %v4687, %v4863
      %v5232 = vsub.f32 %v4688, %v4864
      %v5233 = vsub.f32 %v4689, %v4864
      %v5234 = vsub.f32 %v4690, %v4865
      %v5235 = vsub.f32 %v4691, %v4865
      %v5236 = vsub.f32 %v4692, %v4866
      %v5237 = vsub.f32 %v4693, %v4866
      %v5238 = vsub.f32 %v4694, %v4867
      %v5239 = vsub.f32 %v4695, %v4867
      %v5240 = vsub.f32 %v4696, %v4868
      %v5241 = vsub.f32 %v4697, %v4868
      %v5242 = vsub.f32 %v4698, %v4869
      %v5243 = vsub.f32 %v4699, %v4869
      %v5244 = vsub.f32 %v4700, %v4870
      %v5245 = vsub.f32 %v4701, %v4870
      %v5246 = vsub.f32 %v4702, %v4871
      %v5247 = vsub.f32 %v4703, %v4871
      %v5248 = vsub.f32 %v4704, %v4872
      %v5249 = vsub.f32 %v4705, %v4872
      %v5250 = vsub.f32 %v4706, %v4873
      %v5251 = vsub.f32 %v4707, %v4873
      %v5252 = vsub.f32 %v4708, %v4874
      %v5253 = vsub.f32 %v4709, %v4874
      %v5254 = vsub.f32 %v4710, %v4875
      %v5255 = vsub.f32 %v4711, %v4875
      %v5256 = vsub.f32 %v4712, %v4876
      %v5257 = vsub.f32 %v4713, %v4876
      %v5258 = vsub.f32 %v4714, %v4877
      %v5259 = vsub.f32 %v4715, %v4877
      %v5260 = vsub.f32 %v4716, %v4878
      %v5261 = vsub.f32 %v4717, %v4878
      %v5262 = vsub.f32 %v4718, %v4879
      %v5263 = vsub.f32 %v4719, %v4879
      %v5264 = vadd.f32 %v5168, 1e-05
      %v5265 = vadd.f32 %v5169, 1e-05
      %v5266 = vadd.f32 %v5170, 1e-05
      %v5267 = vadd.f32 %v5171, 1e-05
      %v5268 = vadd.f32 %v5172, 1e-05
      %v5269 = vadd.f32 %v5173, 1e-05
      %v5270 = vadd.f32 %v5174, 1e-05
      %v5271 = vadd.f32 %v5175, 1e-05
      %v5272 = vadd.f32 %v5176, 1e-05
      %v5273 = vadd.f32 %v5177, 1e-05
      %v5274 = vadd.f32 %v5178, 1e-05
      %v5275 = vadd.f32 %v5179, 1e-05
      %v5276 = vadd.f32 %v5180, 1e-05
      %v5277 = vadd.f32 %v5181, 1e-05
      %v5278 = vadd.f32 %v5182, 1e-05
      %v5279 = vadd.f32 %v5183, 1e-05
      %v5280 = vadd.f32 %v5184, 1e-05
      %v5281 = vadd.f32 %v5185, 1e-05
      %v5282 = vadd.f32 %v5186, 1e-05
      %v5283 = vadd.f32 %v5187, 1e-05
      %v5284 = vadd.f32 %v5188, 1e-05
      %v5285 = vadd.f32 %v5189, 1e-05
      %v5286 = vadd.f32 %v5190, 1e-05
      %v5287 = vadd.f32 %v5191, 1e-05
      %v5288 = vadd.f32 %v5192, 1e-05
      %v5289 = vadd.f32 %v5193, 1e-05
      %v5290 = vadd.f32 %v5194, 1e-05
      %v5291 = vadd.f32 %v5195, 1e-05
      %v5292 = vadd.f32 %v5196, 1e-05
      %v5293 = vadd.f32 %v5197, 1e-05
      %v5294 = vadd.f32 %v5198, 1e-05
      %v5295 = vadd.f32 %v5199, 1e-05
      %v5296 = vrsqrt.pop %v5264
      %v5297 = vmul.f32 %v5296, %v5264
      %v5298 = vmul.f32 %v5297, %v5296
      %v5299 = vmul.f32 0.5, %v5298
      %v5300 = vsub.f32 1.5, %v5299
      %v5301 = vmul.f32 %v5296, %v5300
      %vm5302 = vweird.f32 %v5264
      %vm5303 = vweird.f32 %v5296
      %vm5304 = vmor %vm5302, %vm5303
      %v5305 = vsel %vm5304, %v5296, %v5301
      %v5306 = vrsqrt.pop %v5265
      %v5307 = vmul.f32 %v5306, %v5265
      %v5308 = vmul.f32 %v5307, %v5306
      %v5309 = vmul.f32 0.5, %v5308
      %v5310 = vsub.f32 1.5, %v5309
      %v5311 = vmul.f32 %v5306, %v5310
      %vm5312 = vweird.f32 %v5265
      %vm5313 = vweird.f32 %v5306
      %vm5314 = vmor %vm5312, %vm5313
      %v5315 = vsel %vm5314, %v5306, %v5311
      %v5316 = vrsqrt.pop %v5266
      %v5317 = vmul.f32 %v5316, %v5266
      %v5318 = vmul.f32 %v5317, %v5316
      %v5319 = vmul.f32 0.5, %v5318
      %v5320 = vsub.f32 1.5, %v5319
      %v5321 = vmul.f32 %v5316, %v5320
      %vm5322 = vweird.f32 %v5266
      %vm5323 = vweird.f32 %v5316
      %vm5324 = vmor %vm5322, %vm5323
      %v5325 = vsel %vm5324, %v5316, %v5321
      %v5326 = vrsqrt.pop %v5267
      %v5327 = vmul.f32 %v5326, %v5267
      %v5328 = vmul.f32 %v5327, %v5326
      %v5329 = vmul.f32 0.5, %v5328
      %v5330 = vsub.f32 1.5, %v5329
      %v5331 = vmul.f32 %v5326, %v5330
      %vm5332 = vweird.f32 %v5267
      %vm5333 = vweird.f32 %v5326
      %vm5334 = vmor %vm5332, %vm5333
      %v5335 = vsel %vm5334, %v5326, %v5331
      %v5336 = vrsqrt.pop %v5268
      %v5337 = vmul.f32 %v5336, %v5268
      %v5338 = vmul.f32 %v5337, %v5336
      %v5339 = vmul.f32 0.5, %v5338
      %v5340 = vsub.f32 1.5, %v5339
      %v5341 = vmul.f32 %v5336, %v5340
      %vm5342 = vweird.f32 %v5268
      %vm5343 = vweird.f32 %v5336
      %vm5344 = vmor %vm5342, %vm5343
      %v5345 = vsel %vm5344, %v5336, %v5341
      %v5346 = vrsqrt.pop %v5269
      %v5347 = vmul.f32 %v5346, %v5269
      %v5348 = vmul.f32 %v5347, %v5346
      %v5349 = vmul.f32 0.5, %v5348
      %v5350 = vsub.f32 1.5, %v5349
      %v5351 = vmul.f32 %v5346, %v5350
      %vm5352 = vweird.f32 %v5269
      %vm5353 = vweird.f32 %v5346
      %vm5354 = vmor %vm5352, %vm5353
      %v5355 = vsel %vm5354, %v5346, %v5351
      %v5356 = vrsqrt.pop %v5270
      %v5357 = vmul.f32 %v5356, %v5270
      %v5358 = vmul.f32 %v5357, %v5356
      %v5359 = vmul.f32 0.5, %v5358
      %v5360 = vsub.f32 1.5, %v5359
      %v5361 = vmul.f32 %v5356, %v5360
      %vm5362 = vweird.f32 %v5270
      %vm5363 = vweird.f32 %v5356
      %vm5364 = vmor %vm5362, %vm5363
      %v5365 = vsel %vm5364, %v5356, %v5361
      %v5366 = vrsqrt.pop %v5271
      %v5367 = vmul.f32 %v5366, %v5271
      %v5368 = vmul.f32 %v5367, %v5366
      %v5369 = vmul.f32 0.5, %v5368
      %v5370 = vsub.f32 1.5, %v5369
      %v5371 = vmul.f32 %v5366, %v5370
      %vm5372 = vweird.f32 %v5271
      %vm5373 = vweird.f32 %v5366
      %vm5374 = vmor %vm5372, %vm5373
      %v5375 = vsel %vm5374, %v5366, %v5371
      %v5376 = vrsqrt.pop %v5272
      %v5377 = vmul.f32 %v5376, %v5272
      %v5378 = vmul.f32 %v5377, %v5376
      %v5379 = vmul.f32 0.5, %v5378
      %v5380 = vsub.f32 1.5, %v5379
      %v5381 = vmul.f32 %v5376, %v5380
      %vm5382 = vweird.f32 %v5272
      %vm5383 = vweird.f32 %v5376
      %vm5384 = vmor %vm5382, %vm5383
      %v5385 = vsel %vm5384, %v5376, %v5381
      %v5386 = vrsqrt.pop %v5273
      %v5387 = vmul.f32 %v5386, %v5273
      %v5388 = vmul.f32 %v5387, %v5386
      %v5389 = vmul.f32 0.5, %v5388
      %v5390 = vsub.f32 1.5, %v5389
      %v5391 = vmul.f32 %v5386, %v5390
      %vm5392 = vweird.f32 %v5273
      %vm5393 = vweird.f32 %v5386
      %vm5394 = vmor %vm5392, %vm5393
      %v5395 = vsel %vm5394, %v5386, %v5391
      %v5396 = vrsqrt.pop %v5274
      %v5397 = vmul.f32 %v5396, %v5274
      %v5398 = vmul.f32 %v5397, %v5396
      %v5399 = vmul.f32 0.5, %v5398
      %v5400 = vsub.f32 1.5, %v5399
      %v5401 = vmul.f32 %v5396, %v5400
      %vm5402 = vweird.f32 %v5274
      %vm5403 = vweird.f32 %v5396
      %vm5404 = vmor %vm5402, %vm5403
      %v5405 = vsel %vm5404, %v5396, %v5401
      %v5406 = vrsqrt.pop %v5275
      %v5407 = vmul.f32 %v5406, %v5275
      %v5408 = vmul.f32 %v5407, %v5406
      %v5409 = vmul.f32 0.5, %v5408
      %v5410 = vsub.f32 1.5, %v5409
      %v5411 = vmul.f32 %v5406, %v5410
      %vm5412 = vweird.f32 %v5275
      %vm5413 = vweird.f32 %v5406
      %vm5414 = vmor %vm5412, %vm5413
      %v5415 = vsel %vm5414, %v5406, %v5411
      %v5416 = vrsqrt.pop %v5276
      %v5417 = vmul.f32 %v5416, %v5276
      %v5418 = vmul.f32 %v5417, %v5416
      %v5419 = vmul.f32 0.5, %v5418
      %v5420 = vsub.f32 1.5, %v5419
      %v5421 = vmul.f32 %v5416, %v5420
      %vm5422 = vweird.f32 %v5276
      %vm5423 = vweird.f32 %v5416
      %vm5424 = vmor %vm5422, %vm5423
      %v5425 = vsel %vm5424, %v5416, %v5421
      %v5426 = vrsqrt.pop %v5277
      %v5427 = vmul.f32 %v5426, %v5277
      %v5428 = vmul.f32 %v5427, %v5426
      %v5429 = vmul.f32 0.5, %v5428
      %v5430 = vsub.f32 1.5, %v5429
      %v5431 = vmul.f32 %v5426, %v5430
      %vm5432 = vweird.f32 %v5277
      %vm5433 = vweird.f32 %v5426
      %vm5434 = vmor %vm5432, %vm5433
      %v5435 = vsel %vm5434, %v5426, %v5431
      %v5436 = vrsqrt.pop %v5278
      %v5437 = vmul.f32 %v5436, %v5278
      %v5438 = vmul.f32 %v5437, %v5436
      %v5439 = vmul.f32 0.5, %v5438
      %v5440 = vsub.f32 1.5, %v5439
      %v5441 = vmul.f32 %v5436, %v5440
      %vm5442 = vweird.f32 %v5278
      %vm5443 = vweird.f32 %v5436
      %vm5444 = vmor %vm5442, %vm5443
      %v5445 = vsel %vm5444, %v5436, %v5441
      %v5446 = vrsqrt.pop %v5279
      %v5447 = vmul.f32 %v5446, %v5279
      %v5448 = vmul.f32 %v5447, %v5446
      %v5449 = vmul.f32 0.5, %v5448
      %v5450 = vsub.f32 1.5, %v5449
      %v5451 = vmul.f32 %v5446, %v5450
      %vm5452 = vweird.f32 %v5279
      %vm5453 = vweird.f32 %v5446
      %vm5454 = vmor %vm5452, %vm5453
      %v5455 = vsel %vm5454, %v5446, %v5451
      %v5456 = vrsqrt.pop %v5280
      %v5457 = vmul.f32 %v5456, %v5280
      %v5458 = vmul.f32 %v5457, %v5456
      %v5459 = vmul.f32 0.5, %v5458
      %v5460 = vsub.f32 1.5, %v5459
      %v5461 = vmul.f32 %v5456, %v5460
      %vm5462 = vweird.f32 %v5280
      %vm5463 = vweird.f32 %v5456
      %vm5464 = vmor %vm5462, %vm5463
      %v5465 = vsel %vm5464, %v5456, %v5461
      %v5466 = vrsqrt.pop %v5281
      %v5467 = vmul.f32 %v5466, %v5281
      %v5468 = vmul.f32 %v5467, %v5466
      %v5469 = vmul.f32 0.5, %v5468
      %v5470 = vsub.f32 1.5, %v5469
      %v5471 = vmul.f32 %v5466, %v5470
      %vm5472 = vweird.f32 %v5281
      %vm5473 = vweird.f32 %v5466
      %vm5474 = vmor %vm5472, %vm5473
      %v5475 = vsel %vm5474, %v5466, %v5471
      %v5476 = vrsqrt.pop %v5282
      %v5477 = vmul.f32 %v5476, %v5282
      %v5478 = vmul.f32 %v5477, %v5476
      %v5479 = vmul.f32 0.5, %v5478
      %v5480 = vsub.f32 1.5, %v5479
      %v5481 = vmul.f32 %v5476, %v5480
      %vm5482 = vweird.f32 %v5282
      %vm5483 = vweird.f32 %v5476
      %vm5484 = vmor %vm5482, %vm5483
      %v5485 = vsel %vm5484, %v5476, %v5481
      %v5486 = vrsqrt.pop %v5283
      %v5487 = vmul.f32 %v5486, %v5283
      %v5488 = vmul.f32 %v5487, %v5486
      %v5489 = vmul.f32 0.5, %v5488
      %v5490 = vsub.f32 1.5, %v5489
      %v5491 = vmul.f32 %v5486, %v5490
      %vm5492 = vweird.f32 %v5283
      %vm5493 = vweird.f32 %v5486
      %vm5494 = vmor %vm5492, %vm5493
      %v5495 = vsel %vm5494, %v5486, %v5491
      %v5496 = vrsqrt.pop %v5284
      %v5497 = vmul.f32 %v5496, %v5284
      %v5498 = vmul.f32 %v5497, %v5496
      %v5499 = vmul.f32 0.5, %v5498
      %v5500 = vsub.f32 1.5, %v5499
      %v5501 = vmul.f32 %v5496, %v5500
      %vm5502 = vweird.f32 %v5284
      %vm5503 = vweird.f32 %v5496
      %vm5504 = vmor %vm5502, %vm5503
      %v5505 = vsel %vm5504, %v5496, %v5501
      %v5506 = vrsqrt.pop %v5285
      %v5507 = vmul.f32 %v5506, %v5285
      %v5508 = vmul.f32 %v5507, %v5506
      %v5509 = vmul.f32 0.5, %v5508
      %v5510 = vsub.f32 1.5, %v5509
      %v5511 = vmul.f32 %v5506, %v5510
      %vm5512 = vweird.f32 %v5285
      %vm5513 = vweird.f32 %v5506
      %vm5514 = vmor %vm5512, %vm5513
      %v5515 = vsel %vm5514, %v5506, %v5511
      %v5516 = vrsqrt.pop %v5286
      %v5517 = vmul.f32 %v5516, %v5286
      %v5518 = vmul.f32 %v5517, %v5516
      %v5519 = vmul.f32 0.5, %v5518
      %v5520 = vsub.f32 1.5, %v5519
      %v5521 = vmul.f32 %v5516, %v5520
      %vm5522 = vweird.f32 %v5286
      %vm5523 = vweird.f32 %v5516
      %vm5524 = vmor %vm5522, %vm5523
      %v5525 = vsel %vm5524, %v5516, %v5521
      %v5526 = vrsqrt.pop %v5287
      %v5527 = vmul.f32 %v5526, %v5287
      %v5528 = vmul.f32 %v5527, %v5526
      %v5529 = vmul.f32 0.5, %v5528
      %v5530 = vsub.f32 1.5, %v5529
      %v5531 = vmul.f32 %v5526, %v5530
      %vm5532 = vweird.f32 %v5287
      %vm5533 = vweird.f32 %v5526
      %vm5534 = vmor %vm5532, %vm5533
      %v5535 = vsel %vm5534, %v5526, %v5531
      %v5536 = vrsqrt.pop %v5288
      %v5537 = vmul.f32 %v5536, %v5288
      %v5538 = vmul.f32 %v5537, %v5536
      %v5539 = vmul.f32 0.5, %v5538
      %v5540 = vsub.f32 1.5, %v5539
      %v5541 = vmul.f32 %v5536, %v5540
      %vm5542 = vweird.f32 %v5288
      %vm5543 = vweird.f32 %v5536
      %vm5544 = vmor %vm5542, %vm5543
      %v5545 = vsel %vm5544, %v5536, %v5541
      %v5546 = vrsqrt.pop %v5289
      %v5547 = vmul.f32 %v5546, %v5289
      %v5548 = vmul.f32 %v5547, %v5546
      %v5549 = vmul.f32 0.5, %v5548
      %v5550 = vsub.f32 1.5, %v5549
      %v5551 = vmul.f32 %v5546, %v5550
      %vm5552 = vweird.f32 %v5289
      %vm5553 = vweird.f32 %v5546
      %vm5554 = vmor %vm5552, %vm5553
      %v5555 = vsel %vm5554, %v5546, %v5551
      %v5556 = vrsqrt.pop %v5290
      %v5557 = vmul.f32 %v5556, %v5290
      %v5558 = vmul.f32 %v5557, %v5556
      %v5559 = vmul.f32 0.5, %v5558
      %v5560 = vsub.f32 1.5, %v5559
      %v5561 = vmul.f32 %v5556, %v5560
      %vm5562 = vweird.f32 %v5290
      %vm5563 = vweird.f32 %v5556
      %vm5564 = vmor %vm5562, %vm5563
      %v5565 = vsel %vm5564, %v5556, %v5561
      %v5566 = vrsqrt.pop %v5291
      %v5567 = vmul.f32 %v5566, %v5291
      %v5568 = vmul.f32 %v5567, %v5566
      %v5569 = vmul.f32 0.5, %v5568
      %v5570 = vsub.f32 1.5, %v5569
      %v5571 = vmul.f32 %v5566, %v5570
      %vm5572 = vweird.f32 %v5291
      %vm5573 = vweird.f32 %v5566
      %vm5574 = vmor %vm5572, %vm5573
      %v5575 = vsel %vm5574, %v5566, %v5571
      %v5576 = vrsqrt.pop %v5292
      %v5577 = vmul.f32 %v5576, %v5292
      %v5578 = vmul.f32 %v5577, %v5576
      %v5579 = vmul.f32 0.5, %v5578
      %v5580 = vsub.f32 1.5, %v5579
      %v5581 = vmul.f32 %v5576, %v5580
      %vm5582 = vweird.f32 %v5292
      %vm5583 = vweird.f32 %v5576
      %vm5584 = vmor %vm5582, %vm5583
      %v5585 = vsel %vm5584, %v5576, %v5581
      %v5586 = vrsqrt.pop %v5293
      %v5587 = vmul.f32 %v5586, %v5293
      %v5588 = vmul.f32 %v5587, %v5586
      %v5589 = vmul.f32 0.5, %v5588
      %v5590 = vsub.f32 1.5, %v5589
      %v5591 = vmul.f32 %v5586, %v5590
      %vm5592 = vweird.f32 %v5293
      %vm5593 = vweird.f32 %v5586
      %vm5594 = vmor %vm5592, %vm5593
      %v5595 = vsel %vm5594, %v5586, %v5591
      %v5596 = vrsqrt.pop %v5294
      %v5597 = vmul.f32 %v5596, %v5294
      %v5598 = vmul.f32 %v5597, %v5596
      %v5599 = vmul.f32 0.5, %v5598
      %v5600 = vsub.f32 1.5, %v5599
      %v5601 = vmul.f32 %v5596, %v5600
      %vm5602 = vweird.f32 %v5294
      %vm5603 = vweird.f32 %v5596
      %vm5604 = vmor %vm5602, %vm5603
      %v5605 = vsel %vm5604, %v5596, %v5601
      %v5606 = vrsqrt.pop %v5295
      %v5607 = vmul.f32 %v5606, %v5295
      %v5608 = vmul.f32 %v5607, %v5606
      %v5609 = vmul.f32 0.5, %v5608
      %v5610 = vsub.f32 1.5, %v5609
      %v5611 = vmul.f32 %v5606, %v5610
      %vm5612 = vweird.f32 %v5295
      %vm5613 = vweird.f32 %v5606
      %vm5614 = vmor %vm5612, %vm5613
      %v5615 = vsel %vm5614, %v5606, %v5611
      %v5616 = vmul.f32 %v5200, %v5305
      %v5617 = vmul.f32 %v5201, %v5305
      %v5618 = vmul.f32 %v5202, %v5315
      %v5619 = vmul.f32 %v5203, %v5315
      %v5620 = vmul.f32 %v5204, %v5325
      %v5621 = vmul.f32 %v5205, %v5325
      %v5622 = vmul.f32 %v5206, %v5335
      %v5623 = vmul.f32 %v5207, %v5335
      %v5624 = vmul.f32 %v5208, %v5345
      %v5625 = vmul.f32 %v5209, %v5345
      %v5626 = vmul.f32 %v5210, %v5355
      %v5627 = vmul.f32 %v5211, %v5355
      %v5628 = vmul.f32 %v5212, %v5365
      %v5629 = vmul.f32 %v5213, %v5365
      %v5630 = vmul.f32 %v5214, %v5375
      %v5631 = vmul.f32 %v5215, %v5375
      %v5632 = vmul.f32 %v5216, %v5385
      %v5633 = vmul.f32 %v5217, %v5385
      %v5634 = vmul.f32 %v5218, %v5395
      %v5635 = vmul.f32 %v5219, %v5395
      %v5636 = vmul.f32 %v5220, %v5405
      %v5637 = vmul.f32 %v5221, %v5405
      %v5638 = vmul.f32 %v5222, %v5415
      %v5639 = vmul.f32 %v5223, %v5415
      %v5640 = vmul.f32 %v5224, %v5425
      %v5641 = vmul.f32 %v5225, %v5425
      %v5642 = vmul.f32 %v5226, %v5435
      %v5643 = vmul.f32 %v5227, %v5435
      %v5644 = vmul.f32 %v5228, %v5445
      %v5645 = vmul.f32 %v5229, %v5445
      %v5646 = vmul.f32 %v5230, %v5455
      %v5647 = vmul.f32 %v5231, %v5455
      %v5648 = vmul.f32 %v5232, %v5465
      %v5649 = vmul.f32 %v5233, %v5465
      %v5650 = vmul.f32 %v5234, %v5475
      %v5651 = vmul.f32 %v5235, %v5475
      %v5652 = vmul.f32 %v5236, %v5485
      %v5653 = vmul.f32 %v5237, %v5485
      %v5654 = vmul.f32 %v5238, %v5495
      %v5655 = vmul.f32 %v5239, %v5495
      %v5656 = vmul.f32 %v5240, %v5505
      %v5657 = vmul.f32 %v5241, %v5505
      %v5658 = vmul.f32 %v5242, %v5515
      %v5659 = vmul.f32 %v5243, %v5515
      %v5660 = vmul.f32 %v5244, %v5525
      %v5661 = vmul.f32 %v5245, %v5525
      %v5662 = vmul.f32 %v5246, %v5535
      %v5663 = vmul.f32 %v5247, %v5535
      %v5664 = vmul.f32 %v5248, %v5545
      %v5665 = vmul.f32 %v5249, %v5545
      %v5666 = vmul.f32 %v5250, %v5555
      %v5667 = vmul.f32 %v5251, %v5555
      %v5668 = vmul.f32 %v5252, %v5565
      %v5669 = vmul.f32 %v5253, %v5565
      %v5670 = vmul.f32 %v5254, %v5575
      %v5671 = vmul.f32 %v5255, %v5575
      %v5672 = vmul.f32 %v5256, %v5585
      %v5673 = vmul.f32 %v5257, %v5585
      %v5674 = vmul.f32 %v5258, %v5595
      %v5675 = vmul.f32 %v5259, %v5595
      %v5676 = vmul.f32 %v5260, %v5605
      %v5677 = vmul.f32 %v5261, %v5605
      %v5678 = vmul.f32 %v5262, %v5615
      %v5679 = vmul.f32 %v5263, %v5615
      %v5680 = vpack.c.bf16 %v5618, %v5616
      %v5681 = vpack.c.bf16 %v5619, %v5617
      %v5682 = vpack.c.bf16 %v5622, %v5620
      %v5683 = vpack.c.bf16 %v5623, %v5621
      %v5684 = vpack.c.bf16 %v5626, %v5624
      %v5685 = vpack.c.bf16 %v5627, %v5625
      %v5686 = vpack.c.bf16 %v5630, %v5628
      %v5687 = vpack.c.bf16 %v5631, %v5629
      %v5688 = vpack.c.bf16 %v5634, %v5632
      %v5689 = vpack.c.bf16 %v5635, %v5633
      %v5690 = vpack.c.bf16 %v5638, %v5636
      %v5691 = vpack.c.bf16 %v5639, %v5637
      %v5692 = vpack.c.bf16 %v5642, %v5640
      %v5693 = vpack.c.bf16 %v5643, %v5641
      %v5694 = vpack.c.bf16 %v5646, %v5644
      %v5695 = vpack.c.bf16 %v5647, %v5645
      %v5696 = vpack.c.bf16 %v5650, %v5648
      %v5697 = vpack.c.bf16 %v5651, %v5649
      %v5698 = vpack.c.bf16 %v5654, %v5652
      %v5699 = vpack.c.bf16 %v5655, %v5653
      %v5700 = vpack.c.bf16 %v5658, %v5656
      %v5701 = vpack.c.bf16 %v5659, %v5657
      %v5702 = vpack.c.bf16 %v5662, %v5660
      %v5703 = vpack.c.bf16 %v5663, %v5661
      %v5704 = vpack.c.bf16 %v5666, %v5664
      %v5705 = vpack.c.bf16 %v5667, %v5665
      %v5706 = vpack.c.bf16 %v5670, %v5668
      %v5707 = vpack.c.bf16 %v5671, %v5669
      %v5708 = vpack.c.bf16 %v5674, %v5672
      %v5709 = vpack.c.bf16 %v5675, %v5673
      %v5710 = vpack.c.bf16 %v5678, %v5676
      %v5711 = vpack.c.bf16 %v5679, %v5677
      %v5712 = vld [vmem:[%s5] sm:$0xff]
      %v5713 = vld [vmem:[%s5 + $0x8] sm:$0xff]
      %v5714 = vld [vmem:[%s5 + $0x10] sm:$0xff]
      %v5715 = vld [vmem:[%s5 + $0x18] sm:$0xff]
      %v5716 = vld [vmem:[%s5 + $0x20] sm:$0xff]
      %v5717 = vld [vmem:[%s5 + $0x28] sm:$0xff]
      %v5718 = vld [vmem:[%s5 + $0x30] sm:$0xff]
      %v5719 = vld [vmem:[%s5 + $0x38] sm:$0xff]
      %v5720 = vld [vmem:[%s5 + $0x40] sm:$0xff]
      %v5721 = vld [vmem:[%s5 + $0x48] sm:$0xff]
      %v5722 = vld [vmem:[%s5 + $0x50] sm:$0xff]
      %v5723 = vld [vmem:[%s5 + $0x58] sm:$0xff]
      %v5724 = vld [vmem:[%s5 + $0x60] sm:$0xff]
      %v5725 = vld [vmem:[%s5 + $0x68] sm:$0xff]
      %v5726 = vld [vmem:[%s5 + $0x70] sm:$0xff]
      %v5727 = vld [vmem:[%s5 + $0x78] sm:$0xff]
      %v5728 = vld [vmem:[%s5 + $0x80] sm:$0xff]
      %v5729 = vld [vmem:[%s5 + $0x88] sm:$0xff]
      %v5730 = vld [vmem:[%s5 + $0x90] sm:$0xff]
      %v5731 = vld [vmem:[%s5 + $0x98] sm:$0xff]
      %v5732 = vld [vmem:[%s5 + $0xa0] sm:$0xff]
      %v5733 = vld [vmem:[%s5 + $0xa8] sm:$0xff]
      %v5734 = vld [vmem:[%s5 + $0xb0] sm:$0xff]
      %v5735 = vld [vmem:[%s5 + $0xb8] sm:$0xff]
      %v5736 = vld [vmem:[%s5 + $0xc0] sm:$0xff]
      %v5737 = vld [vmem:[%s6] sm:$0x3]
      %v5739 = vperm.slane %v5737, 0
      %v5740 = vperm.slane %v5737, 1
      %v5768 = vunpack.c.l.b16 %v5712
      %v5769 = vunpack.c.h.b16 %v5712
      %v5770 = vunpack.c.l.b16 %v5713
      %v5771 = vunpack.c.h.b16 %v5713
      %v5772 = vunpack.c.l.b16 %v5714
      %v5773 = vunpack.c.h.b16 %v5714
      %v5774 = vunpack.c.l.b16 %v5715
      %v5775 = vunpack.c.h.b16 %v5715
      %v5776 = vunpack.c.l.b16 %v5716
      %v5777 = vunpack.c.h.b16 %v5716
      %v5778 = vunpack.c.l.b16 %v5717
      %v5779 = vunpack.c.h.b16 %v5717
      %v5780 = vunpack.c.l.b16 %v5718
      %v5781 = vunpack.c.h.b16 %v5718
      %v5782 = vunpack.c.l.b16 %v5719
      %v5783 = vunpack.c.h.b16 %v5719
      %v5784 = vunpack.c.l.b16 %v5720
      %v5785 = vunpack.c.h.b16 %v5720
      %v5786 = vunpack.c.l.b16 %v5721
      %v5787 = vunpack.c.h.b16 %v5721
      %v5788 = vunpack.c.l.b16 %v5722
      %v5789 = vunpack.c.h.b16 %v5722
      %v5790 = vunpack.c.l.b16 %v5723
      %v5791 = vunpack.c.h.b16 %v5723
      %v5792 = vunpack.c.l.b16 %v5724
      %v5793 = vunpack.c.h.b16 %v5724
      %v5794 = vunpack.c.l.b16 %v5725
      %v5795 = vunpack.c.h.b16 %v5725
      %v5796 = vunpack.c.l.b16 %v5726
      %v5797 = vunpack.c.h.b16 %v5726
      %v5798 = vunpack.c.l.b16 %v5727
      %v5799 = vunpack.c.h.b16 %v5727
      %v5800 = vunpack.c.l.b16 %v5728
      %v5801 = vunpack.c.h.b16 %v5728
      %v5802 = vunpack.c.l.b16 %v5729
      %v5803 = vunpack.c.h.b16 %v5729
      %v5804 = vunpack.c.l.b16 %v5730
      %v5805 = vunpack.c.h.b16 %v5730
      %v5806 = vunpack.c.l.b16 %v5731
      %v5807 = vunpack.c.h.b16 %v5731
      %v5808 = vunpack.c.l.b16 %v5732
      %v5809 = vunpack.c.h.b16 %v5732
      %v5810 = vunpack.c.l.b16 %v5733
      %v5811 = vunpack.c.h.b16 %v5733
      %v5812 = vunpack.c.l.b16 %v5734
      %v5813 = vunpack.c.h.b16 %v5734
      %v5814 = vunpack.c.l.b16 %v5735
      %v5815 = vunpack.c.h.b16 %v5735
      %v5816 = vunpack.c.l.b16 %v5736
      %v5817 = vunpack.c.h.b16 %v5736
      %v5818 = vpack.c.b16 %v5770, %v5768
      %v5819 = vpack.c.b16 %v5771, %v5769
      %v5820 = vpack.c.b16 %v5774, %v5772
      %v5821 = vpack.c.b16 %v5775, %v5773
      %v5822 = vpack.c.b16 %v5778, %v5776
      %v5823 = vpack.c.b16 %v5779, %v5777
      %v5824 = vpack.c.b16 %v5782, %v5780
      %v5825 = vpack.c.b16 %v5783, %v5781
      %v5826 = vpack.c.b16 %v5786, %v5784
      %v5827 = vpack.c.b16 %v5787, %v5785
      %v5828 = vpack.c.b16 %v5790, %v5788
      %v5829 = vpack.c.b16 %v5791, %v5789
      %v5830 = vpack.c.b16 %v5794, %v5792
      %v5831 = vpack.c.b16 %v5795, %v5793
      %v5832 = vpack.c.b16 %v5798, %v5796
      %v5833 = vpack.c.b16 %v5799, %v5797
      %v5834 = vpack.c.b16 %v5802, %v5800
      %v5835 = vpack.c.b16 %v5803, %v5801
      %v5836 = vpack.c.b16 %v5806, %v5804
      %v5837 = vpack.c.b16 %v5807, %v5805
      %v5838 = vpack.c.b16 %v5810, %v5808
      %v5839 = vpack.c.b16 %v5811, %v5809
      %v5840 = vpack.c.b16 %v5814, %v5812
      %v5841 = vpack.c.b16 %v5815, %v5813
      %v5842 = vpack.c.b16 %v5816, %v5816
      %v5843 = vpack.c.b16 %v5817, %v5817
      %v5869 = vsel %vm3089, %v5681, 0
      %v5872 = vsel %vm3089, %v5683, 0
      %v5875 = vsel %vm3089, %v5685, 0
      %v5878 = vsel %vm3089, %v5687, 0
      %v5881 = vsel %vm3089, %v5689, 0
      %v5884 = vsel %vm3089, %v5691, 0
      %v5887 = vsel %vm3089, %v5693, 0
      %v5890 = vsel %vm3089, %v5695, 0
      %v5893 = vsel %vm3089, %v5697, 0
      %v5896 = vsel %vm3089, %v5699, 0
      %v5899 = vsel %vm3089, %v5701, 0
      %v5902 = vsel %vm3089, %v5703, 0
      %v5905 = vsel %vm3089, %v5705, 0
      %v5908 = vsel %vm3089, %v5707, 0
      %v5911 = vsel %vm3089, %v5709, 0
      %v5914 = vsel %vm3089, %v5711, 0
      %v5917 = vsel %vm4293, %v5842, 0
      %v5920 = vsel %vm4293, %v5843, 0
      %5922 = vmatpush.bf16.msra.mxu0 %v5832
      %5923 = vmatpush.bf16.msra.mxu0 %v5830
      %5924 = vmatpush.bf16.msra.mxu0 %v5828
      %5925 = vmatpush.bf16.msra.mxu0 %v5826
      %5926 = vmatpush.bf16.msra.mxu0 %v5824
      %5927 = vmatpush.bf16.msra.mxu0 %v5822
      %5928 = vmatpush.bf16.msra.mxu0 %v5820
      %5929 = vmatpush.bf16.msra.mxu0 %v5818
      %5930 = vmatmul.bf16.gmra.mxu0 %v5680
      %v5931 = vpop.f32.mrf.mxu0
      %v5932 = vadd.f32 %v5739, %v5931
      %v5933 = vpop.f32.mrf.mxu0
      %v5934 = vadd.f32 %v5739, %v5933
      %5935 = vmatmul.bf16.gmra.mxu0 %v5682
      %v5936 = vpop.f32.mrf.mxu0
      %v5937 = vadd.f32 %v5739, %v5936
      %v5938 = vpop.f32.mrf.mxu0
      %v5939 = vadd.f32 %v5739, %v5938
      %5940 = vmatmul.bf16.gmra.mxu0 %v5684
      %v5941 = vpop.f32.mrf.mxu0
      %v5942 = vadd.f32 %v5739, %v5941
      %v5943 = vpop.f32.mrf.mxu0
      %v5944 = vadd.f32 %v5739, %v5943
      %5945 = vmatmul.bf16.gmra.mxu0 %v5686
      %v5946 = vpop.f32.mrf.mxu0
      %v5947 = vadd.f32 %v5739, %v5946
      %v5948 = vpop.f32.mrf.mxu0
      %v5949 = vadd.f32 %v5739, %v5948
      %5950 = vmatmul.bf16.gmra.mxu0 %v5688
      %v5951 = vpop.f32.mrf.mxu0
      %v5952 = vadd.f32 %v5739, %v5951
      %v5953 = vpop.f32.mrf.mxu0
      %v5954 = vadd.f32 %v5739, %v5953
      %5955 = vmatmul.bf16.gmra.mxu0 %v5690
      %v5956 = vpop.f32.mrf.mxu0
      %v5957 = vadd.f32 %v5739, %v5956
      %v5958 = vpop.f32.mrf.mxu0
      %v5959 = vadd.f32 %v5739, %v5958
      %5960 = vmatmul.bf16.gmra.mxu0 %v5692
      %v5961 = vpop.f32.mrf.mxu0
      %v5962 = vadd.f32 %v5739, %v5961
      %v5963 = vpop.f32.mrf.mxu0
      %v5964 = vadd.f32 %v5739, %v5963
      %5965 = vmatmul.bf16.gmra.mxu0 %v5694
      %v5966 = vpop.f32.mrf.mxu0
      %v5967 = vadd.f32 %v5739, %v5966
      %v5968 = vpop.f32.mrf.mxu0
      %v5969 = vadd.f32 %v5739, %v5968
      %5970 = vmatmul.bf16.gmra.mxu0 %v5696
      %v5971 = vpop.f32.mrf.mxu0
      %v5972 = vadd.f32 %v5739, %v5971
      %v5973 = vpop.f32.mrf.mxu0
      %v5974 = vadd.f32 %v5739, %v5973
      %5975 = vmatmul.bf16.gmra.mxu0 %v5698
      %v5976 = vpop.f32.mrf.mxu0
      %v5977 = vadd.f32 %v5739, %v5976
      %v5978 = vpop.f32.mrf.mxu0
      %v5979 = vadd.f32 %v5739, %v5978
      %5980 = vmatmul.bf16.gmra.mxu0 %v5700
      %v5981 = vpop.f32.mrf.mxu0
      %v5982 = vadd.f32 %v5739, %v5981
      %v5983 = vpop.f32.mrf.mxu0
      %v5984 = vadd.f32 %v5739, %v5983
      %5985 = vmatmul.bf16.gmra.mxu0 %v5702
      %v5986 = vpop.f32.mrf.mxu0
      %v5987 = vadd.f32 %v5739, %v5986
      %v5988 = vpop.f32.mrf.mxu0
      %v5989 = vadd.f32 %v5739, %v5988
      %5990 = vmatmul.bf16.gmra.mxu0 %v5704
      %v5991 = vpop.f32.mrf.mxu0
      %v5992 = vadd.f32 %v5739, %v5991
      %v5993 = vpop.f32.mrf.mxu0
      %v5994 = vadd.f32 %v5739, %v5993
      %5995 = vmatmul.bf16.gmra.mxu0 %v5706
      %v5996 = vpop.f32.mrf.mxu0
      %v5997 = vadd.f32 %v5739, %v5996
      %v5998 = vpop.f32.mrf.mxu0
      %v5999 = vadd.f32 %v5739, %v5998
      %6000 = vmatmul.bf16.gmra.mxu0 %v5708
      %v6001 = vpop.f32.mrf.mxu0
      %v6002 = vadd.f32 %v5739, %v6001
      %v6003 = vpop.f32.mrf.mxu0
      %v6004 = vadd.f32 %v5739, %v6003
      %6005 = vmatmul.bf16.gmra.mxu0 %v5710
      %v6006 = vpop.f32.mrf.mxu0
      %v6007 = vadd.f32 %v5739, %v6006
      %v6008 = vpop.f32.mrf.mxu0
      %v6009 = vadd.f32 %v5739, %v6008
      %6010 = vdwg.mxu0
      %6011 = vmatpush.bf16.msra.mxu0 0
      %6012 = vmatpush.bf16.msra.mxu0 0
      %6013 = vmatpush.bf16.msra.mxu0 0
      %6014 = vmatpush.bf16.msra.mxu0 %v5917
      %6015 = vmatpush.bf16.msra.mxu0 %v5840
      %6016 = vmatpush.bf16.msra.mxu0 %v5838
      %6017 = vmatpush.bf16.msra.mxu0 %v5836
      %6018 = vmatpush.bf16.msra.mxu0 %v5834
      %6019 = vmatmul.bf16.gmra.mxu0 %v5869
      %v6020 = vpop.f32.mrf.mxu0
      %v6021 = vadd.f32 %v5932, %v6020
      %v6022 = vpop.f32.mrf.mxu0
      %v6023 = vadd.f32 %v5934, %v6022
      %6024 = vmatmul.bf16.gmra.mxu0 %v5872
      %v6025 = vpop.f32.mrf.mxu0
      %v6026 = vadd.f32 %v5937, %v6025
      %v6027 = vpop.f32.mrf.mxu0
      %v6028 = vadd.f32 %v5939, %v6027
      %6029 = vmatmul.bf16.gmra.mxu0 %v5875
      %v6030 = vpop.f32.mrf.mxu0
      %v6031 = vadd.f32 %v5942, %v6030
      %v6032 = vpop.f32.mrf.mxu0
      %v6033 = vadd.f32 %v5944, %v6032
      %6034 = vmatmul.bf16.gmra.mxu0 %v5878
      %v6035 = vpop.f32.mrf.mxu0
      %v6036 = vadd.f32 %v5947, %v6035
      %v6037 = vpop.f32.mrf.mxu0
      %v6038 = vadd.f32 %v5949, %v6037
      %6039 = vmatmul.bf16.gmra.mxu0 %v5881
      %v6040 = vpop.f32.mrf.mxu0
      %v6041 = vadd.f32 %v5952, %v6040
      %v6042 = vpop.f32.mrf.mxu0
      %v6043 = vadd.f32 %v5954, %v6042
      %6044 = vmatmul.bf16.gmra.mxu0 %v5884
      %v6045 = vpop.f32.mrf.mxu0
      %v6046 = vadd.f32 %v5957, %v6045
      %v6047 = vpop.f32.mrf.mxu0
      %v6048 = vadd.f32 %v5959, %v6047
      %6049 = vmatmul.bf16.gmra.mxu0 %v5887
      %v6050 = vpop.f32.mrf.mxu0
      %v6051 = vadd.f32 %v5962, %v6050
      %v6052 = vpop.f32.mrf.mxu0
      %v6053 = vadd.f32 %v5964, %v6052
      %6054 = vmatmul.bf16.gmra.mxu0 %v5890
      %v6055 = vpop.f32.mrf.mxu0
      %v6056 = vadd.f32 %v5967, %v6055
      %v6057 = vpop.f32.mrf.mxu0
      %v6058 = vadd.f32 %v5969, %v6057
      %6059 = vmatmul.bf16.gmra.mxu0 %v5893
      %v6060 = vpop.f32.mrf.mxu0
      %v6061 = vadd.f32 %v5972, %v6060
      %v6062 = vpop.f32.mrf.mxu0
      %v6063 = vadd.f32 %v5974, %v6062
      %6064 = vmatmul.bf16.gmra.mxu0 %v5896
      %v6065 = vpop.f32.mrf.mxu0
      %v6066 = vadd.f32 %v5977, %v6065
      %v6067 = vpop.f32.mrf.mxu0
      %v6068 = vadd.f32 %v5979, %v6067
      %6069 = vmatmul.bf16.gmra.mxu0 %v5899
      %v6070 = vpop.f32.mrf.mxu0
      %v6071 = vadd.f32 %v5982, %v6070
      %v6072 = vpop.f32.mrf.mxu0
      %v6073 = vadd.f32 %v5984, %v6072
      %6074 = vmatmul.bf16.gmra.mxu0 %v5902
      %v6075 = vpop.f32.mrf.mxu0
      %v6076 = vadd.f32 %v5987, %v6075
      %v6077 = vpop.f32.mrf.mxu0
      %v6078 = vadd.f32 %v5989, %v6077
      %6079 = vmatmul.bf16.gmra.mxu0 %v5905
      %v6080 = vpop.f32.mrf.mxu0
      %v6081 = vadd.f32 %v5992, %v6080
      %v6082 = vpop.f32.mrf.mxu0
      %v6083 = vadd.f32 %v5994, %v6082
      %6084 = vmatmul.bf16.gmra.mxu0 %v5908
      %v6085 = vpop.f32.mrf.mxu0
      %v6086 = vadd.f32 %v5997, %v6085
      %v6087 = vpop.f32.mrf.mxu0
      %v6088 = vadd.f32 %v5999, %v6087
      %6089 = vmatmul.bf16.gmra.mxu0 %v5911
      %v6090 = vpop.f32.mrf.mxu0
      %v6091 = vadd.f32 %v6002, %v6090
      %v6092 = vpop.f32.mrf.mxu0
      %v6093 = vadd.f32 %v6004, %v6092
      %6094 = vmatmul.bf16.gmra.mxu0 %v5914
      %v6095 = vpop.f32.mrf.mxu0
      %v6096 = vadd.f32 %v6007, %v6095
      %v6097 = vpop.f32.mrf.mxu0
      %v6098 = vadd.f32 %v6009, %v6097
      %6099 = vdwg.mxu0
      %6100 = vmatpush.bf16.msra.mxu0 %v5833
      %6101 = vmatpush.bf16.msra.mxu0 %v5831
      %6102 = vmatpush.bf16.msra.mxu0 %v5829
      %6103 = vmatpush.bf16.msra.mxu0 %v5827
      %6104 = vmatpush.bf16.msra.mxu0 %v5825
      %6105 = vmatpush.bf16.msra.mxu0 %v5823
      %6106 = vmatpush.bf16.msra.mxu0 %v5821
      %6107 = vmatpush.bf16.msra.mxu0 %v5819
      %6108 = vmatmul.bf16.gmra.mxu0 %v5680
      %v6109 = vpop.f32.mrf.mxu0
      %v6110 = vadd.f32 %v5740, %v6109
      %v6111 = vpop.f32.mrf.mxu0
      %v6112 = vadd.f32 %v5740, %v6111
      %6113 = vmatmul.bf16.gmra.mxu0 %v5682
      %v6114 = vpop.f32.mrf.mxu0
      %v6115 = vadd.f32 %v5740, %v6114
      %v6116 = vpop.f32.mrf.mxu0
      %v6117 = vadd.f32 %v5740, %v6116
      %6118 = vmatmul.bf16.gmra.mxu0 %v5684
      %v6119 = vpop.f32.mrf.mxu0
      %v6120 = vadd.f32 %v5740, %v6119
      %v6121 = vpop.f32.mrf.mxu0
      %v6122 = vadd.f32 %v5740, %v6121
      %6123 = vmatmul.bf16.gmra.mxu0 %v5686
      %v6124 = vpop.f32.mrf.mxu0
      %v6125 = vadd.f32 %v5740, %v6124
      %v6126 = vpop.f32.mrf.mxu0
      %v6127 = vadd.f32 %v5740, %v6126
      %6128 = vmatmul.bf16.gmra.mxu0 %v5688
      %v6129 = vpop.f32.mrf.mxu0
      %v6130 = vadd.f32 %v5740, %v6129
      %v6131 = vpop.f32.mrf.mxu0
      %v6132 = vadd.f32 %v5740, %v6131
      %6133 = vmatmul.bf16.gmra.mxu0 %v5690
      %v6134 = vpop.f32.mrf.mxu0
      %v6135 = vadd.f32 %v5740, %v6134
      %v6136 = vpop.f32.mrf.mxu0
      %v6137 = vadd.f32 %v5740, %v6136
      %6138 = vmatmul.bf16.gmra.mxu0 %v5692
      %v6139 = vpop.f32.mrf.mxu0
      %v6140 = vadd.f32 %v5740, %v6139
      %v6141 = vpop.f32.mrf.mxu0
      %v6142 = vadd.f32 %v5740, %v6141
      %6143 = vmatmul.bf16.gmra.mxu0 %v5694
      %v6144 = vpop.f32.mrf.mxu0
      %v6145 = vadd.f32 %v5740, %v6144
      %v6146 = vpop.f32.mrf.mxu0
      %v6147 = vadd.f32 %v5740, %v6146
      %6148 = vmatmul.bf16.gmra.mxu0 %v5696
      %v6149 = vpop.f32.mrf.mxu0
      %v6150 = vadd.f32 %v5740, %v6149
      %v6151 = vpop.f32.mrf.mxu0
      %v6152 = vadd.f32 %v5740, %v6151
      %6153 = vmatmul.bf16.gmra.mxu0 %v5698
      %v6154 = vpop.f32.mrf.mxu0
      %v6155 = vadd.f32 %v5740, %v6154
      %v6156 = vpop.f32.mrf.mxu0
      %v6157 = vadd.f32 %v5740, %v6156
      %6158 = vmatmul.bf16.gmra.mxu0 %v5700
      %v6159 = vpop.f32.mrf.mxu0
      %v6160 = vadd.f32 %v5740, %v6159
      %v6161 = vpop.f32.mrf.mxu0
      %v6162 = vadd.f32 %v5740, %v6161
      %6163 = vmatmul.bf16.gmra.mxu0 %v5702
      %v6164 = vpop.f32.mrf.mxu0
      %v6165 = vadd.f32 %v5740, %v6164
      %v6166 = vpop.f32.mrf.mxu0
      %v6167 = vadd.f32 %v5740, %v6166
      %6168 = vmatmul.bf16.gmra.mxu0 %v5704
      %v6169 = vpop.f32.mrf.mxu0
      %v6170 = vadd.f32 %v5740, %v6169
      %v6171 = vpop.f32.mrf.mxu0
      %v6172 = vadd.f32 %v5740, %v6171
      %6173 = vmatmul.bf16.gmra.mxu0 %v5706
      %v6174 = vpop.f32.mrf.mxu0
      %v6175 = vadd.f32 %v5740, %v6174
      %v6176 = vpop.f32.mrf.mxu0
      %v6177 = vadd.f32 %v5740, %v6176
      %6178 = vmatmul.bf16.gmra.mxu0 %v5708
      %v6179 = vpop.f32.mrf.mxu0
      %v6180 = vadd.f32 %v5740, %v6179
      %v6181 = vpop.f32.mrf.mxu0
      %v6182 = vadd.f32 %v5740, %v6181
      %6183 = vmatmul.bf16.gmra.mxu0 %v5710
      %v6184 = vpop.f32.mrf.mxu0
      %v6185 = vadd.f32 %v5740, %v6184
      %v6186 = vpop.f32.mrf.mxu0
      %v6187 = vadd.f32 %v5740, %v6186
      %6188 = vdwg.mxu0
      %6189 = vmatpush.bf16.msra.mxu0 0
      %6190 = vmatpush.bf16.msra.mxu0 0
      %6191 = vmatpush.bf16.msra.mxu0 0
      %6192 = vmatpush.bf16.msra.mxu0 %v5920
      %6193 = vmatpush.bf16.msra.mxu0 %v5841
      %6194 = vmatpush.bf16.msra.mxu0 %v5839
      %6195 = vmatpush.bf16.msra.mxu0 %v5837
      %6196 = vmatpush.bf16.msra.mxu0 %v5835
      %6197 = vmatmul.bf16.gmra.mxu0 %v5869
      %v6198 = vpop.f32.mrf.mxu0
      %v6199 = vadd.f32 %v6110, %v6198
      %v6200 = vpop.f32.mrf.mxu0
      %v6201 = vadd.f32 %v6112, %v6200
      %6202 = vmatmul.bf16.gmra.mxu0 %v5872
      %v6203 = vpop.f32.mrf.mxu0
      %v6204 = vadd.f32 %v6115, %v6203
      %v6205 = vpop.f32.mrf.mxu0
      %v6206 = vadd.f32 %v6117, %v6205
      %6207 = vmatmul.bf16.gmra.mxu0 %v5875
      %v6208 = vpop.f32.mrf.mxu0
      %v6209 = vadd.f32 %v6120, %v6208
      %v6210 = vpop.f32.mrf.mxu0
      %v6211 = vadd.f32 %v6122, %v6210
      %6212 = vmatmul.bf16.gmra.mxu0 %v5878
      %v6213 = vpop.f32.mrf.mxu0
      %v6214 = vadd.f32 %v6125, %v6213
      %v6215 = vpop.f32.mrf.mxu0
      %v6216 = vadd.f32 %v6127, %v6215
      %6217 = vmatmul.bf16.gmra.mxu0 %v5881
      %v6218 = vpop.f32.mrf.mxu0
      %v6219 = vadd.f32 %v6130, %v6218
      %v6220 = vpop.f32.mrf.mxu0
      %v6221 = vadd.f32 %v6132, %v6220
      %6222 = vmatmul.bf16.gmra.mxu0 %v5884
      %v6223 = vpop.f32.mrf.mxu0
      %v6224 = vadd.f32 %v6135, %v6223
      %v6225 = vpop.f32.mrf.mxu0
      %v6226 = vadd.f32 %v6137, %v6225
      %6227 = vmatmul.bf16.gmra.mxu0 %v5887
      %v6228 = vpop.f32.mrf.mxu0
      %v6229 = vadd.f32 %v6140, %v6228
      %v6230 = vpop.f32.mrf.mxu0
      %v6231 = vadd.f32 %v6142, %v6230
      %6232 = vmatmul.bf16.gmra.mxu0 %v5890
      %v6233 = vpop.f32.mrf.mxu0
      %v6234 = vadd.f32 %v6145, %v6233
      %v6235 = vpop.f32.mrf.mxu0
      %v6236 = vadd.f32 %v6147, %v6235
      %6237 = vmatmul.bf16.gmra.mxu0 %v5893
      %v6238 = vpop.f32.mrf.mxu0
      %v6239 = vadd.f32 %v6150, %v6238
      %v6240 = vpop.f32.mrf.mxu0
      %v6241 = vadd.f32 %v6152, %v6240
      %6242 = vmatmul.bf16.gmra.mxu0 %v5896
      %v6243 = vpop.f32.mrf.mxu0
      %v6244 = vadd.f32 %v6155, %v6243
      %v6245 = vpop.f32.mrf.mxu0
      %v6246 = vadd.f32 %v6157, %v6245
      %6247 = vmatmul.bf16.gmra.mxu0 %v5899
      %v6248 = vpop.f32.mrf.mxu0
      %v6249 = vadd.f32 %v6160, %v6248
      %v6250 = vpop.f32.mrf.mxu0
      %v6251 = vadd.f32 %v6162, %v6250
      %6252 = vmatmul.bf16.gmra.mxu0 %v5902
      %v6253 = vpop.f32.mrf.mxu0
      %v6254 = vadd.f32 %v6165, %v6253
      %v6255 = vpop.f32.mrf.mxu0
      %v6256 = vadd.f32 %v6167, %v6255
      %6257 = vmatmul.bf16.gmra.mxu0 %v5905
      %v6258 = vpop.f32.mrf.mxu0
      %v6259 = vadd.f32 %v6170, %v6258
      %v6260 = vpop.f32.mrf.mxu0
      %v6261 = vadd.f32 %v6172, %v6260
      %6262 = vmatmul.bf16.gmra.mxu0 %v5908
      %v6263 = vpop.f32.mrf.mxu0
      %v6264 = vadd.f32 %v6175, %v6263
      %v6265 = vpop.f32.mrf.mxu0
      %v6266 = vadd.f32 %v6177, %v6265
      %6267 = vmatmul.bf16.gmra.mxu0 %v5911
      %v6268 = vpop.f32.mrf.mxu0
      %v6269 = vadd.f32 %v6180, %v6268
      %v6270 = vpop.f32.mrf.mxu0
      %v6271 = vadd.f32 %v6182, %v6270
      %6272 = vmatmul.bf16.gmra.mxu0 %v5914
      %v6273 = vpop.f32.mrf.mxu0
      %v6274 = vadd.f32 %v6185, %v6273
      %v6275 = vpop.f32.mrf.mxu0
      %v6276 = vadd.f32 %v6187, %v6275
      %6277 = vdwg.mxu0
      %v6278 = vmax.f32 %v6021, 0.0
      %v6279 = vmax.f32 %v6199, 0.0
      %v6280 = vmax.f32 %v6023, 0.0
      %v6281 = vmax.f32 %v6201, 0.0
      %v6282 = vmax.f32 %v6026, 0.0
      %v6283 = vmax.f32 %v6204, 0.0
      %v6284 = vmax.f32 %v6028, 0.0
      %v6285 = vmax.f32 %v6206, 0.0
      %v6286 = vmax.f32 %v6031, 0.0
      %v6287 = vmax.f32 %v6209, 0.0
      %v6288 = vmax.f32 %v6033, 0.0
      %v6289 = vmax.f32 %v6211, 0.0
      %v6290 = vmax.f32 %v6036, 0.0
      %v6291 = vmax.f32 %v6214, 0.0
      %v6292 = vmax.f32 %v6038, 0.0
      %v6293 = vmax.f32 %v6216, 0.0
      %v6294 = vmax.f32 %v6041, 0.0
      %v6295 = vmax.f32 %v6219, 0.0
      %v6296 = vmax.f32 %v6043, 0.0
      %v6297 = vmax.f32 %v6221, 0.0
      %v6298 = vmax.f32 %v6046, 0.0
      %v6299 = vmax.f32 %v6224, 0.0
      %v6300 = vmax.f32 %v6048, 0.0
      %v6301 = vmax.f32 %v6226, 0.0
      %v6302 = vmax.f32 %v6051, 0.0
      %v6303 = vmax.f32 %v6229, 0.0
      %v6304 = vmax.f32 %v6053, 0.0
      %v6305 = vmax.f32 %v6231, 0.0
      %v6306 = vmax.f32 %v6056, 0.0
      %v6307 = vmax.f32 %v6234, 0.0
      %v6308 = vmax.f32 %v6058, 0.0
      %v6309 = vmax.f32 %v6236, 0.0
      %v6310 = vmax.f32 %v6061, 0.0
      %v6311 = vmax.f32 %v6239, 0.0
      %v6312 = vmax.f32 %v6063, 0.0
      %v6313 = vmax.f32 %v6241, 0.0
      %v6314 = vmax.f32 %v6066, 0.0
      %v6315 = vmax.f32 %v6244, 0.0
      %v6316 = vmax.f32 %v6068, 0.0
      %v6317 = vmax.f32 %v6246, 0.0
      %v6318 = vmax.f32 %v6071, 0.0
      %v6319 = vmax.f32 %v6249, 0.0
      %v6320 = vmax.f32 %v6073, 0.0
      %v6321 = vmax.f32 %v6251, 0.0
      %v6322 = vmax.f32 %v6076, 0.0
      %v6323 = vmax.f32 %v6254, 0.0
      %v6324 = vmax.f32 %v6078, 0.0
      %v6325 = vmax.f32 %v6256, 0.0
      %v6326 = vmax.f32 %v6081, 0.0
      %v6327 = vmax.f32 %v6259, 0.0
      %v6328 = vmax.f32 %v6083, 0.0
      %v6329 = vmax.f32 %v6261, 0.0
      %v6330 = vmax.f32 %v6086, 0.0
      %v6331 = vmax.f32 %v6264, 0.0
      %v6332 = vmax.f32 %v6088, 0.0
      %v6333 = vmax.f32 %v6266, 0.0
      %v6334 = vmax.f32 %v6091, 0.0
      %v6335 = vmax.f32 %v6269, 0.0
      %v6336 = vmax.f32 %v6093, 0.0
      %v6337 = vmax.f32 %v6271, 0.0
      %v6338 = vmax.f32 %v6096, 0.0
      %v6339 = vmax.f32 %v6274, 0.0
      %v6340 = vmax.f32 %v6098, 0.0
      %v6341 = vmax.f32 %v6276, 0.0
      %v6342 = vsel %vm3089, %v6279, 0.0
      %v6343 = vadd.f32 %v6278, %v6342
      %6344 = vadd.xlane.f32.xlu0 %v6343
      %v6345 = vpop.xlane.xlu0 %6344
      %v6346 = vsel %vm3089, %v6281, 0.0
      %v6347 = vadd.f32 %v6280, %v6346
      %6348 = vadd.xlane.f32.xlu0 %v6347
      %v6349 = vpop.xlane.xlu0 %6348
      %v6350 = vsel %vm3089, %v6283, 0.0
      %v6351 = vadd.f32 %v6282, %v6350
      %6352 = vadd.xlane.f32.xlu0 %v6351
      %v6353 = vpop.xlane.xlu0 %6352
      %v6354 = vsel %vm3089, %v6285, 0.0
      %v6355 = vadd.f32 %v6284, %v6354
      %6356 = vadd.xlane.f32.xlu0 %v6355
      %v6357 = vpop.xlane.xlu0 %6356
      %v6358 = vsel %vm3089, %v6287, 0.0
      %v6359 = vadd.f32 %v6286, %v6358
      %6360 = vadd.xlane.f32.xlu0 %v6359
      %v6361 = vpop.xlane.xlu0 %6360
      %v6362 = vsel %vm3089, %v6289, 0.0
      %v6363 = vadd.f32 %v6288, %v6362
      %6364 = vadd.xlane.f32.xlu0 %v6363
      %v6365 = vpop.xlane.xlu0 %6364
      %v6366 = vsel %vm3089, %v6291, 0.0
      %v6367 = vadd.f32 %v6290, %v6366
      %6368 = vadd.xlane.f32.xlu0 %v6367
      %v6369 = vpop.xlane.xlu0 %6368
      %v6370 = vsel %vm3089, %v6293, 0.0
      %v6371 = vadd.f32 %v6292, %v6370
      %6372 = vadd.xlane.f32.xlu0 %v6371
      %v6373 = vpop.xlane.xlu0 %6372
      %v6374 = vsel %vm3089, %v6295, 0.0
      %v6375 = vadd.f32 %v6294, %v6374
      %6376 = vadd.xlane.f32.xlu0 %v6375
      %v6377 = vpop.xlane.xlu0 %6376
      %v6378 = vsel %vm3089, %v6297, 0.0
      %v6379 = vadd.f32 %v6296, %v6378
      %6380 = vadd.xlane.f32.xlu0 %v6379
      %v6381 = vpop.xlane.xlu0 %6380
      %v6382 = vsel %vm3089, %v6299, 0.0
      %v6383 = vadd.f32 %v6298, %v6382
      %6384 = vadd.xlane.f32.xlu0 %v6383
      %v6385 = vpop.xlane.xlu0 %6384
      %v6386 = vsel %vm3089, %v6301, 0.0
      %v6387 = vadd.f32 %v6300, %v6386
      %6388 = vadd.xlane.f32.xlu0 %v6387
      %v6389 = vpop.xlane.xlu0 %6388
      %v6390 = vsel %vm3089, %v6303, 0.0
      %v6391 = vadd.f32 %v6302, %v6390
      %6392 = vadd.xlane.f32.xlu0 %v6391
      %v6393 = vpop.xlane.xlu0 %6392
      %v6394 = vsel %vm3089, %v6305, 0.0
      %v6395 = vadd.f32 %v6304, %v6394
      %6396 = vadd.xlane.f32.xlu0 %v6395
      %v6397 = vpop.xlane.xlu0 %6396
      %v6398 = vsel %vm3089, %v6307, 0.0
      %v6399 = vadd.f32 %v6306, %v6398
      %6400 = vadd.xlane.f32.xlu0 %v6399
      %v6401 = vpop.xlane.xlu0 %6400
      %v6402 = vsel %vm3089, %v6309, 0.0
      %v6403 = vadd.f32 %v6308, %v6402
      %6404 = vadd.xlane.f32.xlu0 %v6403
      %v6405 = vpop.xlane.xlu0 %6404
      %v6406 = vsel %vm3089, %v6311, 0.0
      %v6407 = vadd.f32 %v6310, %v6406
      %6408 = vadd.xlane.f32.xlu0 %v6407
      %v6409 = vpop.xlane.xlu0 %6408
      %v6410 = vsel %vm3089, %v6313, 0.0
      %v6411 = vadd.f32 %v6312, %v6410
      %6412 = vadd.xlane.f32.xlu0 %v6411
      %v6413 = vpop.xlane.xlu0 %6412
      %v6414 = vsel %vm3089, %v6315, 0.0
      %v6415 = vadd.f32 %v6314, %v6414
      %6416 = vadd.xlane.f32.xlu0 %v6415
      %v6417 = vpop.xlane.xlu0 %6416
      %v6418 = vsel %vm3089, %v6317, 0.0
      %v6419 = vadd.f32 %v6316, %v6418
      %6420 = vadd.xlane.f32.xlu0 %v6419
      %v6421 = vpop.xlane.xlu0 %6420
      %v6422 = vsel %vm3089, %v6319, 0.0
      %v6423 = vadd.f32 %v6318, %v6422
      %6424 = vadd.xlane.f32.xlu0 %v6423
      %v6425 = vpop.xlane.xlu0 %6424
      %v6426 = vsel %vm3089, %v6321, 0.0
      %v6427 = vadd.f32 %v6320, %v6426
      %6428 = vadd.xlane.f32.xlu0 %v6427
      %v6429 = vpop.xlane.xlu0 %6428
      %v6430 = vsel %vm3089, %v6323, 0.0
      %v6431 = vadd.f32 %v6322, %v6430
      %6432 = vadd.xlane.f32.xlu0 %v6431
      %v6433 = vpop.xlane.xlu0 %6432
      %v6434 = vsel %vm3089, %v6325, 0.0
      %v6435 = vadd.f32 %v6324, %v6434
      %6436 = vadd.xlane.f32.xlu0 %v6435
      %v6437 = vpop.xlane.xlu0 %6436
      %v6438 = vsel %vm3089, %v6327, 0.0
      %v6439 = vadd.f32 %v6326, %v6438
      %6440 = vadd.xlane.f32.xlu0 %v6439
      %v6441 = vpop.xlane.xlu0 %6440
      %v6442 = vsel %vm3089, %v6329, 0.0
      %v6443 = vadd.f32 %v6328, %v6442
      %6444 = vadd.xlane.f32.xlu0 %v6443
      %v6445 = vpop.xlane.xlu0 %6444
      %v6446 = vsel %vm3089, %v6331, 0.0
      %v6447 = vadd.f32 %v6330, %v6446
      %6448 = vadd.xlane.f32.xlu0 %v6447
      %v6449 = vpop.xlane.xlu0 %6448
      %v6450 = vsel %vm3089, %v6333, 0.0
      %v6451 = vadd.f32 %v6332, %v6450
      %6452 = vadd.xlane.f32.xlu0 %v6451
      %v6453 = vpop.xlane.xlu0 %6452
      %v6454 = vsel %vm3089, %v6335, 0.0
      %v6455 = vadd.f32 %v6334, %v6454
      %6456 = vadd.xlane.f32.xlu0 %v6455
      %v6457 = vpop.xlane.xlu0 %6456
      %v6458 = vsel %vm3089, %v6337, 0.0
      %v6459 = vadd.f32 %v6336, %v6458
      %6460 = vadd.xlane.f32.xlu0 %v6459
      %v6461 = vpop.xlane.xlu0 %6460
      %v6462 = vsel %vm3089, %v6339, 0.0
      %v6463 = vadd.f32 %v6338, %v6462
      %6464 = vadd.xlane.f32.xlu0 %v6463
      %v6465 = vpop.xlane.xlu0 %6464
      %v6466 = vsel %vm3089, %v6341, 0.0
      %v6467 = vadd.f32 %v6340, %v6466
      %6468 = vadd.xlane.f32.xlu0 %v6467
      %v6469 = vpop.xlane.xlu0 %6468
      %v6470 = vmul.f32 %v6345, %v3224
      %v6471 = vmul.f32 %v6349, %v3224
      %v6472 = vmul.f32 %v6353, %v3224
      %v6473 = vmul.f32 %v6357, %v3224
      %v6474 = vmul.f32 %v6361, %v3224
      %v6475 = vmul.f32 %v6365, %v3224
      %v6476 = vmul.f32 %v6369, %v3224
      %v6477 = vmul.f32 %v6373, %v3224
      %v6478 = vmul.f32 %v6377, %v3224
      %v6479 = vmul.f32 %v6381, %v3224
      %v6480 = vmul.f32 %v6385, %v3224
      %v6481 = vmul.f32 %v6389, %v3224
      %v6482 = vmul.f32 %v6393, %v3224
      %v6483 = vmul.f32 %v6397, %v3224
      %v6484 = vmul.f32 %v6401, %v3224
      %v6485 = vmul.f32 %v6405, %v3224
      %v6486 = vmul.f32 %v6409, %v3224
      %v6487 = vmul.f32 %v6413, %v3224
      %v6488 = vmul.f32 %v6417, %v3224
      %v6489 = vmul.f32 %v6421, %v3224
      %v6490 = vmul.f32 %v6425, %v3224
      %v6491 = vmul.f32 %v6429, %v3224
      %v6492 = vmul.f32 %v6433, %v3224
      %v6493 = vmul.f32 %v6437, %v3224
      %v6494 = vmul.f32 %v6441, %v3224
      %v6495 = vmul.f32 %v6445, %v3224
      %v6496 = vmul.f32 %v6449, %v3224
      %v6497 = vmul.f32 %v6453, %v3224
      %v6498 = vmul.f32 %v6457, %v3224
      %v6499 = vmul.f32 %v6461, %v3224
      %v6500 = vmul.f32 %v6465, %v3224
      %v6501 = vmul.f32 %v6469, %v3224
      %v6502 = vmul.f32 %v6278, %v6278
      %v6503 = vmul.f32 %v6279, %v6279
      %v6504 = vmul.f32 %v6280, %v6280
      %v6505 = vmul.f32 %v6281, %v6281
      %v6506 = vmul.f32 %v6282, %v6282
      %v6507 = vmul.f32 %v6283, %v6283
      %v6508 = vmul.f32 %v6284, %v6284
      %v6509 = vmul.f32 %v6285, %v6285
      %v6510 = vmul.f32 %v6286, %v6286
      %v6511 = vmul.f32 %v6287, %v6287
      %v6512 = vmul.f32 %v6288, %v6288
      %v6513 = vmul.f32 %v6289, %v6289
      %v6514 = vmul.f32 %v6290, %v6290
      %v6515 = vmul.f32 %v6291, %v6291
      %v6516 = vmul.f32 %v6292, %v6292
      %v6517 = vmul.f32 %v6293, %v6293
      %v6518 = vmul.f32 %v6294, %v6294
      %v6519 = vmul.f32 %v6295, %v6295
      %v6520 = vmul.f32 %v6296, %v6296
      %v6521 = vmul.f32 %v6297, %v6297
      %v6522 = vmul.f32 %v6298, %v6298
      %v6523 = vmul.f32 %v6299, %v6299
      %v6524 = vmul.f32 %v6300, %v6300
      %v6525 = vmul.f32 %v6301, %v6301
      %v6526 = vmul.f32 %v6302, %v6302
      %v6527 = vmul.f32 %v6303, %v6303
      %v6528 = vmul.f32 %v6304, %v6304
      %v6529 = vmul.f32 %v6305, %v6305
      %v6530 = vmul.f32 %v6306, %v6306
      %v6531 = vmul.f32 %v6307, %v6307
      %v6532 = vmul.f32 %v6308, %v6308
      %v6533 = vmul.f32 %v6309, %v6309
      %v6534 = vmul.f32 %v6310, %v6310
      %v6535 = vmul.f32 %v6311, %v6311
      %v6536 = vmul.f32 %v6312, %v6312
      %v6537 = vmul.f32 %v6313, %v6313
      %v6538 = vmul.f32 %v6314, %v6314
      %v6539 = vmul.f32 %v6315, %v6315
      %v6540 = vmul.f32 %v6316, %v6316
      %v6541 = vmul.f32 %v6317, %v6317
      %v6542 = vmul.f32 %v6318, %v6318
      %v6543 = vmul.f32 %v6319, %v6319
      %v6544 = vmul.f32 %v6320, %v6320
      %v6545 = vmul.f32 %v6321, %v6321
      %v6546 = vmul.f32 %v6322, %v6322
      %v6547 = vmul.f32 %v6323, %v6323
      %v6548 = vmul.f32 %v6324, %v6324
      %v6549 = vmul.f32 %v6325, %v6325
      %v6550 = vmul.f32 %v6326, %v6326
      %v6551 = vmul.f32 %v6327, %v6327
      %v6552 = vmul.f32 %v6328, %v6328
      %v6553 = vmul.f32 %v6329, %v6329
      %v6554 = vmul.f32 %v6330, %v6330
      %v6555 = vmul.f32 %v6331, %v6331
      %v6556 = vmul.f32 %v6332, %v6332
      %v6557 = vmul.f32 %v6333, %v6333
      %v6558 = vmul.f32 %v6334, %v6334
      %v6559 = vmul.f32 %v6335, %v6335
      %v6560 = vmul.f32 %v6336, %v6336
      %v6561 = vmul.f32 %v6337, %v6337
      %v6562 = vmul.f32 %v6338, %v6338
      %v6563 = vmul.f32 %v6339, %v6339
      %v6564 = vmul.f32 %v6340, %v6340
      %v6565 = vmul.f32 %v6341, %v6341
      %v6566 = vsel %vm3089, %v6503, 0.0
      %v6567 = vadd.f32 %v6502, %v6566
      %6568 = vadd.xlane.f32.xlu0 %v6567
      %v6569 = vpop.xlane.xlu0 %6568
      %v6570 = vsel %vm3089, %v6505, 0.0
      %v6571 = vadd.f32 %v6504, %v6570
      %6572 = vadd.xlane.f32.xlu0 %v6571
      %v6573 = vpop.xlane.xlu0 %6572
      %v6574 = vsel %vm3089, %v6507, 0.0
      %v6575 = vadd.f32 %v6506, %v6574
      %6576 = vadd.xlane.f32.xlu0 %v6575
      %v6577 = vpop.xlane.xlu0 %6576
      %v6578 = vsel %vm3089, %v6509, 0.0
      %v6579 = vadd.f32 %v6508, %v6578
      %6580 = vadd.xlane.f32.xlu0 %v6579
      %v6581 = vpop.xlane.xlu0 %6580
      %v6582 = vsel %vm3089, %v6511, 0.0
      %v6583 = vadd.f32 %v6510, %v6582
      %6584 = vadd.xlane.f32.xlu0 %v6583
      %v6585 = vpop.xlane.xlu0 %6584
      %v6586 = vsel %vm3089, %v6513, 0.0
      %v6587 = vadd.f32 %v6512, %v6586
      %6588 = vadd.xlane.f32.xlu0 %v6587
      %v6589 = vpop.xlane.xlu0 %6588
      %v6590 = vsel %vm3089, %v6515, 0.0
      %v6591 = vadd.f32 %v6514, %v6590
      %6592 = vadd.xlane.f32.xlu0 %v6591
      %v6593 = vpop.xlane.xlu0 %6592
      %v6594 = vsel %vm3089, %v6517, 0.0
      %v6595 = vadd.f32 %v6516, %v6594
      %6596 = vadd.xlane.f32.xlu0 %v6595
      %v6597 = vpop.xlane.xlu0 %6596
      %v6598 = vsel %vm3089, %v6519, 0.0
      %v6599 = vadd.f32 %v6518, %v6598
      %6600 = vadd.xlane.f32.xlu0 %v6599
      %v6601 = vpop.xlane.xlu0 %6600
      %v6602 = vsel %vm3089, %v6521, 0.0
      %v6603 = vadd.f32 %v6520, %v6602
      %6604 = vadd.xlane.f32.xlu0 %v6603
      %v6605 = vpop.xlane.xlu0 %6604
      %v6606 = vsel %vm3089, %v6523, 0.0
      %v6607 = vadd.f32 %v6522, %v6606
      %6608 = vadd.xlane.f32.xlu0 %v6607
      %v6609 = vpop.xlane.xlu0 %6608
      %v6610 = vsel %vm3089, %v6525, 0.0
      %v6611 = vadd.f32 %v6524, %v6610
      %6612 = vadd.xlane.f32.xlu0 %v6611
      %v6613 = vpop.xlane.xlu0 %6612
      %v6614 = vsel %vm3089, %v6527, 0.0
      %v6615 = vadd.f32 %v6526, %v6614
      %6616 = vadd.xlane.f32.xlu0 %v6615
      %v6617 = vpop.xlane.xlu0 %6616
      %v6618 = vsel %vm3089, %v6529, 0.0
      %v6619 = vadd.f32 %v6528, %v6618
      %6620 = vadd.xlane.f32.xlu0 %v6619
      %v6621 = vpop.xlane.xlu0 %6620
      %v6622 = vsel %vm3089, %v6531, 0.0
      %v6623 = vadd.f32 %v6530, %v6622
      %6624 = vadd.xlane.f32.xlu0 %v6623
      %v6625 = vpop.xlane.xlu0 %6624
      %v6626 = vsel %vm3089, %v6533, 0.0
      %v6627 = vadd.f32 %v6532, %v6626
      %6628 = vadd.xlane.f32.xlu0 %v6627
      %v6629 = vpop.xlane.xlu0 %6628
      %v6630 = vsel %vm3089, %v6535, 0.0
      %v6631 = vadd.f32 %v6534, %v6630
      %6632 = vadd.xlane.f32.xlu0 %v6631
      %v6633 = vpop.xlane.xlu0 %6632
      %v6634 = vsel %vm3089, %v6537, 0.0
      %v6635 = vadd.f32 %v6536, %v6634
      %6636 = vadd.xlane.f32.xlu0 %v6635
      %v6637 = vpop.xlane.xlu0 %6636
      %v6638 = vsel %vm3089, %v6539, 0.0
      %v6639 = vadd.f32 %v6538, %v6638
      %6640 = vadd.xlane.f32.xlu0 %v6639
      %v6641 = vpop.xlane.xlu0 %6640
      %v6642 = vsel %vm3089, %v6541, 0.0
      %v6643 = vadd.f32 %v6540, %v6642
      %6644 = vadd.xlane.f32.xlu0 %v6643
      %v6645 = vpop.xlane.xlu0 %6644
      %v6646 = vsel %vm3089, %v6543, 0.0
      %v6647 = vadd.f32 %v6542, %v6646
      %6648 = vadd.xlane.f32.xlu0 %v6647
      %v6649 = vpop.xlane.xlu0 %6648
      %v6650 = vsel %vm3089, %v6545, 0.0
      %v6651 = vadd.f32 %v6544, %v6650
      %6652 = vadd.xlane.f32.xlu0 %v6651
      %v6653 = vpop.xlane.xlu0 %6652
      %v6654 = vsel %vm3089, %v6547, 0.0
      %v6655 = vadd.f32 %v6546, %v6654
      %6656 = vadd.xlane.f32.xlu0 %v6655
      %v6657 = vpop.xlane.xlu0 %6656
      %v6658 = vsel %vm3089, %v6549, 0.0
      %v6659 = vadd.f32 %v6548, %v6658
      %6660 = vadd.xlane.f32.xlu0 %v6659
      %v6661 = vpop.xlane.xlu0 %6660
      %v6662 = vsel %vm3089, %v6551, 0.0
      %v6663 = vadd.f32 %v6550, %v6662
      %6664 = vadd.xlane.f32.xlu0 %v6663
      %v6665 = vpop.xlane.xlu0 %6664
      %v6666 = vsel %vm3089, %v6553, 0.0
      %v6667 = vadd.f32 %v6552, %v6666
      %6668 = vadd.xlane.f32.xlu0 %v6667
      %v6669 = vpop.xlane.xlu0 %6668
      %v6670 = vsel %vm3089, %v6555, 0.0
      %v6671 = vadd.f32 %v6554, %v6670
      %6672 = vadd.xlane.f32.xlu0 %v6671
      %v6673 = vpop.xlane.xlu0 %6672
      %v6674 = vsel %vm3089, %v6557, 0.0
      %v6675 = vadd.f32 %v6556, %v6674
      %6676 = vadd.xlane.f32.xlu0 %v6675
      %v6677 = vpop.xlane.xlu0 %6676
      %v6678 = vsel %vm3089, %v6559, 0.0
      %v6679 = vadd.f32 %v6558, %v6678
      %6680 = vadd.xlane.f32.xlu0 %v6679
      %v6681 = vpop.xlane.xlu0 %6680
      %v6682 = vsel %vm3089, %v6561, 0.0
      %v6683 = vadd.f32 %v6560, %v6682
      %6684 = vadd.xlane.f32.xlu0 %v6683
      %v6685 = vpop.xlane.xlu0 %6684
      %v6686 = vsel %vm3089, %v6563, 0.0
      %v6687 = vadd.f32 %v6562, %v6686
      %6688 = vadd.xlane.f32.xlu0 %v6687
      %v6689 = vpop.xlane.xlu0 %6688
      %v6690 = vsel %vm3089, %v6565, 0.0
      %v6691 = vadd.f32 %v6564, %v6690
      %6692 = vadd.xlane.f32.xlu0 %v6691
      %v6693 = vpop.xlane.xlu0 %6692
      %v6694 = vmul.f32 %v6569, %v3224
      %v6695 = vmul.f32 %v6573, %v3224
      %v6696 = vmul.f32 %v6577, %v3224
      %v6697 = vmul.f32 %v6581, %v3224
      %v6698 = vmul.f32 %v6585, %v3224
      %v6699 = vmul.f32 %v6589, %v3224
      %v6700 = vmul.f32 %v6593, %v3224
      %v6701 = vmul.f32 %v6597, %v3224
      %v6702 = vmul.f32 %v6601, %v3224
      %v6703 = vmul.f32 %v6605, %v3224
      %v6704 = vmul.f32 %v6609, %v3224
      %v6705 = vmul.f32 %v6613, %v3224
      %v6706 = vmul.f32 %v6617, %v3224
      %v6707 = vmul.f32 %v6621, %v3224
      %v6708 = vmul.f32 %v6625, %v3224
      %v6709 = vmul.f32 %v6629, %v3224
      %v6710 = vmul.f32 %v6633, %v3224
      %v6711 = vmul.f32 %v6637, %v3224
      %v6712 = vmul.f32 %v6641, %v3224
      %v6713 = vmul.f32 %v6645, %v3224
      %v6714 = vmul.f32 %v6649, %v3224
      %v6715 = vmul.f32 %v6653, %v3224
      %v6716 = vmul.f32 %v6657, %v3224
      %v6717 = vmul.f32 %v6661, %v3224
      %v6718 = vmul.f32 %v6665, %v3224
      %v6719 = vmul.f32 %v6669, %v3224
      %v6720 = vmul.f32 %v6673, %v3224
      %v6721 = vmul.f32 %v6677, %v3224
      %v6722 = vmul.f32 %v6681, %v3224
      %v6723 = vmul.f32 %v6685, %v3224
      %v6724 = vmul.f32 %v6689, %v3224
      %v6725 = vmul.f32 %v6693, %v3224
      %v6726 = vmul.f32 %v6470, %v6470
      %v6727 = vmul.f32 %v6471, %v6471
      %v6728 = vmul.f32 %v6472, %v6472
      %v6729 = vmul.f32 %v6473, %v6473
      %v6730 = vmul.f32 %v6474, %v6474
      %v6731 = vmul.f32 %v6475, %v6475
      %v6732 = vmul.f32 %v6476, %v6476
      %v6733 = vmul.f32 %v6477, %v6477
      %v6734 = vmul.f32 %v6478, %v6478
      %v6735 = vmul.f32 %v6479, %v6479
      %v6736 = vmul.f32 %v6480, %v6480
      %v6737 = vmul.f32 %v6481, %v6481
      %v6738 = vmul.f32 %v6482, %v6482
      %v6739 = vmul.f32 %v6483, %v6483
      %v6740 = vmul.f32 %v6484, %v6484
      %v6741 = vmul.f32 %v6485, %v6485
      %v6742 = vmul.f32 %v6486, %v6486
      %v6743 = vmul.f32 %v6487, %v6487
      %v6744 = vmul.f32 %v6488, %v6488
      %v6745 = vmul.f32 %v6489, %v6489
      %v6746 = vmul.f32 %v6490, %v6490
      %v6747 = vmul.f32 %v6491, %v6491
      %v6748 = vmul.f32 %v6492, %v6492
      %v6749 = vmul.f32 %v6493, %v6493
      %v6750 = vmul.f32 %v6494, %v6494
      %v6751 = vmul.f32 %v6495, %v6495
      %v6752 = vmul.f32 %v6496, %v6496
      %v6753 = vmul.f32 %v6497, %v6497
      %v6754 = vmul.f32 %v6498, %v6498
      %v6755 = vmul.f32 %v6499, %v6499
      %v6756 = vmul.f32 %v6500, %v6500
      %v6757 = vmul.f32 %v6501, %v6501
      %v6758 = vsub.f32 %v6694, %v6726
      %v6759 = vsub.f32 %v6695, %v6727
      %v6760 = vsub.f32 %v6696, %v6728
      %v6761 = vsub.f32 %v6697, %v6729
      %v6762 = vsub.f32 %v6698, %v6730
      %v6763 = vsub.f32 %v6699, %v6731
      %v6764 = vsub.f32 %v6700, %v6732
      %v6765 = vsub.f32 %v6701, %v6733
      %v6766 = vsub.f32 %v6702, %v6734
      %v6767 = vsub.f32 %v6703, %v6735
      %v6768 = vsub.f32 %v6704, %v6736
      %v6769 = vsub.f32 %v6705, %v6737
      %v6770 = vsub.f32 %v6706, %v6738
      %v6771 = vsub.f32 %v6707, %v6739
      %v6772 = vsub.f32 %v6708, %v6740
      %v6773 = vsub.f32 %v6709, %v6741
      %v6774 = vsub.f32 %v6710, %v6742
      %v6775 = vsub.f32 %v6711, %v6743
      %v6776 = vsub.f32 %v6712, %v6744
      %v6777 = vsub.f32 %v6713, %v6745
      %v6778 = vsub.f32 %v6714, %v6746
      %v6779 = vsub.f32 %v6715, %v6747
      %v6780 = vsub.f32 %v6716, %v6748
      %v6781 = vsub.f32 %v6717, %v6749
      %v6782 = vsub.f32 %v6718, %v6750
      %v6783 = vsub.f32 %v6719, %v6751
      %v6784 = vsub.f32 %v6720, %v6752
      %v6785 = vsub.f32 %v6721, %v6753
      %v6786 = vsub.f32 %v6722, %v6754
      %v6787 = vsub.f32 %v6723, %v6755
      %v6788 = vsub.f32 %v6724, %v6756
      %v6789 = vsub.f32 %v6725, %v6757
      %v6790 = vmax.f32 %v6758, 0.0
      %v6791 = vmax.f32 %v6759, 0.0
      %v6792 = vmax.f32 %v6760, 0.0
      %v6793 = vmax.f32 %v6761, 0.0
      %v6794 = vmax.f32 %v6762, 0.0
      %v6795 = vmax.f32 %v6763, 0.0
      %v6796 = vmax.f32 %v6764, 0.0
      %v6797 = vmax.f32 %v6765, 0.0
      %v6798 = vmax.f32 %v6766, 0.0
      %v6799 = vmax.f32 %v6767, 0.0
      %v6800 = vmax.f32 %v6768, 0.0
      %v6801 = vmax.f32 %v6769, 0.0
      %v6802 = vmax.f32 %v6770, 0.0
      %v6803 = vmax.f32 %v6771, 0.0
      %v6804 = vmax.f32 %v6772, 0.0
      %v6805 = vmax.f32 %v6773, 0.0
      %v6806 = vmax.f32 %v6774, 0.0
      %v6807 = vmax.f32 %v6775, 0.0
      %v6808 = vmax.f32 %v6776, 0.0
      %v6809 = vmax.f32 %v6777, 0.0
      %v6810 = vmax.f32 %v6778, 0.0
      %v6811 = vmax.f32 %v6779, 0.0
      %v6812 = vmax.f32 %v6780, 0.0
      %v6813 = vmax.f32 %v6781, 0.0
      %v6814 = vmax.f32 %v6782, 0.0
      %v6815 = vmax.f32 %v6783, 0.0
      %v6816 = vmax.f32 %v6784, 0.0
      %v6817 = vmax.f32 %v6785, 0.0
      %v6818 = vmax.f32 %v6786, 0.0
      %v6819 = vmax.f32 %v6787, 0.0
      %v6820 = vmax.f32 %v6788, 0.0
      %v6821 = vmax.f32 %v6789, 0.0
      %v6822 = vsub.f32 %v6278, %v6470
      %v6823 = vsub.f32 %v6279, %v6470
      %v6824 = vsub.f32 %v6280, %v6471
      %v6825 = vsub.f32 %v6281, %v6471
      %v6826 = vsub.f32 %v6282, %v6472
      %v6827 = vsub.f32 %v6283, %v6472
      %v6828 = vsub.f32 %v6284, %v6473
      %v6829 = vsub.f32 %v6285, %v6473
      %v6830 = vsub.f32 %v6286, %v6474
      %v6831 = vsub.f32 %v6287, %v6474
      %v6832 = vsub.f32 %v6288, %v6475
      %v6833 = vsub.f32 %v6289, %v6475
      %v6834 = vsub.f32 %v6290, %v6476
      %v6835 = vsub.f32 %v6291, %v6476
      %v6836 = vsub.f32 %v6292, %v6477
      %v6837 = vsub.f32 %v6293, %v6477
      %v6838 = vsub.f32 %v6294, %v6478
      %v6839 = vsub.f32 %v6295, %v6478
      %v6840 = vsub.f32 %v6296, %v6479
      %v6841 = vsub.f32 %v6297, %v6479
      %v6842 = vsub.f32 %v6298, %v6480
      %v6843 = vsub.f32 %v6299, %v6480
      %v6844 = vsub.f32 %v6300, %v6481
      %v6845 = vsub.f32 %v6301, %v6481
      %v6846 = vsub.f32 %v6302, %v6482
      %v6847 = vsub.f32 %v6303, %v6482
      %v6848 = vsub.f32 %v6304, %v6483
      %v6849 = vsub.f32 %v6305, %v6483
      %v6850 = vsub.f32 %v6306, %v6484
      %v6851 = vsub.f32 %v6307, %v6484
      %v6852 = vsub.f32 %v6308, %v6485
      %v6853 = vsub.f32 %v6309, %v6485
      %v6854 = vsub.f32 %v6310, %v6486
      %v6855 = vsub.f32 %v6311, %v6486
      %v6856 = vsub.f32 %v6312, %v6487
      %v6857 = vsub.f32 %v6313, %v6487
      %v6858 = vsub.f32 %v6314, %v6488
      %v6859 = vsub.f32 %v6315, %v6488
      %v6860 = vsub.f32 %v6316, %v6489
      %v6861 = vsub.f32 %v6317, %v6489
      %v6862 = vsub.f32 %v6318, %v6490
      %v6863 = vsub.f32 %v6319, %v6490
      %v6864 = vsub.f32 %v6320, %v6491
      %v6865 = vsub.f32 %v6321, %v6491
      %v6866 = vsub.f32 %v6322, %v6492
      %v6867 = vsub.f32 %v6323, %v6492
      %v6868 = vsub.f32 %v6324, %v6493
      %v6869 = vsub.f32 %v6325, %v6493
      %v6870 = vsub.f32 %v6326, %v6494
      %v6871 = vsub.f32 %v6327, %v6494
      %v6872 = vsub.f32 %v6328, %v6495
      %v6873 = vsub.f32 %v6329, %v6495
      %v6874 = vsub.f32 %v6330, %v6496
      %v6875 = vsub.f32 %v6331, %v6496
      %v6876 = vsub.f32 %v6332, %v6497
      %v6877 = vsub.f32 %v6333, %v6497
      %v6878 = vsub.f32 %v6334, %v6498
      %v6879 = vsub.f32 %v6335, %v6498
      %v6880 = vsub.f32 %v6336, %v6499
      %v6881 = vsub.f32 %v6337, %v6499
      %v6882 = vsub.f32 %v6338, %v6500
      %v6883 = vsub.f32 %v6339, %v6500
      %v6884 = vsub.f32 %v6340, %v6501
      %v6885 = vsub.f32 %v6341, %v6501
      %v6886 = vadd.f32 %v6790, 1e-05
      %v6887 = vadd.f32 %v6791, 1e-05
      %v6888 = vadd.f32 %v6792, 1e-05
      %v6889 = vadd.f32 %v6793, 1e-05
      %v6890 = vadd.f32 %v6794, 1e-05
      %v6891 = vadd.f32 %v6795, 1e-05
      %v6892 = vadd.f32 %v6796, 1e-05
      %v6893 = vadd.f32 %v6797, 1e-05
      %v6894 = vadd.f32 %v6798, 1e-05
      %v6895 = vadd.f32 %v6799, 1e-05
      %v6896 = vadd.f32 %v6800, 1e-05
      %v6897 = vadd.f32 %v6801, 1e-05
      %v6898 = vadd.f32 %v6802, 1e-05
      %v6899 = vadd.f32 %v6803, 1e-05
      %v6900 = vadd.f32 %v6804, 1e-05
      %v6901 = vadd.f32 %v6805, 1e-05
      %v6902 = vadd.f32 %v6806, 1e-05
      %v6903 = vadd.f32 %v6807, 1e-05
      %v6904 = vadd.f32 %v6808, 1e-05
      %v6905 = vadd.f32 %v6809, 1e-05
      %v6906 = vadd.f32 %v6810, 1e-05
      %v6907 = vadd.f32 %v6811, 1e-05
      %v6908 = vadd.f32 %v6812, 1e-05
      %v6909 = vadd.f32 %v6813, 1e-05
      %v6910 = vadd.f32 %v6814, 1e-05
      %v6911 = vadd.f32 %v6815, 1e-05
      %v6912 = vadd.f32 %v6816, 1e-05
      %v6913 = vadd.f32 %v6817, 1e-05
      %v6914 = vadd.f32 %v6818, 1e-05
      %v6915 = vadd.f32 %v6819, 1e-05
      %v6916 = vadd.f32 %v6820, 1e-05
      %v6917 = vadd.f32 %v6821, 1e-05
      %v6918 = vrsqrt.pop %v6886
      %v6919 = vmul.f32 %v6918, %v6886
      %v6920 = vmul.f32 %v6919, %v6918
      %v6921 = vmul.f32 0.5, %v6920
      %v6922 = vsub.f32 1.5, %v6921
      %v6923 = vmul.f32 %v6918, %v6922
      %vm6924 = vweird.f32 %v6886
      %vm6925 = vweird.f32 %v6918
      %vm6926 = vmor %vm6924, %vm6925
      %v6927 = vsel %vm6926, %v6918, %v6923
      %v6928 = vrsqrt.pop %v6887
      %v6929 = vmul.f32 %v6928, %v6887
      %v6930 = vmul.f32 %v6929, %v6928
      %v6931 = vmul.f32 0.5, %v6930
      %v6932 = vsub.f32 1.5, %v6931
      %v6933 = vmul.f32 %v6928, %v6932
      %vm6934 = vweird.f32 %v6887
      %vm6935 = vweird.f32 %v6928
      %vm6936 = vmor %vm6934, %vm6935
      %v6937 = vsel %vm6936, %v6928, %v6933
      %v6938 = vrsqrt.pop %v6888
      %v6939 = vmul.f32 %v6938, %v6888
      %v6940 = vmul.f32 %v6939, %v6938
      %v6941 = vmul.f32 0.5, %v6940
      %v6942 = vsub.f32 1.5, %v6941
      %v6943 = vmul.f32 %v6938, %v6942
      %vm6944 = vweird.f32 %v6888
      %vm6945 = vweird.f32 %v6938
      %vm6946 = vmor %vm6944, %vm6945
      %v6947 = vsel %vm6946, %v6938, %v6943
      %v6948 = vrsqrt.pop %v6889
      %v6949 = vmul.f32 %v6948, %v6889
      %v6950 = vmul.f32 %v6949, %v6948
      %v6951 = vmul.f32 0.5, %v6950
      %v6952 = vsub.f32 1.5, %v6951
      %v6953 = vmul.f32 %v6948, %v6952
      %vm6954 = vweird.f32 %v6889
      %vm6955 = vweird.f32 %v6948
      %vm6956 = vmor %vm6954, %vm6955
      %v6957 = vsel %vm6956, %v6948, %v6953
      %v6958 = vrsqrt.pop %v6890
      %v6959 = vmul.f32 %v6958, %v6890
      %v6960 = vmul.f32 %v6959, %v6958
      %v6961 = vmul.f32 0.5, %v6960
      %v6962 = vsub.f32 1.5, %v6961
      %v6963 = vmul.f32 %v6958, %v6962
      %vm6964 = vweird.f32 %v6890
      %vm6965 = vweird.f32 %v6958
      %vm6966 = vmor %vm6964, %vm6965
      %v6967 = vsel %vm6966, %v6958, %v6963
      %v6968 = vrsqrt.pop %v6891
      %v6969 = vmul.f32 %v6968, %v6891
      %v6970 = vmul.f32 %v6969, %v6968
      %v6971 = vmul.f32 0.5, %v6970
      %v6972 = vsub.f32 1.5, %v6971
      %v6973 = vmul.f32 %v6968, %v6972
      %vm6974 = vweird.f32 %v6891
      %vm6975 = vweird.f32 %v6968
      %vm6976 = vmor %vm6974, %vm6975
      %v6977 = vsel %vm6976, %v6968, %v6973
      %v6978 = vrsqrt.pop %v6892
      %v6979 = vmul.f32 %v6978, %v6892
      %v6980 = vmul.f32 %v6979, %v6978
      %v6981 = vmul.f32 0.5, %v6980
      %v6982 = vsub.f32 1.5, %v6981
      %v6983 = vmul.f32 %v6978, %v6982
      %vm6984 = vweird.f32 %v6892
      %vm6985 = vweird.f32 %v6978
      %vm6986 = vmor %vm6984, %vm6985
      %v6987 = vsel %vm6986, %v6978, %v6983
      %v6988 = vrsqrt.pop %v6893
      %v6989 = vmul.f32 %v6988, %v6893
      %v6990 = vmul.f32 %v6989, %v6988
      %v6991 = vmul.f32 0.5, %v6990
      %v6992 = vsub.f32 1.5, %v6991
      %v6993 = vmul.f32 %v6988, %v6992
      %vm6994 = vweird.f32 %v6893
      %vm6995 = vweird.f32 %v6988
      %vm6996 = vmor %vm6994, %vm6995
      %v6997 = vsel %vm6996, %v6988, %v6993
      %v6998 = vrsqrt.pop %v6894
      %v6999 = vmul.f32 %v6998, %v6894
      %v7000 = vmul.f32 %v6999, %v6998
      %v7001 = vmul.f32 0.5, %v7000
      %v7002 = vsub.f32 1.5, %v7001
      %v7003 = vmul.f32 %v6998, %v7002
      %vm7004 = vweird.f32 %v6894
      %vm7005 = vweird.f32 %v6998
      %vm7006 = vmor %vm7004, %vm7005
      %v7007 = vsel %vm7006, %v6998, %v7003
      %v7008 = vrsqrt.pop %v6895
      %v7009 = vmul.f32 %v7008, %v6895
      %v7010 = vmul.f32 %v7009, %v7008
      %v7011 = vmul.f32 0.5, %v7010
      %v7012 = vsub.f32 1.5, %v7011
      %v7013 = vmul.f32 %v7008, %v7012
      %vm7014 = vweird.f32 %v6895
      %vm7015 = vweird.f32 %v7008
      %vm7016 = vmor %vm7014, %vm7015
      %v7017 = vsel %vm7016, %v7008, %v7013
      %v7018 = vrsqrt.pop %v6896
      %v7019 = vmul.f32 %v7018, %v6896
      %v7020 = vmul.f32 %v7019, %v7018
      %v7021 = vmul.f32 0.5, %v7020
      %v7022 = vsub.f32 1.5, %v7021
      %v7023 = vmul.f32 %v7018, %v7022
      %vm7024 = vweird.f32 %v6896
      %vm7025 = vweird.f32 %v7018
      %vm7026 = vmor %vm7024, %vm7025
      %v7027 = vsel %vm7026, %v7018, %v7023
      %v7028 = vrsqrt.pop %v6897
      %v7029 = vmul.f32 %v7028, %v6897
      %v7030 = vmul.f32 %v7029, %v7028
      %v7031 = vmul.f32 0.5, %v7030
      %v7032 = vsub.f32 1.5, %v7031
      %v7033 = vmul.f32 %v7028, %v7032
      %vm7034 = vweird.f32 %v6897
      %vm7035 = vweird.f32 %v7028
      %vm7036 = vmor %vm7034, %vm7035
      %v7037 = vsel %vm7036, %v7028, %v7033
      %v7038 = vrsqrt.pop %v6898
      %v7039 = vmul.f32 %v7038, %v6898
      %v7040 = vmul.f32 %v7039, %v7038
      %v7041 = vmul.f32 0.5, %v7040
      %v7042 = vsub.f32 1.5, %v7041
      %v7043 = vmul.f32 %v7038, %v7042
      %vm7044 = vweird.f32 %v6898
      %vm7045 = vweird.f32 %v7038
      %vm7046 = vmor %vm7044, %vm7045
      %v7047 = vsel %vm7046, %v7038, %v7043
      %v7048 = vrsqrt.pop %v6899
      %v7049 = vmul.f32 %v7048, %v6899
      %v7050 = vmul.f32 %v7049, %v7048
      %v7051 = vmul.f32 0.5, %v7050
      %v7052 = vsub.f32 1.5, %v7051
      %v7053 = vmul.f32 %v7048, %v7052
      %vm7054 = vweird.f32 %v6899
      %vm7055 = vweird.f32 %v7048
      %vm7056 = vmor %vm7054, %vm7055
      %v7057 = vsel %vm7056, %v7048, %v7053
      %v7058 = vrsqrt.pop %v6900
      %v7059 = vmul.f32 %v7058, %v6900
      %v7060 = vmul.f32 %v7059, %v7058
      %v7061 = vmul.f32 0.5, %v7060
      %v7062 = vsub.f32 1.5, %v7061
      %v7063 = vmul.f32 %v7058, %v7062
      %vm7064 = vweird.f32 %v6900
      %vm7065 = vweird.f32 %v7058
      %vm7066 = vmor %vm7064, %vm7065
      %v7067 = vsel %vm7066, %v7058, %v7063
      %v7068 = vrsqrt.pop %v6901
      %v7069 = vmul.f32 %v7068, %v6901
      %v7070 = vmul.f32 %v7069, %v7068
      %v7071 = vmul.f32 0.5, %v7070
      %v7072 = vsub.f32 1.5, %v7071
      %v7073 = vmul.f32 %v7068, %v7072
      %vm7074 = vweird.f32 %v6901
      %vm7075 = vweird.f32 %v7068
      %vm7076 = vmor %vm7074, %vm7075
      %v7077 = vsel %vm7076, %v7068, %v7073
      %v7078 = vrsqrt.pop %v6902
      %v7079 = vmul.f32 %v7078, %v6902
      %v7080 = vmul.f32 %v7079, %v7078
      %v7081 = vmul.f32 0.5, %v7080
      %v7082 = vsub.f32 1.5, %v7081
      %v7083 = vmul.f32 %v7078, %v7082
      %vm7084 = vweird.f32 %v6902
      %vm7085 = vweird.f32 %v7078
      %vm7086 = vmor %vm7084, %vm7085
      %v7087 = vsel %vm7086, %v7078, %v7083
      %v7088 = vrsqrt.pop %v6903
      %v7089 = vmul.f32 %v7088, %v6903
      %v7090 = vmul.f32 %v7089, %v7088
      %v7091 = vmul.f32 0.5, %v7090
      %v7092 = vsub.f32 1.5, %v7091
      %v7093 = vmul.f32 %v7088, %v7092
      %vm7094 = vweird.f32 %v6903
      %vm7095 = vweird.f32 %v7088
      %vm7096 = vmor %vm7094, %vm7095
      %v7097 = vsel %vm7096, %v7088, %v7093
      %v7098 = vrsqrt.pop %v6904
      %v7099 = vmul.f32 %v7098, %v6904
      %v7100 = vmul.f32 %v7099, %v7098
      %v7101 = vmul.f32 0.5, %v7100
      %v7102 = vsub.f32 1.5, %v7101
      %v7103 = vmul.f32 %v7098, %v7102
      %vm7104 = vweird.f32 %v6904
      %vm7105 = vweird.f32 %v7098
      %vm7106 = vmor %vm7104, %vm7105
      %v7107 = vsel %vm7106, %v7098, %v7103
      %v7108 = vrsqrt.pop %v6905
      %v7109 = vmul.f32 %v7108, %v6905
      %v7110 = vmul.f32 %v7109, %v7108
      %v7111 = vmul.f32 0.5, %v7110
      %v7112 = vsub.f32 1.5, %v7111
      %v7113 = vmul.f32 %v7108, %v7112
      %vm7114 = vweird.f32 %v6905
      %vm7115 = vweird.f32 %v7108
      %vm7116 = vmor %vm7114, %vm7115
      %v7117 = vsel %vm7116, %v7108, %v7113
      %v7118 = vrsqrt.pop %v6906
      %v7119 = vmul.f32 %v7118, %v6906
      %v7120 = vmul.f32 %v7119, %v7118
      %v7121 = vmul.f32 0.5, %v7120
      %v7122 = vsub.f32 1.5, %v7121
      %v7123 = vmul.f32 %v7118, %v7122
      %vm7124 = vweird.f32 %v6906
      %vm7125 = vweird.f32 %v7118
      %vm7126 = vmor %vm7124, %vm7125
      %v7127 = vsel %vm7126, %v7118, %v7123
      %v7128 = vrsqrt.pop %v6907
      %v7129 = vmul.f32 %v7128, %v6907
      %v7130 = vmul.f32 %v7129, %v7128
      %v7131 = vmul.f32 0.5, %v7130
      %v7132 = vsub.f32 1.5, %v7131
      %v7133 = vmul.f32 %v7128, %v7132
      %vm7134 = vweird.f32 %v6907
      %vm7135 = vweird.f32 %v7128
      %vm7136 = vmor %vm7134, %vm7135
      %v7137 = vsel %vm7136, %v7128, %v7133
      %v7138 = vrsqrt.pop %v6908
      %v7139 = vmul.f32 %v7138, %v6908
      %v7140 = vmul.f32 %v7139, %v7138
      %v7141 = vmul.f32 0.5, %v7140
      %v7142 = vsub.f32 1.5, %v7141
      %v7143 = vmul.f32 %v7138, %v7142
      %vm7144 = vweird.f32 %v6908
      %vm7145 = vweird.f32 %v7138
      %vm7146 = vmor %vm7144, %vm7145
      %v7147 = vsel %vm7146, %v7138, %v7143
      %v7148 = vrsqrt.pop %v6909
      %v7149 = vmul.f32 %v7148, %v6909
      %v7150 = vmul.f32 %v7149, %v7148
      %v7151 = vmul.f32 0.5, %v7150
      %v7152 = vsub.f32 1.5, %v7151
      %v7153 = vmul.f32 %v7148, %v7152
      %vm7154 = vweird.f32 %v6909
      %vm7155 = vweird.f32 %v7148
      %vm7156 = vmor %vm7154, %vm7155
      %v7157 = vsel %vm7156, %v7148, %v7153
      %v7158 = vrsqrt.pop %v6910
      %v7159 = vmul.f32 %v7158, %v6910
      %v7160 = vmul.f32 %v7159, %v7158
      %v7161 = vmul.f32 0.5, %v7160
      %v7162 = vsub.f32 1.5, %v7161
      %v7163 = vmul.f32 %v7158, %v7162
      %vm7164 = vweird.f32 %v6910
      %vm7165 = vweird.f32 %v7158
      %vm7166 = vmor %vm7164, %vm7165
      %v7167 = vsel %vm7166, %v7158, %v7163
      %v7168 = vrsqrt.pop %v6911
      %v7169 = vmul.f32 %v7168, %v6911
      %v7170 = vmul.f32 %v7169, %v7168
      %v7171 = vmul.f32 0.5, %v7170
      %v7172 = vsub.f32 1.5, %v7171
      %v7173 = vmul.f32 %v7168, %v7172
      %vm7174 = vweird.f32 %v6911
      %vm7175 = vweird.f32 %v7168
      %vm7176 = vmor %vm7174, %vm7175
      %v7177 = vsel %vm7176, %v7168, %v7173
      %v7178 = vrsqrt.pop %v6912
      %v7179 = vmul.f32 %v7178, %v6912
      %v7180 = vmul.f32 %v7179, %v7178
      %v7181 = vmul.f32 0.5, %v7180
      %v7182 = vsub.f32 1.5, %v7181
      %v7183 = vmul.f32 %v7178, %v7182
      %vm7184 = vweird.f32 %v6912
      %vm7185 = vweird.f32 %v7178
      %vm7186 = vmor %vm7184, %vm7185
      %v7187 = vsel %vm7186, %v7178, %v7183
      %v7188 = vrsqrt.pop %v6913
      %v7189 = vmul.f32 %v7188, %v6913
      %v7190 = vmul.f32 %v7189, %v7188
      %v7191 = vmul.f32 0.5, %v7190
      %v7192 = vsub.f32 1.5, %v7191
      %v7193 = vmul.f32 %v7188, %v7192
      %vm7194 = vweird.f32 %v6913
      %vm7195 = vweird.f32 %v7188
      %vm7196 = vmor %vm7194, %vm7195
      %v7197 = vsel %vm7196, %v7188, %v7193
      %v7198 = vrsqrt.pop %v6914
      %v7199 = vmul.f32 %v7198, %v6914
      %v7200 = vmul.f32 %v7199, %v7198
      %v7201 = vmul.f32 0.5, %v7200
      %v7202 = vsub.f32 1.5, %v7201
      %v7203 = vmul.f32 %v7198, %v7202
      %vm7204 = vweird.f32 %v6914
      %vm7205 = vweird.f32 %v7198
      %vm7206 = vmor %vm7204, %vm7205
      %v7207 = vsel %vm7206, %v7198, %v7203
      %v7208 = vrsqrt.pop %v6915
      %v7209 = vmul.f32 %v7208, %v6915
      %v7210 = vmul.f32 %v7209, %v7208
      %v7211 = vmul.f32 0.5, %v7210
      %v7212 = vsub.f32 1.5, %v7211
      %v7213 = vmul.f32 %v7208, %v7212
      %vm7214 = vweird.f32 %v6915
      %vm7215 = vweird.f32 %v7208
      %vm7216 = vmor %vm7214, %vm7215
      %v7217 = vsel %vm7216, %v7208, %v7213
      %v7218 = vrsqrt.pop %v6916
      %v7219 = vmul.f32 %v7218, %v6916
      %v7220 = vmul.f32 %v7219, %v7218
      %v7221 = vmul.f32 0.5, %v7220
      %v7222 = vsub.f32 1.5, %v7221
      %v7223 = vmul.f32 %v7218, %v7222
      %vm7224 = vweird.f32 %v6916
      %vm7225 = vweird.f32 %v7218
      %vm7226 = vmor %vm7224, %vm7225
      %v7227 = vsel %vm7226, %v7218, %v7223
      %v7228 = vrsqrt.pop %v6917
      %v7229 = vmul.f32 %v7228, %v6917
      %v7230 = vmul.f32 %v7229, %v7228
      %v7231 = vmul.f32 0.5, %v7230
      %v7232 = vsub.f32 1.5, %v7231
      %v7233 = vmul.f32 %v7228, %v7232
      %vm7234 = vweird.f32 %v6917
      %vm7235 = vweird.f32 %v7228
      %vm7236 = vmor %vm7234, %vm7235
      %v7237 = vsel %vm7236, %v7228, %v7233
      %v7238 = vmul.f32 %v6822, %v6927
      %v7239 = vmul.f32 %v6823, %v6927
      %v7240 = vmul.f32 %v6824, %v6937
      %v7241 = vmul.f32 %v6825, %v6937
      %v7242 = vmul.f32 %v6826, %v6947
      %v7243 = vmul.f32 %v6827, %v6947
      %v7244 = vmul.f32 %v6828, %v6957
      %v7245 = vmul.f32 %v6829, %v6957
      %v7246 = vmul.f32 %v6830, %v6967
      %v7247 = vmul.f32 %v6831, %v6967
      %v7248 = vmul.f32 %v6832, %v6977
      %v7249 = vmul.f32 %v6833, %v6977
      %v7250 = vmul.f32 %v6834, %v6987
      %v7251 = vmul.f32 %v6835, %v6987
      %v7252 = vmul.f32 %v6836, %v6997
      %v7253 = vmul.f32 %v6837, %v6997
      %v7254 = vmul.f32 %v6838, %v7007
      %v7255 = vmul.f32 %v6839, %v7007
      %v7256 = vmul.f32 %v6840, %v7017
      %v7257 = vmul.f32 %v6841, %v7017
      %v7258 = vmul.f32 %v6842, %v7027
      %v7259 = vmul.f32 %v6843, %v7027
      %v7260 = vmul.f32 %v6844, %v7037
      %v7261 = vmul.f32 %v6845, %v7037
      %v7262 = vmul.f32 %v6846, %v7047
      %v7263 = vmul.f32 %v6847, %v7047
      %v7264 = vmul.f32 %v6848, %v7057
      %v7265 = vmul.f32 %v6849, %v7057
      %v7266 = vmul.f32 %v6850, %v7067
      %v7267 = vmul.f32 %v6851, %v7067
      %v7268 = vmul.f32 %v6852, %v7077
      %v7269 = vmul.f32 %v6853, %v7077
      %v7270 = vmul.f32 %v6854, %v7087
      %v7271 = vmul.f32 %v6855, %v7087
      %v7272 = vmul.f32 %v6856, %v7097
      %v7273 = vmul.f32 %v6857, %v7097
      %v7274 = vmul.f32 %v6858, %v7107
      %v7275 = vmul.f32 %v6859, %v7107
      %v7276 = vmul.f32 %v6860, %v7117
      %v7277 = vmul.f32 %v6861, %v7117
      %v7278 = vmul.f32 %v6862, %v7127
      %v7279 = vmul.f32 %v6863, %v7127
      %v7280 = vmul.f32 %v6864, %v7137
      %v7281 = vmul.f32 %v6865, %v7137
      %v7282 = vmul.f32 %v6866, %v7147
      %v7283 = vmul.f32 %v6867, %v7147
      %v7284 = vmul.f32 %v6868, %v7157
      %v7285 = vmul.f32 %v6869, %v7157
      %v7286 = vmul.f32 %v6870, %v7167
      %v7287 = vmul.f32 %v6871, %v7167
      %v7288 = vmul.f32 %v6872, %v7177
      %v7289 = vmul.f32 %v6873, %v7177
      %v7290 = vmul.f32 %v6874, %v7187
      %v7291 = vmul.f32 %v6875, %v7187
      %v7292 = vmul.f32 %v6876, %v7197
      %v7293 = vmul.f32 %v6877, %v7197
      %v7294 = vmul.f32 %v6878, %v7207
      %v7295 = vmul.f32 %v6879, %v7207
      %v7296 = vmul.f32 %v6880, %v7217
      %v7297 = vmul.f32 %v6881, %v7217
      %v7298 = vmul.f32 %v6882, %v7227
      %v7299 = vmul.f32 %v6883, %v7227
      %v7300 = vmul.f32 %v6884, %v7237
      %v7301 = vmul.f32 %v6885, %v7237
      %v7302 = vpack.c.bf16 %v7240, %v7238
      %v7303 = vpack.c.bf16 %v7241, %v7239
      %v7304 = vpack.c.bf16 %v7244, %v7242
      %v7305 = vpack.c.bf16 %v7245, %v7243
      %v7306 = vpack.c.bf16 %v7248, %v7246
      %v7307 = vpack.c.bf16 %v7249, %v7247
      %v7308 = vpack.c.bf16 %v7252, %v7250
      %v7309 = vpack.c.bf16 %v7253, %v7251
      %v7310 = vpack.c.bf16 %v7256, %v7254
      %v7311 = vpack.c.bf16 %v7257, %v7255
      %v7312 = vpack.c.bf16 %v7260, %v7258
      %v7313 = vpack.c.bf16 %v7261, %v7259
      %v7314 = vpack.c.bf16 %v7264, %v7262
      %v7315 = vpack.c.bf16 %v7265, %v7263
      %v7316 = vpack.c.bf16 %v7268, %v7266
      %v7317 = vpack.c.bf16 %v7269, %v7267
      %v7318 = vpack.c.bf16 %v7272, %v7270
      %v7319 = vpack.c.bf16 %v7273, %v7271
      %v7320 = vpack.c.bf16 %v7276, %v7274
      %v7321 = vpack.c.bf16 %v7277, %v7275
      %v7322 = vpack.c.bf16 %v7280, %v7278
      %v7323 = vpack.c.bf16 %v7281, %v7279
      %v7324 = vpack.c.bf16 %v7284, %v7282
      %v7325 = vpack.c.bf16 %v7285, %v7283
      %v7326 = vpack.c.bf16 %v7288, %v7286
      %v7327 = vpack.c.bf16 %v7289, %v7287
      %v7328 = vpack.c.bf16 %v7292, %v7290
      %v7329 = vpack.c.bf16 %v7293, %v7291
      %v7330 = vpack.c.bf16 %v7296, %v7294
      %v7331 = vpack.c.bf16 %v7297, %v7295
      %v7332 = vpack.c.bf16 %v7300, %v7298
      %v7333 = vpack.c.bf16 %v7301, %v7299
      %v7334 = vld [vmem:[%s7] sm:$0xff]
      %v7335 = vld [vmem:[%s7 + $0x8] sm:$0xff]
      %v7336 = vld [vmem:[%s7 + $0x10] sm:$0xff]
      %v7337 = vld [vmem:[%s7 + $0x18] sm:$0xff]
      %v7338 = vld [vmem:[%s7 + $0x20] sm:$0xff]
      %v7339 = vld [vmem:[%s7 + $0x28] sm:$0xff]
      %v7340 = vld [vmem:[%s7 + $0x30] sm:$0xff]
      %v7341 = vld [vmem:[%s7 + $0x38] sm:$0xff]
      %v7342 = vld [vmem:[%s7 + $0x40] sm:$0xff]
      %v7343 = vld [vmem:[%s7 + $0x48] sm:$0xff]
      %v7344 = vld [vmem:[%s7 + $0x50] sm:$0xff]
      %v7345 = vld [vmem:[%s7 + $0x58] sm:$0xff]
      %v7346 = vld [vmem:[%s7 + $0x60] sm:$0xff]
      %v7347 = vld [vmem:[%s7 + $0x68] sm:$0xff]
      %v7348 = vld [vmem:[%s7 + $0x70] sm:$0xff]
      %v7349 = vld [vmem:[%s7 + $0x78] sm:$0xff]
      %v7350 = vld [vmem:[%s7 + $0x80] sm:$0xff]
      %v7351 = vld [vmem:[%s7 + $0x88] sm:$0xff]
      %v7352 = vld [vmem:[%s7 + $0x90] sm:$0xff]
      %v7353 = vld [vmem:[%s7 + $0x98] sm:$0xff]
      %v7354 = vld [vmem:[%s7 + $0xa0] sm:$0xff]
      %v7355 = vld [vmem:[%s7 + $0xa8] sm:$0xff]
      %v7356 = vld [vmem:[%s7 + $0xb0] sm:$0xff]
      %v7357 = vld [vmem:[%s7 + $0xb8] sm:$0xff]
      %v7358 = vld [vmem:[%s7 + $0xc0] sm:$0xff]
      %v7359 = vld [vmem:[%s8] sm:$0x3]
      %v7361 = vperm.slane %v7359, 0
      %v7362 = vperm.slane %v7359, 1
      %v7390 = vunpack.c.l.b16 %v7334
      %v7391 = vunpack.c.h.b16 %v7334
      %v7392 = vunpack.c.l.b16 %v7335
      %v7393 = vunpack.c.h.b16 %v7335
      %v7394 = vunpack.c.l.b16 %v7336
      %v7395 = vunpack.c.h.b16 %v7336
      %v7396 = vunpack.c.l.b16 %v7337
      %v7397 = vunpack.c.h.b16 %v7337
      %v7398 = vunpack.c.l.b16 %v7338
      %v7399 = vunpack.c.h.b16 %v7338
      %v7400 = vunpack.c.l.b16 %v7339
      %v7401 = vunpack.c.h.b16 %v7339
      %v7402 = vunpack.c.l.b16 %v7340
      %v7403 = vunpack.c.h.b16 %v7340
      %v7404 = vunpack.c.l.b16 %v7341
      %v7405 = vunpack.c.h.b16 %v7341
      %v7406 = vunpack.c.l.b16 %v7342
      %v7407 = vunpack.c.h.b16 %v7342
      %v7408 = vunpack.c.l.b16 %v7343
      %v7409 = vunpack.c.h.b16 %v7343
      %v7410 = vunpack.c.l.b16 %v7344
      %v7411 = vunpack.c.h.b16 %v7344
      %v7412 = vunpack.c.l.b16 %v7345
      %v7413 = vunpack.c.h.b16 %v7345
      %v7414 = vunpack.c.l.b16 %v7346
      %v7415 = vunpack.c.h.b16 %v7346
      %v7416 = vunpack.c.l.b16 %v7347
      %v7417 = vunpack.c.h.b16 %v7347
      %v7418 = vunpack.c.l.b16 %v7348
      %v7419 = vunpack.c.h.b16 %v7348
      %v7420 = vunpack.c.l.b16 %v7349
      %v7421 = vunpack.c.h.b16 %v7349
      %v7422 = vunpack.c.l.b16 %v7350
      %v7423 = vunpack.c.h.b16 %v7350
      %v7424 = vunpack.c.l.b16 %v7351
      %v7425 = vunpack.c.h.b16 %v7351
      %v7426 = vunpack.c.l.b16 %v7352
      %v7427 = vunpack.c.h.b16 %v7352
      %v7428 = vunpack.c.l.b16 %v7353
      %v7429 = vunpack.c.h.b16 %v7353
      %v7430 = vunpack.c.l.b16 %v7354
      %v7431 = vunpack.c.h.b16 %v7354
      %v7432 = vunpack.c.l.b16 %v7355
      %v7433 = vunpack.c.h.b16 %v7355
      %v7434 = vunpack.c.l.b16 %v7356
      %v7435 = vunpack.c.h.b16 %v7356
      %v7436 = vunpack.c.l.b16 %v7357
      %v7437 = vunpack.c.h.b16 %v7357
      %v7438 = vunpack.c.l.b16 %v7358
      %v7439 = vunpack.c.h.b16 %v7358
      %v7440 = vpack.c.b16 %v7392, %v7390
      %v7441 = vpack.c.b16 %v7393, %v7391
      %v7442 = vpack.c.b16 %v7396, %v7394
      %v7443 = vpack.c.b16 %v7397, %v7395
      %v7444 = vpack.c.b16 %v7400, %v7398
      %v7445 = vpack.c.b16 %v7401, %v7399
      %v7446 = vpack.c.b16 %v7404, %v7402
      %v7447 = vpack.c.b16 %v7405, %v7403
      %v7448 = vpack.c.b16 %v7408, %v7406
      %v7449 = vpack.c.b16 %v7409, %v7407
      %v7450 = vpack.c.b16 %v7412, %v7410
      %v7451 = vpack.c.b16 %v7413, %v7411
      %v7452 = vpack.c.b16 %v7416, %v7414
      %v7453 = vpack.c.b16 %v7417, %v7415
      %v7454 = vpack.c.b16 %v7420, %v7418
      %v7455 = vpack.c.b16 %v7421, %v7419
      %v7456 = vpack.c.b16 %v7424, %v7422
      %v7457 = vpack.c.b16 %v7425, %v7423
      %v7458 = vpack.c.b16 %v7428, %v7426
      %v7459 = vpack.c.b16 %v7429, %v7427
      %v7460 = vpack.c.b16 %v7432, %v7430
      %v7461 = vpack.c.b16 %v7433, %v7431
      %v7462 = vpack.c.b16 %v7436, %v7434
      %v7463 = vpack.c.b16 %v7437, %v7435
      %v7464 = vpack.c.b16 %v7438, %v7438
      %v7465 = vpack.c.b16 %v7439, %v7439
      %v7491 = vsel %vm3089, %v7303, 0
      %v7494 = vsel %vm3089, %v7305, 0
      %v7497 = vsel %vm3089, %v7307, 0
      %v7500 = vsel %vm3089, %v7309, 0
      %v7503 = vsel %vm3089, %v7311, 0
      %v7506 = vsel %vm3089, %v7313, 0
      %v7509 = vsel %vm3089, %v7315, 0
      %v7512 = vsel %vm3089, %v7317, 0
      %v7515 = vsel %vm3089, %v7319, 0
      %v7518 = vsel %vm3089, %v7321, 0
      %v7521 = vsel %vm3089, %v7323, 0
      %v7524 = vsel %vm3089, %v7325, 0
      %v7527 = vsel %vm3089, %v7327, 0
      %v7530 = vsel %vm3089, %v7329, 0
      %v7533 = vsel %vm3089, %v7331, 0
      %v7536 = vsel %vm3089, %v7333, 0
      %v7539 = vsel %vm4293, %v7464, 0
      %v7542 = vsel %vm4293, %v7465, 0
      %7544 = vmatpush.bf16.msra.mxu0 %v7454
      %7545 = vmatpush.bf16.msra.mxu0 %v7452
      %7546 = vmatpush.bf16.msra.mxu0 %v7450
      %7547 = vmatpush.bf16.msra.mxu0 %v7448
      %7548 = vmatpush.bf16.msra.mxu0 %v7446
      %7549 = vmatpush.bf16.msra.mxu0 %v7444
      %7550 = vmatpush.bf16.msra.mxu0 %v7442
      %7551 = vmatpush.bf16.msra.mxu0 %v7440
      %7552 = vmatmul.bf16.gmra.mxu0 %v7302
      %v7553 = vpop.f32.mrf.mxu0
      %v7554 = vadd.f32 %v7361, %v7553
      %v7555 = vpop.f32.mrf.mxu0
      %v7556 = vadd.f32 %v7361, %v7555
      %7557 = vmatmul.bf16.gmra.mxu0 %v7304
      %v7558 = vpop.f32.mrf.mxu0
      %v7559 = vadd.f32 %v7361, %v7558
      %v7560 = vpop.f32.mrf.mxu0
      %v7561 = vadd.f32 %v7361, %v7560
      %7562 = vmatmul.bf16.gmra.mxu0 %v7306
      %v7563 = vpop.f32.mrf.mxu0
      %v7564 = vadd.f32 %v7361, %v7563
      %v7565 = vpop.f32.mrf.mxu0
      %v7566 = vadd.f32 %v7361, %v7565
      %7567 = vmatmul.bf16.gmra.mxu0 %v7308
      %v7568 = vpop.f32.mrf.mxu0
      %v7569 = vadd.f32 %v7361, %v7568
      %v7570 = vpop.f32.mrf.mxu0
      %v7571 = vadd.f32 %v7361, %v7570
      %7572 = vmatmul.bf16.gmra.mxu0 %v7310
      %v7573 = vpop.f32.mrf.mxu0
      %v7574 = vadd.f32 %v7361, %v7573
      %v7575 = vpop.f32.mrf.mxu0
      %v7576 = vadd.f32 %v7361, %v7575
      %7577 = vmatmul.bf16.gmra.mxu0 %v7312
      %v7578 = vpop.f32.mrf.mxu0
      %v7579 = vadd.f32 %v7361, %v7578
      %v7580 = vpop.f32.mrf.mxu0
      %v7581 = vadd.f32 %v7361, %v7580
      %7582 = vmatmul.bf16.gmra.mxu0 %v7314
      %v7583 = vpop.f32.mrf.mxu0
      %v7584 = vadd.f32 %v7361, %v7583
      %v7585 = vpop.f32.mrf.mxu0
      %v7586 = vadd.f32 %v7361, %v7585
      %7587 = vmatmul.bf16.gmra.mxu0 %v7316
      %v7588 = vpop.f32.mrf.mxu0
      %v7589 = vadd.f32 %v7361, %v7588
      %v7590 = vpop.f32.mrf.mxu0
      %v7591 = vadd.f32 %v7361, %v7590
      %7592 = vmatmul.bf16.gmra.mxu0 %v7318
      %v7593 = vpop.f32.mrf.mxu0
      %v7594 = vadd.f32 %v7361, %v7593
      %v7595 = vpop.f32.mrf.mxu0
      %v7596 = vadd.f32 %v7361, %v7595
      %7597 = vmatmul.bf16.gmra.mxu0 %v7320
      %v7598 = vpop.f32.mrf.mxu0
      %v7599 = vadd.f32 %v7361, %v7598
      %v7600 = vpop.f32.mrf.mxu0
      %v7601 = vadd.f32 %v7361, %v7600
      %7602 = vmatmul.bf16.gmra.mxu0 %v7322
      %v7603 = vpop.f32.mrf.mxu0
      %v7604 = vadd.f32 %v7361, %v7603
      %v7605 = vpop.f32.mrf.mxu0
      %v7606 = vadd.f32 %v7361, %v7605
      %7607 = vmatmul.bf16.gmra.mxu0 %v7324
      %v7608 = vpop.f32.mrf.mxu0
      %v7609 = vadd.f32 %v7361, %v7608
      %v7610 = vpop.f32.mrf.mxu0
      %v7611 = vadd.f32 %v7361, %v7610
      %7612 = vmatmul.bf16.gmra.mxu0 %v7326
      %v7613 = vpop.f32.mrf.mxu0
      %v7614 = vadd.f32 %v7361, %v7613
      %v7615 = vpop.f32.mrf.mxu0
      %v7616 = vadd.f32 %v7361, %v7615
      %7617 = vmatmul.bf16.gmra.mxu0 %v7328
      %v7618 = vpop.f32.mrf.mxu0
      %v7619 = vadd.f32 %v7361, %v7618
      %v7620 = vpop.f32.mrf.mxu0
      %v7621 = vadd.f32 %v7361, %v7620
      %7622 = vmatmul.bf16.gmra.mxu0 %v7330
      %v7623 = vpop.f32.mrf.mxu0
      %v7624 = vadd.f32 %v7361, %v7623
      %v7625 = vpop.f32.mrf.mxu0
      %v7626 = vadd.f32 %v7361, %v7625
      %7627 = vmatmul.bf16.gmra.mxu0 %v7332
      %v7628 = vpop.f32.mrf.mxu0
      %v7629 = vadd.f32 %v7361, %v7628
      %v7630 = vpop.f32.mrf.mxu0
      %v7631 = vadd.f32 %v7361, %v7630
      %7632 = vdwg.mxu0
      %7633 = vmatpush.bf16.msra.mxu0 0
      %7634 = vmatpush.bf16.msra.mxu0 0
      %7635 = vmatpush.bf16.msra.mxu0 0
      %7636 = vmatpush.bf16.msra.mxu0 %v7539
      %7637 = vmatpush.bf16.msra.mxu0 %v7462
      %7638 = vmatpush.bf16.msra.mxu0 %v7460
      %7639 = vmatpush.bf16.msra.mxu0 %v7458
      %7640 = vmatpush.bf16.msra.mxu0 %v7456
      %7641 = vmatmul.bf16.gmra.mxu0 %v7491
      %v7642 = vpop.f32.mrf.mxu0
      %v7643 = vadd.f32 %v7554, %v7642
      %v7644 = vpop.f32.mrf.mxu0
      %v7645 = vadd.f32 %v7556, %v7644
      %7646 = vmatmul.bf16.gmra.mxu0 %v7494
      %v7647 = vpop.f32.mrf.mxu0
      %v7648 = vadd.f32 %v7559, %v7647
      %v7649 = vpop.f32.mrf.mxu0
      %v7650 = vadd.f32 %v7561, %v7649
      %7651 = vmatmul.bf16.gmra.mxu0 %v7497
      %v7652 = vpop.f32.mrf.mxu0
      %v7653 = vadd.f32 %v7564, %v7652
      %v7654 = vpop.f32.mrf.mxu0
      %v7655 = vadd.f32 %v7566, %v7654
      %7656 = vmatmul.bf16.gmra.mxu0 %v7500
      %v7657 = vpop.f32.mrf.mxu0
      %v7658 = vadd.f32 %v7569, %v7657
      %v7659 = vpop.f32.mrf.mxu0
      %v7660 = vadd.f32 %v7571, %v7659
      %7661 = vmatmul.bf16.gmra.mxu0 %v7503
      %v7662 = vpop.f32.mrf.mxu0
      %v7663 = vadd.f32 %v7574, %v7662
      %v7664 = vpop.f32.mrf.mxu0
      %v7665 = vadd.f32 %v7576, %v7664
      %7666 = vmatmul.bf16.gmra.mxu0 %v7506
      %v7667 = vpop.f32.mrf.mxu0
      %v7668 = vadd.f32 %v7579, %v7667
      %v7669 = vpop.f32.mrf.mxu0
      %v7670 = vadd.f32 %v7581, %v7669
      %7671 = vmatmul.bf16.gmra.mxu0 %v7509
      %v7672 = vpop.f32.mrf.mxu0
      %v7673 = vadd.f32 %v7584, %v7672
      %v7674 = vpop.f32.mrf.mxu0
      %v7675 = vadd.f32 %v7586, %v7674
      %7676 = vmatmul.bf16.gmra.mxu0 %v7512
      %v7677 = vpop.f32.mrf.mxu0
      %v7678 = vadd.f32 %v7589, %v7677
      %v7679 = vpop.f32.mrf.mxu0
      %v7680 = vadd.f32 %v7591, %v7679
      %7681 = vmatmul.bf16.gmra.mxu0 %v7515
      %v7682 = vpop.f32.mrf.mxu0
      %v7683 = vadd.f32 %v7594, %v7682
      %v7684 = vpop.f32.mrf.mxu0
      %v7685 = vadd.f32 %v7596, %v7684
      %7686 = vmatmul.bf16.gmra.mxu0 %v7518
      %v7687 = vpop.f32.mrf.mxu0
      %v7688 = vadd.f32 %v7599, %v7687
      %v7689 = vpop.f32.mrf.mxu0
      %v7690 = vadd.f32 %v7601, %v7689
      %7691 = vmatmul.bf16.gmra.mxu0 %v7521
      %v7692 = vpop.f32.mrf.mxu0
      %v7693 = vadd.f32 %v7604, %v7692
      %v7694 = vpop.f32.mrf.mxu0
      %v7695 = vadd.f32 %v7606, %v7694
      %7696 = vmatmul.bf16.gmra.mxu0 %v7524
      %v7697 = vpop.f32.mrf.mxu0
      %v7698 = vadd.f32 %v7609, %v7697
      %v7699 = vpop.f32.mrf.mxu0
      %v7700 = vadd.f32 %v7611, %v7699
      %7701 = vmatmul.bf16.gmra.mxu0 %v7527
      %v7702 = vpop.f32.mrf.mxu0
      %v7703 = vadd.f32 %v7614, %v7702
      %v7704 = vpop.f32.mrf.mxu0
      %v7705 = vadd.f32 %v7616, %v7704
      %7706 = vmatmul.bf16.gmra.mxu0 %v7530
      %v7707 = vpop.f32.mrf.mxu0
      %v7708 = vadd.f32 %v7619, %v7707
      %v7709 = vpop.f32.mrf.mxu0
      %v7710 = vadd.f32 %v7621, %v7709
      %7711 = vmatmul.bf16.gmra.mxu0 %v7533
      %v7712 = vpop.f32.mrf.mxu0
      %v7713 = vadd.f32 %v7624, %v7712
      %v7714 = vpop.f32.mrf.mxu0
      %v7715 = vadd.f32 %v7626, %v7714
      %7716 = vmatmul.bf16.gmra.mxu0 %v7536
      %v7717 = vpop.f32.mrf.mxu0
      %v7718 = vadd.f32 %v7629, %v7717
      %v7719 = vpop.f32.mrf.mxu0
      %v7720 = vadd.f32 %v7631, %v7719
      %7721 = vdwg.mxu0
      %7722 = vmatpush.bf16.msra.mxu0 %v7455
      %7723 = vmatpush.bf16.msra.mxu0 %v7453
      %7724 = vmatpush.bf16.msra.mxu0 %v7451
      %7725 = vmatpush.bf16.msra.mxu0 %v7449
      %7726 = vmatpush.bf16.msra.mxu0 %v7447
      %7727 = vmatpush.bf16.msra.mxu0 %v7445
      %7728 = vmatpush.bf16.msra.mxu0 %v7443
      %7729 = vmatpush.bf16.msra.mxu0 %v7441
      %7730 = vmatmul.bf16.gmra.mxu0 %v7302
      %v7731 = vpop.f32.mrf.mxu0
      %v7732 = vadd.f32 %v7362, %v7731
      %v7733 = vpop.f32.mrf.mxu0
      %v7734 = vadd.f32 %v7362, %v7733
      %7735 = vmatmul.bf16.gmra.mxu0 %v7304
      %v7736 = vpop.f32.mrf.mxu0
      %v7737 = vadd.f32 %v7362, %v7736
      %v7738 = vpop.f32.mrf.mxu0
      %v7739 = vadd.f32 %v7362, %v7738
      %7740 = vmatmul.bf16.gmra.mxu0 %v7306
      %v7741 = vpop.f32.mrf.mxu0
      %v7742 = vadd.f32 %v7362, %v7741
      %v7743 = vpop.f32.mrf.mxu0
      %v7744 = vadd.f32 %v7362, %v7743
      %7745 = vmatmul.bf16.gmra.mxu0 %v7308
      %v7746 = vpop.f32.mrf.mxu0
      %v7747 = vadd.f32 %v7362, %v7746
      %v7748 = vpop.f32.mrf.mxu0
      %v7749 = vadd.f32 %v7362, %v7748
      %7750 = vmatmul.bf16.gmra.mxu0 %v7310
      %v7751 = vpop.f32.mrf.mxu0
      %v7752 = vadd.f32 %v7362, %v7751
      %v7753 = vpop.f32.mrf.mxu0
      %v7754 = vadd.f32 %v7362, %v7753
      %7755 = vmatmul.bf16.gmra.mxu0 %v7312
      %v7756 = vpop.f32.mrf.mxu0
      %v7757 = vadd.f32 %v7362, %v7756
      %v7758 = vpop.f32.mrf.mxu0
      %v7759 = vadd.f32 %v7362, %v7758
      %7760 = vmatmul.bf16.gmra.mxu0 %v7314
      %v7761 = vpop.f32.mrf.mxu0
      %v7762 = vadd.f32 %v7362, %v7761
      %v7763 = vpop.f32.mrf.mxu0
      %v7764 = vadd.f32 %v7362, %v7763
      %7765 = vmatmul.bf16.gmra.mxu0 %v7316
      %v7766 = vpop.f32.mrf.mxu0
      %v7767 = vadd.f32 %v7362, %v7766
      %v7768 = vpop.f32.mrf.mxu0
      %v7769 = vadd.f32 %v7362, %v7768
      %7770 = vmatmul.bf16.gmra.mxu0 %v7318
      %v7771 = vpop.f32.mrf.mxu0
      %v7772 = vadd.f32 %v7362, %v7771
      %v7773 = vpop.f32.mrf.mxu0
      %v7774 = vadd.f32 %v7362, %v7773
      %7775 = vmatmul.bf16.gmra.mxu0 %v7320
      %v7776 = vpop.f32.mrf.mxu0
      %v7777 = vadd.f32 %v7362, %v7776
      %v7778 = vpop.f32.mrf.mxu0
      %v7779 = vadd.f32 %v7362, %v7778
      %7780 = vmatmul.bf16.gmra.mxu0 %v7322
      %v7781 = vpop.f32.mrf.mxu0
      %v7782 = vadd.f32 %v7362, %v7781
      %v7783 = vpop.f32.mrf.mxu0
      %v7784 = vadd.f32 %v7362, %v7783
      %7785 = vmatmul.bf16.gmra.mxu0 %v7324
      %v7786 = vpop.f32.mrf.mxu0
      %v7787 = vadd.f32 %v7362, %v7786
      %v7788 = vpop.f32.mrf.mxu0
      %v7789 = vadd.f32 %v7362, %v7788
      %7790 = vmatmul.bf16.gmra.mxu0 %v7326
      %v7791 = vpop.f32.mrf.mxu0
      %v7792 = vadd.f32 %v7362, %v7791
      %v7793 = vpop.f32.mrf.mxu0
      %v7794 = vadd.f32 %v7362, %v7793
      %7795 = vmatmul.bf16.gmra.mxu0 %v7328
      %v7796 = vpop.f32.mrf.mxu0
      %v7797 = vadd.f32 %v7362, %v7796
      %v7798 = vpop.f32.mrf.mxu0
      %v7799 = vadd.f32 %v7362, %v7798
      %7800 = vmatmul.bf16.gmra.mxu0 %v7330
      %v7801 = vpop.f32.mrf.mxu0
      %v7802 = vadd.f32 %v7362, %v7801
      %v7803 = vpop.f32.mrf.mxu0
      %v7804 = vadd.f32 %v7362, %v7803
      %7805 = vmatmul.bf16.gmra.mxu0 %v7332
      %v7806 = vpop.f32.mrf.mxu0
      %v7807 = vadd.f32 %v7362, %v7806
      %v7808 = vpop.f32.mrf.mxu0
      %v7809 = vadd.f32 %v7362, %v7808
      %7810 = vdwg.mxu0
      %7811 = vmatpush.bf16.msra.mxu0 0
      %7812 = vmatpush.bf16.msra.mxu0 0
      %7813 = vmatpush.bf16.msra.mxu0 0
      %7814 = vmatpush.bf16.msra.mxu0 %v7542
      %7815 = vmatpush.bf16.msra.mxu0 %v7463
      %7816 = vmatpush.bf16.msra.mxu0 %v7461
      %7817 = vmatpush.bf16.msra.mxu0 %v7459
      %7818 = vmatpush.bf16.msra.mxu0 %v7457
      %7819 = vmatmul.bf16.gmra.mxu0 %v7491
      %v7820 = vpop.f32.mrf.mxu0
      %v7821 = vadd.f32 %v7732, %v7820
      %v7822 = vpop.f32.mrf.mxu0
      %v7823 = vadd.f32 %v7734, %v7822
      %7824 = vmatmul.bf16.gmra.mxu0 %v7494
      %v7825 = vpop.f32.mrf.mxu0
      %v7826 = vadd.f32 %v7737, %v7825
      %v7827 = vpop.f32.mrf.mxu0
      %v7828 = vadd.f32 %v7739, %v7827
      %7829 = vmatmul.bf16.gmra.mxu0 %v7497
      %v7830 = vpop.f32.mrf.mxu0
      %v7831 = vadd.f32 %v7742, %v7830
      %v7832 = vpop.f32.mrf.mxu0
      %v7833 = vadd.f32 %v7744, %v7832
      %7834 = vmatmul.bf16.gmra.mxu0 %v7500
      %v7835 = vpop.f32.mrf.mxu0
      %v7836 = vadd.f32 %v7747, %v7835
      %v7837 = vpop.f32.mrf.mxu0
      %v7838 = vadd.f32 %v7749, %v7837
      %7839 = vmatmul.bf16.gmra.mxu0 %v7503
      %v7840 = vpop.f32.mrf.mxu0
      %v7841 = vadd.f32 %v7752, %v7840
      %v7842 = vpop.f32.mrf.mxu0
      %v7843 = vadd.f32 %v7754, %v7842
      %7844 = vmatmul.bf16.gmra.mxu0 %v7506
      %v7845 = vpop.f32.mrf.mxu0
      %v7846 = vadd.f32 %v7757, %v7845
      %v7847 = vpop.f32.mrf.mxu0
      %v7848 = vadd.f32 %v7759, %v7847
      %7849 = vmatmul.bf16.gmra.mxu0 %v7509
      %v7850 = vpop.f32.mrf.mxu0
      %v7851 = vadd.f32 %v7762, %v7850
      %v7852 = vpop.f32.mrf.mxu0
      %v7853 = vadd.f32 %v7764, %v7852
      %7854 = vmatmul.bf16.gmra.mxu0 %v7512
      %v7855 = vpop.f32.mrf.mxu0
      %v7856 = vadd.f32 %v7767, %v7855
      %v7857 = vpop.f32.mrf.mxu0
      %v7858 = vadd.f32 %v7769, %v7857
      %7859 = vmatmul.bf16.gmra.mxu0 %v7515
      %v7860 = vpop.f32.mrf.mxu0
      %v7861 = vadd.f32 %v7772, %v7860
      %v7862 = vpop.f32.mrf.mxu0
      %v7863 = vadd.f32 %v7774, %v7862
      %7864 = vmatmul.bf16.gmra.mxu0 %v7518
      %v7865 = vpop.f32.mrf.mxu0
      %v7866 = vadd.f32 %v7777, %v7865
      %v7867 = vpop.f32.mrf.mxu0
      %v7868 = vadd.f32 %v7779, %v7867
      %7869 = vmatmul.bf16.gmra.mxu0 %v7521
      %v7870 = vpop.f32.mrf.mxu0
      %v7871 = vadd.f32 %v7782, %v7870
      %v7872 = vpop.f32.mrf.mxu0
      %v7873 = vadd.f32 %v7784, %v7872
      %7874 = vmatmul.bf16.gmra.mxu0 %v7524
      %v7875 = vpop.f32.mrf.mxu0
      %v7876 = vadd.f32 %v7787, %v7875
      %v7877 = vpop.f32.mrf.mxu0
      %v7878 = vadd.f32 %v7789, %v7877
      %7879 = vmatmul.bf16.gmra.mxu0 %v7527
      %v7880 = vpop.f32.mrf.mxu0
      %v7881 = vadd.f32 %v7792, %v7880
      %v7882 = vpop.f32.mrf.mxu0
      %v7883 = vadd.f32 %v7794, %v7882
      %7884 = vmatmul.bf16.gmra.mxu0 %v7530
      %v7885 = vpop.f32.mrf.mxu0
      %v7886 = vadd.f32 %v7797, %v7885
      %v7887 = vpop.f32.mrf.mxu0
      %v7888 = vadd.f32 %v7799, %v7887
      %7889 = vmatmul.bf16.gmra.mxu0 %v7533
      %v7890 = vpop.f32.mrf.mxu0
      %v7891 = vadd.f32 %v7802, %v7890
      %v7892 = vpop.f32.mrf.mxu0
      %v7893 = vadd.f32 %v7804, %v7892
      %7894 = vmatmul.bf16.gmra.mxu0 %v7536
      %v7895 = vpop.f32.mrf.mxu0
      %v7896 = vadd.f32 %v7807, %v7895
      %v7897 = vpop.f32.mrf.mxu0
      %v7898 = vadd.f32 %v7809, %v7897
      %7899 = vdwg.mxu0
      %v7900 = vmax.f32 %v7643, 0.0
      %v7901 = vmax.f32 %v7821, 0.0
      %v7902 = vmax.f32 %v7645, 0.0
      %v7903 = vmax.f32 %v7823, 0.0
      %v7904 = vmax.f32 %v7648, 0.0
      %v7905 = vmax.f32 %v7826, 0.0
      %v7906 = vmax.f32 %v7650, 0.0
      %v7907 = vmax.f32 %v7828, 0.0
      %v7908 = vmax.f32 %v7653, 0.0
      %v7909 = vmax.f32 %v7831, 0.0
      %v7910 = vmax.f32 %v7655, 0.0
      %v7911 = vmax.f32 %v7833, 0.0
      %v7912 = vmax.f32 %v7658, 0.0
      %v7913 = vmax.f32 %v7836, 0.0
      %v7914 = vmax.f32 %v7660, 0.0
      %v7915 = vmax.f32 %v7838, 0.0
      %v7916 = vmax.f32 %v7663, 0.0
      %v7917 = vmax.f32 %v7841, 0.0
      %v7918 = vmax.f32 %v7665, 0.0
      %v7919 = vmax.f32 %v7843, 0.0
      %v7920 = vmax.f32 %v7668, 0.0
      %v7921 = vmax.f32 %v7846, 0.0
      %v7922 = vmax.f32 %v7670, 0.0
      %v7923 = vmax.f32 %v7848, 0.0
      %v7924 = vmax.f32 %v7673, 0.0
      %v7925 = vmax.f32 %v7851, 0.0
      %v7926 = vmax.f32 %v7675, 0.0
      %v7927 = vmax.f32 %v7853, 0.0
      %v7928 = vmax.f32 %v7678, 0.0
      %v7929 = vmax.f32 %v7856, 0.0
      %v7930 = vmax.f32 %v7680, 0.0
      %v7931 = vmax.f32 %v7858, 0.0
      %v7932 = vmax.f32 %v7683, 0.0
      %v7933 = vmax.f32 %v7861, 0.0
      %v7934 = vmax.f32 %v7685, 0.0
      %v7935 = vmax.f32 %v7863, 0.0
      %v7936 = vmax.f32 %v7688, 0.0
      %v7937 = vmax.f32 %v7866, 0.0
      %v7938 = vmax.f32 %v7690, 0.0
      %v7939 = vmax.f32 %v7868, 0.0
      %v7940 = vmax.f32 %v7693, 0.0
      %v7941 = vmax.f32 %v7871, 0.0
      %v7942 = vmax.f32 %v7695, 0.0
      %v7943 = vmax.f32 %v7873, 0.0
      %v7944 = vmax.f32 %v7698, 0.0
      %v7945 = vmax.f32 %v7876, 0.0
      %v7946 = vmax.f32 %v7700, 0.0
      %v7947 = vmax.f32 %v7878, 0.0
      %v7948 = vmax.f32 %v7703, 0.0
      %v7949 = vmax.f32 %v7881, 0.0
      %v7950 = vmax.f32 %v7705, 0.0
      %v7951 = vmax.f32 %v7883, 0.0
      %v7952 = vmax.f32 %v7708, 0.0
      %v7953 = vmax.f32 %v7886, 0.0
      %v7954 = vmax.f32 %v7710, 0.0
      %v7955 = vmax.f32 %v7888, 0.0
      %v7956 = vmax.f32 %v7713, 0.0
      %v7957 = vmax.f32 %v7891, 0.0
      %v7958 = vmax.f32 %v7715, 0.0
      %v7959 = vmax.f32 %v7893, 0.0
      %v7960 = vmax.f32 %v7718, 0.0
      %v7961 = vmax.f32 %v7896, 0.0
      %v7962 = vmax.f32 %v7720, 0.0
      %v7963 = vmax.f32 %v7898, 0.0
      %v7964 = vsel %vm3089, %v7901, 0.0
      %v7965 = vadd.f32 %v7900, %v7964
      %7966 = vadd.xlane.f32.xlu0 %v7965
      %v7967 = vpop.xlane.xlu0 %7966
      %v7968 = vsel %vm3089, %v7903, 0.0
      %v7969 = vadd.f32 %v7902, %v7968
      %7970 = vadd.xlane.f32.xlu0 %v7969
      %v7971 = vpop.xlane.xlu0 %7970
      %v7972 = vsel %vm3089, %v7905, 0.0
      %v7973 = vadd.f32 %v7904, %v7972
      %7974 = vadd.xlane.f32.xlu0 %v7973
      %v7975 = vpop.xlane.xlu0 %7974
      %v7976 = vsel %vm3089, %v7907, 0.0
      %v7977 = vadd.f32 %v7906, %v7976
      %7978 = vadd.xlane.f32.xlu0 %v7977
      %v7979 = vpop.xlane.xlu0 %7978
      %v7980 = vsel %vm3089, %v7909, 0.0
      %v7981 = vadd.f32 %v7908, %v7980
      %7982 = vadd.xlane.f32.xlu0 %v7981
      %v7983 = vpop.xlane.xlu0 %7982
      %v7984 = vsel %vm3089, %v7911, 0.0
      %v7985 = vadd.f32 %v7910, %v7984
      %7986 = vadd.xlane.f32.xlu0 %v7985
      %v7987 = vpop.xlane.xlu0 %7986
      %v7988 = vsel %vm3089, %v7913, 0.0
      %v7989 = vadd.f32 %v7912, %v7988
      %7990 = vadd.xlane.f32.xlu0 %v7989
      %v7991 = vpop.xlane.xlu0 %7990
      %v7992 = vsel %vm3089, %v7915, 0.0
      %v7993 = vadd.f32 %v7914, %v7992
      %7994 = vadd.xlane.f32.xlu0 %v7993
      %v7995 = vpop.xlane.xlu0 %7994
      %v7996 = vsel %vm3089, %v7917, 0.0
      %v7997 = vadd.f32 %v7916, %v7996
      %7998 = vadd.xlane.f32.xlu0 %v7997
      %v7999 = vpop.xlane.xlu0 %7998
      %v8000 = vsel %vm3089, %v7919, 0.0
      %v8001 = vadd.f32 %v7918, %v8000
      %8002 = vadd.xlane.f32.xlu0 %v8001
      %v8003 = vpop.xlane.xlu0 %8002
      %v8004 = vsel %vm3089, %v7921, 0.0
      %v8005 = vadd.f32 %v7920, %v8004
      %8006 = vadd.xlane.f32.xlu0 %v8005
      %v8007 = vpop.xlane.xlu0 %8006
      %v8008 = vsel %vm3089, %v7923, 0.0
      %v8009 = vadd.f32 %v7922, %v8008
      %8010 = vadd.xlane.f32.xlu0 %v8009
      %v8011 = vpop.xlane.xlu0 %8010
      %v8012 = vsel %vm3089, %v7925, 0.0
      %v8013 = vadd.f32 %v7924, %v8012
      %8014 = vadd.xlane.f32.xlu0 %v8013
      %v8015 = vpop.xlane.xlu0 %8014
      %v8016 = vsel %vm3089, %v7927, 0.0
      %v8017 = vadd.f32 %v7926, %v8016
      %8018 = vadd.xlane.f32.xlu0 %v8017
      %v8019 = vpop.xlane.xlu0 %8018
      %v8020 = vsel %vm3089, %v7929, 0.0
      %v8021 = vadd.f32 %v7928, %v8020
      %8022 = vadd.xlane.f32.xlu0 %v8021
      %v8023 = vpop.xlane.xlu0 %8022
      %v8024 = vsel %vm3089, %v7931, 0.0
      %v8025 = vadd.f32 %v7930, %v8024
      %8026 = vadd.xlane.f32.xlu0 %v8025
      %v8027 = vpop.xlane.xlu0 %8026
      %v8028 = vsel %vm3089, %v7933, 0.0
      %v8029 = vadd.f32 %v7932, %v8028
      %8030 = vadd.xlane.f32.xlu0 %v8029
      %v8031 = vpop.xlane.xlu0 %8030
      %v8032 = vsel %vm3089, %v7935, 0.0
      %v8033 = vadd.f32 %v7934, %v8032
      %8034 = vadd.xlane.f32.xlu0 %v8033
      %v8035 = vpop.xlane.xlu0 %8034
      %v8036 = vsel %vm3089, %v7937, 0.0
      %v8037 = vadd.f32 %v7936, %v8036
      %8038 = vadd.xlane.f32.xlu0 %v8037
      %v8039 = vpop.xlane.xlu0 %8038
      %v8040 = vsel %vm3089, %v7939, 0.0
      %v8041 = vadd.f32 %v7938, %v8040
      %8042 = vadd.xlane.f32.xlu0 %v8041
      %v8043 = vpop.xlane.xlu0 %8042
      %v8044 = vsel %vm3089, %v7941, 0.0
      %v8045 = vadd.f32 %v7940, %v8044
      %8046 = vadd.xlane.f32.xlu0 %v8045
      %v8047 = vpop.xlane.xlu0 %8046
      %v8048 = vsel %vm3089, %v7943, 0.0
      %v8049 = vadd.f32 %v7942, %v8048
      %8050 = vadd.xlane.f32.xlu0 %v8049
      %v8051 = vpop.xlane.xlu0 %8050
      %v8052 = vsel %vm3089, %v7945, 0.0
      %v8053 = vadd.f32 %v7944, %v8052
      %8054 = vadd.xlane.f32.xlu0 %v8053
      %v8055 = vpop.xlane.xlu0 %8054
      %v8056 = vsel %vm3089, %v7947, 0.0
      %v8057 = vadd.f32 %v7946, %v8056
      %8058 = vadd.xlane.f32.xlu0 %v8057
      %v8059 = vpop.xlane.xlu0 %8058
      %v8060 = vsel %vm3089, %v7949, 0.0
      %v8061 = vadd.f32 %v7948, %v8060
      %8062 = vadd.xlane.f32.xlu0 %v8061
      %v8063 = vpop.xlane.xlu0 %8062
      %v8064 = vsel %vm3089, %v7951, 0.0
      %v8065 = vadd.f32 %v7950, %v8064
      %8066 = vadd.xlane.f32.xlu0 %v8065
      %v8067 = vpop.xlane.xlu0 %8066
      %v8068 = vsel %vm3089, %v7953, 0.0
      %v8069 = vadd.f32 %v7952, %v8068
      %8070 = vadd.xlane.f32.xlu0 %v8069
      %v8071 = vpop.xlane.xlu0 %8070
      %v8072 = vsel %vm3089, %v7955, 0.0
      %v8073 = vadd.f32 %v7954, %v8072
      %8074 = vadd.xlane.f32.xlu0 %v8073
      %v8075 = vpop.xlane.xlu0 %8074
      %v8076 = vsel %vm3089, %v7957, 0.0
      %v8077 = vadd.f32 %v7956, %v8076
      %8078 = vadd.xlane.f32.xlu0 %v8077
      %v8079 = vpop.xlane.xlu0 %8078
      %v8080 = vsel %vm3089, %v7959, 0.0
      %v8081 = vadd.f32 %v7958, %v8080
      %8082 = vadd.xlane.f32.xlu0 %v8081
      %v8083 = vpop.xlane.xlu0 %8082
      %v8084 = vsel %vm3089, %v7961, 0.0
      %v8085 = vadd.f32 %v7960, %v8084
      %8086 = vadd.xlane.f32.xlu0 %v8085
      %v8087 = vpop.xlane.xlu0 %8086
      %v8088 = vsel %vm3089, %v7963, 0.0
      %v8089 = vadd.f32 %v7962, %v8088
      %8090 = vadd.xlane.f32.xlu0 %v8089
      %v8091 = vpop.xlane.xlu0 %8090
      %v8092 = vmul.f32 %v7967, %v3224
      %v8093 = vmul.f32 %v7971, %v3224
      %v8094 = vmul.f32 %v7975, %v3224
      %v8095 = vmul.f32 %v7979, %v3224
      %v8096 = vmul.f32 %v7983, %v3224
      %v8097 = vmul.f32 %v7987, %v3224
      %v8098 = vmul.f32 %v7991, %v3224
      %v8099 = vmul.f32 %v7995, %v3224
      %v8100 = vmul.f32 %v7999, %v3224
      %v8101 = vmul.f32 %v8003, %v3224
      %v8102 = vmul.f32 %v8007, %v3224
      %v8103 = vmul.f32 %v8011, %v3224
      %v8104 = vmul.f32 %v8015, %v3224
      %v8105 = vmul.f32 %v8019, %v3224
      %v8106 = vmul.f32 %v8023, %v3224
      %v8107 = vmul.f32 %v8027, %v3224
      %v8108 = vmul.f32 %v8031, %v3224
      %v8109 = vmul.f32 %v8035, %v3224
      %v8110 = vmul.f32 %v8039, %v3224
      %v8111 = vmul.f32 %v8043, %v3224
      %v8112 = vmul.f32 %v8047, %v3224
      %v8113 = vmul.f32 %v8051, %v3224
      %v8114 = vmul.f32 %v8055, %v3224
      %v8115 = vmul.f32 %v8059, %v3224
      %v8116 = vmul.f32 %v8063, %v3224
      %v8117 = vmul.f32 %v8067, %v3224
      %v8118 = vmul.f32 %v8071, %v3224
      %v8119 = vmul.f32 %v8075, %v3224
      %v8120 = vmul.f32 %v8079, %v3224
      %v8121 = vmul.f32 %v8083, %v3224
      %v8122 = vmul.f32 %v8087, %v3224
      %v8123 = vmul.f32 %v8091, %v3224
      %v8124 = vmul.f32 %v7900, %v7900
      %v8125 = vmul.f32 %v7901, %v7901
      %v8126 = vmul.f32 %v7902, %v7902
      %v8127 = vmul.f32 %v7903, %v7903
      %v8128 = vmul.f32 %v7904, %v7904
      %v8129 = vmul.f32 %v7905, %v7905
      %v8130 = vmul.f32 %v7906, %v7906
      %v8131 = vmul.f32 %v7907, %v7907
      %v8132 = vmul.f32 %v7908, %v7908
      %v8133 = vmul.f32 %v7909, %v7909
      %v8134 = vmul.f32 %v7910, %v7910
      %v8135 = vmul.f32 %v7911, %v7911
      %v8136 = vmul.f32 %v7912, %v7912
      %v8137 = vmul.f32 %v7913, %v7913
      %v8138 = vmul.f32 %v7914, %v7914
      %v8139 = vmul.f32 %v7915, %v7915
      %v8140 = vmul.f32 %v7916, %v7916
      %v8141 = vmul.f32 %v7917, %v7917
      %v8142 = vmul.f32 %v7918, %v7918
      %v8143 = vmul.f32 %v7919, %v7919
      %v8144 = vmul.f32 %v7920, %v7920
      %v8145 = vmul.f32 %v7921, %v7921
      %v8146 = vmul.f32 %v7922, %v7922
      %v8147 = vmul.f32 %v7923, %v7923
      %v8148 = vmul.f32 %v7924, %v7924
      %v8149 = vmul.f32 %v7925, %v7925
      %v8150 = vmul.f32 %v7926, %v7926
      %v8151 = vmul.f32 %v7927, %v7927
      %v8152 = vmul.f32 %v7928, %v7928
      %v8153 = vmul.f32 %v7929, %v7929
      %v8154 = vmul.f32 %v7930, %v7930
      %v8155 = vmul.f32 %v7931, %v7931
      %v8156 = vmul.f32 %v7932, %v7932
      %v8157 = vmul.f32 %v7933, %v7933
      %v8158 = vmul.f32 %v7934, %v7934
      %v8159 = vmul.f32 %v7935, %v7935
      %v8160 = vmul.f32 %v7936, %v7936
      %v8161 = vmul.f32 %v7937, %v7937
      %v8162 = vmul.f32 %v7938, %v7938
      %v8163 = vmul.f32 %v7939, %v7939
      %v8164 = vmul.f32 %v7940, %v7940
      %v8165 = vmul.f32 %v7941, %v7941
      %v8166 = vmul.f32 %v7942, %v7942
      %v8167 = vmul.f32 %v7943, %v7943
      %v8168 = vmul.f32 %v7944, %v7944
      %v8169 = vmul.f32 %v7945, %v7945
      %v8170 = vmul.f32 %v7946, %v7946
      %v8171 = vmul.f32 %v7947, %v7947
      %v8172 = vmul.f32 %v7948, %v7948
      %v8173 = vmul.f32 %v7949, %v7949
      %v8174 = vmul.f32 %v7950, %v7950
      %v8175 = vmul.f32 %v7951, %v7951
      %v8176 = vmul.f32 %v7952, %v7952
      %v8177 = vmul.f32 %v7953, %v7953
      %v8178 = vmul.f32 %v7954, %v7954
      %v8179 = vmul.f32 %v7955, %v7955
      %v8180 = vmul.f32 %v7956, %v7956
      %v8181 = vmul.f32 %v7957, %v7957
      %v8182 = vmul.f32 %v7958, %v7958
      %v8183 = vmul.f32 %v7959, %v7959
      %v8184 = vmul.f32 %v7960, %v7960
      %v8185 = vmul.f32 %v7961, %v7961
      %v8186 = vmul.f32 %v7962, %v7962
      %v8187 = vmul.f32 %v7963, %v7963
      %v8188 = vsel %vm3089, %v8125, 0.0
      %v8189 = vadd.f32 %v8124, %v8188
      %8190 = vadd.xlane.f32.xlu0 %v8189
      %v8191 = vpop.xlane.xlu0 %8190
      %v8192 = vsel %vm3089, %v8127, 0.0
      %v8193 = vadd.f32 %v8126, %v8192
      %8194 = vadd.xlane.f32.xlu0 %v8193
      %v8195 = vpop.xlane.xlu0 %8194
      %v8196 = vsel %vm3089, %v8129, 0.0
      %v8197 = vadd.f32 %v8128, %v8196
      %8198 = vadd.xlane.f32.xlu0 %v8197
      %v8199 = vpop.xlane.xlu0 %8198
      %v8200 = vsel %vm3089, %v8131, 0.0
      %v8201 = vadd.f32 %v8130, %v8200
      %8202 = vadd.xlane.f32.xlu0 %v8201
      %v8203 = vpop.xlane.xlu0 %8202
      %v8204 = vsel %vm3089, %v8133, 0.0
      %v8205 = vadd.f32 %v8132, %v8204
      %8206 = vadd.xlane.f32.xlu0 %v8205
      %v8207 = vpop.xlane.xlu0 %8206
      %v8208 = vsel %vm3089, %v8135, 0.0
      %v8209 = vadd.f32 %v8134, %v8208
      %8210 = vadd.xlane.f32.xlu0 %v8209
      %v8211 = vpop.xlane.xlu0 %8210
      %v8212 = vsel %vm3089, %v8137, 0.0
      %v8213 = vadd.f32 %v8136, %v8212
      %8214 = vadd.xlane.f32.xlu0 %v8213
      %v8215 = vpop.xlane.xlu0 %8214
      %v8216 = vsel %vm3089, %v8139, 0.0
      %v8217 = vadd.f32 %v8138, %v8216
      %8218 = vadd.xlane.f32.xlu0 %v8217
      %v8219 = vpop.xlane.xlu0 %8218
      %v8220 = vsel %vm3089, %v8141, 0.0
      %v8221 = vadd.f32 %v8140, %v8220
      %8222 = vadd.xlane.f32.xlu0 %v8221
      %v8223 = vpop.xlane.xlu0 %8222
      %v8224 = vsel %vm3089, %v8143, 0.0
      %v8225 = vadd.f32 %v8142, %v8224
      %8226 = vadd.xlane.f32.xlu0 %v8225
      %v8227 = vpop.xlane.xlu0 %8226
      %v8228 = vsel %vm3089, %v8145, 0.0
      %v8229 = vadd.f32 %v8144, %v8228
      %8230 = vadd.xlane.f32.xlu0 %v8229
      %v8231 = vpop.xlane.xlu0 %8230
      %v8232 = vsel %vm3089, %v8147, 0.0
      %v8233 = vadd.f32 %v8146, %v8232
      %8234 = vadd.xlane.f32.xlu0 %v8233
      %v8235 = vpop.xlane.xlu0 %8234
      %v8236 = vsel %vm3089, %v8149, 0.0
      %v8237 = vadd.f32 %v8148, %v8236
      %8238 = vadd.xlane.f32.xlu0 %v8237
      %v8239 = vpop.xlane.xlu0 %8238
      %v8240 = vsel %vm3089, %v8151, 0.0
      %v8241 = vadd.f32 %v8150, %v8240
      %8242 = vadd.xlane.f32.xlu0 %v8241
      %v8243 = vpop.xlane.xlu0 %8242
      %v8244 = vsel %vm3089, %v8153, 0.0
      %v8245 = vadd.f32 %v8152, %v8244
      %8246 = vadd.xlane.f32.xlu0 %v8245
      %v8247 = vpop.xlane.xlu0 %8246
      %v8248 = vsel %vm3089, %v8155, 0.0
      %v8249 = vadd.f32 %v8154, %v8248
      %8250 = vadd.xlane.f32.xlu0 %v8249
      %v8251 = vpop.xlane.xlu0 %8250
      %v8252 = vsel %vm3089, %v8157, 0.0
      %v8253 = vadd.f32 %v8156, %v8252
      %8254 = vadd.xlane.f32.xlu0 %v8253
      %v8255 = vpop.xlane.xlu0 %8254
      %v8256 = vsel %vm3089, %v8159, 0.0
      %v8257 = vadd.f32 %v8158, %v8256
      %8258 = vadd.xlane.f32.xlu0 %v8257
      %v8259 = vpop.xlane.xlu0 %8258
      %v8260 = vsel %vm3089, %v8161, 0.0
      %v8261 = vadd.f32 %v8160, %v8260
      %8262 = vadd.xlane.f32.xlu0 %v8261
      %v8263 = vpop.xlane.xlu0 %8262
      %v8264 = vsel %vm3089, %v8163, 0.0
      %v8265 = vadd.f32 %v8162, %v8264
      %8266 = vadd.xlane.f32.xlu0 %v8265
      %v8267 = vpop.xlane.xlu0 %8266
      %v8268 = vsel %vm3089, %v8165, 0.0
      %v8269 = vadd.f32 %v8164, %v8268
      %8270 = vadd.xlane.f32.xlu0 %v8269
      %v8271 = vpop.xlane.xlu0 %8270
      %v8272 = vsel %vm3089, %v8167, 0.0
      %v8273 = vadd.f32 %v8166, %v8272
      %8274 = vadd.xlane.f32.xlu0 %v8273
      %v8275 = vpop.xlane.xlu0 %8274
      %v8276 = vsel %vm3089, %v8169, 0.0
      %v8277 = vadd.f32 %v8168, %v8276
      %8278 = vadd.xlane.f32.xlu0 %v8277
      %v8279 = vpop.xlane.xlu0 %8278
      %v8280 = vsel %vm3089, %v8171, 0.0
      %v8281 = vadd.f32 %v8170, %v8280
      %8282 = vadd.xlane.f32.xlu0 %v8281
      %v8283 = vpop.xlane.xlu0 %8282
      %v8284 = vsel %vm3089, %v8173, 0.0
      %v8285 = vadd.f32 %v8172, %v8284
      %8286 = vadd.xlane.f32.xlu0 %v8285
      %v8287 = vpop.xlane.xlu0 %8286
      %v8288 = vsel %vm3089, %v8175, 0.0
      %v8289 = vadd.f32 %v8174, %v8288
      %8290 = vadd.xlane.f32.xlu0 %v8289
      %v8291 = vpop.xlane.xlu0 %8290
      %v8292 = vsel %vm3089, %v8177, 0.0
      %v8293 = vadd.f32 %v8176, %v8292
      %8294 = vadd.xlane.f32.xlu0 %v8293
      %v8295 = vpop.xlane.xlu0 %8294
      %v8296 = vsel %vm3089, %v8179, 0.0
      %v8297 = vadd.f32 %v8178, %v8296
      %8298 = vadd.xlane.f32.xlu0 %v8297
      %v8299 = vpop.xlane.xlu0 %8298
      %v8300 = vsel %vm3089, %v8181, 0.0
      %v8301 = vadd.f32 %v8180, %v8300
      %8302 = vadd.xlane.f32.xlu0 %v8301
      %v8303 = vpop.xlane.xlu0 %8302
      %v8304 = vsel %vm3089, %v8183, 0.0
      %v8305 = vadd.f32 %v8182, %v8304
      %8306 = vadd.xlane.f32.xlu0 %v8305
      %v8307 = vpop.xlane.xlu0 %8306
      %v8308 = vsel %vm3089, %v8185, 0.0
      %v8309 = vadd.f32 %v8184, %v8308
      %8310 = vadd.xlane.f32.xlu0 %v8309
      %v8311 = vpop.xlane.xlu0 %8310
      %v8312 = vsel %vm3089, %v8187, 0.0
      %v8313 = vadd.f32 %v8186, %v8312
      %8314 = vadd.xlane.f32.xlu0 %v8313
      %v8315 = vpop.xlane.xlu0 %8314
      %v8316 = vmul.f32 %v8191, %v3224
      %v8317 = vmul.f32 %v8195, %v3224
      %v8318 = vmul.f32 %v8199, %v3224
      %v8319 = vmul.f32 %v8203, %v3224
      %v8320 = vmul.f32 %v8207, %v3224
      %v8321 = vmul.f32 %v8211, %v3224
      %v8322 = vmul.f32 %v8215, %v3224
      %v8323 = vmul.f32 %v8219, %v3224
      %v8324 = vmul.f32 %v8223, %v3224
      %v8325 = vmul.f32 %v8227, %v3224
      %v8326 = vmul.f32 %v8231, %v3224
      %v8327 = vmul.f32 %v8235, %v3224
      %v8328 = vmul.f32 %v8239, %v3224
      %v8329 = vmul.f32 %v8243, %v3224
      %v8330 = vmul.f32 %v8247, %v3224
      %v8331 = vmul.f32 %v8251, %v3224
      %v8332 = vmul.f32 %v8255, %v3224
      %v8333 = vmul.f32 %v8259, %v3224
      %v8334 = vmul.f32 %v8263, %v3224
      %v8335 = vmul.f32 %v8267, %v3224
      %v8336 = vmul.f32 %v8271, %v3224
      %v8337 = vmul.f32 %v8275, %v3224
      %v8338 = vmul.f32 %v8279, %v3224
      %v8339 = vmul.f32 %v8283, %v3224
      %v8340 = vmul.f32 %v8287, %v3224
      %v8341 = vmul.f32 %v8291, %v3224
      %v8342 = vmul.f32 %v8295, %v3224
      %v8343 = vmul.f32 %v8299, %v3224
      %v8344 = vmul.f32 %v8303, %v3224
      %v8345 = vmul.f32 %v8307, %v3224
      %v8346 = vmul.f32 %v8311, %v3224
      %v8347 = vmul.f32 %v8315, %v3224
      %v8348 = vmul.f32 %v8092, %v8092
      %v8349 = vmul.f32 %v8093, %v8093
      %v8350 = vmul.f32 %v8094, %v8094
      %v8351 = vmul.f32 %v8095, %v8095
      %v8352 = vmul.f32 %v8096, %v8096
      %v8353 = vmul.f32 %v8097, %v8097
      %v8354 = vmul.f32 %v8098, %v8098
      %v8355 = vmul.f32 %v8099, %v8099
      %v8356 = vmul.f32 %v8100, %v8100
      %v8357 = vmul.f32 %v8101, %v8101
      %v8358 = vmul.f32 %v8102, %v8102
      %v8359 = vmul.f32 %v8103, %v8103
      %v8360 = vmul.f32 %v8104, %v8104
      %v8361 = vmul.f32 %v8105, %v8105
      %v8362 = vmul.f32 %v8106, %v8106
      %v8363 = vmul.f32 %v8107, %v8107
      %v8364 = vmul.f32 %v8108, %v8108
      %v8365 = vmul.f32 %v8109, %v8109
      %v8366 = vmul.f32 %v8110, %v8110
      %v8367 = vmul.f32 %v8111, %v8111
      %v8368 = vmul.f32 %v8112, %v8112
      %v8369 = vmul.f32 %v8113, %v8113
      %v8370 = vmul.f32 %v8114, %v8114
      %v8371 = vmul.f32 %v8115, %v8115
      %v8372 = vmul.f32 %v8116, %v8116
      %v8373 = vmul.f32 %v8117, %v8117
      %v8374 = vmul.f32 %v8118, %v8118
      %v8375 = vmul.f32 %v8119, %v8119
      %v8376 = vmul.f32 %v8120, %v8120
      %v8377 = vmul.f32 %v8121, %v8121
      %v8378 = vmul.f32 %v8122, %v8122
      %v8379 = vmul.f32 %v8123, %v8123
      %v8380 = vsub.f32 %v8316, %v8348
      %v8381 = vsub.f32 %v8317, %v8349
      %v8382 = vsub.f32 %v8318, %v8350
      %v8383 = vsub.f32 %v8319, %v8351
      %v8384 = vsub.f32 %v8320, %v8352
      %v8385 = vsub.f32 %v8321, %v8353
      %v8386 = vsub.f32 %v8322, %v8354
      %v8387 = vsub.f32 %v8323, %v8355
      %v8388 = vsub.f32 %v8324, %v8356
      %v8389 = vsub.f32 %v8325, %v8357
      %v8390 = vsub.f32 %v8326, %v8358
      %v8391 = vsub.f32 %v8327, %v8359
      %v8392 = vsub.f32 %v8328, %v8360
      %v8393 = vsub.f32 %v8329, %v8361
      %v8394 = vsub.f32 %v8330, %v8362
      %v8395 = vsub.f32 %v8331, %v8363
      %v8396 = vsub.f32 %v8332, %v8364
      %v8397 = vsub.f32 %v8333, %v8365
      %v8398 = vsub.f32 %v8334, %v8366
      %v8399 = vsub.f32 %v8335, %v8367
      %v8400 = vsub.f32 %v8336, %v8368
      %v8401 = vsub.f32 %v8337, %v8369
      %v8402 = vsub.f32 %v8338, %v8370
      %v8403 = vsub.f32 %v8339, %v8371
      %v8404 = vsub.f32 %v8340, %v8372
      %v8405 = vsub.f32 %v8341, %v8373
      %v8406 = vsub.f32 %v8342, %v8374
      %v8407 = vsub.f32 %v8343, %v8375
      %v8408 = vsub.f32 %v8344, %v8376
      %v8409 = vsub.f32 %v8345, %v8377
      %v8410 = vsub.f32 %v8346, %v8378
      %v8411 = vsub.f32 %v8347, %v8379
      %v8412 = vmax.f32 %v8380, 0.0
      %v8413 = vmax.f32 %v8381, 0.0
      %v8414 = vmax.f32 %v8382, 0.0
      %v8415 = vmax.f32 %v8383, 0.0
      %v8416 = vmax.f32 %v8384, 0.0
      %v8417 = vmax.f32 %v8385, 0.0
      %v8418 = vmax.f32 %v8386, 0.0
      %v8419 = vmax.f32 %v8387, 0.0
      %v8420 = vmax.f32 %v8388, 0.0
      %v8421 = vmax.f32 %v8389, 0.0
      %v8422 = vmax.f32 %v8390, 0.0
      %v8423 = vmax.f32 %v8391, 0.0
      %v8424 = vmax.f32 %v8392, 0.0
      %v8425 = vmax.f32 %v8393, 0.0
      %v8426 = vmax.f32 %v8394, 0.0
      %v8427 = vmax.f32 %v8395, 0.0
      %v8428 = vmax.f32 %v8396, 0.0
      %v8429 = vmax.f32 %v8397, 0.0
      %v8430 = vmax.f32 %v8398, 0.0
      %v8431 = vmax.f32 %v8399, 0.0
      %v8432 = vmax.f32 %v8400, 0.0
      %v8433 = vmax.f32 %v8401, 0.0
      %v8434 = vmax.f32 %v8402, 0.0
      %v8435 = vmax.f32 %v8403, 0.0
      %v8436 = vmax.f32 %v8404, 0.0
      %v8437 = vmax.f32 %v8405, 0.0
      %v8438 = vmax.f32 %v8406, 0.0
      %v8439 = vmax.f32 %v8407, 0.0
      %v8440 = vmax.f32 %v8408, 0.0
      %v8441 = vmax.f32 %v8409, 0.0
      %v8442 = vmax.f32 %v8410, 0.0
      %v8443 = vmax.f32 %v8411, 0.0
      %v8444 = vsub.f32 %v7900, %v8092
      %v8445 = vsub.f32 %v7901, %v8092
      %v8446 = vsub.f32 %v7902, %v8093
      %v8447 = vsub.f32 %v7903, %v8093
      %v8448 = vsub.f32 %v7904, %v8094
      %v8449 = vsub.f32 %v7905, %v8094
      %v8450 = vsub.f32 %v7906, %v8095
      %v8451 = vsub.f32 %v7907, %v8095
      %v8452 = vsub.f32 %v7908, %v8096
      %v8453 = vsub.f32 %v7909, %v8096
      %v8454 = vsub.f32 %v7910, %v8097
      %v8455 = vsub.f32 %v7911, %v8097
      %v8456 = vsub.f32 %v7912, %v8098
      %v8457 = vsub.f32 %v7913, %v8098
      %v8458 = vsub.f32 %v7914, %v8099
      %v8459 = vsub.f32 %v7915, %v8099
      %v8460 = vsub.f32 %v7916, %v8100
      %v8461 = vsub.f32 %v7917, %v8100
      %v8462 = vsub.f32 %v7918, %v8101
      %v8463 = vsub.f32 %v7919, %v8101
      %v8464 = vsub.f32 %v7920, %v8102
      %v8465 = vsub.f32 %v7921, %v8102
      %v8466 = vsub.f32 %v7922, %v8103
      %v8467 = vsub.f32 %v7923, %v8103
      %v8468 = vsub.f32 %v7924, %v8104
      %v8469 = vsub.f32 %v7925, %v8104
      %v8470 = vsub.f32 %v7926, %v8105
      %v8471 = vsub.f32 %v7927, %v8105
      %v8472 = vsub.f32 %v7928, %v8106
      %v8473 = vsub.f32 %v7929, %v8106
      %v8474 = vsub.f32 %v7930, %v8107
      %v8475 = vsub.f32 %v7931, %v8107
      %v8476 = vsub.f32 %v7932, %v8108
      %v8477 = vsub.f32 %v7933, %v8108
      %v8478 = vsub.f32 %v7934, %v8109
      %v8479 = vsub.f32 %v7935, %v8109
      %v8480 = vsub.f32 %v7936, %v8110
      %v8481 = vsub.f32 %v7937, %v8110
      %v8482 = vsub.f32 %v7938, %v8111
      %v8483 = vsub.f32 %v7939, %v8111
      %v8484 = vsub.f32 %v7940, %v8112
      %v8485 = vsub.f32 %v7941, %v8112
      %v8486 = vsub.f32 %v7942, %v8113
      %v8487 = vsub.f32 %v7943, %v8113
      %v8488 = vsub.f32 %v7944, %v8114
      %v8489 = vsub.f32 %v7945, %v8114
      %v8490 = vsub.f32 %v7946, %v8115
      %v8491 = vsub.f32 %v7947, %v8115
      %v8492 = vsub.f32 %v7948, %v8116
      %v8493 = vsub.f32 %v7949, %v8116
      %v8494 = vsub.f32 %v7950, %v8117
      %v8495 = vsub.f32 %v7951, %v8117
      %v8496 = vsub.f32 %v7952, %v8118
      %v8497 = vsub.f32 %v7953, %v8118
      %v8498 = vsub.f32 %v7954, %v8119
      %v8499 = vsub.f32 %v7955, %v8119
      %v8500 = vsub.f32 %v7956, %v8120
      %v8501 = vsub.f32 %v7957, %v8120
      %v8502 = vsub.f32 %v7958, %v8121
      %v8503 = vsub.f32 %v7959, %v8121
      %v8504 = vsub.f32 %v7960, %v8122
      %v8505 = vsub.f32 %v7961, %v8122
      %v8506 = vsub.f32 %v7962, %v8123
      %v8507 = vsub.f32 %v7963, %v8123
      %v8508 = vadd.f32 %v8412, 1e-05
      %v8509 = vadd.f32 %v8413, 1e-05
      %v8510 = vadd.f32 %v8414, 1e-05
      %v8511 = vadd.f32 %v8415, 1e-05
      %v8512 = vadd.f32 %v8416, 1e-05
      %v8513 = vadd.f32 %v8417, 1e-05
      %v8514 = vadd.f32 %v8418, 1e-05
      %v8515 = vadd.f32 %v8419, 1e-05
      %v8516 = vadd.f32 %v8420, 1e-05
      %v8517 = vadd.f32 %v8421, 1e-05
      %v8518 = vadd.f32 %v8422, 1e-05
      %v8519 = vadd.f32 %v8423, 1e-05
      %v8520 = vadd.f32 %v8424, 1e-05
      %v8521 = vadd.f32 %v8425, 1e-05
      %v8522 = vadd.f32 %v8426, 1e-05
      %v8523 = vadd.f32 %v8427, 1e-05
      %v8524 = vadd.f32 %v8428, 1e-05
      %v8525 = vadd.f32 %v8429, 1e-05
      %v8526 = vadd.f32 %v8430, 1e-05
      %v8527 = vadd.f32 %v8431, 1e-05
      %v8528 = vadd.f32 %v8432, 1e-05
      %v8529 = vadd.f32 %v8433, 1e-05
      %v8530 = vadd.f32 %v8434, 1e-05
      %v8531 = vadd.f32 %v8435, 1e-05
      %v8532 = vadd.f32 %v8436, 1e-05
      %v8533 = vadd.f32 %v8437, 1e-05
      %v8534 = vadd.f32 %v8438, 1e-05
      %v8535 = vadd.f32 %v8439, 1e-05
      %v8536 = vadd.f32 %v8440, 1e-05
      %v8537 = vadd.f32 %v8441, 1e-05
      %v8538 = vadd.f32 %v8442, 1e-05
      %v8539 = vadd.f32 %v8443, 1e-05
      %v8540 = vrsqrt.pop %v8508
      %v8541 = vmul.f32 %v8540, %v8508
      %v8542 = vmul.f32 %v8541, %v8540
      %v8543 = vmul.f32 0.5, %v8542
      %v8544 = vsub.f32 1.5, %v8543
      %v8545 = vmul.f32 %v8540, %v8544
      %vm8546 = vweird.f32 %v8508
      %vm8547 = vweird.f32 %v8540
      %vm8548 = vmor %vm8546, %vm8547
      %v8549 = vsel %vm8548, %v8540, %v8545
      %v8550 = vrsqrt.pop %v8509
      %v8551 = vmul.f32 %v8550, %v8509
      %v8552 = vmul.f32 %v8551, %v8550
      %v8553 = vmul.f32 0.5, %v8552
      %v8554 = vsub.f32 1.5, %v8553
      %v8555 = vmul.f32 %v8550, %v8554
      %vm8556 = vweird.f32 %v8509
      %vm8557 = vweird.f32 %v8550
      %vm8558 = vmor %vm8556, %vm8557
      %v8559 = vsel %vm8558, %v8550, %v8555
      %v8560 = vrsqrt.pop %v8510
      %v8561 = vmul.f32 %v8560, %v8510
      %v8562 = vmul.f32 %v8561, %v8560
      %v8563 = vmul.f32 0.5, %v8562
      %v8564 = vsub.f32 1.5, %v8563
      %v8565 = vmul.f32 %v8560, %v8564
      %vm8566 = vweird.f32 %v8510
      %vm8567 = vweird.f32 %v8560
      %vm8568 = vmor %vm8566, %vm8567
      %v8569 = vsel %vm8568, %v8560, %v8565
      %v8570 = vrsqrt.pop %v8511
      %v8571 = vmul.f32 %v8570, %v8511
      %v8572 = vmul.f32 %v8571, %v8570
      %v8573 = vmul.f32 0.5, %v8572
      %v8574 = vsub.f32 1.5, %v8573
      %v8575 = vmul.f32 %v8570, %v8574
      %vm8576 = vweird.f32 %v8511
      %vm8577 = vweird.f32 %v8570
      %vm8578 = vmor %vm8576, %vm8577
      %v8579 = vsel %vm8578, %v8570, %v8575
      %v8580 = vrsqrt.pop %v8512
      %v8581 = vmul.f32 %v8580, %v8512
      %v8582 = vmul.f32 %v8581, %v8580
      %v8583 = vmul.f32 0.5, %v8582
      %v8584 = vsub.f32 1.5, %v8583
      %v8585 = vmul.f32 %v8580, %v8584
      %vm8586 = vweird.f32 %v8512
      %vm8587 = vweird.f32 %v8580
      %vm8588 = vmor %vm8586, %vm8587
      %v8589 = vsel %vm8588, %v8580, %v8585
      %v8590 = vrsqrt.pop %v8513
      %v8591 = vmul.f32 %v8590, %v8513
      %v8592 = vmul.f32 %v8591, %v8590
      %v8593 = vmul.f32 0.5, %v8592
      %v8594 = vsub.f32 1.5, %v8593
      %v8595 = vmul.f32 %v8590, %v8594
      %vm8596 = vweird.f32 %v8513
      %vm8597 = vweird.f32 %v8590
      %vm8598 = vmor %vm8596, %vm8597
      %v8599 = vsel %vm8598, %v8590, %v8595
      %v8600 = vrsqrt.pop %v8514
      %v8601 = vmul.f32 %v8600, %v8514
      %v8602 = vmul.f32 %v8601, %v8600
      %v8603 = vmul.f32 0.5, %v8602
      %v8604 = vsub.f32 1.5, %v8603
      %v8605 = vmul.f32 %v8600, %v8604
      %vm8606 = vweird.f32 %v8514
      %vm8607 = vweird.f32 %v8600
      %vm8608 = vmor %vm8606, %vm8607
      %v8609 = vsel %vm8608, %v8600, %v8605
      %v8610 = vrsqrt.pop %v8515
      %v8611 = vmul.f32 %v8610, %v8515
      %v8612 = vmul.f32 %v8611, %v8610
      %v8613 = vmul.f32 0.5, %v8612
      %v8614 = vsub.f32 1.5, %v8613
      %v8615 = vmul.f32 %v8610, %v8614
      %vm8616 = vweird.f32 %v8515
      %vm8617 = vweird.f32 %v8610
      %vm8618 = vmor %vm8616, %vm8617
      %v8619 = vsel %vm8618, %v8610, %v8615
      %v8620 = vrsqrt.pop %v8516
      %v8621 = vmul.f32 %v8620, %v8516
      %v8622 = vmul.f32 %v8621, %v8620
      %v8623 = vmul.f32 0.5, %v8622
      %v8624 = vsub.f32 1.5, %v8623
      %v8625 = vmul.f32 %v8620, %v8624
      %vm8626 = vweird.f32 %v8516
      %vm8627 = vweird.f32 %v8620
      %vm8628 = vmor %vm8626, %vm8627
      %v8629 = vsel %vm8628, %v8620, %v8625
      %v8630 = vrsqrt.pop %v8517
      %v8631 = vmul.f32 %v8630, %v8517
      %v8632 = vmul.f32 %v8631, %v8630
      %v8633 = vmul.f32 0.5, %v8632
      %v8634 = vsub.f32 1.5, %v8633
      %v8635 = vmul.f32 %v8630, %v8634
      %vm8636 = vweird.f32 %v8517
      %vm8637 = vweird.f32 %v8630
      %vm8638 = vmor %vm8636, %vm8637
      %v8639 = vsel %vm8638, %v8630, %v8635
      %v8640 = vrsqrt.pop %v8518
      %v8641 = vmul.f32 %v8640, %v8518
      %v8642 = vmul.f32 %v8641, %v8640
      %v8643 = vmul.f32 0.5, %v8642
      %v8644 = vsub.f32 1.5, %v8643
      %v8645 = vmul.f32 %v8640, %v8644
      %vm8646 = vweird.f32 %v8518
      %vm8647 = vweird.f32 %v8640
      %vm8648 = vmor %vm8646, %vm8647
      %v8649 = vsel %vm8648, %v8640, %v8645
      %v8650 = vrsqrt.pop %v8519
      %v8651 = vmul.f32 %v8650, %v8519
      %v8652 = vmul.f32 %v8651, %v8650
      %v8653 = vmul.f32 0.5, %v8652
      %v8654 = vsub.f32 1.5, %v8653
      %v8655 = vmul.f32 %v8650, %v8654
      %vm8656 = vweird.f32 %v8519
      %vm8657 = vweird.f32 %v8650
      %vm8658 = vmor %vm8656, %vm8657
      %v8659 = vsel %vm8658, %v8650, %v8655
      %v8660 = vrsqrt.pop %v8520
      %v8661 = vmul.f32 %v8660, %v8520
      %v8662 = vmul.f32 %v8661, %v8660
      %v8663 = vmul.f32 0.5, %v8662
      %v8664 = vsub.f32 1.5, %v8663
      %v8665 = vmul.f32 %v8660, %v8664
      %vm8666 = vweird.f32 %v8520
      %vm8667 = vweird.f32 %v8660
      %vm8668 = vmor %vm8666, %vm8667
      %v8669 = vsel %vm8668, %v8660, %v8665
      %v8670 = vrsqrt.pop %v8521
      %v8671 = vmul.f32 %v8670, %v8521
      %v8672 = vmul.f32 %v8671, %v8670
      %v8673 = vmul.f32 0.5, %v8672
      %v8674 = vsub.f32 1.5, %v8673
      %v8675 = vmul.f32 %v8670, %v8674
      %vm8676 = vweird.f32 %v8521
      %vm8677 = vweird.f32 %v8670
      %vm8678 = vmor %vm8676, %vm8677
      %v8679 = vsel %vm8678, %v8670, %v8675
      %v8680 = vrsqrt.pop %v8522
      %v8681 = vmul.f32 %v8680, %v8522
      %v8682 = vmul.f32 %v8681, %v8680
      %v8683 = vmul.f32 0.5, %v8682
      %v8684 = vsub.f32 1.5, %v8683
      %v8685 = vmul.f32 %v8680, %v8684
      %vm8686 = vweird.f32 %v8522
      %vm8687 = vweird.f32 %v8680
      %vm8688 = vmor %vm8686, %vm8687
      %v8689 = vsel %vm8688, %v8680, %v8685
      %v8690 = vrsqrt.pop %v8523
      %v8691 = vmul.f32 %v8690, %v8523
      %v8692 = vmul.f32 %v8691, %v8690
      %v8693 = vmul.f32 0.5, %v8692
      %v8694 = vsub.f32 1.5, %v8693
      %v8695 = vmul.f32 %v8690, %v8694
      %vm8696 = vweird.f32 %v8523
      %vm8697 = vweird.f32 %v8690
      %vm8698 = vmor %vm8696, %vm8697
      %v8699 = vsel %vm8698, %v8690, %v8695
      %v8700 = vrsqrt.pop %v8524
      %v8701 = vmul.f32 %v8700, %v8524
      %v8702 = vmul.f32 %v8701, %v8700
      %v8703 = vmul.f32 0.5, %v8702
      %v8704 = vsub.f32 1.5, %v8703
      %v8705 = vmul.f32 %v8700, %v8704
      %vm8706 = vweird.f32 %v8524
      %vm8707 = vweird.f32 %v8700
      %vm8708 = vmor %vm8706, %vm8707
      %v8709 = vsel %vm8708, %v8700, %v8705
      %v8710 = vrsqrt.pop %v8525
      %v8711 = vmul.f32 %v8710, %v8525
      %v8712 = vmul.f32 %v8711, %v8710
      %v8713 = vmul.f32 0.5, %v8712
      %v8714 = vsub.f32 1.5, %v8713
      %v8715 = vmul.f32 %v8710, %v8714
      %vm8716 = vweird.f32 %v8525
      %vm8717 = vweird.f32 %v8710
      %vm8718 = vmor %vm8716, %vm8717
      %v8719 = vsel %vm8718, %v8710, %v8715
      %v8720 = vrsqrt.pop %v8526
      %v8721 = vmul.f32 %v8720, %v8526
      %v8722 = vmul.f32 %v8721, %v8720
      %v8723 = vmul.f32 0.5, %v8722
      %v8724 = vsub.f32 1.5, %v8723
      %v8725 = vmul.f32 %v8720, %v8724
      %vm8726 = vweird.f32 %v8526
      %vm8727 = vweird.f32 %v8720
      %vm8728 = vmor %vm8726, %vm8727
      %v8729 = vsel %vm8728, %v8720, %v8725
      %v8730 = vrsqrt.pop %v8527
      %v8731 = vmul.f32 %v8730, %v8527
      %v8732 = vmul.f32 %v8731, %v8730
      %v8733 = vmul.f32 0.5, %v8732
      %v8734 = vsub.f32 1.5, %v8733
      %v8735 = vmul.f32 %v8730, %v8734
      %vm8736 = vweird.f32 %v8527
      %vm8737 = vweird.f32 %v8730
      %vm8738 = vmor %vm8736, %vm8737
      %v8739 = vsel %vm8738, %v8730, %v8735
      %v8740 = vrsqrt.pop %v8528
      %v8741 = vmul.f32 %v8740, %v8528
      %v8742 = vmul.f32 %v8741, %v8740
      %v8743 = vmul.f32 0.5, %v8742
      %v8744 = vsub.f32 1.5, %v8743
      %v8745 = vmul.f32 %v8740, %v8744
      %vm8746 = vweird.f32 %v8528
      %vm8747 = vweird.f32 %v8740
      %vm8748 = vmor %vm8746, %vm8747
      %v8749 = vsel %vm8748, %v8740, %v8745
      %v8750 = vrsqrt.pop %v8529
      %v8751 = vmul.f32 %v8750, %v8529
      %v8752 = vmul.f32 %v8751, %v8750
      %v8753 = vmul.f32 0.5, %v8752
      %v8754 = vsub.f32 1.5, %v8753
      %v8755 = vmul.f32 %v8750, %v8754
      %vm8756 = vweird.f32 %v8529
      %vm8757 = vweird.f32 %v8750
      %vm8758 = vmor %vm8756, %vm8757
      %v8759 = vsel %vm8758, %v8750, %v8755
      %v8760 = vrsqrt.pop %v8530
      %v8761 = vmul.f32 %v8760, %v8530
      %v8762 = vmul.f32 %v8761, %v8760
      %v8763 = vmul.f32 0.5, %v8762
      %v8764 = vsub.f32 1.5, %v8763
      %v8765 = vmul.f32 %v8760, %v8764
      %vm8766 = vweird.f32 %v8530
      %vm8767 = vweird.f32 %v8760
      %vm8768 = vmor %vm8766, %vm8767
      %v8769 = vsel %vm8768, %v8760, %v8765
      %v8770 = vrsqrt.pop %v8531
      %v8771 = vmul.f32 %v8770, %v8531
      %v8772 = vmul.f32 %v8771, %v8770
      %v8773 = vmul.f32 0.5, %v8772
      %v8774 = vsub.f32 1.5, %v8773
      %v8775 = vmul.f32 %v8770, %v8774
      %vm8776 = vweird.f32 %v8531
      %vm8777 = vweird.f32 %v8770
      %vm8778 = vmor %vm8776, %vm8777
      %v8779 = vsel %vm8778, %v8770, %v8775
      %v8780 = vrsqrt.pop %v8532
      %v8781 = vmul.f32 %v8780, %v8532
      %v8782 = vmul.f32 %v8781, %v8780
      %v8783 = vmul.f32 0.5, %v8782
      %v8784 = vsub.f32 1.5, %v8783
      %v8785 = vmul.f32 %v8780, %v8784
      %vm8786 = vweird.f32 %v8532
      %vm8787 = vweird.f32 %v8780
      %vm8788 = vmor %vm8786, %vm8787
      %v8789 = vsel %vm8788, %v8780, %v8785
      %v8790 = vrsqrt.pop %v8533
      %v8791 = vmul.f32 %v8790, %v8533
      %v8792 = vmul.f32 %v8791, %v8790
      %v8793 = vmul.f32 0.5, %v8792
      %v8794 = vsub.f32 1.5, %v8793
      %v8795 = vmul.f32 %v8790, %v8794
      %vm8796 = vweird.f32 %v8533
      %vm8797 = vweird.f32 %v8790
      %vm8798 = vmor %vm8796, %vm8797
      %v8799 = vsel %vm8798, %v8790, %v8795
      %v8800 = vrsqrt.pop %v8534
      %v8801 = vmul.f32 %v8800, %v8534
      %v8802 = vmul.f32 %v8801, %v8800
      %v8803 = vmul.f32 0.5, %v8802
      %v8804 = vsub.f32 1.5, %v8803
      %v8805 = vmul.f32 %v8800, %v8804
      %vm8806 = vweird.f32 %v8534
      %vm8807 = vweird.f32 %v8800
      %vm8808 = vmor %vm8806, %vm8807
      %v8809 = vsel %vm8808, %v8800, %v8805
      %v8810 = vrsqrt.pop %v8535
      %v8811 = vmul.f32 %v8810, %v8535
      %v8812 = vmul.f32 %v8811, %v8810
      %v8813 = vmul.f32 0.5, %v8812
      %v8814 = vsub.f32 1.5, %v8813
      %v8815 = vmul.f32 %v8810, %v8814
      %vm8816 = vweird.f32 %v8535
      %vm8817 = vweird.f32 %v8810
      %vm8818 = vmor %vm8816, %vm8817
      %v8819 = vsel %vm8818, %v8810, %v8815
      %v8820 = vrsqrt.pop %v8536
      %v8821 = vmul.f32 %v8820, %v8536
      %v8822 = vmul.f32 %v8821, %v8820
      %v8823 = vmul.f32 0.5, %v8822
      %v8824 = vsub.f32 1.5, %v8823
      %v8825 = vmul.f32 %v8820, %v8824
      %vm8826 = vweird.f32 %v8536
      %vm8827 = vweird.f32 %v8820
      %vm8828 = vmor %vm8826, %vm8827
      %v8829 = vsel %vm8828, %v8820, %v8825
      %v8830 = vrsqrt.pop %v8537
      %v8831 = vmul.f32 %v8830, %v8537
      %v8832 = vmul.f32 %v8831, %v8830
      %v8833 = vmul.f32 0.5, %v8832
      %v8834 = vsub.f32 1.5, %v8833
      %v8835 = vmul.f32 %v8830, %v8834
      %vm8836 = vweird.f32 %v8537
      %vm8837 = vweird.f32 %v8830
      %vm8838 = vmor %vm8836, %vm8837
      %v8839 = vsel %vm8838, %v8830, %v8835
      %v8840 = vrsqrt.pop %v8538
      %v8841 = vmul.f32 %v8840, %v8538
      %v8842 = vmul.f32 %v8841, %v8840
      %v8843 = vmul.f32 0.5, %v8842
      %v8844 = vsub.f32 1.5, %v8843
      %v8845 = vmul.f32 %v8840, %v8844
      %vm8846 = vweird.f32 %v8538
      %vm8847 = vweird.f32 %v8840
      %vm8848 = vmor %vm8846, %vm8847
      %v8849 = vsel %vm8848, %v8840, %v8845
      %v8850 = vrsqrt.pop %v8539
      %v8851 = vmul.f32 %v8850, %v8539
      %v8852 = vmul.f32 %v8851, %v8850
      %v8853 = vmul.f32 0.5, %v8852
      %v8854 = vsub.f32 1.5, %v8853
      %v8855 = vmul.f32 %v8850, %v8854
      %vm8856 = vweird.f32 %v8539
      %vm8857 = vweird.f32 %v8850
      %vm8858 = vmor %vm8856, %vm8857
      %v8859 = vsel %vm8858, %v8850, %v8855
      %v8860 = vmul.f32 %v8444, %v8549
      %v8861 = vmul.f32 %v8445, %v8549
      %v8862 = vmul.f32 %v8446, %v8559
      %v8863 = vmul.f32 %v8447, %v8559
      %v8864 = vmul.f32 %v8448, %v8569
      %v8865 = vmul.f32 %v8449, %v8569
      %v8866 = vmul.f32 %v8450, %v8579
      %v8867 = vmul.f32 %v8451, %v8579
      %v8868 = vmul.f32 %v8452, %v8589
      %v8869 = vmul.f32 %v8453, %v8589
      %v8870 = vmul.f32 %v8454, %v8599
      %v8871 = vmul.f32 %v8455, %v8599
      %v8872 = vmul.f32 %v8456, %v8609
      %v8873 = vmul.f32 %v8457, %v8609
      %v8874 = vmul.f32 %v8458, %v8619
      %v8875 = vmul.f32 %v8459, %v8619
      %v8876 = vmul.f32 %v8460, %v8629
      %v8877 = vmul.f32 %v8461, %v8629
      %v8878 = vmul.f32 %v8462, %v8639
      %v8879 = vmul.f32 %v8463, %v8639
      %v8880 = vmul.f32 %v8464, %v8649
      %v8881 = vmul.f32 %v8465, %v8649
      %v8882 = vmul.f32 %v8466, %v8659
      %v8883 = vmul.f32 %v8467, %v8659
      %v8884 = vmul.f32 %v8468, %v8669
      %v8885 = vmul.f32 %v8469, %v8669
      %v8886 = vmul.f32 %v8470, %v8679
      %v8887 = vmul.f32 %v8471, %v8679
      %v8888 = vmul.f32 %v8472, %v8689
      %v8889 = vmul.f32 %v8473, %v8689
      %v8890 = vmul.f32 %v8474, %v8699
      %v8891 = vmul.f32 %v8475, %v8699
      %v8892 = vmul.f32 %v8476, %v8709
      %v8893 = vmul.f32 %v8477, %v8709
      %v8894 = vmul.f32 %v8478, %v8719
      %v8895 = vmul.f32 %v8479, %v8719
      %v8896 = vmul.f32 %v8480, %v8729
      %v8897 = vmul.f32 %v8481, %v8729
      %v8898 = vmul.f32 %v8482, %v8739
      %v8899 = vmul.f32 %v8483, %v8739
      %v8900 = vmul.f32 %v8484, %v8749
      %v8901 = vmul.f32 %v8485, %v8749
      %v8902 = vmul.f32 %v8486, %v8759
      %v8903 = vmul.f32 %v8487, %v8759
      %v8904 = vmul.f32 %v8488, %v8769
      %v8905 = vmul.f32 %v8489, %v8769
      %v8906 = vmul.f32 %v8490, %v8779
      %v8907 = vmul.f32 %v8491, %v8779
      %v8908 = vmul.f32 %v8492, %v8789
      %v8909 = vmul.f32 %v8493, %v8789
      %v8910 = vmul.f32 %v8494, %v8799
      %v8911 = vmul.f32 %v8495, %v8799
      %v8912 = vmul.f32 %v8496, %v8809
      %v8913 = vmul.f32 %v8497, %v8809
      %v8914 = vmul.f32 %v8498, %v8819
      %v8915 = vmul.f32 %v8499, %v8819
      %v8916 = vmul.f32 %v8500, %v8829
      %v8917 = vmul.f32 %v8501, %v8829
      %v8918 = vmul.f32 %v8502, %v8839
      %v8919 = vmul.f32 %v8503, %v8839
      %v8920 = vmul.f32 %v8504, %v8849
      %v8921 = vmul.f32 %v8505, %v8849
      %v8922 = vmul.f32 %v8506, %v8859
      %v8923 = vmul.f32 %v8507, %v8859
      %v8924 = vld [vmem:[%s9] sm:$0xf]
      %v8925 = vld [vmem:[%s9 + $0x4] sm:$0xf]
      %v8926 = vld [vmem:[%s9 + $0x8] sm:$0xf]
      %v8927 = vld [vmem:[%s9 + $0xc] sm:$0xf]
      %v8928 = vld [vmem:[%s9 + $0x10] sm:$0xf]
      %v8929 = vld [vmem:[%s9 + $0x14] sm:$0xf]
      %v8930 = vld [vmem:[%s9 + $0x18] sm:$0xf]
      %v8931 = vld [vmem:[%s9 + $0x1c] sm:$0xf]
      %v8932 = vld [vmem:[%s9 + $0x20] sm:$0xf]
      %v8933 = vld [vmem:[%s9 + $0x24] sm:$0xf]
      %v8934 = vld [vmem:[%s9 + $0x28] sm:$0xf]
      %v8935 = vld [vmem:[%s9 + $0x2c] sm:$0xf]
      %v8936 = vld [vmem:[%s9 + $0x30] sm:$0xf]
      %v8937 = vld [vmem:[%s9 + $0x34] sm:$0xf]
      %v8938 = vld [vmem:[%s9 + $0x38] sm:$0xf]
      %v8939 = vld [vmem:[%s9 + $0x3c] sm:$0xf]
      %v8940 = vld [vmem:[%s9 + $0x40] sm:$0xf]
      %v8941 = vld [vmem:[%s9 + $0x44] sm:$0xf]
      %v8942 = vld [vmem:[%s9 + $0x48] sm:$0xf]
      %v8943 = vld [vmem:[%s9 + $0x4c] sm:$0xf]
      %v8944 = vld [vmem:[%s9 + $0x50] sm:$0xf]
      %v8945 = vld [vmem:[%s9 + $0x54] sm:$0xf]
      %v8946 = vld [vmem:[%s9 + $0x58] sm:$0xf]
      %v8947 = vld [vmem:[%s9 + $0x5c] sm:$0xf]
      %v8948 = vld [vmem:[%s9 + $0x60] sm:$0xf]
      %v8949 = vld [vmem:[%s10] sm:$0xf]
      %v8950 = vld [vmem:[%s10 + $0x4] sm:$0xf]
      %v8951 = vld [vmem:[%s10 + $0x8] sm:$0xf]
      %v8952 = vld [vmem:[%s10 + $0xc] sm:$0xf]
      %v8953 = vld [vmem:[%s10 + $0x10] sm:$0xf]
      %v8954 = vld [vmem:[%s10 + $0x14] sm:$0xf]
      %v8955 = vld [vmem:[%s10 + $0x18] sm:$0xf]
      %v8956 = vld [vmem:[%s10 + $0x1c] sm:$0xf]
      %v8957 = vld [vmem:[%s10 + $0x20] sm:$0xf]
      %v8958 = vld [vmem:[%s10 + $0x24] sm:$0xf]
      %v8959 = vld [vmem:[%s10 + $0x28] sm:$0xf]
      %v8960 = vld [vmem:[%s10 + $0x2c] sm:$0xf]
      %v8961 = vld [vmem:[%s10 + $0x30] sm:$0xf]
      %v8962 = vld [vmem:[%s10 + $0x34] sm:$0xf]
      %v8963 = vld [vmem:[%s10 + $0x38] sm:$0xf]
      %v8964 = vld [vmem:[%s10 + $0x3c] sm:$0xf]
      %v8965 = vld [vmem:[%s10 + $0x40] sm:$0xf]
      %v8966 = vld [vmem:[%s10 + $0x44] sm:$0xf]
      %v8967 = vld [vmem:[%s10 + $0x48] sm:$0xf]
      %v8968 = vld [vmem:[%s10 + $0x4c] sm:$0xf]
      %v8969 = vld [vmem:[%s10 + $0x50] sm:$0xf]
      %v8970 = vld [vmem:[%s10 + $0x54] sm:$0xf]
      %v8971 = vld [vmem:[%s10 + $0x58] sm:$0xf]
      %v8972 = vld [vmem:[%s10 + $0x5c] sm:$0xf]
      %v8973 = vld [vmem:[%s10 + $0x60] sm:$0xf]
      %v8999 = vunpack.c.l.b16 %v8949
      %v9000 = vunpack.c.l.b16 %v8950
      %v9001 = vunpack.c.l.b16 %v8951
      %v9002 = vunpack.c.l.b16 %v8952
      %v9003 = vunpack.c.l.b16 %v8953
      %v9004 = vunpack.c.l.b16 %v8954
      %v9005 = vunpack.c.l.b16 %v8955
      %v9006 = vunpack.c.l.b16 %v8956
      %v9007 = vunpack.c.l.b16 %v8957
      %v9008 = vunpack.c.l.b16 %v8958
      %v9009 = vunpack.c.l.b16 %v8959
      %v9010 = vunpack.c.l.b16 %v8960
      %v9011 = vunpack.c.l.b16 %v8961
      %v9012 = vunpack.c.l.b16 %v8962
      %v9013 = vunpack.c.l.b16 %v8963
      %v9014 = vunpack.c.l.b16 %v8964
      %v9015 = vunpack.c.l.b16 %v8965
      %v9016 = vunpack.c.l.b16 %v8966
      %v9017 = vunpack.c.l.b16 %v8967
      %v9018 = vunpack.c.l.b16 %v8968
      %v9019 = vunpack.c.l.b16 %v8969
      %v9020 = vunpack.c.l.b16 %v8970
      %v9021 = vunpack.c.l.b16 %v8971
      %v9022 = vunpack.c.l.b16 %v8972
      %v9023 = vunpack.c.l.b16 %v8973
      %v9024 = vpack.c.b16 %v9000, %v8999
      %v9025 = vpack.c.b16 %v9002, %v9001
      %v9026 = vpack.c.b16 %v9004, %v9003
      %v9027 = vpack.c.b16 %v9006, %v9005
      %v9028 = vpack.c.b16 %v9008, %v9007
      %v9029 = vpack.c.b16 %v9010, %v9009
      %v9030 = vpack.c.b16 %v9012, %v9011
      %v9031 = vpack.c.b16 %v9014, %v9013
      %v9032 = vpack.c.b16 %v9016, %v9015
      %v9033 = vpack.c.b16 %v9018, %v9017
      %v9034 = vpack.c.b16 %v9020, %v9019
      %v9035 = vpack.c.b16 %v9022, %v9021
      %v9036 = vpack.c.b16 %v9023, %v9023
      %v9050 = vsel %vm4293, %v9036, 0
      %9052 = vmatpush.bf16.msra.mxu0 %v9031
      %9053 = vmatpush.bf16.msra.mxu0 %v9030
      %9054 = vmatpush.bf16.msra.mxu0 %v9029
      %9055 = vmatpush.bf16.msra.mxu0 %v9028
      %9056 = vmatpush.bf16.msra.mxu0 %v9027
      %9057 = vmatpush.bf16.msra.mxu0 %v9026
      %9058 = vmatpush.bf16.msra.mxu0 %v9025
      %9059 = vmatpush.bf16.msra.mxu0 %v9024
      %9060 = vmatmul.bf16.gmra.mxu0 %v7302
      %v9061 = vpop.f32.mrf.mxu0
      %v9062 = vadd.f32 0.0, %v9061
      %v9063 = vpop.f32.mrf.mxu0
      %v9064 = vadd.f32 0.0, %v9063
      %9065 = vmatmul.bf16.gmra.mxu0 %v7304
      %v9066 = vpop.f32.mrf.mxu0
      %v9067 = vadd.f32 0.0, %v9066
      %v9068 = vpop.f32.mrf.mxu0
      %v9069 = vadd.f32 0.0, %v9068
      %9070 = vmatmul.bf16.gmra.mxu0 %v7306
      %v9071 = vpop.f32.mrf.mxu0
      %v9072 = vadd.f32 0.0, %v9071
      %v9073 = vpop.f32.mrf.mxu0
      %v9074 = vadd.f32 0.0, %v9073
      %9075 = vmatmul.bf16.gmra.mxu0 %v7308
      %v9076 = vpop.f32.mrf.mxu0
      %v9077 = vadd.f32 0.0, %v9076
      %v9078 = vpop.f32.mrf.mxu0
      %v9079 = vadd.f32 0.0, %v9078
      %9080 = vmatmul.bf16.gmra.mxu0 %v7310
      %v9081 = vpop.f32.mrf.mxu0
      %v9082 = vadd.f32 0.0, %v9081
      %v9083 = vpop.f32.mrf.mxu0
      %v9084 = vadd.f32 0.0, %v9083
      %9085 = vmatmul.bf16.gmra.mxu0 %v7312
      %v9086 = vpop.f32.mrf.mxu0
      %v9087 = vadd.f32 0.0, %v9086
      %v9088 = vpop.f32.mrf.mxu0
      %v9089 = vadd.f32 0.0, %v9088
      %9090 = vmatmul.bf16.gmra.mxu0 %v7314
      %v9091 = vpop.f32.mrf.mxu0
      %v9092 = vadd.f32 0.0, %v9091
      %v9093 = vpop.f32.mrf.mxu0
      %v9094 = vadd.f32 0.0, %v9093
      %9095 = vmatmul.bf16.gmra.mxu0 %v7316
      %v9096 = vpop.f32.mrf.mxu0
      %v9097 = vadd.f32 0.0, %v9096
      %v9098 = vpop.f32.mrf.mxu0
      %v9099 = vadd.f32 0.0, %v9098
      %9100 = vmatmul.bf16.gmra.mxu0 %v7318
      %v9101 = vpop.f32.mrf.mxu0
      %v9102 = vadd.f32 0.0, %v9101
      %v9103 = vpop.f32.mrf.mxu0
      %v9104 = vadd.f32 0.0, %v9103
      %9105 = vmatmul.bf16.gmra.mxu0 %v7320
      %v9106 = vpop.f32.mrf.mxu0
      %v9107 = vadd.f32 0.0, %v9106
      %v9108 = vpop.f32.mrf.mxu0
      %v9109 = vadd.f32 0.0, %v9108
      %9110 = vmatmul.bf16.gmra.mxu0 %v7322
      %v9111 = vpop.f32.mrf.mxu0
      %v9112 = vadd.f32 0.0, %v9111
      %v9113 = vpop.f32.mrf.mxu0
      %v9114 = vadd.f32 0.0, %v9113
      %9115 = vmatmul.bf16.gmra.mxu0 %v7324
      %v9116 = vpop.f32.mrf.mxu0
      %v9117 = vadd.f32 0.0, %v9116
      %v9118 = vpop.f32.mrf.mxu0
      %v9119 = vadd.f32 0.0, %v9118
      %9120 = vmatmul.bf16.gmra.mxu0 %v7326
      %v9121 = vpop.f32.mrf.mxu0
      %v9122 = vadd.f32 0.0, %v9121
      %v9123 = vpop.f32.mrf.mxu0
      %v9124 = vadd.f32 0.0, %v9123
      %9125 = vmatmul.bf16.gmra.mxu0 %v7328
      %v9126 = vpop.f32.mrf.mxu0
      %v9127 = vadd.f32 0.0, %v9126
      %v9128 = vpop.f32.mrf.mxu0
      %v9129 = vadd.f32 0.0, %v9128
      %9130 = vmatmul.bf16.gmra.mxu0 %v7330
      %v9131 = vpop.f32.mrf.mxu0
      %v9132 = vadd.f32 0.0, %v9131
      %v9133 = vpop.f32.mrf.mxu0
      %v9134 = vadd.f32 0.0, %v9133
      %9135 = vmatmul.bf16.gmra.mxu0 %v7332
      %v9136 = vpop.f32.mrf.mxu0
      %v9137 = vadd.f32 0.0, %v9136
      %v9138 = vpop.f32.mrf.mxu0
      %v9139 = vadd.f32 0.0, %v9138
      %9140 = vdwg.mxu0
      %9141 = vmatpush.bf16.msra.mxu0 0
      %9142 = vmatpush.bf16.msra.mxu0 0
      %9143 = vmatpush.bf16.msra.mxu0 0
      %9144 = vmatpush.bf16.msra.mxu0 %v9050
      %9145 = vmatpush.bf16.msra.mxu0 %v9035
      %9146 = vmatpush.bf16.msra.mxu0 %v9034
      %9147 = vmatpush.bf16.msra.mxu0 %v9033
      %9148 = vmatpush.bf16.msra.mxu0 %v9032
      %9149 = vmatmul.bf16.gmra.mxu0 %v7491
      %v9150 = vpop.f32.mrf.mxu0
      %v9151 = vadd.f32 %v9062, %v9150
      %v9152 = vpop.f32.mrf.mxu0
      %v9153 = vadd.f32 %v9064, %v9152
      %9154 = vmatmul.bf16.gmra.mxu0 %v7494
      %v9155 = vpop.f32.mrf.mxu0
      %v9156 = vadd.f32 %v9067, %v9155
      %v9157 = vpop.f32.mrf.mxu0
      %v9158 = vadd.f32 %v9069, %v9157
      %9159 = vmatmul.bf16.gmra.mxu0 %v7497
      %v9160 = vpop.f32.mrf.mxu0
      %v9161 = vadd.f32 %v9072, %v9160
      %v9162 = vpop.f32.mrf.mxu0
      %v9163 = vadd.f32 %v9074, %v9162
      %9164 = vmatmul.bf16.gmra.mxu0 %v7500
      %v9165 = vpop.f32.mrf.mxu0
      %v9166 = vadd.f32 %v9077, %v9165
      %v9167 = vpop.f32.mrf.mxu0
      %v9168 = vadd.f32 %v9079, %v9167
      %9169 = vmatmul.bf16.gmra.mxu0 %v7503
      %v9170 = vpop.f32.mrf.mxu0
      %v9171 = vadd.f32 %v9082, %v9170
      %v9172 = vpop.f32.mrf.mxu0
      %v9173 = vadd.f32 %v9084, %v9172
      %9174 = vmatmul.bf16.gmra.mxu0 %v7506
      %v9175 = vpop.f32.mrf.mxu0
      %v9176 = vadd.f32 %v9087, %v9175
      %v9177 = vpop.f32.mrf.mxu0
      %v9178 = vadd.f32 %v9089, %v9177
      %9179 = vmatmul.bf16.gmra.mxu0 %v7509
      %v9180 = vpop.f32.mrf.mxu0
      %v9181 = vadd.f32 %v9092, %v9180
      %v9182 = vpop.f32.mrf.mxu0
      %v9183 = vadd.f32 %v9094, %v9182
      %9184 = vmatmul.bf16.gmra.mxu0 %v7512
      %v9185 = vpop.f32.mrf.mxu0
      %v9186 = vadd.f32 %v9097, %v9185
      %v9187 = vpop.f32.mrf.mxu0
      %v9188 = vadd.f32 %v9099, %v9187
      %9189 = vmatmul.bf16.gmra.mxu0 %v7515
      %v9190 = vpop.f32.mrf.mxu0
      %v9191 = vadd.f32 %v9102, %v9190
      %v9192 = vpop.f32.mrf.mxu0
      %v9193 = vadd.f32 %v9104, %v9192
      %9194 = vmatmul.bf16.gmra.mxu0 %v7518
      %v9195 = vpop.f32.mrf.mxu0
      %v9196 = vadd.f32 %v9107, %v9195
      %v9197 = vpop.f32.mrf.mxu0
      %v9198 = vadd.f32 %v9109, %v9197
      %9199 = vmatmul.bf16.gmra.mxu0 %v7521
      %v9200 = vpop.f32.mrf.mxu0
      %v9201 = vadd.f32 %v9112, %v9200
      %v9202 = vpop.f32.mrf.mxu0
      %v9203 = vadd.f32 %v9114, %v9202
      %9204 = vmatmul.bf16.gmra.mxu0 %v7524
      %v9205 = vpop.f32.mrf.mxu0
      %v9206 = vadd.f32 %v9117, %v9205
      %v9207 = vpop.f32.mrf.mxu0
      %v9208 = vadd.f32 %v9119, %v9207
      %9209 = vmatmul.bf16.gmra.mxu0 %v7527
      %v9210 = vpop.f32.mrf.mxu0
      %v9211 = vadd.f32 %v9122, %v9210
      %v9212 = vpop.f32.mrf.mxu0
      %v9213 = vadd.f32 %v9124, %v9212
      %9214 = vmatmul.bf16.gmra.mxu0 %v7530
      %v9215 = vpop.f32.mrf.mxu0
      %v9216 = vadd.f32 %v9127, %v9215
      %v9217 = vpop.f32.mrf.mxu0
      %v9218 = vadd.f32 %v9129, %v9217
      %9219 = vmatmul.bf16.gmra.mxu0 %v7533
      %v9220 = vpop.f32.mrf.mxu0
      %v9221 = vadd.f32 %v9132, %v9220
      %v9222 = vpop.f32.mrf.mxu0
      %v9223 = vadd.f32 %v9134, %v9222
      %9224 = vmatmul.bf16.gmra.mxu0 %v7536
      %v9225 = vpop.f32.mrf.mxu0
      %v9226 = vadd.f32 %v9137, %v9225
      %v9227 = vpop.f32.mrf.mxu0
      %v9228 = vadd.f32 %v9139, %v9227
      %9229 = vdwg.mxu0
      %v9255 = vunpack.c.l.b16 %v8924
      %v9256 = vunpack.c.l.b16 %v8925
      %v9257 = vunpack.c.l.b16 %v8926
      %v9258 = vunpack.c.l.b16 %v8927
      %v9259 = vunpack.c.l.b16 %v8928
      %v9260 = vunpack.c.l.b16 %v8929
      %v9261 = vunpack.c.l.b16 %v8930
      %v9262 = vunpack.c.l.b16 %v8931
      %v9263 = vunpack.c.l.b16 %v8932
      %v9264 = vunpack.c.l.b16 %v8933
      %v9265 = vunpack.c.l.b16 %v8934
      %v9266 = vunpack.c.l.b16 %v8935
      %v9267 = vunpack.c.l.b16 %v8936
      %v9268 = vunpack.c.l.b16 %v8937
      %v9269 = vunpack.c.l.b16 %v8938
      %v9270 = vunpack.c.l.b16 %v8939
      %v9271 = vunpack.c.l.b16 %v8940
      %v9272 = vunpack.c.l.b16 %v8941
      %v9273 = vunpack.c.l.b16 %v8942
      %v9274 = vunpack.c.l.b16 %v8943
      %v9275 = vunpack.c.l.b16 %v8944
      %v9276 = vunpack.c.l.b16 %v8945
      %v9277 = vunpack.c.l.b16 %v8946
      %v9278 = vunpack.c.l.b16 %v8947
      %v9279 = vunpack.c.l.b16 %v8948
      %v9280 = vpack.c.b16 %v9256, %v9255
      %v9281 = vpack.c.b16 %v9258, %v9257
      %v9282 = vpack.c.b16 %v9260, %v9259
      %v9283 = vpack.c.b16 %v9262, %v9261
      %v9284 = vpack.c.b16 %v9264, %v9263
      %v9285 = vpack.c.b16 %v9266, %v9265
      %v9286 = vpack.c.b16 %v9268, %v9267
      %v9287 = vpack.c.b16 %v9270, %v9269
      %v9288 = vpack.c.b16 %v9272, %v9271
      %v9289 = vpack.c.b16 %v9274, %v9273
      %v9290 = vpack.c.b16 %v9276, %v9275
      %v9291 = vpack.c.b16 %v9278, %v9277
      %v9292 = vpack.c.b16 %v9279, %v9279
      %v9306 = vsel %vm4293, %v9292, 0
      %9308 = vmatpush.bf16.msra.mxu0 %v9287
      %9309 = vmatpush.bf16.msra.mxu0 %v9286
      %9310 = vmatpush.bf16.msra.mxu0 %v9285
      %9311 = vmatpush.bf16.msra.mxu0 %v9284
      %9312 = vmatpush.bf16.msra.mxu0 %v9283
      %9313 = vmatpush.bf16.msra.mxu0 %v9282
      %9314 = vmatpush.bf16.msra.mxu0 %v9281
      %9315 = vmatpush.bf16.msra.mxu0 %v9280
      %9316 = vmatmul.bf16.gmra.mxu0 %v5680
      %v9317 = vpop.f32.mrf.mxu0
      %v9318 = vadd.f32 %v9151, %v9317
      %v9319 = vpop.f32.mrf.mxu0
      %v9320 = vadd.f32 %v9153, %v9319
      %9321 = vmatmul.bf16.gmra.mxu0 %v5682
      %v9322 = vpop.f32.mrf.mxu0
      %v9323 = vadd.f32 %v9156, %v9322
      %v9324 = vpop.f32.mrf.mxu0
      %v9325 = vadd.f32 %v9158, %v9324
      %9326 = vmatmul.bf16.gmra.mxu0 %v5684
      %v9327 = vpop.f32.mrf.mxu0
      %v9328 = vadd.f32 %v9161, %v9327
      %v9329 = vpop.f32.mrf.mxu0
      %v9330 = vadd.f32 %v9163, %v9329
      %9331 = vmatmul.bf16.gmra.mxu0 %v5686
      %v9332 = vpop.f32.mrf.mxu0
      %v9333 = vadd.f32 %v9166, %v9332
      %v9334 = vpop.f32.mrf.mxu0
      %v9335 = vadd.f32 %v9168, %v9334
      %9336 = vmatmul.bf16.gmra.mxu0 %v5688
      %v9337 = vpop.f32.mrf.mxu0
      %v9338 = vadd.f32 %v9171, %v9337
      %v9339 = vpop.f32.mrf.mxu0
      %v9340 = vadd.f32 %v9173, %v9339
      %9341 = vmatmul.bf16.gmra.mxu0 %v5690
      %v9342 = vpop.f32.mrf.mxu0
      %v9343 = vadd.f32 %v9176, %v9342
      %v9344 = vpop.f32.mrf.mxu0
      %v9345 = vadd.f32 %v9178, %v9344
      %9346 = vmatmul.bf16.gmra.mxu0 %v5692
      %v9347 = vpop.f32.mrf.mxu0
      %v9348 = vadd.f32 %v9181, %v9347
      %v9349 = vpop.f32.mrf.mxu0
      %v9350 = vadd.f32 %v9183, %v9349
      %9351 = vmatmul.bf16.gmra.mxu0 %v5694
      %v9352 = vpop.f32.mrf.mxu0
      %v9353 = vadd.f32 %v9186, %v9352
      %v9354 = vpop.f32.mrf.mxu0
      %v9355 = vadd.f32 %v9188, %v9354
      %9356 = vmatmul.bf16.gmra.mxu0 %v5696
      %v9357 = vpop.f32.mrf.mxu0
      %v9358 = vadd.f32 %v9191, %v9357
      %v9359 = vpop.f32.mrf.mxu0
      %v9360 = vadd.f32 %v9193, %v9359
      %9361 = vmatmul.bf16.gmra.mxu0 %v5698
      %v9362 = vpop.f32.mrf.mxu0
      %v9363 = vadd.f32 %v9196, %v9362
      %v9364 = vpop.f32.mrf.mxu0
      %v9365 = vadd.f32 %v9198, %v9364
      %9366 = vmatmul.bf16.gmra.mxu0 %v5700
      %v9367 = vpop.f32.mrf.mxu0
      %v9368 = vadd.f32 %v9201, %v9367
      %v9369 = vpop.f32.mrf.mxu0
      %v9370 = vadd.f32 %v9203, %v9369
      %9371 = vmatmul.bf16.gmra.mxu0 %v5702
      %v9372 = vpop.f32.mrf.mxu0
      %v9373 = vadd.f32 %v9206, %v9372
      %v9374 = vpop.f32.mrf.mxu0
      %v9375 = vadd.f32 %v9208, %v9374
      %9376 = vmatmul.bf16.gmra.mxu0 %v5704
      %v9377 = vpop.f32.mrf.mxu0
      %v9378 = vadd.f32 %v9211, %v9377
      %v9379 = vpop.f32.mrf.mxu0
      %v9380 = vadd.f32 %v9213, %v9379
      %9381 = vmatmul.bf16.gmra.mxu0 %v5706
      %v9382 = vpop.f32.mrf.mxu0
      %v9383 = vadd.f32 %v9216, %v9382
      %v9384 = vpop.f32.mrf.mxu0
      %v9385 = vadd.f32 %v9218, %v9384
      %9386 = vmatmul.bf16.gmra.mxu0 %v5708
      %v9387 = vpop.f32.mrf.mxu0
      %v9388 = vadd.f32 %v9221, %v9387
      %v9389 = vpop.f32.mrf.mxu0
      %v9390 = vadd.f32 %v9223, %v9389
      %9391 = vmatmul.bf16.gmra.mxu0 %v5710
      %v9392 = vpop.f32.mrf.mxu0
      %v9393 = vadd.f32 %v9226, %v9392
      %v9394 = vpop.f32.mrf.mxu0
      %v9395 = vadd.f32 %v9228, %v9394
      %9396 = vdwg.mxu0
      %9397 = vmatpush.bf16.msra.mxu0 0
      %9398 = vmatpush.bf16.msra.mxu0 0
      %9399 = vmatpush.bf16.msra.mxu0 0
      %9400 = vmatpush.bf16.msra.mxu0 %v9306
      %9401 = vmatpush.bf16.msra.mxu0 %v9291
      %9402 = vmatpush.bf16.msra.mxu0 %v9290
      %9403 = vmatpush.bf16.msra.mxu0 %v9289
      %9404 = vmatpush.bf16.msra.mxu0 %v9288
      %9405 = vmatmul.bf16.gmra.mxu0 %v5869
      %v9406 = vpop.f32.mrf.mxu0
      %v9407 = vadd.f32 %v9318, %v9406
      %v9408 = vpop.f32.mrf.mxu0
      %v9409 = vadd.f32 %v9320, %v9408
      %9410 = vmatmul.bf16.gmra.mxu0 %v5872
      %v9411 = vpop.f32.mrf.mxu0
      %v9412 = vadd.f32 %v9323, %v9411
      %v9413 = vpop.f32.mrf.mxu0
      %v9414 = vadd.f32 %v9325, %v9413
      %9415 = vmatmul.bf16.gmra.mxu0 %v5875
      %v9416 = vpop.f32.mrf.mxu0
      %v9417 = vadd.f32 %v9328, %v9416
      %v9418 = vpop.f32.mrf.mxu0
      %v9419 = vadd.f32 %v9330, %v9418
      %9420 = vmatmul.bf16.gmra.mxu0 %v5878
      %v9421 = vpop.f32.mrf.mxu0
      %v9422 = vadd.f32 %v9333, %v9421
      %v9423 = vpop.f32.mrf.mxu0
      %v9424 = vadd.f32 %v9335, %v9423
      %9425 = vmatmul.bf16.gmra.mxu0 %v5881
      %v9426 = vpop.f32.mrf.mxu0
      %v9427 = vadd.f32 %v9338, %v9426
      %v9428 = vpop.f32.mrf.mxu0
      %v9429 = vadd.f32 %v9340, %v9428
      %9430 = vmatmul.bf16.gmra.mxu0 %v5884
      %v9431 = vpop.f32.mrf.mxu0
      %v9432 = vadd.f32 %v9343, %v9431
      %v9433 = vpop.f32.mrf.mxu0
      %v9434 = vadd.f32 %v9345, %v9433
      %9435 = vmatmul.bf16.gmra.mxu0 %v5887
      %v9436 = vpop.f32.mrf.mxu0
      %v9437 = vadd.f32 %v9348, %v9436
      %v9438 = vpop.f32.mrf.mxu0
      %v9439 = vadd.f32 %v9350, %v9438
      %9440 = vmatmul.bf16.gmra.mxu0 %v5890
      %v9441 = vpop.f32.mrf.mxu0
      %v9442 = vadd.f32 %v9353, %v9441
      %v9443 = vpop.f32.mrf.mxu0
      %v9444 = vadd.f32 %v9355, %v9443
      %9445 = vmatmul.bf16.gmra.mxu0 %v5893
      %v9446 = vpop.f32.mrf.mxu0
      %v9447 = vadd.f32 %v9358, %v9446
      %v9448 = vpop.f32.mrf.mxu0
      %v9449 = vadd.f32 %v9360, %v9448
      %9450 = vmatmul.bf16.gmra.mxu0 %v5896
      %v9451 = vpop.f32.mrf.mxu0
      %v9452 = vadd.f32 %v9363, %v9451
      %v9453 = vpop.f32.mrf.mxu0
      %v9454 = vadd.f32 %v9365, %v9453
      %9455 = vmatmul.bf16.gmra.mxu0 %v5899
      %v9456 = vpop.f32.mrf.mxu0
      %v9457 = vadd.f32 %v9368, %v9456
      %v9458 = vpop.f32.mrf.mxu0
      %v9459 = vadd.f32 %v9370, %v9458
      %9460 = vmatmul.bf16.gmra.mxu0 %v5902
      %v9461 = vpop.f32.mrf.mxu0
      %v9462 = vadd.f32 %v9373, %v9461
      %v9463 = vpop.f32.mrf.mxu0
      %v9464 = vadd.f32 %v9375, %v9463
      %9465 = vmatmul.bf16.gmra.mxu0 %v5905
      %v9466 = vpop.f32.mrf.mxu0
      %v9467 = vadd.f32 %v9378, %v9466
      %v9468 = vpop.f32.mrf.mxu0
      %v9469 = vadd.f32 %v9380, %v9468
      %9470 = vmatmul.bf16.gmra.mxu0 %v5908
      %v9471 = vpop.f32.mrf.mxu0
      %v9472 = vadd.f32 %v9383, %v9471
      %v9473 = vpop.f32.mrf.mxu0
      %v9474 = vadd.f32 %v9385, %v9473
      %9475 = vmatmul.bf16.gmra.mxu0 %v5911
      %v9476 = vpop.f32.mrf.mxu0
      %v9477 = vadd.f32 %v9388, %v9476
      %v9478 = vpop.f32.mrf.mxu0
      %v9479 = vadd.f32 %v9390, %v9478
      %9480 = vmatmul.bf16.gmra.mxu0 %v5914
      %v9481 = vpop.f32.mrf.mxu0
      %v9482 = vadd.f32 %v9393, %v9481
      %v9483 = vpop.f32.mrf.mxu0
      %v9484 = vadd.f32 %v9395, %v9483
      %9485 = vdwg.mxu0
      %v9486 = vpack.c.bf16 %v8862, %v8860
      %v9487 = vpack.c.bf16 %v8863, %v8861
      %v9488 = vpack.c.bf16 %v8866, %v8864
      %v9489 = vpack.c.bf16 %v8867, %v8865
      %v9490 = vpack.c.bf16 %v8870, %v8868
      %v9491 = vpack.c.bf16 %v8871, %v8869
      %v9492 = vpack.c.bf16 %v8874, %v8872
      %v9493 = vpack.c.bf16 %v8875, %v8873
      %v9494 = vpack.c.bf16 %v8878, %v8876
      %v9495 = vpack.c.bf16 %v8879, %v8877
      %v9496 = vpack.c.bf16 %v8882, %v8880
      %v9497 = vpack.c.bf16 %v8883, %v8881
      %v9498 = vpack.c.bf16 %v8886, %v8884
      %v9499 = vpack.c.bf16 %v8887, %v8885
      %v9500 = vpack.c.bf16 %v8890, %v8888
      %v9501 = vpack.c.bf16 %v8891, %v8889
      %v9502 = vpack.c.bf16 %v8894, %v8892
      %v9503 = vpack.c.bf16 %v8895, %v8893
      %v9504 = vpack.c.bf16 %v8898, %v8896
      %v9505 = vpack.c.bf16 %v8899, %v8897
      %v9506 = vpack.c.bf16 %v8902, %v8900
      %v9507 = vpack.c.bf16 %v8903, %v8901
      %v9508 = vpack.c.bf16 %v8906, %v8904
      %v9509 = vpack.c.bf16 %v8907, %v8905
      %v9510 = vpack.c.bf16 %v8910, %v8908
      %v9511 = vpack.c.bf16 %v8911, %v8909
      %v9512 = vpack.c.bf16 %v8914, %v8912
      %v9513 = vpack.c.bf16 %v8915, %v8913
      %v9514 = vpack.c.bf16 %v8918, %v8916
      %v9515 = vpack.c.bf16 %v8919, %v8917
      %v9516 = vpack.c.bf16 %v8922, %v8920
      %v9517 = vpack.c.bf16 %v8923, %v8921
      %v9518 = vld [vmem:[%s11] sm:$0xf]
      %v9519 = vld [vmem:[%s11 + $0x4] sm:$0xf]
      %v9520 = vld [vmem:[%s11 + $0x8] sm:$0xf]
      %v9521 = vld [vmem:[%s11 + $0xc] sm:$0xf]
      %v9522 = vld [vmem:[%s11 + $0x10] sm:$0xf]
      %v9523 = vld [vmem:[%s11 + $0x14] sm:$0xf]
      %v9524 = vld [vmem:[%s11 + $0x18] sm:$0xf]
      %v9525 = vld [vmem:[%s11 + $0x1c] sm:$0xf]
      %v9526 = vld [vmem:[%s11 + $0x20] sm:$0xf]
      %v9527 = vld [vmem:[%s11 + $0x24] sm:$0xf]
      %v9528 = vld [vmem:[%s11 + $0x28] sm:$0xf]
      %v9529 = vld [vmem:[%s11 + $0x2c] sm:$0xf]
      %v9530 = vld [vmem:[%s11 + $0x30] sm:$0xf]
      %v9531 = vld [vmem:[%s11 + $0x34] sm:$0xf]
      %v9532 = vld [vmem:[%s11 + $0x38] sm:$0xf]
      %v9533 = vld [vmem:[%s11 + $0x3c] sm:$0xf]
      %v9534 = vld [vmem:[%s11 + $0x40] sm:$0xf]
      %v9535 = vld [vmem:[%s11 + $0x44] sm:$0xf]
      %v9536 = vld [vmem:[%s11 + $0x48] sm:$0xf]
      %v9537 = vld [vmem:[%s11 + $0x4c] sm:$0xf]
      %v9538 = vld [vmem:[%s11 + $0x50] sm:$0xf]
      %v9539 = vld [vmem:[%s11 + $0x54] sm:$0xf]
      %v9540 = vld [vmem:[%s11 + $0x58] sm:$0xf]
      %v9541 = vld [vmem:[%s11 + $0x5c] sm:$0xf]
      %v9542 = vld [vmem:[%s11 + $0x60] sm:$0xf]
      %v9568 = vunpack.c.l.b16 %v9518
      %v9569 = vunpack.c.l.b16 %v9519
      %v9570 = vunpack.c.l.b16 %v9520
      %v9571 = vunpack.c.l.b16 %v9521
      %v9572 = vunpack.c.l.b16 %v9522
      %v9573 = vunpack.c.l.b16 %v9523
      %v9574 = vunpack.c.l.b16 %v9524
      %v9575 = vunpack.c.l.b16 %v9525
      %v9576 = vunpack.c.l.b16 %v9526
      %v9577 = vunpack.c.l.b16 %v9527
      %v9578 = vunpack.c.l.b16 %v9528
      %v9579 = vunpack.c.l.b16 %v9529
      %v9580 = vunpack.c.l.b16 %v9530
      %v9581 = vunpack.c.l.b16 %v9531
      %v9582 = vunpack.c.l.b16 %v9532
      %v9583 = vunpack.c.l.b16 %v9533
      %v9584 = vunpack.c.l.b16 %v9534
      %v9585 = vunpack.c.l.b16 %v9535
      %v9586 = vunpack.c.l.b16 %v9536
      %v9587 = vunpack.c.l.b16 %v9537
      %v9588 = vunpack.c.l.b16 %v9538
      %v9589 = vunpack.c.l.b16 %v9539
      %v9590 = vunpack.c.l.b16 %v9540
      %v9591 = vunpack.c.l.b16 %v9541
      %v9592 = vunpack.c.l.b16 %v9542
      %v9593 = vpack.c.b16 %v9569, %v9568
      %v9594 = vpack.c.b16 %v9571, %v9570
      %v9595 = vpack.c.b16 %v9573, %v9572
      %v9596 = vpack.c.b16 %v9575, %v9574
      %v9597 = vpack.c.b16 %v9577, %v9576
      %v9598 = vpack.c.b16 %v9579, %v9578
      %v9599 = vpack.c.b16 %v9581, %v9580
      %v9600 = vpack.c.b16 %v9583, %v9582
      %v9601 = vpack.c.b16 %v9585, %v9584
      %v9602 = vpack.c.b16 %v9587, %v9586
      %v9603 = vpack.c.b16 %v9589, %v9588
      %v9604 = vpack.c.b16 %v9591, %v9590
      %v9605 = vpack.c.b16 %v9592, %v9592
      %v9619 = vsel %vm3089, %v9487, 0
      %v9622 = vsel %vm3089, %v9489, 0
      %v9625 = vsel %vm3089, %v9491, 0
      %v9628 = vsel %vm3089, %v9493, 0
      %v9631 = vsel %vm3089, %v9495, 0
      %v9634 = vsel %vm3089, %v9497, 0
      %v9637 = vsel %vm3089, %v9499, 0
      %v9640 = vsel %vm3089, %v9501, 0
      %v9643 = vsel %vm3089, %v9503, 0
      %v9646 = vsel %vm3089, %v9505, 0
      %v9649 = vsel %vm3089, %v9507, 0
      %v9652 = vsel %vm3089, %v9509, 0
      %v9655 = vsel %vm3089, %v9511, 0
      %v9658 = vsel %vm3089, %v9513, 0
      %v9661 = vsel %vm3089, %v9515, 0
      %v9664 = vsel %vm3089, %v9517, 0
      %v9667 = vsel %vm4293, %v9605, 0
      %9669 = vmatpush.bf16.msra.mxu0 %v9600
      %9670 = vmatpush.bf16.msra.mxu0 %v9599
      %9671 = vmatpush.bf16.msra.mxu0 %v9598
      %9672 = vmatpush.bf16.msra.mxu0 %v9597
      %9673 = vmatpush.bf16.msra.mxu0 %v9596
      %9674 = vmatpush.bf16.msra.mxu0 %v9595
      %9675 = vmatpush.bf16.msra.mxu0 %v9594
      %9676 = vmatpush.bf16.msra.mxu0 %v9593
      %9677 = vmatmul.bf16.gmra.mxu0 %v9486
      %v9678 = vpop.f32.mrf.mxu0
      %v9679 = vadd.f32 0.0, %v9678
      %v9680 = vpop.f32.mrf.mxu0
      %v9681 = vadd.f32 0.0, %v9680
      %9682 = vmatmul.bf16.gmra.mxu0 %v9488
      %v9683 = vpop.f32.mrf.mxu0
      %v9684 = vadd.f32 0.0, %v9683
      %v9685 = vpop.f32.mrf.mxu0
      %v9686 = vadd.f32 0.0, %v9685
      %9687 = vmatmul.bf16.gmra.mxu0 %v9490
      %v9688 = vpop.f32.mrf.mxu0
      %v9689 = vadd.f32 0.0, %v9688
      %v9690 = vpop.f32.mrf.mxu0
      %v9691 = vadd.f32 0.0, %v9690
      %9692 = vmatmul.bf16.gmra.mxu0 %v9492
      %v9693 = vpop.f32.mrf.mxu0
      %v9694 = vadd.f32 0.0, %v9693
      %v9695 = vpop.f32.mrf.mxu0
      %v9696 = vadd.f32 0.0, %v9695
      %9697 = vmatmul.bf16.gmra.mxu0 %v9494
      %v9698 = vpop.f32.mrf.mxu0
      %v9699 = vadd.f32 0.0, %v9698
      %v9700 = vpop.f32.mrf.mxu0
      %v9701 = vadd.f32 0.0, %v9700
      %9702 = vmatmul.bf16.gmra.mxu0 %v9496
      %v9703 = vpop.f32.mrf.mxu0
      %v9704 = vadd.f32 0.0, %v9703
      %v9705 = vpop.f32.mrf.mxu0
      %v9706 = vadd.f32 0.0, %v9705
      %9707 = vmatmul.bf16.gmra.mxu0 %v9498
      %v9708 = vpop.f32.mrf.mxu0
      %v9709 = vadd.f32 0.0, %v9708
      %v9710 = vpop.f32.mrf.mxu0
      %v9711 = vadd.f32 0.0, %v9710
      %9712 = vmatmul.bf16.gmra.mxu0 %v9500
      %v9713 = vpop.f32.mrf.mxu0
      %v9714 = vadd.f32 0.0, %v9713
      %v9715 = vpop.f32.mrf.mxu0
      %v9716 = vadd.f32 0.0, %v9715
      %9717 = vmatmul.bf16.gmra.mxu0 %v9502
      %v9718 = vpop.f32.mrf.mxu0
      %v9719 = vadd.f32 0.0, %v9718
      %v9720 = vpop.f32.mrf.mxu0
      %v9721 = vadd.f32 0.0, %v9720
      %9722 = vmatmul.bf16.gmra.mxu0 %v9504
      %v9723 = vpop.f32.mrf.mxu0
      %v9724 = vadd.f32 0.0, %v9723
      %v9725 = vpop.f32.mrf.mxu0
      %v9726 = vadd.f32 0.0, %v9725
      %9727 = vmatmul.bf16.gmra.mxu0 %v9506
      %v9728 = vpop.f32.mrf.mxu0
      %v9729 = vadd.f32 0.0, %v9728
      %v9730 = vpop.f32.mrf.mxu0
      %v9731 = vadd.f32 0.0, %v9730
      %9732 = vmatmul.bf16.gmra.mxu0 %v9508
      %v9733 = vpop.f32.mrf.mxu0
      %v9734 = vadd.f32 0.0, %v9733
      %v9735 = vpop.f32.mrf.mxu0
      %v9736 = vadd.f32 0.0, %v9735
      %9737 = vmatmul.bf16.gmra.mxu0 %v9510
      %v9738 = vpop.f32.mrf.mxu0
      %v9739 = vadd.f32 0.0, %v9738
      %v9740 = vpop.f32.mrf.mxu0
      %v9741 = vadd.f32 0.0, %v9740
      %9742 = vmatmul.bf16.gmra.mxu0 %v9512
      %v9743 = vpop.f32.mrf.mxu0
      %v9744 = vadd.f32 0.0, %v9743
      %v9745 = vpop.f32.mrf.mxu0
      %v9746 = vadd.f32 0.0, %v9745
      %9747 = vmatmul.bf16.gmra.mxu0 %v9514
      %v9748 = vpop.f32.mrf.mxu0
      %v9749 = vadd.f32 0.0, %v9748
      %v9750 = vpop.f32.mrf.mxu0
      %v9751 = vadd.f32 0.0, %v9750
      %9752 = vmatmul.bf16.gmra.mxu0 %v9516
      %v9753 = vpop.f32.mrf.mxu0
      %v9754 = vadd.f32 0.0, %v9753
      %v9755 = vpop.f32.mrf.mxu0
      %v9756 = vadd.f32 0.0, %v9755
      %9757 = vdwg.mxu0
      %9758 = vmatpush.bf16.msra.mxu0 0
      %9759 = vmatpush.bf16.msra.mxu0 0
      %9760 = vmatpush.bf16.msra.mxu0 0
      %9761 = vmatpush.bf16.msra.mxu0 %v9667
      %9762 = vmatpush.bf16.msra.mxu0 %v9604
      %9763 = vmatpush.bf16.msra.mxu0 %v9603
      %9764 = vmatpush.bf16.msra.mxu0 %v9602
      %9765 = vmatpush.bf16.msra.mxu0 %v9601
      %9766 = vmatmul.bf16.gmra.mxu0 %v9619
      %v9767 = vpop.f32.mrf.mxu0
      %v9768 = vadd.f32 %v9679, %v9767
      %v9769 = vpop.f32.mrf.mxu0
      %v9770 = vadd.f32 %v9681, %v9769
      %9771 = vmatmul.bf16.gmra.mxu0 %v9622
      %v9772 = vpop.f32.mrf.mxu0
      %v9773 = vadd.f32 %v9684, %v9772
      %v9774 = vpop.f32.mrf.mxu0
      %v9775 = vadd.f32 %v9686, %v9774
      %9776 = vmatmul.bf16.gmra.mxu0 %v9625
      %v9777 = vpop.f32.mrf.mxu0
      %v9778 = vadd.f32 %v9689, %v9777
      %v9779 = vpop.f32.mrf.mxu0
      %v9780 = vadd.f32 %v9691, %v9779
      %9781 = vmatmul.bf16.gmra.mxu0 %v9628
      %v9782 = vpop.f32.mrf.mxu0
      %v9783 = vadd.f32 %v9694, %v9782
      %v9784 = vpop.f32.mrf.mxu0
      %v9785 = vadd.f32 %v9696, %v9784
      %9786 = vmatmul.bf16.gmra.mxu0 %v9631
      %v9787 = vpop.f32.mrf.mxu0
      %v9788 = vadd.f32 %v9699, %v9787
      %v9789 = vpop.f32.mrf.mxu0
      %v9790 = vadd.f32 %v9701, %v9789
      %9791 = vmatmul.bf16.gmra.mxu0 %v9634
      %v9792 = vpop.f32.mrf.mxu0
      %v9793 = vadd.f32 %v9704, %v9792
      %v9794 = vpop.f32.mrf.mxu0
      %v9795 = vadd.f32 %v9706, %v9794
      %9796 = vmatmul.bf16.gmra.mxu0 %v9637
      %v9797 = vpop.f32.mrf.mxu0
      %v9798 = vadd.f32 %v9709, %v9797
      %v9799 = vpop.f32.mrf.mxu0
      %v9800 = vadd.f32 %v9711, %v9799
      %9801 = vmatmul.bf16.gmra.mxu0 %v9640
      %v9802 = vpop.f32.mrf.mxu0
      %v9803 = vadd.f32 %v9714, %v9802
      %v9804 = vpop.f32.mrf.mxu0
      %v9805 = vadd.f32 %v9716, %v9804
      %9806 = vmatmul.bf16.gmra.mxu0 %v9643
      %v9807 = vpop.f32.mrf.mxu0
      %v9808 = vadd.f32 %v9719, %v9807
      %v9809 = vpop.f32.mrf.mxu0
      %v9810 = vadd.f32 %v9721, %v9809
      %9811 = vmatmul.bf16.gmra.mxu0 %v9646
      %v9812 = vpop.f32.mrf.mxu0
      %v9813 = vadd.f32 %v9724, %v9812
      %v9814 = vpop.f32.mrf.mxu0
      %v9815 = vadd.f32 %v9726, %v9814
      %9816 = vmatmul.bf16.gmra.mxu0 %v9649
      %v9817 = vpop.f32.mrf.mxu0
      %v9818 = vadd.f32 %v9729, %v9817
      %v9819 = vpop.f32.mrf.mxu0
      %v9820 = vadd.f32 %v9731, %v9819
      %9821 = vmatmul.bf16.gmra.mxu0 %v9652
      %v9822 = vpop.f32.mrf.mxu0
      %v9823 = vadd.f32 %v9734, %v9822
      %v9824 = vpop.f32.mrf.mxu0
      %v9825 = vadd.f32 %v9736, %v9824
      %9826 = vmatmul.bf16.gmra.mxu0 %v9655
      %v9827 = vpop.f32.mrf.mxu0
      %v9828 = vadd.f32 %v9739, %v9827
      %v9829 = vpop.f32.mrf.mxu0
      %v9830 = vadd.f32 %v9741, %v9829
      %9831 = vmatmul.bf16.gmra.mxu0 %v9658
      %v9832 = vpop.f32.mrf.mxu0
      %v9833 = vadd.f32 %v9744, %v9832
      %v9834 = vpop.f32.mrf.mxu0
      %v9835 = vadd.f32 %v9746, %v9834
      %9836 = vmatmul.bf16.gmra.mxu0 %v9661
      %v9837 = vpop.f32.mrf.mxu0
      %v9838 = vadd.f32 %v9749, %v9837
      %v9839 = vpop.f32.mrf.mxu0
      %v9840 = vadd.f32 %v9751, %v9839
      %9841 = vmatmul.bf16.gmra.mxu0 %v9664
      %v9842 = vpop.f32.mrf.mxu0
      %v9843 = vadd.f32 %v9754, %v9842
      %v9844 = vpop.f32.mrf.mxu0
      %v9845 = vadd.f32 %v9756, %v9844
      %9846 = vdwg.mxu0
      %v9847 = vadd.f32 %v9407, %v9768
      %v9848 = vadd.f32 %v9409, %v9770
      %v9849 = vadd.f32 %v9412, %v9773
      %v9850 = vadd.f32 %v9414, %v9775
      %v9851 = vadd.f32 %v9417, %v9778
      %v9852 = vadd.f32 %v9419, %v9780
      %v9853 = vadd.f32 %v9422, %v9783
      %v9854 = vadd.f32 %v9424, %v9785
      %v9855 = vadd.f32 %v9427, %v9788
      %v9856 = vadd.f32 %v9429, %v9790
      %v9857 = vadd.f32 %v9432, %v9793
      %v9858 = vadd.f32 %v9434, %v9795
      %v9859 = vadd.f32 %v9437, %v9798
      %v9860 = vadd.f32 %v9439, %v9800
      %v9861 = vadd.f32 %v9442, %v9803
      %v9862 = vadd.f32 %v9444, %v9805
      %v9863 = vadd.f32 %v9447, %v9808
      %v9864 = vadd.f32 %v9449, %v9810
      %v9865 = vadd.f32 %v9452, %v9813
      %v9866 = vadd.f32 %v9454, %v9815
      %v9867 = vadd.f32 %v9457, %v9818
      %v9868 = vadd.f32 %v9459, %v9820
      %v9869 = vadd.f32 %v9462, %v9823
      %v9870 = vadd.f32 %v9464, %v9825
      %v9871 = vadd.f32 %v9467, %v9828
      %v9872 = vadd.f32 %v9469, %v9830
      %v9873 = vadd.f32 %v9472, %v9833
      %v9874 = vadd.f32 %v9474, %v9835
      %v9875 = vadd.f32 %v9477, %v9838
      %v9876 = vadd.f32 %v9479, %v9840
      %v9877 = vadd.f32 %v9482, %v9843
      %v9878 = vadd.f32 %v9484, %v9845
      %v9879 = vld [vmem:[%s12] sm:$0x1]
      %v9881 = vperm.slane %v9879, 0
      %v9883 = vadd.f32 %v9847, %v9881
      %v9884 = vadd.f32 %v9848, %v9881
      %v9885 = vadd.f32 %v9849, %v9881
      %v9886 = vadd.f32 %v9850, %v9881
      %v9887 = vadd.f32 %v9851, %v9881
      %v9888 = vadd.f32 %v9852, %v9881
      %v9889 = vadd.f32 %v9853, %v9881
      %v9890 = vadd.f32 %v9854, %v9881
      %v9891 = vadd.f32 %v9855, %v9881
      %v9892 = vadd.f32 %v9856, %v9881
      %v9893 = vadd.f32 %v9857, %v9881
      %v9894 = vadd.f32 %v9858, %v9881
      %v9895 = vadd.f32 %v9859, %v9881
      %v9896 = vadd.f32 %v9860, %v9881
      %v9897 = vadd.f32 %v9861, %v9881
      %v9898 = vadd.f32 %v9862, %v9881
      %v9899 = vadd.f32 %v9863, %v9881
      %v9900 = vadd.f32 %v9864, %v9881
      %v9901 = vadd.f32 %v9865, %v9881
      %v9902 = vadd.f32 %v9866, %v9881
      %v9903 = vadd.f32 %v9867, %v9881
      %v9904 = vadd.f32 %v9868, %v9881
      %v9905 = vadd.f32 %v9869, %v9881
      %v9906 = vadd.f32 %v9870, %v9881
      %v9907 = vadd.f32 %v9871, %v9881
      %v9908 = vadd.f32 %v9872, %v9881
      %v9909 = vadd.f32 %v9873, %v9881
      %v9910 = vadd.f32 %v9874, %v9881
      %v9911 = vadd.f32 %v9875, %v9881
      %v9912 = vadd.f32 %v9876, %v9881
      %v9913 = vadd.f32 %v9877, %v9881
      %v9914 = vadd.f32 %v9878, %v9881
      %vm9915 = vcmask 80896
      %v9916 = vsel %vm9915, %v9883, -inf
      %9917 = vmax.xlane.f32.xlu0 %v9916
      %v9918 = vpop.xlane.xlu0 %9917
      %v9919 = vsel %vm9915, %v9884, -inf
      %9920 = vmax.xlane.f32.xlu0 %v9919
      %v9921 = vpop.xlane.xlu0 %9920
      %v9922 = vsel %vm9915, %v9885, -inf
      %9923 = vmax.xlane.f32.xlu0 %v9922
      %v9924 = vpop.xlane.xlu0 %9923
      %v9925 = vsel %vm9915, %v9886, -inf
      %9926 = vmax.xlane.f32.xlu0 %v9925
      %v9927 = vpop.xlane.xlu0 %9926
      %v9928 = vsel %vm9915, %v9887, -inf
      %9929 = vmax.xlane.f32.xlu0 %v9928
      %v9930 = vpop.xlane.xlu0 %9929
      %v9931 = vsel %vm9915, %v9888, -inf
      %9932 = vmax.xlane.f32.xlu0 %v9931
      %v9933 = vpop.xlane.xlu0 %9932
      %v9934 = vsel %vm9915, %v9889, -inf
      %9935 = vmax.xlane.f32.xlu0 %v9934
      %v9936 = vpop.xlane.xlu0 %9935
      %v9937 = vsel %vm9915, %v9890, -inf
      %9938 = vmax.xlane.f32.xlu0 %v9937
      %v9939 = vpop.xlane.xlu0 %9938
      %v9940 = vsel %vm9915, %v9891, -inf
      %9941 = vmax.xlane.f32.xlu0 %v9940
      %v9942 = vpop.xlane.xlu0 %9941
      %v9943 = vsel %vm9915, %v9892, -inf
      %9944 = vmax.xlane.f32.xlu0 %v9943
      %v9945 = vpop.xlane.xlu0 %9944
      %v9946 = vsel %vm9915, %v9893, -inf
      %9947 = vmax.xlane.f32.xlu0 %v9946
      %v9948 = vpop.xlane.xlu0 %9947
      %v9949 = vsel %vm9915, %v9894, -inf
      %9950 = vmax.xlane.f32.xlu0 %v9949
      %v9951 = vpop.xlane.xlu0 %9950
      %v9952 = vsel %vm9915, %v9895, -inf
      %9953 = vmax.xlane.f32.xlu0 %v9952
      %v9954 = vpop.xlane.xlu0 %9953
      %v9955 = vsel %vm9915, %v9896, -inf
      %9956 = vmax.xlane.f32.xlu0 %v9955
      %v9957 = vpop.xlane.xlu0 %9956
      %v9958 = vsel %vm9915, %v9897, -inf
      %9959 = vmax.xlane.f32.xlu0 %v9958
      %v9960 = vpop.xlane.xlu0 %9959
      %v9961 = vsel %vm9915, %v9898, -inf
      %9962 = vmax.xlane.f32.xlu0 %v9961
      %v9963 = vpop.xlane.xlu0 %9962
      %v9964 = vsel %vm9915, %v9899, -inf
      %9965 = vmax.xlane.f32.xlu0 %v9964
      %v9966 = vpop.xlane.xlu0 %9965
      %v9967 = vsel %vm9915, %v9900, -inf
      %9968 = vmax.xlane.f32.xlu0 %v9967
      %v9969 = vpop.xlane.xlu0 %9968
      %v9970 = vsel %vm9915, %v9901, -inf
      %9971 = vmax.xlane.f32.xlu0 %v9970
      %v9972 = vpop.xlane.xlu0 %9971
      %v9973 = vsel %vm9915, %v9902, -inf
      %9974 = vmax.xlane.f32.xlu0 %v9973
      %v9975 = vpop.xlane.xlu0 %9974
      %v9976 = vsel %vm9915, %v9903, -inf
      %9977 = vmax.xlane.f32.xlu0 %v9976
      %v9978 = vpop.xlane.xlu0 %9977
      %v9979 = vsel %vm9915, %v9904, -inf
      %9980 = vmax.xlane.f32.xlu0 %v9979
      %v9981 = vpop.xlane.xlu0 %9980
      %v9982 = vsel %vm9915, %v9905, -inf
      %9983 = vmax.xlane.f32.xlu0 %v9982
      %v9984 = vpop.xlane.xlu0 %9983
      %v9985 = vsel %vm9915, %v9906, -inf
      %9986 = vmax.xlane.f32.xlu0 %v9985
      %v9987 = vpop.xlane.xlu0 %9986
      %v9988 = vsel %vm9915, %v9907, -inf
      %9989 = vmax.xlane.f32.xlu0 %v9988
      %v9990 = vpop.xlane.xlu0 %9989
      %v9991 = vsel %vm9915, %v9908, -inf
      %9992 = vmax.xlane.f32.xlu0 %v9991
      %v9993 = vpop.xlane.xlu0 %9992
      %v9994 = vsel %vm9915, %v9909, -inf
      %9995 = vmax.xlane.f32.xlu0 %v9994
      %v9996 = vpop.xlane.xlu0 %9995
      %v9997 = vsel %vm9915, %v9910, -inf
      %9998 = vmax.xlane.f32.xlu0 %v9997
      %v9999 = vpop.xlane.xlu0 %9998
      %v10000 = vsel %vm9915, %v9911, -inf
      %10001 = vmax.xlane.f32.xlu0 %v10000
      %v10002 = vpop.xlane.xlu0 %10001
      %v10003 = vsel %vm9915, %v9912, -inf
      %10004 = vmax.xlane.f32.xlu0 %v10003
      %v10005 = vpop.xlane.xlu0 %10004
      %v10006 = vsel %vm9915, %v9913, -inf
      %10007 = vmax.xlane.f32.xlu0 %v10006
      %v10008 = vpop.xlane.xlu0 %10007
      %v10009 = vsel %vm9915, %v9914, -inf
      %10010 = vmax.xlane.f32.xlu0 %v10009
      %v10011 = vpop.xlane.xlu0 %10010
      %v10012 = vsub.f32 %v9883, %v9918
      %v10013 = vsub.f32 %v9884, %v9921
      %v10014 = vsub.f32 %v9885, %v9924
      %v10015 = vsub.f32 %v9886, %v9927
      %v10016 = vsub.f32 %v9887, %v9930
      %v10017 = vsub.f32 %v9888, %v9933
      %v10018 = vsub.f32 %v9889, %v9936
      %v10019 = vsub.f32 %v9890, %v9939
      %v10020 = vsub.f32 %v9891, %v9942
      %v10021 = vsub.f32 %v9892, %v9945
      %v10022 = vsub.f32 %v9893, %v9948
      %v10023 = vsub.f32 %v9894, %v9951
      %v10024 = vsub.f32 %v9895, %v9954
      %v10025 = vsub.f32 %v9896, %v9957
      %v10026 = vsub.f32 %v9897, %v9960
      %v10027 = vsub.f32 %v9898, %v9963
      %v10028 = vsub.f32 %v9899, %v9966
      %v10029 = vsub.f32 %v9900, %v9969
      %v10030 = vsub.f32 %v9901, %v9972
      %v10031 = vsub.f32 %v9902, %v9975
      %v10032 = vsub.f32 %v9903, %v9978
      %v10033 = vsub.f32 %v9904, %v9981
      %v10034 = vsub.f32 %v9905, %v9984
      %v10035 = vsub.f32 %v9906, %v9987
      %v10036 = vsub.f32 %v9907, %v9990
      %v10037 = vsub.f32 %v9908, %v9993
      %v10038 = vsub.f32 %v9909, %v9996
      %v10039 = vsub.f32 %v9910, %v9999
      %v10040 = vsub.f32 %v9911, %v10002
      %v10041 = vsub.f32 %v9912, %v10005
      %v10042 = vsub.f32 %v9913, %v10008
      %v10043 = vsub.f32 %v9914, %v10011
      %v10044 = vmul.f32 %v10012, 1.442695
      %v10045 = vpow.pop %v10044
      %v10046 = vmul.f32 %v10013, 1.442695
      %v10047 = vpow.pop %v10046
      %v10048 = vmul.f32 %v10014, 1.442695
      %v10049 = vpow.pop %v10048
      %v10050 = vmul.f32 %v10015, 1.442695
      %v10051 = vpow.pop %v10050
      %v10052 = vmul.f32 %v10016, 1.442695
      %v10053 = vpow.pop %v10052
      %v10054 = vmul.f32 %v10017, 1.442695
      %v10055 = vpow.pop %v10054
      %v10056 = vmul.f32 %v10018, 1.442695
      %v10057 = vpow.pop %v10056
      %v10058 = vmul.f32 %v10019, 1.442695
      %v10059 = vpow.pop %v10058
      %v10060 = vmul.f32 %v10020, 1.442695
      %v10061 = vpow.pop %v10060
      %v10062 = vmul.f32 %v10021, 1.442695
      %v10063 = vpow.pop %v10062
      %v10064 = vmul.f32 %v10022, 1.442695
      %v10065 = vpow.pop %v10064
      %v10066 = vmul.f32 %v10023, 1.442695
      %v10067 = vpow.pop %v10066
      %v10068 = vmul.f32 %v10024, 1.442695
      %v10069 = vpow.pop %v10068
      %v10070 = vmul.f32 %v10025, 1.442695
      %v10071 = vpow.pop %v10070
      %v10072 = vmul.f32 %v10026, 1.442695
      %v10073 = vpow.pop %v10072
      %v10074 = vmul.f32 %v10027, 1.442695
      %v10075 = vpow.pop %v10074
      %v10076 = vmul.f32 %v10028, 1.442695
      %v10077 = vpow.pop %v10076
      %v10078 = vmul.f32 %v10029, 1.442695
      %v10079 = vpow.pop %v10078
      %v10080 = vmul.f32 %v10030, 1.442695
      %v10081 = vpow.pop %v10080
      %v10082 = vmul.f32 %v10031, 1.442695
      %v10083 = vpow.pop %v10082
      %v10084 = vmul.f32 %v10032, 1.442695
      %v10085 = vpow.pop %v10084
      %v10086 = vmul.f32 %v10033, 1.442695
      %v10087 = vpow.pop %v10086
      %v10088 = vmul.f32 %v10034, 1.442695
      %v10089 = vpow.pop %v10088
      %v10090 = vmul.f32 %v10035, 1.442695
      %v10091 = vpow.pop %v10090
      %v10092 = vmul.f32 %v10036, 1.442695
      %v10093 = vpow.pop %v10092
      %v10094 = vmul.f32 %v10037, 1.442695
      %v10095 = vpow.pop %v10094
      %v10096 = vmul.f32 %v10038, 1.442695
      %v10097 = vpow.pop %v10096
      %v10098 = vmul.f32 %v10039, 1.442695
      %v10099 = vpow.pop %v10098
      %v10100 = vmul.f32 %v10040, 1.442695
      %v10101 = vpow.pop %v10100
      %v10102 = vmul.f32 %v10041, 1.442695
      %v10103 = vpow.pop %v10102
      %v10104 = vmul.f32 %v10042, 1.442695
      %v10105 = vpow.pop %v10104
      %v10106 = vmul.f32 %v10043, 1.442695
      %v10107 = vpow.pop %v10106
      %v10108 = vsel %vm9915, %v10045, 0.0
      %10109 = vadd.xlane.f32.xlu0 %v10108
      %v10110 = vpop.xlane.xlu0 %10109
      %v10111 = vsel %vm9915, %v10047, 0.0
      %10112 = vadd.xlane.f32.xlu0 %v10111
      %v10113 = vpop.xlane.xlu0 %10112
      %v10114 = vsel %vm9915, %v10049, 0.0
      %10115 = vadd.xlane.f32.xlu0 %v10114
      %v10116 = vpop.xlane.xlu0 %10115
      %v10117 = vsel %vm9915, %v10051, 0.0
      %10118 = vadd.xlane.f32.xlu0 %v10117
      %v10119 = vpop.xlane.xlu0 %10118
      %v10120 = vsel %vm9915, %v10053, 0.0
      %10121 = vadd.xlane.f32.xlu0 %v10120
      %v10122 = vpop.xlane.xlu0 %10121
      %v10123 = vsel %vm9915, %v10055, 0.0
      %10124 = vadd.xlane.f32.xlu0 %v10123
      %v10125 = vpop.xlane.xlu0 %10124
      %v10126 = vsel %vm9915, %v10057, 0.0
      %10127 = vadd.xlane.f32.xlu0 %v10126
      %v10128 = vpop.xlane.xlu0 %10127
      %v10129 = vsel %vm9915, %v10059, 0.0
      %10130 = vadd.xlane.f32.xlu0 %v10129
      %v10131 = vpop.xlane.xlu0 %10130
      %v10132 = vsel %vm9915, %v10061, 0.0
      %10133 = vadd.xlane.f32.xlu0 %v10132
      %v10134 = vpop.xlane.xlu0 %10133
      %v10135 = vsel %vm9915, %v10063, 0.0
      %10136 = vadd.xlane.f32.xlu0 %v10135
      %v10137 = vpop.xlane.xlu0 %10136
      %v10138 = vsel %vm9915, %v10065, 0.0
      %10139 = vadd.xlane.f32.xlu0 %v10138
      %v10140 = vpop.xlane.xlu0 %10139
      %v10141 = vsel %vm9915, %v10067, 0.0
      %10142 = vadd.xlane.f32.xlu0 %v10141
      %v10143 = vpop.xlane.xlu0 %10142
      %v10144 = vsel %vm9915, %v10069, 0.0
      %10145 = vadd.xlane.f32.xlu0 %v10144
      %v10146 = vpop.xlane.xlu0 %10145
      %v10147 = vsel %vm9915, %v10071, 0.0
      %10148 = vadd.xlane.f32.xlu0 %v10147
      %v10149 = vpop.xlane.xlu0 %10148
      %v10150 = vsel %vm9915, %v10073, 0.0
      %10151 = vadd.xlane.f32.xlu0 %v10150
      %v10152 = vpop.xlane.xlu0 %10151
      %v10153 = vsel %vm9915, %v10075, 0.0
      %10154 = vadd.xlane.f32.xlu0 %v10153
      %v10155 = vpop.xlane.xlu0 %10154
      %v10156 = vsel %vm9915, %v10077, 0.0
      %10157 = vadd.xlane.f32.xlu0 %v10156
      %v10158 = vpop.xlane.xlu0 %10157
      %v10159 = vsel %vm9915, %v10079, 0.0
      %10160 = vadd.xlane.f32.xlu0 %v10159
      %v10161 = vpop.xlane.xlu0 %10160
      %v10162 = vsel %vm9915, %v10081, 0.0
      %10163 = vadd.xlane.f32.xlu0 %v10162
      %v10164 = vpop.xlane.xlu0 %10163
      %v10165 = vsel %vm9915, %v10083, 0.0
      %10166 = vadd.xlane.f32.xlu0 %v10165
      %v10167 = vpop.xlane.xlu0 %10166
      %v10168 = vsel %vm9915, %v10085, 0.0
      %10169 = vadd.xlane.f32.xlu0 %v10168
      %v10170 = vpop.xlane.xlu0 %10169
      %v10171 = vsel %vm9915, %v10087, 0.0
      %10172 = vadd.xlane.f32.xlu0 %v10171
      %v10173 = vpop.xlane.xlu0 %10172
      %v10174 = vsel %vm9915, %v10089, 0.0
      %10175 = vadd.xlane.f32.xlu0 %v10174
      %v10176 = vpop.xlane.xlu0 %10175
      %v10177 = vsel %vm9915, %v10091, 0.0
      %10178 = vadd.xlane.f32.xlu0 %v10177
      %v10179 = vpop.xlane.xlu0 %10178
      %v10180 = vsel %vm9915, %v10093, 0.0
      %10181 = vadd.xlane.f32.xlu0 %v10180
      %v10182 = vpop.xlane.xlu0 %10181
      %v10183 = vsel %vm9915, %v10095, 0.0
      %10184 = vadd.xlane.f32.xlu0 %v10183
      %v10185 = vpop.xlane.xlu0 %10184
      %v10186 = vsel %vm9915, %v10097, 0.0
      %10187 = vadd.xlane.f32.xlu0 %v10186
      %v10188 = vpop.xlane.xlu0 %10187
      %v10189 = vsel %vm9915, %v10099, 0.0
      %10190 = vadd.xlane.f32.xlu0 %v10189
      %v10191 = vpop.xlane.xlu0 %10190
      %v10192 = vsel %vm9915, %v10101, 0.0
      %10193 = vadd.xlane.f32.xlu0 %v10192
      %v10194 = vpop.xlane.xlu0 %10193
      %v10195 = vsel %vm9915, %v10103, 0.0
      %10196 = vadd.xlane.f32.xlu0 %v10195
      %v10197 = vpop.xlane.xlu0 %10196
      %v10198 = vsel %vm9915, %v10105, 0.0
      %10199 = vadd.xlane.f32.xlu0 %v10198
      %v10200 = vpop.xlane.xlu0 %10199
      %v10201 = vsel %vm9915, %v10107, 0.0
      %10202 = vadd.xlane.f32.xlu0 %v10201
      %v10203 = vpop.xlane.xlu0 %10202
      %v10204 = vrcp.pop %v10110
      %v10205 = vmul.f32 %v10110, %v10204
      %v10206 = vsub.f32 1.0, %v10205
      %v10207 = vmul.f32 %v10204, %v10206
      %v10208 = vadd.f32 %v10204, %v10207
      %vm10209 = vweird.f32 %v10110
      %vm10210 = vweird.f32 %v10204
      %vm10211 = vmor %vm10209, %vm10210
      %v10212 = vsel %vm10211, %v10204, %v10208
      %v10213 = vand.u32 2147483647, %v10110
      %vm10214 = vcmp.eq.f32.partialorder %v10213, 8.507059e+37
      %v10215 = vand.u32 %v10110, 2147483648
      %v10216 = vor.u32 1.1754944e-38, %v10215
      %v10217 = vsel %vm10214, %v10216, %v10212
      %v10218 = vmul.f32 %v10045, %v10217
      %v10219 = vrcp.pop %v10113
      %v10220 = vmul.f32 %v10113, %v10219
      %v10221 = vsub.f32 1.0, %v10220
      %v10222 = vmul.f32 %v10219, %v10221
      %v10223 = vadd.f32 %v10219, %v10222
      %vm10224 = vweird.f32 %v10113
      %vm10225 = vweird.f32 %v10219
      %vm10226 = vmor %vm10224, %vm10225
      %v10227 = vsel %vm10226, %v10219, %v10223
      %v10228 = vand.u32 2147483647, %v10113
      %vm10229 = vcmp.eq.f32.partialorder %v10228, 8.507059e+37
      %v10230 = vand.u32 %v10113, 2147483648
      %v10231 = vor.u32 1.1754944e-38, %v10230
      %v10232 = vsel %vm10229, %v10231, %v10227
      %v10233 = vmul.f32 %v10047, %v10232
      %v10234 = vrcp.pop %v10116
      %v10235 = vmul.f32 %v10116, %v10234
      %v10236 = vsub.f32 1.0, %v10235
      %v10237 = vmul.f32 %v10234, %v10236
      %v10238 = vadd.f32 %v10234, %v10237
      %vm10239 = vweird.f32 %v10116
      %vm10240 = vweird.f32 %v10234
      %vm10241 = vmor %vm10239, %vm10240
      %v10242 = vsel %vm10241, %v10234, %v10238
      %v10243 = vand.u32 2147483647, %v10116
      %vm10244 = vcmp.eq.f32.partialorder %v10243, 8.507059e+37
      %v10245 = vand.u32 %v10116, 2147483648
      %v10246 = vor.u32 1.1754944e-38, %v10245
      %v10247 = vsel %vm10244, %v10246, %v10242
      %v10248 = vmul.f32 %v10049, %v10247
      %v10249 = vrcp.pop %v10119
      %v10250 = vmul.f32 %v10119, %v10249
      %v10251 = vsub.f32 1.0, %v10250
      %v10252 = vmul.f32 %v10249, %v10251
      %v10253 = vadd.f32 %v10249, %v10252
      %vm10254 = vweird.f32 %v10119
      %vm10255 = vweird.f32 %v10249
      %vm10256 = vmor %vm10254, %vm10255
      %v10257 = vsel %vm10256, %v10249, %v10253
      %v10258 = vand.u32 2147483647, %v10119
      %vm10259 = vcmp.eq.f32.partialorder %v10258, 8.507059e+37
      %v10260 = vand.u32 %v10119, 2147483648
      %v10261 = vor.u32 1.1754944e-38, %v10260
      %v10262 = vsel %vm10259, %v10261, %v10257
      %v10263 = vmul.f32 %v10051, %v10262
      %v10264 = vrcp.pop %v10122
      %v10265 = vmul.f32 %v10122, %v10264
      %v10266 = vsub.f32 1.0, %v10265
      %v10267 = vmul.f32 %v10264, %v10266
      %v10268 = vadd.f32 %v10264, %v10267
      %vm10269 = vweird.f32 %v10122
      %vm10270 = vweird.f32 %v10264
      %vm10271 = vmor %vm10269, %vm10270
      %v10272 = vsel %vm10271, %v10264, %v10268
      %v10273 = vand.u32 2147483647, %v10122
      %vm10274 = vcmp.eq.f32.partialorder %v10273, 8.507059e+37
      %v10275 = vand.u32 %v10122, 2147483648
      %v10276 = vor.u32 1.1754944e-38, %v10275
      %v10277 = vsel %vm10274, %v10276, %v10272
      %v10278 = vmul.f32 %v10053, %v10277
      %v10279 = vrcp.pop %v10125
      %v10280 = vmul.f32 %v10125, %v10279
      %v10281 = vsub.f32 1.0, %v10280
      %v10282 = vmul.f32 %v10279, %v10281
      %v10283 = vadd.f32 %v10279, %v10282
      %vm10284 = vweird.f32 %v10125
      %vm10285 = vweird.f32 %v10279
      %vm10286 = vmor %vm10284, %vm10285
      %v10287 = vsel %vm10286, %v10279, %v10283
      %v10288 = vand.u32 2147483647, %v10125
      %vm10289 = vcmp.eq.f32.partialorder %v10288, 8.507059e+37
      %v10290 = vand.u32 %v10125, 2147483648
      %v10291 = vor.u32 1.1754944e-38, %v10290
      %v10292 = vsel %vm10289, %v10291, %v10287
      %v10293 = vmul.f32 %v10055, %v10292
      %v10294 = vrcp.pop %v10128
      %v10295 = vmul.f32 %v10128, %v10294
      %v10296 = vsub.f32 1.0, %v10295
      %v10297 = vmul.f32 %v10294, %v10296
      %v10298 = vadd.f32 %v10294, %v10297
      %vm10299 = vweird.f32 %v10128
      %vm10300 = vweird.f32 %v10294
      %vm10301 = vmor %vm10299, %vm10300
      %v10302 = vsel %vm10301, %v10294, %v10298
      %v10303 = vand.u32 2147483647, %v10128
      %vm10304 = vcmp.eq.f32.partialorder %v10303, 8.507059e+37
      %v10305 = vand.u32 %v10128, 2147483648
      %v10306 = vor.u32 1.1754944e-38, %v10305
      %v10307 = vsel %vm10304, %v10306, %v10302
      %v10308 = vmul.f32 %v10057, %v10307
      %v10309 = vrcp.pop %v10131
      %v10310 = vmul.f32 %v10131, %v10309
      %v10311 = vsub.f32 1.0, %v10310
      %v10312 = vmul.f32 %v10309, %v10311
      %v10313 = vadd.f32 %v10309, %v10312
      %vm10314 = vweird.f32 %v10131
      %vm10315 = vweird.f32 %v10309
      %vm10316 = vmor %vm10314, %vm10315
      %v10317 = vsel %vm10316, %v10309, %v10313
      %v10318 = vand.u32 2147483647, %v10131
      %vm10319 = vcmp.eq.f32.partialorder %v10318, 8.507059e+37
      %v10320 = vand.u32 %v10131, 2147483648
      %v10321 = vor.u32 1.1754944e-38, %v10320
      %v10322 = vsel %vm10319, %v10321, %v10317
      %v10323 = vmul.f32 %v10059, %v10322
      %v10324 = vrcp.pop %v10134
      %v10325 = vmul.f32 %v10134, %v10324
      %v10326 = vsub.f32 1.0, %v10325
      %v10327 = vmul.f32 %v10324, %v10326
      %v10328 = vadd.f32 %v10324, %v10327
      %vm10329 = vweird.f32 %v10134
      %vm10330 = vweird.f32 %v10324
      %vm10331 = vmor %vm10329, %vm10330
      %v10332 = vsel %vm10331, %v10324, %v10328
      %v10333 = vand.u32 2147483647, %v10134
      %vm10334 = vcmp.eq.f32.partialorder %v10333, 8.507059e+37
      %v10335 = vand.u32 %v10134, 2147483648
      %v10336 = vor.u32 1.1754944e-38, %v10335
      %v10337 = vsel %vm10334, %v10336, %v10332
      %v10338 = vmul.f32 %v10061, %v10337
      %v10339 = vrcp.pop %v10137
      %v10340 = vmul.f32 %v10137, %v10339
      %v10341 = vsub.f32 1.0, %v10340
      %v10342 = vmul.f32 %v10339, %v10341
      %v10343 = vadd.f32 %v10339, %v10342
      %vm10344 = vweird.f32 %v10137
      %vm10345 = vweird.f32 %v10339
      %vm10346 = vmor %vm10344, %vm10345
      %v10347 = vsel %vm10346, %v10339, %v10343
      %v10348 = vand.u32 2147483647, %v10137
      %vm10349 = vcmp.eq.f32.partialorder %v10348, 8.507059e+37
      %v10350 = vand.u32 %v10137, 2147483648
      %v10351 = vor.u32 1.1754944e-38, %v10350
      %v10352 = vsel %vm10349, %v10351, %v10347
      %v10353 = vmul.f32 %v10063, %v10352
      %v10354 = vrcp.pop %v10140
      %v10355 = vmul.f32 %v10140, %v10354
      %v10356 = vsub.f32 1.0, %v10355
      %v10357 = vmul.f32 %v10354, %v10356
      %v10358 = vadd.f32 %v10354, %v10357
      %vm10359 = vweird.f32 %v10140
      %vm10360 = vweird.f32 %v10354
      %vm10361 = vmor %vm10359, %vm10360
      %v10362 = vsel %vm10361, %v10354, %v10358
      %v10363 = vand.u32 2147483647, %v10140
      %vm10364 = vcmp.eq.f32.partialorder %v10363, 8.507059e+37
      %v10365 = vand.u32 %v10140, 2147483648
      %v10366 = vor.u32 1.1754944e-38, %v10365
      %v10367 = vsel %vm10364, %v10366, %v10362
      %v10368 = vmul.f32 %v10065, %v10367
      %v10369 = vrcp.pop %v10143
      %v10370 = vmul.f32 %v10143, %v10369
      %v10371 = vsub.f32 1.0, %v10370
      %v10372 = vmul.f32 %v10369, %v10371
      %v10373 = vadd.f32 %v10369, %v10372
      %vm10374 = vweird.f32 %v10143
      %vm10375 = vweird.f32 %v10369
      %vm10376 = vmor %vm10374, %vm10375
      %v10377 = vsel %vm10376, %v10369, %v10373
      %v10378 = vand.u32 2147483647, %v10143
      %vm10379 = vcmp.eq.f32.partialorder %v10378, 8.507059e+37
      %v10380 = vand.u32 %v10143, 2147483648
      %v10381 = vor.u32 1.1754944e-38, %v10380
      %v10382 = vsel %vm10379, %v10381, %v10377
      %v10383 = vmul.f32 %v10067, %v10382
      %v10384 = vrcp.pop %v10146
      %v10385 = vmul.f32 %v10146, %v10384
      %v10386 = vsub.f32 1.0, %v10385
      %v10387 = vmul.f32 %v10384, %v10386
      %v10388 = vadd.f32 %v10384, %v10387
      %vm10389 = vweird.f32 %v10146
      %vm10390 = vweird.f32 %v10384
      %vm10391 = vmor %vm10389, %vm10390
      %v10392 = vsel %vm10391, %v10384, %v10388
      %v10393 = vand.u32 2147483647, %v10146
      %vm10394 = vcmp.eq.f32.partialorder %v10393, 8.507059e+37
      %v10395 = vand.u32 %v10146, 2147483648
      %v10396 = vor.u32 1.1754944e-38, %v10395
      %v10397 = vsel %vm10394, %v10396, %v10392
      %v10398 = vmul.f32 %v10069, %v10397
      %v10399 = vrcp.pop %v10149
      %v10400 = vmul.f32 %v10149, %v10399
      %v10401 = vsub.f32 1.0, %v10400
      %v10402 = vmul.f32 %v10399, %v10401
      %v10403 = vadd.f32 %v10399, %v10402
      %vm10404 = vweird.f32 %v10149
      %vm10405 = vweird.f32 %v10399
      %vm10406 = vmor %vm10404, %vm10405
      %v10407 = vsel %vm10406, %v10399, %v10403
      %v10408 = vand.u32 2147483647, %v10149
      %vm10409 = vcmp.eq.f32.partialorder %v10408, 8.507059e+37
      %v10410 = vand.u32 %v10149, 2147483648
      %v10411 = vor.u32 1.1754944e-38, %v10410
      %v10412 = vsel %vm10409, %v10411, %v10407
      %v10413 = vmul.f32 %v10071, %v10412
      %v10414 = vrcp.pop %v10152
      %v10415 = vmul.f32 %v10152, %v10414
      %v10416 = vsub.f32 1.0, %v10415
      %v10417 = vmul.f32 %v10414, %v10416
      %v10418 = vadd.f32 %v10414, %v10417
      %vm10419 = vweird.f32 %v10152
      %vm10420 = vweird.f32 %v10414
      %vm10421 = vmor %vm10419, %vm10420
      %v10422 = vsel %vm10421, %v10414, %v10418
      %v10423 = vand.u32 2147483647, %v10152
      %vm10424 = vcmp.eq.f32.partialorder %v10423, 8.507059e+37
      %v10425 = vand.u32 %v10152, 2147483648
      %v10426 = vor.u32 1.1754944e-38, %v10425
      %v10427 = vsel %vm10424, %v10426, %v10422
      %v10428 = vmul.f32 %v10073, %v10427
      %v10429 = vrcp.pop %v10155
      %v10430 = vmul.f32 %v10155, %v10429
      %v10431 = vsub.f32 1.0, %v10430
      %v10432 = vmul.f32 %v10429, %v10431
      %v10433 = vadd.f32 %v10429, %v10432
      %vm10434 = vweird.f32 %v10155
      %vm10435 = vweird.f32 %v10429
      %vm10436 = vmor %vm10434, %vm10435
      %v10437 = vsel %vm10436, %v10429, %v10433
      %v10438 = vand.u32 2147483647, %v10155
      %vm10439 = vcmp.eq.f32.partialorder %v10438, 8.507059e+37
      %v10440 = vand.u32 %v10155, 2147483648
      %v10441 = vor.u32 1.1754944e-38, %v10440
      %v10442 = vsel %vm10439, %v10441, %v10437
      %v10443 = vmul.f32 %v10075, %v10442
      %v10444 = vrcp.pop %v10158
      %v10445 = vmul.f32 %v10158, %v10444
      %v10446 = vsub.f32 1.0, %v10445
      %v10447 = vmul.f32 %v10444, %v10446
      %v10448 = vadd.f32 %v10444, %v10447
      %vm10449 = vweird.f32 %v10158
      %vm10450 = vweird.f32 %v10444
      %vm10451 = vmor %vm10449, %vm10450
      %v10452 = vsel %vm10451, %v10444, %v10448
      %v10453 = vand.u32 2147483647, %v10158
      %vm10454 = vcmp.eq.f32.partialorder %v10453, 8.507059e+37
      %v10455 = vand.u32 %v10158, 2147483648
      %v10456 = vor.u32 1.1754944e-38, %v10455
      %v10457 = vsel %vm10454, %v10456, %v10452
      %v10458 = vmul.f32 %v10077, %v10457
      %v10459 = vrcp.pop %v10161
      %v10460 = vmul.f32 %v10161, %v10459
      %v10461 = vsub.f32 1.0, %v10460
      %v10462 = vmul.f32 %v10459, %v10461
      %v10463 = vadd.f32 %v10459, %v10462
      %vm10464 = vweird.f32 %v10161
      %vm10465 = vweird.f32 %v10459
      %vm10466 = vmor %vm10464, %vm10465
      %v10467 = vsel %vm10466, %v10459, %v10463
      %v10468 = vand.u32 2147483647, %v10161
      %vm10469 = vcmp.eq.f32.partialorder %v10468, 8.507059e+37
      %v10470 = vand.u32 %v10161, 2147483648
      %v10471 = vor.u32 1.1754944e-38, %v10470
      %v10472 = vsel %vm10469, %v10471, %v10467
      %v10473 = vmul.f32 %v10079, %v10472
      %v10474 = vrcp.pop %v10164
      %v10475 = vmul.f32 %v10164, %v10474
      %v10476 = vsub.f32 1.0, %v10475
      %v10477 = vmul.f32 %v10474, %v10476
      %v10478 = vadd.f32 %v10474, %v10477
      %vm10479 = vweird.f32 %v10164
      %vm10480 = vweird.f32 %v10474
      %vm10481 = vmor %vm10479, %vm10480
      %v10482 = vsel %vm10481, %v10474, %v10478
      %v10483 = vand.u32 2147483647, %v10164
      %vm10484 = vcmp.eq.f32.partialorder %v10483, 8.507059e+37
      %v10485 = vand.u32 %v10164, 2147483648
      %v10486 = vor.u32 1.1754944e-38, %v10485
      %v10487 = vsel %vm10484, %v10486, %v10482
      %v10488 = vmul.f32 %v10081, %v10487
      %v10489 = vrcp.pop %v10167
      %v10490 = vmul.f32 %v10167, %v10489
      %v10491 = vsub.f32 1.0, %v10490
      %v10492 = vmul.f32 %v10489, %v10491
      %v10493 = vadd.f32 %v10489, %v10492
      %vm10494 = vweird.f32 %v10167
      %vm10495 = vweird.f32 %v10489
      %vm10496 = vmor %vm10494, %vm10495
      %v10497 = vsel %vm10496, %v10489, %v10493
      %v10498 = vand.u32 2147483647, %v10167
      %vm10499 = vcmp.eq.f32.partialorder %v10498, 8.507059e+37
      %v10500 = vand.u32 %v10167, 2147483648
      %v10501 = vor.u32 1.1754944e-38, %v10500
      %v10502 = vsel %vm10499, %v10501, %v10497
      %v10503 = vmul.f32 %v10083, %v10502
      %v10504 = vrcp.pop %v10170
      %v10505 = vmul.f32 %v10170, %v10504
      %v10506 = vsub.f32 1.0, %v10505
      %v10507 = vmul.f32 %v10504, %v10506
      %v10508 = vadd.f32 %v10504, %v10507
      %vm10509 = vweird.f32 %v10170
      %vm10510 = vweird.f32 %v10504
      %vm10511 = vmor %vm10509, %vm10510
      %v10512 = vsel %vm10511, %v10504, %v10508
      %v10513 = vand.u32 2147483647, %v10170
      %vm10514 = vcmp.eq.f32.partialorder %v10513, 8.507059e+37
      %v10515 = vand.u32 %v10170, 2147483648
      %v10516 = vor.u32 1.1754944e-38, %v10515
      %v10517 = vsel %vm10514, %v10516, %v10512
      %v10518 = vmul.f32 %v10085, %v10517
      %v10519 = vrcp.pop %v10173
      %v10520 = vmul.f32 %v10173, %v10519
      %v10521 = vsub.f32 1.0, %v10520
      %v10522 = vmul.f32 %v10519, %v10521
      %v10523 = vadd.f32 %v10519, %v10522
      %vm10524 = vweird.f32 %v10173
      %vm10525 = vweird.f32 %v10519
      %vm10526 = vmor %vm10524, %vm10525
      %v10527 = vsel %vm10526, %v10519, %v10523
      %v10528 = vand.u32 2147483647, %v10173
      %vm10529 = vcmp.eq.f32.partialorder %v10528, 8.507059e+37
      %v10530 = vand.u32 %v10173, 2147483648
      %v10531 = vor.u32 1.1754944e-38, %v10530
      %v10532 = vsel %vm10529, %v10531, %v10527
      %v10533 = vmul.f32 %v10087, %v10532
      %v10534 = vrcp.pop %v10176
      %v10535 = vmul.f32 %v10176, %v10534
      %v10536 = vsub.f32 1.0, %v10535
      %v10537 = vmul.f32 %v10534, %v10536
      %v10538 = vadd.f32 %v10534, %v10537
      %vm10539 = vweird.f32 %v10176
      %vm10540 = vweird.f32 %v10534
      %vm10541 = vmor %vm10539, %vm10540
      %v10542 = vsel %vm10541, %v10534, %v10538
      %v10543 = vand.u32 2147483647, %v10176
      %vm10544 = vcmp.eq.f32.partialorder %v10543, 8.507059e+37
      %v10545 = vand.u32 %v10176, 2147483648
      %v10546 = vor.u32 1.1754944e-38, %v10545
      %v10547 = vsel %vm10544, %v10546, %v10542
      %v10548 = vmul.f32 %v10089, %v10547
      %v10549 = vrcp.pop %v10179
      %v10550 = vmul.f32 %v10179, %v10549
      %v10551 = vsub.f32 1.0, %v10550
      %v10552 = vmul.f32 %v10549, %v10551
      %v10553 = vadd.f32 %v10549, %v10552
      %vm10554 = vweird.f32 %v10179
      %vm10555 = vweird.f32 %v10549
      %vm10556 = vmor %vm10554, %vm10555
      %v10557 = vsel %vm10556, %v10549, %v10553
      %v10558 = vand.u32 2147483647, %v10179
      %vm10559 = vcmp.eq.f32.partialorder %v10558, 8.507059e+37
      %v10560 = vand.u32 %v10179, 2147483648
      %v10561 = vor.u32 1.1754944e-38, %v10560
      %v10562 = vsel %vm10559, %v10561, %v10557
      %v10563 = vmul.f32 %v10091, %v10562
      %v10564 = vrcp.pop %v10182
      %v10565 = vmul.f32 %v10182, %v10564
      %v10566 = vsub.f32 1.0, %v10565
      %v10567 = vmul.f32 %v10564, %v10566
      %v10568 = vadd.f32 %v10564, %v10567
      %vm10569 = vweird.f32 %v10182
      %vm10570 = vweird.f32 %v10564
      %vm10571 = vmor %vm10569, %vm10570
      %v10572 = vsel %vm10571, %v10564, %v10568
      %v10573 = vand.u32 2147483647, %v10182
      %vm10574 = vcmp.eq.f32.partialorder %v10573, 8.507059e+37
      %v10575 = vand.u32 %v10182, 2147483648
      %v10576 = vor.u32 1.1754944e-38, %v10575
      %v10577 = vsel %vm10574, %v10576, %v10572
      %v10578 = vmul.f32 %v10093, %v10577
      %v10579 = vrcp.pop %v10185
      %v10580 = vmul.f32 %v10185, %v10579
      %v10581 = vsub.f32 1.0, %v10580
      %v10582 = vmul.f32 %v10579, %v10581
      %v10583 = vadd.f32 %v10579, %v10582
      %vm10584 = vweird.f32 %v10185
      %vm10585 = vweird.f32 %v10579
      %vm10586 = vmor %vm10584, %vm10585
      %v10587 = vsel %vm10586, %v10579, %v10583
      %v10588 = vand.u32 2147483647, %v10185
      %vm10589 = vcmp.eq.f32.partialorder %v10588, 8.507059e+37
      %v10590 = vand.u32 %v10185, 2147483648
      %v10591 = vor.u32 1.1754944e-38, %v10590
      %v10592 = vsel %vm10589, %v10591, %v10587
      %v10593 = vmul.f32 %v10095, %v10592
      %v10594 = vrcp.pop %v10188
      %v10595 = vmul.f32 %v10188, %v10594
      %v10596 = vsub.f32 1.0, %v10595
      %v10597 = vmul.f32 %v10594, %v10596
      %v10598 = vadd.f32 %v10594, %v10597
      %vm10599 = vweird.f32 %v10188
      %vm10600 = vweird.f32 %v10594
      %vm10601 = vmor %vm10599, %vm10600
      %v10602 = vsel %vm10601, %v10594, %v10598
      %v10603 = vand.u32 2147483647, %v10188
      %vm10604 = vcmp.eq.f32.partialorder %v10603, 8.507059e+37
      %v10605 = vand.u32 %v10188, 2147483648
      %v10606 = vor.u32 1.1754944e-38, %v10605
      %v10607 = vsel %vm10604, %v10606, %v10602
      %v10608 = vmul.f32 %v10097, %v10607
      %v10609 = vrcp.pop %v10191
      %v10610 = vmul.f32 %v10191, %v10609
      %v10611 = vsub.f32 1.0, %v10610
      %v10612 = vmul.f32 %v10609, %v10611
      %v10613 = vadd.f32 %v10609, %v10612
      %vm10614 = vweird.f32 %v10191
      %vm10615 = vweird.f32 %v10609
      %vm10616 = vmor %vm10614, %vm10615
      %v10617 = vsel %vm10616, %v10609, %v10613
      %v10618 = vand.u32 2147483647, %v10191
      %vm10619 = vcmp.eq.f32.partialorder %v10618, 8.507059e+37
      %v10620 = vand.u32 %v10191, 2147483648
      %v10621 = vor.u32 1.1754944e-38, %v10620
      %v10622 = vsel %vm10619, %v10621, %v10617
      %v10623 = vmul.f32 %v10099, %v10622
      %v10624 = vrcp.pop %v10194
      %v10625 = vmul.f32 %v10194, %v10624
      %v10626 = vsub.f32 1.0, %v10625
      %v10627 = vmul.f32 %v10624, %v10626
      %v10628 = vadd.f32 %v10624, %v10627
      %vm10629 = vweird.f32 %v10194
      %vm10630 = vweird.f32 %v10624
      %vm10631 = vmor %vm10629, %vm10630
      %v10632 = vsel %vm10631, %v10624, %v10628
      %v10633 = vand.u32 2147483647, %v10194
      %vm10634 = vcmp.eq.f32.partialorder %v10633, 8.507059e+37
      %v10635 = vand.u32 %v10194, 2147483648
      %v10636 = vor.u32 1.1754944e-38, %v10635
      %v10637 = vsel %vm10634, %v10636, %v10632
      %v10638 = vmul.f32 %v10101, %v10637
      %v10639 = vrcp.pop %v10197
      %v10640 = vmul.f32 %v10197, %v10639
      %v10641 = vsub.f32 1.0, %v10640
      %v10642 = vmul.f32 %v10639, %v10641
      %v10643 = vadd.f32 %v10639, %v10642
      %vm10644 = vweird.f32 %v10197
      %vm10645 = vweird.f32 %v10639
      %vm10646 = vmor %vm10644, %vm10645
      %v10647 = vsel %vm10646, %v10639, %v10643
      %v10648 = vand.u32 2147483647, %v10197
      %vm10649 = vcmp.eq.f32.partialorder %v10648, 8.507059e+37
      %v10650 = vand.u32 %v10197, 2147483648
      %v10651 = vor.u32 1.1754944e-38, %v10650
      %v10652 = vsel %vm10649, %v10651, %v10647
      %v10653 = vmul.f32 %v10103, %v10652
      %v10654 = vrcp.pop %v10200
      %v10655 = vmul.f32 %v10200, %v10654
      %v10656 = vsub.f32 1.0, %v10655
      %v10657 = vmul.f32 %v10654, %v10656
      %v10658 = vadd.f32 %v10654, %v10657
      %vm10659 = vweird.f32 %v10200
      %vm10660 = vweird.f32 %v10654
      %vm10661 = vmor %vm10659, %vm10660
      %v10662 = vsel %vm10661, %v10654, %v10658
      %v10663 = vand.u32 2147483647, %v10200
      %vm10664 = vcmp.eq.f32.partialorder %v10663, 8.507059e+37
      %v10665 = vand.u32 %v10200, 2147483648
      %v10666 = vor.u32 1.1754944e-38, %v10665
      %v10667 = vsel %vm10664, %v10666, %v10662
      %v10668 = vmul.f32 %v10105, %v10667
      %v10669 = vrcp.pop %v10203
      %v10670 = vmul.f32 %v10203, %v10669
      %v10671 = vsub.f32 1.0, %v10670
      %v10672 = vmul.f32 %v10669, %v10671
      %v10673 = vadd.f32 %v10669, %v10672
      %vm10674 = vweird.f32 %v10203
      %vm10675 = vweird.f32 %v10669
      %vm10676 = vmor %vm10674, %vm10675
      %v10677 = vsel %vm10676, %v10669, %v10673
      %v10678 = vand.u32 2147483647, %v10203
      %vm10679 = vcmp.eq.f32.partialorder %v10678, 8.507059e+37
      %v10680 = vand.u32 %v10203, 2147483648
      %v10681 = vor.u32 1.1754944e-38, %v10680
      %v10682 = vsel %vm10679, %v10681, %v10677
      %v10683 = vmul.f32 %v10107, %v10682
      %10684 = vst.msk [vmem:[%s445] sm:$0xff] %vm9915, %v10218
      %10685 = vst.msk [vmem:[%s445 + $0x8] sm:$0xff] %vm9915, %v10233
      %10686 = vst.msk [vmem:[%s445 + $0x10] sm:$0xff] %vm9915, %v10248
      %10687 = vst.msk [vmem:[%s445 + $0x18] sm:$0xff] %vm9915, %v10263
      %10688 = vst.msk [vmem:[%s445 + $0x20] sm:$0xff] %vm9915, %v10278
      %10689 = vst.msk [vmem:[%s445 + $0x28] sm:$0xff] %vm9915, %v10293
      %10690 = vst.msk [vmem:[%s445 + $0x30] sm:$0xff] %vm9915, %v10308
      %10691 = vst.msk [vmem:[%s445 + $0x38] sm:$0xff] %vm9915, %v10323
      %10692 = vst.msk [vmem:[%s445 + $0x40] sm:$0xff] %vm9915, %v10338
      %10693 = vst.msk [vmem:[%s445 + $0x48] sm:$0xff] %vm9915, %v10353
      %10694 = vst.msk [vmem:[%s445 + $0x50] sm:$0xff] %vm9915, %v10368
      %10695 = vst.msk [vmem:[%s445 + $0x58] sm:$0xff] %vm9915, %v10383
      %10696 = vst.msk [vmem:[%s445 + $0x60] sm:$0xff] %vm9915, %v10398
      %10697 = vst.msk [vmem:[%s445 + $0x68] sm:$0xff] %vm9915, %v10413
      %10698 = vst.msk [vmem:[%s445 + $0x70] sm:$0xff] %vm9915, %v10428
      %10699 = vst.msk [vmem:[%s445 + $0x78] sm:$0xff] %vm9915, %v10443
      %10700 = vst.msk [vmem:[%s445 + $0x80] sm:$0xff] %vm9915, %v10458
      %10701 = vst.msk [vmem:[%s445 + $0x88] sm:$0xff] %vm9915, %v10473
      %10702 = vst.msk [vmem:[%s445 + $0x90] sm:$0xff] %vm9915, %v10488
      %10703 = vst.msk [vmem:[%s445 + $0x98] sm:$0xff] %vm9915, %v10503
      %10704 = vst.msk [vmem:[%s445 + $0xa0] sm:$0xff] %vm9915, %v10518
      %10705 = vst.msk [vmem:[%s445 + $0xa8] sm:$0xff] %vm9915, %v10533
      %10706 = vst.msk [vmem:[%s445 + $0xb0] sm:$0xff] %vm9915, %v10548
      %10707 = vst.msk [vmem:[%s445 + $0xb8] sm:$0xff] %vm9915, %v10563
      %10708 = vst.msk [vmem:[%s445 + $0xc0] sm:$0xff] %vm9915, %v10578
      %10709 = vst.msk [vmem:[%s445 + $0xc8] sm:$0xff] %vm9915, %v10593
      %10710 = vst.msk [vmem:[%s445 + $0xd0] sm:$0xff] %vm9915, %v10608
      %10711 = vst.msk [vmem:[%s445 + $0xd8] sm:$0xff] %vm9915, %v10623
      %10712 = vst.msk [vmem:[%s445 + $0xe0] sm:$0xff] %vm9915, %v10638
      %10713 = vst.msk [vmem:[%s445 + $0xe8] sm:$0xff] %vm9915, %v10653
      %10714 = vst.msk [vmem:[%s445 + $0xf0] sm:$0xff] %vm9915, %v10668
      %10715 = vst.msk [vmem:[%s445 + $0xf8] sm:$0xff] %vm9915, %v10683
      %s10716 = smul.u32 32, %s24
      %p10717 = scmp.lt.s32.totalorder %s10716, 63
      %s10718 = scalar_select %p10717, %s10716, 63
      %s10719 = smul.addr %s10718, 8
      %s10720 = scalar_lea.vmem %s13, %s10719
      // Predicated region
      $region73: #{tpu_custom_call.1} parent=71 // pred_check
        %p10721 = pneg %p320
      $region74: #{tpu_custom_call.1} parent=71 // pred_check_branch
        %10723 = sbr.rel (%p10721) target = $region76
      $region75: #{tpu_custom_call.1} parent=71 // pred_region
        %s10724 = smul.u32 32, %s24
      $region76: #{tpu_custom_call.1} parent=71 // pred_fallthru
        _
    $region72: #{tpu_custom_call.1} parent=5 // pred_fallthru
      _
    %p10725 = scmp.le.s32.totalorder 2, %s19
    // Predicated region
    $region77: #{tpu_custom_call.1} parent=5 // pred_check
      %p10726 = pneg %p10725
    $region78: #{tpu_custom_call.1} parent=5 // pred_check_branch
      %10728 = sbr.rel (%p10726) target = $region80
    $region79: #{tpu_custom_call.1} parent=5 // pred_region
      %s10729 = ssub.s32 %s19, 2
      // Predicated region
      $region81: #{tpu_custom_call.1} parent=79 // pred_check
        %p10730 = pneg %p326
      $region82: #{tpu_custom_call.1} parent=79 // pred_check_branch
        %10732 = sbr.rel (%p10730) target = $region84
      $region83: #{tpu_custom_call.1} parent=79 // pred_region
        %s10733 = smul.u32 32, %s25
        %p10734 = scmp.lt.s32.totalorder %s10733, 63
        %s10735 = scalar_select %p10734, %s10733, 63
        %s10736 = smul.addr %s10735, 8
        %s10737 = scalar_lea.vmem %s13, %s10736
      $region84: #{tpu_custom_call.1} parent=79 // pred_fallthru
        _
    $region80: #{tpu_custom_call.1} parent=5 // pred_fallthru
      _
  $region6: #{tpu_custom_call.1} parent=0 // loop_footer
    %s23 = sadd.s32 1, %s19
  $region7: #{tpu_custom_call.1} parent=0 // loop_footer_branch
    %18 = sbr.rel target = $region3
  $region8: #{tpu_custom_call.1} parent=0 // loop_exit
    _

</llo_original>
